<compile_context>
chip_gen: v6e
topology: v6e:2x2x1
jax: 0.10.0
libtpu: 0.0.40
codegen_flags: <defaults>
</compile_context>

<pallas_src>
import jax
import jax.numpy as jnp
from jax.experimental import pallas as pl
from jax.experimental.pallas import tpu as pltpu

K = 3     # conv kernel size (stride=1, padding=1)
C1 = 32   # conv1 out channels
C2 = 64   # conv2 out channels
H = 128   # fc1 hidden width


def _round_up(v, m):
    return ((v + m - 1) // m) * m


def convdqn_kernel(x_ref, cw1_ref, cb1_ref, cw2_ref, cb2_ref,
                   fw1_ref, fb1_ref, fw2_ref, fb2_ref, out_ref,
                   h1_ref, h2_ref):
    """ConvDQN forward for one batch tile (batch on the lane axis).

    x_ref  : (T+2, Cin_p, Bt) bf16  zero time-halo input, batch on lanes
    cw1_ref: (3, 32, Cin_p)   bf16  conv1 taps (W[k] is a (Cout, Cin) LHS)
    cw2_ref: (3, 64, 32)      bf16  conv2 taps
    fw1_ref: (128, T*64)      bf16  fc1, columns ordered (t, c)
    fw2_ref: (out_p, 128)     bf16  fc2, rows padded to a multiple of 8
    biases : (F, 1)           f32
    out_ref: (out_p, Bt)      f32
    h1_ref : (T+2, 32, Bt)    bf16  conv1 activations + zero halo (scratch)
    h2_ref : (T*64, Bt)       bf16  conv2 activations, (t, c)-major (scratch)
    """
    T = x_ref.shape[0] - 2
    Bt = x_ref.shape[-1]
    f32 = jnp.float32

    # Zero halo rows (conv2 reads h1 at t-1 / t+1 across the window edges).
    h1_ref[0] = jnp.zeros((C1, Bt), h1_ref.dtype)
    h1_ref[T + 1] = jnp.zeros((C1, Bt), h1_ref.dtype)

    # conv1 + ReLU:  h1[t] = relu(sum_k W1[k] @ x[t+k] + b1)      -> (32, Bt)
    # T is small & static: the Python loop fully unrolls at trace time.
    for t in range(T):
        a = jnp.dot(cw1_ref[0], x_ref[t], preferred_element_type=f32)
        a = a + jnp.dot(cw1_ref[1], x_ref[t + 1], preferred_element_type=f32)
        a = a + jnp.dot(cw1_ref[2], x_ref[t + 2], preferred_element_type=f32)
        h1_ref[t + 1] = jnp.maximum(a + cb1_ref[...], 0.0).astype(h1_ref.dtype)

    # conv2 + ReLU:  h2[t] = relu(sum_k W2[k] @ h1[t-1+k] + b2)   -> (64, Bt)
    # stored at sublane offset t*64 so fc1 contracts the whole T*64 axis at once.
    for t in range(T):
        a = jnp.dot(cw2_ref[0], h1_ref[t], preferred_element_type=f32)
        a = a + jnp.dot(cw2_ref[1], h1_ref[t + 1], preferred_element_type=f32)
        a = a + jnp.dot(cw2_ref[2], h1_ref[t + 2], preferred_element_type=f32)
        h2_ref[pl.ds(t * C2, C2), :] = (
            jnp.maximum(a + cb2_ref[...], 0.0).astype(h2_ref.dtype))

    # fc1: one K = T*64 matmul (2 MXU passes instead of T quarter-depth ones).
    z = jnp.dot(fw1_ref[...], h2_ref[...], preferred_element_type=f32)
    z = jnp.maximum(z + fb1_ref[...], 0.0).astype(jnp.bfloat16)
    # fc2: lane-dense (out_p, Bt) output.
    o = jnp.dot(fw2_ref[...], z, preferred_element_type=f32) + fb2_ref[...]
    out_ref[...] = o.astype(out_ref.dtype)


def convdqn_forward(x, kernel_params, out_dim, *, block_b=1024):
    """x: (B, T, Cin) float32 -> (B, out_dim) float32."""
    B, T, Cin = x.shape
    cw1, cb1, cw2, cb2, fw1, fb1, fw2, fb2 = kernel_params
    cin_p = cw1.shape[-1]
    out_p = fw2.shape[0]

    # Batch tile on the lane axis: multiple of 128, capped by block_b.
    # (On v7x keep block_b <= ~1024-2048 so >=2 grid steps feed both TCs.)
    b_t = min(_round_up(block_b, 128), _round_up(B, 128))
    b_pad = _round_up(B, b_t)

    # Time-major, batch-on-lanes input with a zero time halo (in-kernel im2col).
    xt = jnp.transpose(x, (1, 2, 0)).astype(jnp.bfloat16)          # (T, Cin, B)
    xt = jnp.pad(xt, ((1, 1), (0, cin_p - Cin), (0, b_pad - B)))   # (T+2, Cin_p, B_pad)

    def full(a):
        return pl.BlockSpec(a.shape, lambda b, n=a.ndim: (0,) * n)

    grid_spec = pltpu.PrefetchScalarGridSpec(
        num_scalar_prefetch=0,
        grid=(b_pad // b_t,),
        in_specs=[
            pl.BlockSpec((T + 2, cin_p, b_t), lambda b: (0, 0, b)),  # input slab
            full(cw1), full(cb1), full(cw2), full(cb2),
            full(fw1), full(fb1), full(fw2), full(fb2),
        ],
        out_specs=pl.BlockSpec((out_p, b_t), lambda b: (0, b)),
        scratch_shapes=[
            pltpu.VMEM((T + 2, C1, b_t), jnp.bfloat16),   # h1 with zero halo
            pltpu.VMEM((T * C2, b_t), jnp.bfloat16),      # h2, (t, c)-major
        ],
    )
    out = pl.pallas_call(
        convdqn_kernel,
        out_shape=jax.ShapeDtypeStruct((out_p, b_pad), jnp.float32),
        grid_spec=grid_spec,
        compiler_params=pltpu.CompilerParams(
            dimension_semantics=("parallel",)),
    )(xt, cw1, cb1, cw2, cb2, fw1, fb1, fw2, fb2)
    return jnp.transpose(out[:out_dim, :B])                       # (B, out_dim)


def init_torch_style_params(key, input_dim, output_dim, window_size):
    """Deterministic synthetic params in PyTorch shapes."""
    ks = jax.random.split(key, 8)
    u = lambda k, shape, bound: jax.random.uniform(
        k, shape, jnp.float32, -bound, bound)
    w_c1 = u(ks[0], (C1, input_dim, K), 1.0 / (input_dim * K) ** 0.5)
    b_c1 = u(ks[1], (C1,), 1.0 / (input_dim * K) ** 0.5)
    w_c2 = u(ks[2], (C2, C1, K), 1.0 / (C1 * K) ** 0.5)
    b_c2 = u(ks[3], (C2,), 1.0 / (C1 * K) ** 0.5)
    w_f1 = u(ks[4], (H, C2 * window_size), 1.0 / (C2 * window_size) ** 0.5)
    b_f1 = u(ks[5], (H,), 1.0 / (C2 * window_size) ** 0.5)
    w_f2 = u(ks[6], (output_dim, H), 1.0 / H ** 0.5)
    b_f2 = u(ks[7], (output_dim,), 1.0 / H ** 0.5)
    return w_c1, b_c1, w_c2, b_c2, w_f1, b_f1, w_f2, b_f2


def repack_params(torch_params, window_size):
    """Re-layout PyTorch-shaped weights for the batch-on-lanes kernel."""
    w_c1, b_c1, w_c2, b_c2, w_f1, b_f1, w_f2, b_f2 = torch_params
    T = window_size
    out_dim = w_f2.shape[0]
    cin = w_c1.shape[1]
    cin_p = _round_up(cin, 8)
    bf = jnp.bfloat16
    # Conv taps as (k, Cout, Cin): each tap is the LHS of W[k] @ X[t+k].
    cw1 = jnp.zeros((K, C1, cin_p), bf).at[:, :, :cin].set(
        jnp.transpose(w_c1, (2, 0, 1)).astype(bf))
    cw2 = jnp.transpose(w_c2, (2, 0, 1)).astype(bf)                # (3, 64, 32)
    # PyTorch NCW flatten indexes columns as c*T + t; kernel h2 rows are t*64 + c.
    fw1 = jnp.transpose(w_f1.reshape(H, C2, T), (0, 2, 1)).reshape(H, T * C2)
    fw1 = fw1.astype(bf)                                           # (128, T*64)
    # fc2: pad the action rows to a sublane multiple (output stays lane-dense).
    out_p = _round_up(out_dim, 8)
    fw2 = jnp.zeros((out_p, H), bf).at[:out_dim].set(w_f2.astype(bf))
    fb2 = jnp.zeros((out_p, 1), jnp.float32).at[:out_dim, 0].set(b_f2)
    return (cw1, b_c1.reshape(-1, 1), cw2, b_c2.reshape(-1, 1),
            fw1, b_f1.reshape(-1, 1), fw2, fb2)


def reference_forward(x, torch_params):
    """Pure-JAX f32 replica of the PyTorch forward (x: (B, T, Cin))."""
    w_c1, b_c1, w_c2, b_c2, w_f1, b_f1, w_f2, b_f2 = torch_params
    B, T, _ = x.shape
    h = jnp.transpose(x, (0, 2, 1))                                # NCW

    def conv1d(h_ncw, w, b):
        hp = jnp.pad(h_ncw, ((0, 0), (0, 0), (1, 1)))
        y = b[None, :, None]
        for k in range(K):
            y = y + jnp.einsum('bit,oi->bot', hp[:, :, k:k + T], w[:, :, k])
        return y

    h = jnp.maximum(conv1d(h, w_c1, b_c1), 0.0)
    h = jnp.maximum(conv1d(h, w_c2, b_c2), 0.0)                    # (B, 64, T)
    flat = h.reshape(B, -1)                                        # NCW flatten
    z = jnp.maximum(flat @ w_f1.T + b_f1, 0.0)
    return z @ w_f2.T + b_f2


if __name__ == "__main__":
    batch, window_size, input_dim, output_dim = 2, 8, 4, 3

    key = jax.random.PRNGKey(0)
    kx, kp = jax.random.split(key)
    x = jax.random.normal(kx, (batch, window_size, input_dim), jnp.float32)

    torch_params = init_torch_style_params(kp, input_dim, output_dim, window_size)
    kernel_params = repack_params(torch_params, window_size)

    out = convdqn_forward(x, kernel_params, output_dim)
    out = jax.block_until_ready(out)

    ref = reference_forward(x, torch_params)
    assert out.shape == (batch, output_dim)
    # bf16 MXU operands with f32 accumulation -> ~1e-3 abs error vs f32 ref.
    assert jnp.allclose(out, ref, rtol=2e-2, atol=2e-2), (out, ref)

    print("KERNEL_OK")
</pallas_src>

<mosaic_0001>
module attributes {stable_mosaic.version = 11 : i64} {
  func.func @convdqn_kernel(%arg0: i32, %arg1: memref<10x8x128xbf16, #tpu.memory_space<vmem>>, %arg2: memref<3x32x8xbf16, #tpu.memory_space<vmem>>, %arg3: memref<32x1xf32, #tpu.memory_space<vmem>>, %arg4: memref<3x64x32xbf16, #tpu.memory_space<vmem>>, %arg5: memref<64x1xf32, #tpu.memory_space<vmem>>, %arg6: memref<128x512xbf16, #tpu.memory_space<vmem>>, %arg7: memref<128x1xf32, #tpu.memory_space<vmem>>, %arg8: memref<8x128xbf16, #tpu.memory_space<vmem>>, %arg9: memref<8x1xf32, #tpu.memory_space<vmem>>, %arg10: memref<8x128xf32, #tpu.memory_space<vmem>>, %arg11: memref<10x32x128xbf16, #tpu.memory_space<vmem>>, %arg12: memref<512x128xbf16, #tpu.memory_space<vmem>>) attributes {dimension_semantics = [#tpu.dimension_semantics<parallel>], iteration_bounds = array<i64: 1>, scalar_prefetch = 0 : i64, scratch_operands = 2 : i64, tpu.core_type = #tpu.core_type<tc>, window_params = [{transform_indices = @transform_0, window_bounds = array<i64: 10, 8, 128>}, {pipeline_mode = #tpu.pipeline_mode<synchronous>, transform_indices = @transform_1, window_bounds = array<i64: 3, 32, 8>}, {pipeline_mode = #tpu.pipeline_mode<synchronous>, transform_indices = @transform_2, window_bounds = array<i64: 32, 1>}, {pipeline_mode = #tpu.pipeline_mode<synchronous>, transform_indices = @transform_3, window_bounds = array<i64: 3, 64, 32>}, {pipeline_mode = #tpu.pipeline_mode<synchronous>, transform_indices = @transform_4, window_bounds = array<i64: 64, 1>}, {pipeline_mode = #tpu.pipeline_mode<synchronous>, transform_indices = @transform_5, window_bounds = array<i64: 128, 512>}, {pipeline_mode = #tpu.pipeline_mode<synchronous>, transform_indices = @transform_6, window_bounds = array<i64: 128, 1>}, {pipeline_mode = #tpu.pipeline_mode<synchronous>, transform_indices = @transform_7, window_bounds = array<i64: 8, 128>}, {pipeline_mode = #tpu.pipeline_mode<synchronous>, transform_indices = @transform_8, window_bounds = array<i64: 8, 1>}, {transform_indices = @transform_9, window_bounds = array<i64: 8, 128>}]} {
    %cst = arith.constant 0.000000e+00 : bf16
    %0 = vector.broadcast %cst : bf16 to vector<32x128xbf16>
    %c0 = arith.constant 0 : index
    %c0_0 = arith.constant 0 : index
    %c0_1 = arith.constant 0 : index
    %1 = vector.load %arg11[%c0, %c0_0, %c0_1] : memref<10x32x128xbf16, #tpu.memory_space<vmem>>, vector<1x32x128xbf16>
    %2 = vector.shape_cast %1 : vector<1x32x128xbf16> to vector<32x128xbf16>
    %3 = vector.shape_cast %0 : vector<32x128xbf16> to vector<1x32x128xbf16>
    tpu.vector_store %arg11[%c0, %c0_0, %c0_1], %3 {strides = array<i32>} : memref<10x32x128xbf16, #tpu.memory_space<vmem>>, vector<1x32x128xbf16>,
    %cst_2 = arith.constant 0.000000e+00 : bf16
    %4 = vector.broadcast %cst_2 : bf16 to vector<32x128xbf16>
    %c9 = arith.constant 9 : index
    %c0_3 = arith.constant 0 : index
    %c0_4 = arith.constant 0 : index
    %5 = vector.load %arg11[%c9, %c0_3, %c0_4] : memref<10x32x128xbf16, #tpu.memory_space<vmem>>, vector<1x32x128xbf16>
    %6 = vector.shape_cast %5 : vector<1x32x128xbf16> to vector<32x128xbf16>
    %7 = vector.shape_cast %4 : vector<32x128xbf16> to vector<1x32x128xbf16>
    tpu.vector_store %arg11[%c9, %c0_3, %c0_4], %7 {strides = array<i32>} : memref<10x32x128xbf16, #tpu.memory_space<vmem>>, vector<1x32x128xbf16>,
    %c0_5 = arith.constant 0 : index
    %c0_6 = arith.constant 0 : index
    %c0_7 = arith.constant 0 : index
    %8 = vector.load %arg2[%c0_5, %c0_6, %c0_7] : memref<3x32x8xbf16, #tpu.memory_space<vmem>>, vector<1x32x8xbf16>
    %9 = vector.shape_cast %8 : vector<1x32x8xbf16> to vector<32x8xbf16>
    %c0_8 = arith.constant 0 : index
    %c0_9 = arith.constant 0 : index
    %c0_10 = arith.constant 0 : index
    %10 = vector.load %arg1[%c0_8, %c0_9, %c0_10] : memref<10x8x128xbf16, #tpu.memory_space<vmem>>, vector<1x8x128xbf16>
    %11 = vector.shape_cast %10 : vector<1x8x128xbf16> to vector<8x128xbf16>
    %cst_11 = arith.constant dense<0.000000e+00> : vector<32x128xf32>
    %12 = tpu.matmul %9, %11, %cst_11 {dimension_numbers = #tpu.dot_dimension_numbers<[1], [0], [0], [1], [0, 0, 1, 1], [], []>} : vector<32x8xbf16>, vector<8x128xbf16>, vector<32x128xf32> -> vector<32x128xf32>
    %c1 = arith.constant 1 : index
    %c0_12 = arith.constant 0 : index
    %c0_13 = arith.constant 0 : index
    %13 = vector.load %arg2[%c1, %c0_12, %c0_13] : memref<3x32x8xbf16, #tpu.memory_space<vmem>>, vector<1x32x8xbf16>
    %14 = vector.shape_cast %13 : vector<1x32x8xbf16> to vector<32x8xbf16>
    %c1_14 = arith.constant 1 : index
    %c0_15 = arith.constant 0 : index
    %c0_16 = arith.constant 0 : index
    %15 = vector.load %arg1[%c1_14, %c0_15, %c0_16] : memref<10x8x128xbf16, #tpu.memory_space<vmem>>, vector<1x8x128xbf16>
    %16 = vector.shape_cast %15 : vector<1x8x128xbf16> to vector<8x128xbf16>
    %cst_17 = arith.constant dense<0.000000e+00> : vector<32x128xf32>
    %17 = tpu.matmul %14, %16, %cst_17 {dimension_numbers = #tpu.dot_dimension_numbers<[1], [0], [0], [1], [0, 0, 1, 1], [], []>} : vector<32x8xbf16>, vector<8x128xbf16>, vector<32x128xf32> -> vector<32x128xf32>
    %18 = arith.addf %12, %17 : vector<32x128xf32>
    %c2 = arith.constant 2 : index
    %c0_18 = arith.constant 0 : index
    %c0_19 = arith.constant 0 : index
    %19 = vector.load %arg2[%c2, %c0_18, %c0_19] : memref<3x32x8xbf16, #tpu.memory_space<vmem>>, vector<1x32x8xbf16>
    %20 = vector.shape_cast %19 : vector<1x32x8xbf16> to vector<32x8xbf16>
    %c2_20 = arith.constant 2 : index
    %c0_21 = arith.constant 0 : index
    %c0_22 = arith.constant 0 : index
    %21 = vector.load %arg1[%c2_20, %c0_21, %c0_22] : memref<10x8x128xbf16, #tpu.memory_space<vmem>>, vector<1x8x128xbf16>
    %22 = vector.shape_cast %21 : vector<1x8x128xbf16> to vector<8x128xbf16>
    %cst_23 = arith.constant dense<0.000000e+00> : vector<32x128xf32>
    %23 = tpu.matmul %20, %22, %cst_23 {dimension_numbers = #tpu.dot_dimension_numbers<[1], [0], [0], [1], [0, 0, 1, 1], [], []>} : vector<32x8xbf16>, vector<8x128xbf16>, vector<32x128xf32> -> vector<32x128xf32>
    %24 = arith.addf %18, %23 : vector<32x128xf32>
    %c0_24 = arith.constant 0 : index
    %c0_25 = arith.constant 0 : index
    %25 = vector.load %arg3[%c0_24, %c0_25] : memref<32x1xf32, #tpu.memory_space<vmem>>, vector<32x1xf32>
    %26 = vector.broadcast %25 : vector<32x1xf32> to vector<32x128xf32>
    %27 = arith.addf %24, %26 : vector<32x128xf32>
    %cst_26 = arith.constant 0.000000e+00 : f32
    %28 = vector.broadcast %cst_26 : f32 to vector<32x128xf32>
    %29 = arith.maximumf %27, %28 : vector<32x128xf32>
    %30 = arith.truncf %29 : vector<32x128xf32> to vector<32x128xbf16>
    %c1_27 = arith.constant 1 : index
    %c0_28 = arith.constant 0 : index
    %c0_29 = arith.constant 0 : index
    %31 = vector.load %arg11[%c1_27, %c0_28, %c0_29] : memref<10x32x128xbf16, #tpu.memory_space<vmem>>, vector<1x32x128xbf16>
    %32 = vector.shape_cast %31 : vector<1x32x128xbf16> to vector<32x128xbf16>
    %33 = vector.shape_cast %30 : vector<32x128xbf16> to vector<1x32x128xbf16>
    tpu.vector_store %arg11[%c1_27, %c0_28, %c0_29], %33 {strides = array<i32>} : memref<10x32x128xbf16, #tpu.memory_space<vmem>>, vector<1x32x128xbf16>,
    %c0_30 = arith.constant 0 : index
    %c0_31 = arith.constant 0 : index
    %c0_32 = arith.constant 0 : index
    %34 = vector.load %arg2[%c0_30, %c0_31, %c0_32] : memref<3x32x8xbf16, #tpu.memory_space<vmem>>, vector<1x32x8xbf16>
    %35 = vector.shape_cast %34 : vector<1x32x8xbf16> to vector<32x8xbf16>
    %c1_33 = arith.constant 1 : index
    %c0_34 = arith.constant 0 : index
    %c0_35 = arith.constant 0 : index
    %36 = vector.load %arg1[%c1_33, %c0_34, %c0_35] : memref<10x8x128xbf16, #tpu.memory_space<vmem>>, vector<1x8x128xbf16>
    %37 = vector.shape_cast %36 : vector<1x8x128xbf16> to vector<8x128xbf16>
    %cst_36 = arith.constant dense<0.000000e+00> : vector<32x128xf32>
    %38 = tpu.matmul %35, %37, %cst_36 {dimension_numbers = #tpu.dot_dimension_numbers<[1], [0], [0], [1], [0, 0, 1, 1], [], []>} : vector<32x8xbf16>, vector<8x128xbf16>, vector<32x128xf32> -> vector<32x128xf32>
    %c1_37 = arith.constant 1 : index
    %c0_38 = arith.constant 0 : index
    %c0_39 = arith.constant 0 : index
    %39 = vector.load %arg2[%c1_37, %c0_38, %c0_39] : memref<3x32x8xbf16, #tpu.memory_space<vmem>>, vector<1x32x8xbf16>
    %40 = vector.shape_cast %39 : vector<1x32x8xbf16> to vector<32x8xbf16>
    %c2_40 = arith.constant 2 : index
    %c0_41 = arith.constant 0 : index
    %c0_42 = arith.constant 0 : index
    %41 = vector.load %arg1[%c2_40, %c0_41, %c0_42] : memref<10x8x128xbf16, #tpu.memory_space<vmem>>, vector<1x8x128xbf16>
    %42 = vector.shape_cast %41 : vector<1x8x128xbf16> to vector<8x128xbf16>
    %cst_43 = arith.constant dense<0.000000e+00> : vector<32x128xf32>
    %43 = tpu.matmul %40, %42, %cst_43 {dimension_numbers = #tpu.dot_dimension_numbers<[1], [0], [0], [1], [0, 0, 1, 1], [], []>} : vector<32x8xbf16>, vector<8x128xbf16>, vector<32x128xf32> -> vector<32x128xf32>
    %44 = arith.addf %38, %43 : vector<32x128xf32>
    %c2_44 = arith.constant 2 : index
    %c0_45 = arith.constant 0 : index
    %c0_46 = arith.constant 0 : index
    %45 = vector.load %arg2[%c2_44, %c0_45, %c0_46] : memref<3x32x8xbf16, #tpu.memory_space<vmem>>, vector<1x32x8xbf16>
    %46 = vector.shape_cast %45 : vector<1x32x8xbf16> to vector<32x8xbf16>
    %c3 = arith.constant 3 : index
    %c0_47 = arith.constant 0 : index
    %c0_48 = arith.constant 0 : index
    %47 = vector.load %arg1[%c3, %c0_47, %c0_48] : memref<10x8x128xbf16, #tpu.memory_space<vmem>>, vector<1x8x128xbf16>
    %48 = vector.shape_cast %47 : vector<1x8x128xbf16> to vector<8x128xbf16>
    %cst_49 = arith.constant dense<0.000000e+00> : vector<32x128xf32>
    %49 = tpu.matmul %46, %48, %cst_49 {dimension_numbers = #tpu.dot_dimension_numbers<[1], [0], [0], [1], [0, 0, 1, 1], [], []>} : vector<32x8xbf16>, vector<8x128xbf16>, vector<32x128xf32> -> vector<32x128xf32>
    %50 = arith.addf %44, %49 : vector<32x128xf32>
    %c0_50 = arith.constant 0 : index
    %c0_51 = arith.constant 0 : index
    %51 = vector.load %arg3[%c0_50, %c0_51] : memref<32x1xf32, #tpu.memory_space<vmem>>, vector<32x1xf32>
    %52 = vector.broadcast %51 : vector<32x1xf32> to vector<32x128xf32>
    %53 = arith.addf %50, %52 : vector<32x128xf32>
    %cst_52 = arith.constant 0.000000e+00 : f32
    %54 = vector.broadcast %cst_52 : f32 to vector<32x128xf32>
    %55 = arith.maximumf %53, %54 : vector<32x128xf32>
    %56 = arith.truncf %55 : vector<32x128xf32> to vector<32x128xbf16>
    %c2_53 = arith.constant 2 : index
    %c0_54 = arith.constant 0 : index
    %c0_55 = arith.constant 0 : index
    %57 = vector.load %arg11[%c2_53, %c0_54, %c0_55] : memref<10x32x128xbf16, #tpu.memory_space<vmem>>, vector<1x32x128xbf16>
    %58 = vector.shape_cast %57 : vector<1x32x128xbf16> to vector<32x128xbf16>
    %59 = vector.shape_cast %56 : vector<32x128xbf16> to vector<1x32x128xbf16>
    tpu.vector_store %arg11[%c2_53, %c0_54, %c0_55], %59 {strides = array<i32>} : memref<10x32x128xbf16, #tpu.memory_space<vmem>>, vector<1x32x128xbf16>,
    %c0_56 = arith.constant 0 : index
    %c0_57 = arith.constant 0 : index
    %c0_58 = arith.constant 0 : index
    %60 = vector.load %arg2[%c0_56, %c0_57, %c0_58] : memref<3x32x8xbf16, #tpu.memory_space<vmem>>, vector<1x32x8xbf16>
    %61 = vector.shape_cast %60 : vector<1x32x8xbf16> to vector<32x8xbf16>
    %c2_59 = arith.constant 2 : index
    %c0_60 = arith.constant 0 : index
    %c0_61 = arith.constant 0 : index
    %62 = vector.load %arg1[%c2_59, %c0_60, %c0_61] : memref<10x8x128xbf16, #tpu.memory_space<vmem>>, vector<1x8x128xbf16>
    %63 = vector.shape_cast %62 : vector<1x8x128xbf16> to vector<8x128xbf16>
    %cst_62 = arith.constant dense<0.000000e+00> : vector<32x128xf32>
    %64 = tpu.matmul %61, %63, %cst_62 {dimension_numbers = #tpu.dot_dimension_numbers<[1], [0], [0], [1], [0, 0, 1, 1], [], []>} : vector<32x8xbf16>, vector<8x128xbf16>, vector<32x128xf32> -> vector<32x128xf32>
    %c1_63 = arith.constant 1 : index
    %c0_64 = arith.constant 0 : index
    %c0_65 = arith.constant 0 : index
    %65 = vector.load %arg2[%c1_63, %c0_64, %c0_65] : memref<3x32x8xbf16, #tpu.memory_space<vmem>>, vector<1x32x8xbf16>
    %66 = vector.shape_cast %65 : vector<1x32x8xbf16> to vector<32x8xbf16>
    %c3_66 = arith.constant 3 : index
    %c0_67 = arith.constant 0 : index
    %c0_68 = arith.constant 0 : index
    %67 = vector.load %arg1[%c3_66, %c0_67, %c0_68] : memref<10x8x128xbf16, #tpu.memory_space<vmem>>, vector<1x8x128xbf16>
    %68 = vector.shape_cast %67 : vector<1x8x128xbf16> to vector<8x128xbf16>
    %cst_69 = arith.constant dense<0.000000e+00> : vector<32x128xf32>
    %69 = tpu.matmul %66, %68, %cst_69 {dimension_numbers = #tpu.dot_dimension_numbers<[1], [0], [0], [1], [0, 0, 1, 1], [], []>} : vector<32x8xbf16>, vector<8x128xbf16>, vector<32x128xf32> -> vector<32x128xf32>
    %70 = arith.addf %64, %69 : vector<32x128xf32>
    %c2_70 = arith.constant 2 : index
    %c0_71 = arith.constant 0 : index
    %c0_72 = arith.constant 0 : index
    %71 = vector.load %arg2[%c2_70, %c0_71, %c0_72] : memref<3x32x8xbf16, #tpu.memory_space<vmem>>, vector<1x32x8xbf16>
    %72 = vector.shape_cast %71 : vector<1x32x8xbf16> to vector<32x8xbf16>
    %c4 = arith.constant 4 : index
    %c0_73 = arith.constant 0 : index
    %c0_74 = arith.constant 0 : index
    %73 = vector.load %arg1[%c4, %c0_73, %c0_74] : memref<10x8x128xbf16, #tpu.memory_space<vmem>>, vector<1x8x128xbf16>
    %74 = vector.shape_cast %73 : vector<1x8x128xbf16> to vector<8x128xbf16>
    %cst_75 = arith.constant dense<0.000000e+00> : vector<32x128xf32>
    %75 = tpu.matmul %72, %74, %cst_75 {dimension_numbers = #tpu.dot_dimension_numbers<[1], [0], [0], [1], [0, 0, 1, 1], [], []>} : vector<32x8xbf16>, vector<8x128xbf16>, vector<32x128xf32> -> vector<32x128xf32>
    %76 = arith.addf %70, %75 : vector<32x128xf32>
    %c0_76 = arith.constant 0 : index
    %c0_77 = arith.constant 0 : index
    %77 = vector.load %arg3[%c0_76, %c0_77] : memref<32x1xf32, #tpu.memory_space<vmem>>, vector<32x1xf32>
    %78 = vector.broadcast %77 : vector<32x1xf32> to vector<32x128xf32>
    %79 = arith.addf %76, %78 : vector<32x128xf32>
    %cst_78 = arith.constant 0.000000e+00 : f32
    %80 = vector.broadcast %cst_78 : f32 to vector<32x128xf32>
    %81 = arith.maximumf %79, %80 : vector<32x128xf32>
    %82 = arith.truncf %81 : vector<32x128xf32> to vector<32x128xbf16>
    %c3_79 = arith.constant 3 : index
    %c0_80 = arith.constant 0 : index
    %c0_81 = arith.constant 0 : index
    %83 = vector.load %arg11[%c3_79, %c0_80, %c0_81] : memref<10x32x128xbf16, #tpu.memory_space<vmem>>, vector<1x32x128xbf16>
    %84 = vector.shape_cast %83 : vector<1x32x128xbf16> to vector<32x128xbf16>
    %85 = vector.shape_cast %82 : vector<32x128xbf16> to vector<1x32x128xbf16>
    tpu.vector_store %arg11[%c3_79, %c0_80, %c0_81], %85 {strides = array<i32>} : memref<10x32x128xbf16, #tpu.memory_space<vmem>>, vector<1x32x128xbf16>,
    %c0_82 = arith.constant 0 : index
    %c0_83 = arith.constant 0 : index
    %c0_84 = arith.constant 0 : index
    %86 = vector.load %arg2[%c0_82, %c0_83, %c0_84] : memref<3x32x8xbf16, #tpu.memory_space<vmem>>, vector<1x32x8xbf16>
    %87 = vector.shape_cast %86 : vector<1x32x8xbf16> to vector<32x8xbf16>
    %c3_85 = arith.constant 3 : index
    %c0_86 = arith.constant 0 : index
    %c0_87 = arith.constant 0 : index
    %88 = vector.load %arg1[%c3_85, %c0_86, %c0_87] : memref<10x8x128xbf16, #tpu.memory_space<vmem>>, vector<1x8x128xbf16>
    %89 = vector.shape_cast %88 : vector<1x8x128xbf16> to vector<8x128xbf16>
    %cst_88 = arith.constant dense<0.000000e+00> : vector<32x128xf32>
    %90 = tpu.matmul %87, %89, %cst_88 {dimension_numbers = #tpu.dot_dimension_numbers<[1], [0], [0], [1], [0, 0, 1, 1], [], []>} : vector<32x8xbf16>, vector<8x128xbf16>, vector<32x128xf32> -> vector<32x128xf32>
    %c1_89 = arith.constant 1 : index
    %c0_90 = arith.constant 0 : index
    %c0_91 = arith.constant 0 : index
    %91 = vector.load %arg2[%c1_89, %c0_90, %c0_91] : memref<3x32x8xbf16, #tpu.memory_space<vmem>>, vector<1x32x8xbf16>
    %92 = vector.shape_cast %91 : vector<1x32x8xbf16> to vector<32x8xbf16>
    %c4_92 = arith.constant 4 : index
    %c0_93 = arith.constant 0 : index
    %c0_94 = arith.constant 0 : index
    %93 = vector.load %arg1[%c4_92, %c0_93, %c0_94] : memref<10x8x128xbf16, #tpu.memory_space<vmem>>, vector<1x8x128xbf16>
    %94 = vector.shape_cast %93 : vector<1x8x128xbf16> to vector<8x128xbf16>
    %cst_95 = arith.constant dense<0.000000e+00> : vector<32x128xf32>
    %95 = tpu.matmul %92, %94, %cst_95 {dimension_numbers = #tpu.dot_dimension_numbers<[1], [0], [0], [1], [0, 0, 1, 1], [], []>} : vector<32x8xbf16>, vector<8x128xbf16>, vector<32x128xf32> -> vector<32x128xf32>
    %96 = arith.addf %90, %95 : vector<32x128xf32>
    %c2_96 = arith.constant 2 : index
    %c0_97 = arith.constant 0 : index
    %c0_98 = arith.constant 0 : index
    %97 = vector.load %arg2[%c2_96, %c0_97, %c0_98] : memref<3x32x8xbf16, #tpu.memory_space<vmem>>, vector<1x32x8xbf16>
    %98 = vector.shape_cast %97 : vector<1x32x8xbf16> to vector<32x8xbf16>
    %c5 = arith.constant 5 : index
    %c0_99 = arith.constant 0 : index
    %c0_100 = arith.constant 0 : index
    %99 = vector.load %arg1[%c5, %c0_99, %c0_100] : memref<10x8x128xbf16, #tpu.memory_space<vmem>>, vector<1x8x128xbf16>
    %100 = vector.shape_cast %99 : vector<1x8x128xbf16> to vector<8x128xbf16>
    %cst_101 = arith.constant dense<0.000000e+00> : vector<32x128xf32>
    %101 = tpu.matmul %98, %100, %cst_101 {dimension_numbers = #tpu.dot_dimension_numbers<[1], [0], [0], [1], [0, 0, 1, 1], [], []>} : vector<32x8xbf16>, vector<8x128xbf16>, vector<32x128xf32> -> vector<32x128xf32>
    %102 = arith.addf %96, %101 : vector<32x128xf32>
    %c0_102 = arith.constant 0 : index
    %c0_103 = arith.constant 0 : index
    %103 = vector.load %arg3[%c0_102, %c0_103] : memref<32x1xf32, #tpu.memory_space<vmem>>, vector<32x1xf32>
    %104 = vector.broadcast %103 : vector<32x1xf32> to vector<32x128xf32>
    %105 = arith.addf %102, %104 : vector<32x128xf32>
    %cst_104 = arith.constant 0.000000e+00 : f32
    %106 = vector.broadcast %cst_104 : f32 to vector<32x128xf32>
    %107 = arith.maximumf %105, %106 : vector<32x128xf32>
    %108 = arith.truncf %107 : vector<32x128xf32> to vector<32x128xbf16>
    %c4_105 = arith.constant 4 : index
    %c0_106 = arith.constant 0 : index
    %c0_107 = arith.constant 0 : index
    %109 = vector.load %arg11[%c4_105, %c0_106, %c0_107] : memref<10x32x128xbf16, #tpu.memory_space<vmem>>, vector<1x32x128xbf16>
    %110 = vector.shape_cast %109 : vector<1x32x128xbf16> to vector<32x128xbf16>
    %111 = vector.shape_cast %108 : vector<32x128xbf16> to vector<1x32x128xbf16>
    tpu.vector_store %arg11[%c4_105, %c0_106, %c0_107], %111 {strides = array<i32>} : memref<10x32x128xbf16, #tpu.memory_space<vmem>>, vector<1x32x128xbf16>,
    %c0_108 = arith.constant 0 : index
    %c0_109 = arith.constant 0 : index
    %c0_110 = arith.constant 0 : index
    %112 = vector.load %arg2[%c0_108, %c0_109, %c0_110] : memref<3x32x8xbf16, #tpu.memory_space<vmem>>, vector<1x32x8xbf16>
    %113 = vector.shape_cast %112 : vector<1x32x8xbf16> to vector<32x8xbf16>
    %c4_111 = arith.constant 4 : index
    %c0_112 = arith.constant 0 : index
    %c0_113 = arith.constant 0 : index
    %114 = vector.load %arg1[%c4_111, %c0_112, %c0_113] : memref<10x8x128xbf16, #tpu.memory_space<vmem>>, vector<1x8x128xbf16>
    %115 = vector.shape_cast %114 : vector<1x8x128xbf16> to vector<8x128xbf16>
    %cst_114 = arith.constant dense<0.000000e+00> : vector<32x128xf32>
    %116 = tpu.matmul %113, %115, %cst_114 {dimension_numbers = #tpu.dot_dimension_numbers<[1], [0], [0], [1], [0, 0, 1, 1], [], []>} : vector<32x8xbf16>, vector<8x128xbf16>, vector<32x128xf32> -> vector<32x128xf32>
    %c1_115 = arith.constant 1 : index
    %c0_116 = arith.constant 0 : index
    %c0_117 = arith.constant 0 : index
    %117 = vector.load %arg2[%c1_115, %c0_116, %c0_117] : memref<3x32x8xbf16, #tpu.memory_space<vmem>>, vector<1x32x8xbf16>
    %118 = vector.shape_cast %117 : vector<1x32x8xbf16> to vector<32x8xbf16>
    %c5_118 = arith.constant 5 : index
    %c0_119 = arith.constant 0 : index
    %c0_120 = arith.constant 0 : index
    %119 = vector.load %arg1[%c5_118, %c0_119, %c0_120] : memref<10x8x128xbf16, #tpu.memory_space<vmem>>, vector<1x8x128xbf16>
    %120 = vector.shape_cast %119 : vector<1x8x128xbf16> to vector<8x128xbf16>
    %cst_121 = arith.constant dense<0.000000e+00> : vector<32x128xf32>
    %121 = tpu.matmul %118, %120, %cst_121 {dimension_numbers = #tpu.dot_dimension_numbers<[1], [0], [0], [1], [0, 0, 1, 1], [], []>} : vector<32x8xbf16>, vector<8x128xbf16>, vector<32x128xf32> -> vector<32x128xf32>
    %122 = arith.addf %116, %121 : vector<32x128xf32>
    %c2_122 = arith.constant 2 : index
    %c0_123 = arith.constant 0 : index
    %c0_124 = arith.constant 0 : index
    %123 = vector.load %arg2[%c2_122, %c0_123, %c0_124] : memref<3x32x8xbf16, #tpu.memory_space<vmem>>, vector<1x32x8xbf16>
    %124 = vector.shape_cast %123 : vector<1x32x8xbf16> to vector<32x8xbf16>
    %c6 = arith.constant 6 : index
    %c0_125 = arith.constant 0 : index
    %c0_126 = arith.constant 0 : index
    %125 = vector.load %arg1[%c6, %c0_125, %c0_126] : memref<10x8x128xbf16, #tpu.memory_space<vmem>>, vector<1x8x128xbf16>
    %126 = vector.shape_cast %125 : vector<1x8x128xbf16> to vector<8x128xbf16>
    %cst_127 = arith.constant dense<0.000000e+00> : vector<32x128xf32>
    %127 = tpu.matmul %124, %126, %cst_127 {dimension_numbers = #tpu.dot_dimension_numbers<[1], [0], [0], [1], [0, 0, 1, 1], [], []>} : vector<32x8xbf16>, vector<8x128xbf16>, vector<32x128xf32> -> vector<32x128xf32>
    %128 = arith.addf %122, %127 : vector<32x128xf32>
    %c0_128 = arith.constant 0 : index
    %c0_129 = arith.constant 0 : index
    %129 = vector.load %arg3[%c0_128, %c0_129] : memref<32x1xf32, #tpu.memory_space<vmem>>, vector<32x1xf32>
    %130 = vector.broadcast %129 : vector<32x1xf32> to vector<32x128xf32>
    %131 = arith.addf %128, %130 : vector<32x128xf32>
    %cst_130 = arith.constant 0.000000e+00 : f32
    %132 = vector.broadcast %cst_130 : f32 to vector<32x128xf32>
    %133 = arith.maximumf %131, %132 : vector<32x128xf32>
    %134 = arith.truncf %133 : vector<32x128xf32> to vector<32x128xbf16>
    %c5_131 = arith.constant 5 : index
    %c0_132 = arith.constant 0 : index
    %c0_133 = arith.constant 0 : index
    %135 = vector.load %arg11[%c5_131, %c0_132, %c0_133] : memref<10x32x128xbf16, #tpu.memory_space<vmem>>, vector<1x32x128xbf16>
    %136 = vector.shape_cast %135 : vector<1x32x128xbf16> to vector<32x128xbf16>
    %137 = vector.shape_cast %134 : vector<32x128xbf16> to vector<1x32x128xbf16>
    tpu.vector_store %arg11[%c5_131, %c0_132, %c0_133], %137 {strides = array<i32>} : memref<10x32x128xbf16, #tpu.memory_space<vmem>>, vector<1x32x128xbf16>,
    %c0_134 = arith.constant 0 : index
    %c0_135 = arith.constant 0 : index
    %c0_136 = arith.constant 0 : index
    %138 = vector.load %arg2[%c0_134, %c0_135, %c0_136] : memref<3x32x8xbf16, #tpu.memory_space<vmem>>, vector<1x32x8xbf16>
    %139 = vector.shape_cast %138 : vector<1x32x8xbf16> to vector<32x8xbf16>
    %c5_137 = arith.constant 5 : index
    %c0_138 = arith.constant 0 : index
    %c0_139 = arith.constant 0 : index
    %140 = vector.load %arg1[%c5_137, %c0_138, %c0_139] : memref<10x8x128xbf16, #tpu.memory_space<vmem>>, vector<1x8x128xbf16>
    %141 = vector.shape_cast %140 : vector<1x8x128xbf16> to vector<8x128xbf16>
    %cst_140 = arith.constant dense<0.000000e+00> : vector<32x128xf32>
    %142 = tpu.matmul %139, %141, %cst_140 {dimension_numbers = #tpu.dot_dimension_numbers<[1], [0], [0], [1], [0, 0, 1, 1], [], []>} : vector<32x8xbf16>, vector<8x128xbf16>, vector<32x128xf32> -> vector<32x128xf32>
    %c1_141 = arith.constant 1 : index
    %c0_142 = arith.constant 0 : index
    %c0_143 = arith.constant 0 : index
    %143 = vector.load %arg2[%c1_141, %c0_142, %c0_143] : memref<3x32x8xbf16, #tpu.memory_space<vmem>>, vector<1x32x8xbf16>
    %144 = vector.shape_cast %143 : vector<1x32x8xbf16> to vector<32x8xbf16>
    %c6_144 = arith.constant 6 : index
    %c0_145 = arith.constant 0 : index
    %c0_146 = arith.constant 0 : index
    %145 = vector.load %arg1[%c6_144, %c0_145, %c0_146] : memref<10x8x128xbf16, #tpu.memory_space<vmem>>, vector<1x8x128xbf16>
    %146 = vector.shape_cast %145 : vector<1x8x128xbf16> to vector<8x128xbf16>
    %cst_147 = arith.constant dense<0.000000e+00> : vector<32x128xf32>
    %147 = tpu.matmul %144, %146, %cst_147 {dimension_numbers = #tpu.dot_dimension_numbers<[1], [0], [0], [1], [0, 0, 1, 1], [], []>} : vector<32x8xbf16>, vector<8x128xbf16>, vector<32x128xf32> -> vector<32x128xf32>
    %148 = arith.addf %142, %147 : vector<32x128xf32>
    %c2_148 = arith.constant 2 : index
    %c0_149 = arith.constant 0 : index
    %c0_150 = arith.constant 0 : index
    %149 = vector.load %arg2[%c2_148, %c0_149, %c0_150] : memref<3x32x8xbf16, #tpu.memory_space<vmem>>, vector<1x32x8xbf16>
    %150 = vector.shape_cast %149 : vector<1x32x8xbf16> to vector<32x8xbf16>
    %c7 = arith.constant 7 : index
    %c0_151 = arith.constant 0 : index
    %c0_152 = arith.constant 0 : index
    %151 = vector.load %arg1[%c7, %c0_151, %c0_152] : memref<10x8x128xbf16, #tpu.memory_space<vmem>>, vector<1x8x128xbf16>
    %152 = vector.shape_cast %151 : vector<1x8x128xbf16> to vector<8x128xbf16>
    %cst_153 = arith.constant dense<0.000000e+00> : vector<32x128xf32>
    %153 = tpu.matmul %150, %152, %cst_153 {dimension_numbers = #tpu.dot_dimension_numbers<[1], [0], [0], [1], [0, 0, 1, 1], [], []>} : vector<32x8xbf16>, vector<8x128xbf16>, vector<32x128xf32> -> vector<32x128xf32>
    %154 = arith.addf %148, %153 : vector<32x128xf32>
    %c0_154 = arith.constant 0 : index
    %c0_155 = arith.constant 0 : index
    %155 = vector.load %arg3[%c0_154, %c0_155] : memref<32x1xf32, #tpu.memory_space<vmem>>, vector<32x1xf32>
    %156 = vector.broadcast %155 : vector<32x1xf32> to vector<32x128xf32>
    %157 = arith.addf %154, %156 : vector<32x128xf32>
    %cst_156 = arith.constant 0.000000e+00 : f32
    %158 = vector.broadcast %cst_156 : f32 to vector<32x128xf32>
    %159 = arith.maximumf %157, %158 : vector<32x128xf32>
    %160 = arith.truncf %159 : vector<32x128xf32> to vector<32x128xbf16>
    %c6_157 = arith.constant 6 : index
    %c0_158 = arith.constant 0 : index
    %c0_159 = arith.constant 0 : index
    %161 = vector.load %arg11[%c6_157, %c0_158, %c0_159] : memref<10x32x128xbf16, #tpu.memory_space<vmem>>, vector<1x32x128xbf16>
    %162 = vector.shape_cast %161 : vector<1x32x128xbf16> to vector<32x128xbf16>
    %163 = vector.shape_cast %160 : vector<32x128xbf16> to vector<1x32x128xbf16>
    tpu.vector_store %arg11[%c6_157, %c0_158, %c0_159], %163 {strides = array<i32>} : memref<10x32x128xbf16, #tpu.memory_space<vmem>>, vector<1x32x128xbf16>,
    %c0_160 = arith.constant 0 : index
    %c0_161 = arith.constant 0 : index
    %c0_162 = arith.constant 0 : index
    %164 = vector.load %arg2[%c0_160, %c0_161, %c0_162] : memref<3x32x8xbf16, #tpu.memory_space<vmem>>, vector<1x32x8xbf16>
    %165 = vector.shape_cast %164 : vector<1x32x8xbf16> to vector<32x8xbf16>
    %c6_163 = arith.constant 6 : index
    %c0_164 = arith.constant 0 : index
    %c0_165 = arith.constant 0 : index
    %166 = vector.load %arg1[%c6_163, %c0_164, %c0_165] : memref<10x8x128xbf16, #tpu.memory_space<vmem>>, vector<1x8x128xbf16>
    %167 = vector.shape_cast %166 : vector<1x8x128xbf16> to vector<8x128xbf16>
    %cst_166 = arith.constant dense<0.000000e+00> : vector<32x128xf32>
    %168 = tpu.matmul %165, %167, %cst_166 {dimension_numbers = #tpu.dot_dimension_numbers<[1], [0], [0], [1], [0, 0, 1, 1], [], []>} : vector<32x8xbf16>, vector<8x128xbf16>, vector<32x128xf32> -> vector<32x128xf32>
    %c1_167 = arith.constant 1 : index
    %c0_168 = arith.constant 0 : index
    %c0_169 = arith.constant 0 : index
    %169 = vector.load %arg2[%c1_167, %c0_168, %c0_169] : memref<3x32x8xbf16, #tpu.memory_space<vmem>>, vector<1x32x8xbf16>
    %170 = vector.shape_cast %169 : vector<1x32x8xbf16> to vector<32x8xbf16>
    %c7_170 = arith.constant 7 : index
    %c0_171 = arith.constant 0 : index
    %c0_172 = arith.constant 0 : index
    %171 = vector.load %arg1[%c7_170, %c0_171, %c0_172] : memref<10x8x128xbf16, #tpu.memory_space<vmem>>, vector<1x8x128xbf16>
    %172 = vector.shape_cast %171 : vector<1x8x128xbf16> to vector<8x128xbf16>
    %cst_173 = arith.constant dense<0.000000e+00> : vector<32x128xf32>
    %173 = tpu.matmul %170, %172, %cst_173 {dimension_numbers = #tpu.dot_dimension_numbers<[1], [0], [0], [1], [0, 0, 1, 1], [], []>} : vector<32x8xbf16>, vector<8x128xbf16>, vector<32x128xf32> -> vector<32x128xf32>
    %174 = arith.addf %168, %173 : vector<32x128xf32>
    %c2_174 = arith.constant 2 : index
    %c0_175 = arith.constant 0 : index
    %c0_176 = arith.constant 0 : index
    %175 = vector.load %arg2[%c2_174, %c0_175, %c0_176] : memref<3x32x8xbf16, #tpu.memory_space<vmem>>, vector<1x32x8xbf16>
    %176 = vector.shape_cast %175 : vector<1x32x8xbf16> to vector<32x8xbf16>
    %c8 = arith.constant 8 : index
    %c0_177 = arith.constant 0 : index
    %c0_178 = arith.constant 0 : index
    %177 = vector.load %arg1[%c8, %c0_177, %c0_178] : memref<10x8x128xbf16, #tpu.memory_space<vmem>>, vector<1x8x128xbf16>
    %178 = vector.shape_cast %177 : vector<1x8x128xbf16> to vector<8x128xbf16>
    %cst_179 = arith.constant dense<0.000000e+00> : vector<32x128xf32>
    %179 = tpu.matmul %176, %178, %cst_179 {dimension_numbers = #tpu.dot_dimension_numbers<[1], [0], [0], [1], [0, 0, 1, 1], [], []>} : vector<32x8xbf16>, vector<8x128xbf16>, vector<32x128xf32> -> vector<32x128xf32>
    %180 = arith.addf %174, %179 : vector<32x128xf32>
    %c0_180 = arith.constant 0 : index
    %c0_181 = arith.constant 0 : index
    %181 = vector.load %arg3[%c0_180, %c0_181] : memref<32x1xf32, #tpu.memory_space<vmem>>, vector<32x1xf32>
    %182 = vector.broadcast %181 : vector<32x1xf32> to vector<32x128xf32>
    %183 = arith.addf %180, %182 : vector<32x128xf32>
    %cst_182 = arith.constant 0.000000e+00 : f32
    %184 = vector.broadcast %cst_182 : f32 to vector<32x128xf32>
    %185 = arith.maximumf %183, %184 : vector<32x128xf32>
    %186 = arith.truncf %185 : vector<32x128xf32> to vector<32x128xbf16>
    %c7_183 = arith.constant 7 : index
    %c0_184 = arith.constant 0 : index
    %c0_185 = arith.constant 0 : index
    %187 = vector.load %arg11[%c7_183, %c0_184, %c0_185] : memref<10x32x128xbf16, #tpu.memory_space<vmem>>, vector<1x32x128xbf16>
    %188 = vector.shape_cast %187 : vector<1x32x128xbf16> to vector<32x128xbf16>
    %189 = vector.shape_cast %186 : vector<32x128xbf16> to vector<1x32x128xbf16>
    tpu.vector_store %arg11[%c7_183, %c0_184, %c0_185], %189 {strides = array<i32>} : memref<10x32x128xbf16, #tpu.memory_space<vmem>>, vector<1x32x128xbf16>,
    %c0_186 = arith.constant 0 : index
    %c0_187 = arith.constant 0 : index
    %c0_188 = arith.constant 0 : index
    %190 = vector.load %arg2[%c0_186, %c0_187, %c0_188] : memref<3x32x8xbf16, #tpu.memory_space<vmem>>, vector<1x32x8xbf16>
    %191 = vector.shape_cast %190 : vector<1x32x8xbf16> to vector<32x8xbf16>
    %c7_189 = arith.constant 7 : index
    %c0_190 = arith.constant 0 : index
    %c0_191 = arith.constant 0 : index
    %192 = vector.load %arg1[%c7_189, %c0_190, %c0_191] : memref<10x8x128xbf16, #tpu.memory_space<vmem>>, vector<1x8x128xbf16>
    %193 = vector.shape_cast %192 : vector<1x8x128xbf16> to vector<8x128xbf16>
    %cst_192 = arith.constant dense<0.000000e+00> : vector<32x128xf32>
    %194 = tpu.matmul %191, %193, %cst_192 {dimension_numbers = #tpu.dot_dimension_numbers<[1], [0], [0], [1], [0, 0, 1, 1], [], []>} : vector<32x8xbf16>, vector<8x128xbf16>, vector<32x128xf32> -> vector<32x128xf32>
    %c1_193 = arith.constant 1 : index
    %c0_194 = arith.constant 0 : index
    %c0_195 = arith.constant 0 : index
    %195 = vector.load %arg2[%c1_193, %c0_194, %c0_195] : memref<3x32x8xbf16, #tpu.memory_space<vmem>>, vector<1x32x8xbf16>
    %196 = vector.shape_cast %195 : vector<1x32x8xbf16> to vector<32x8xbf16>
    %c8_196 = arith.constant 8 : index
    %c0_197 = arith.constant 0 : index
    %c0_198 = arith.constant 0 : index
    %197 = vector.load %arg1[%c8_196, %c0_197, %c0_198] : memref<10x8x128xbf16, #tpu.memory_space<vmem>>, vector<1x8x128xbf16>
    %198 = vector.shape_cast %197 : vector<1x8x128xbf16> to vector<8x128xbf16>
    %cst_199 = arith.constant dense<0.000000e+00> : vector<32x128xf32>
    %199 = tpu.matmul %196, %198, %cst_199 {dimension_numbers = #tpu.dot_dimension_numbers<[1], [0], [0], [1], [0, 0, 1, 1], [], []>} : vector<32x8xbf16>, vector<8x128xbf16>, vector<32x128xf32> -> vector<32x128xf32>
    %200 = arith.addf %194, %199 : vector<32x128xf32>
    %c2_200 = arith.constant 2 : index
    %c0_201 = arith.constant 0 : index
    %c0_202 = arith.constant 0 : index
    %201 = vector.load %arg2[%c2_200, %c0_201, %c0_202] : memref<3x32x8xbf16, #tpu.memory_space<vmem>>, vector<1x32x8xbf16>
    %202 = vector.shape_cast %201 : vector<1x32x8xbf16> to vector<32x8xbf16>
    %c9_203 = arith.constant 9 : index
    %c0_204 = arith.constant 0 : index
    %c0_205 = arith.constant 0 : index
    %203 = vector.load %arg1[%c9_203, %c0_204, %c0_205] : memref<10x8x128xbf16, #tpu.memory_space<vmem>>, vector<1x8x128xbf16>
    %204 = vector.shape_cast %203 : vector<1x8x128xbf16> to vector<8x128xbf16>
    %cst_206 = arith.constant dense<0.000000e+00> : vector<32x128xf32>
    %205 = tpu.matmul %202, %204, %cst_206 {dimension_numbers = #tpu.dot_dimension_numbers<[1], [0], [0], [1], [0, 0, 1, 1], [], []>} : vector<32x8xbf16>, vector<8x128xbf16>, vector<32x128xf32> -> vector<32x128xf32>
    %206 = arith.addf %200, %205 : vector<32x128xf32>
    %c0_207 = arith.constant 0 : index
    %c0_208 = arith.constant 0 : index
    %207 = vector.load %arg3[%c0_207, %c0_208] : memref<32x1xf32, #tpu.memory_space<vmem>>, vector<32x1xf32>
    %208 = vector.broadcast %207 : vector<32x1xf32> to vector<32x128xf32>
    %209 = arith.addf %206, %208 : vector<32x128xf32>
    %cst_209 = arith.constant 0.000000e+00 : f32
    %210 = vector.broadcast %cst_209 : f32 to vector<32x128xf32>
    %211 = arith.maximumf %209, %210 : vector<32x128xf32>
    %212 = arith.truncf %211 : vector<32x128xf32> to vector<32x128xbf16>
    %c8_210 = arith.constant 8 : index
    %c0_211 = arith.constant 0 : index
    %c0_212 = arith.constant 0 : index
    %213 = vector.load %arg11[%c8_210, %c0_211, %c0_212] : memref<10x32x128xbf16, #tpu.memory_space<vmem>>, vector<1x32x128xbf16>
    %214 = vector.shape_cast %213 : vector<1x32x128xbf16> to vector<32x128xbf16>
    %215 = vector.shape_cast %212 : vector<32x128xbf16> to vector<1x32x128xbf16>
    tpu.vector_store %arg11[%c8_210, %c0_211, %c0_212], %215 {strides = array<i32>} : memref<10x32x128xbf16, #tpu.memory_space<vmem>>, vector<1x32x128xbf16>,
    %c0_213 = arith.constant 0 : index
    %c0_214 = arith.constant 0 : index
    %c0_215 = arith.constant 0 : index
    %216 = vector.load %arg4[%c0_213, %c0_214, %c0_215] : memref<3x64x32xbf16, #tpu.memory_space<vmem>>, vector<1x64x32xbf16>
    %217 = vector.shape_cast %216 : vector<1x64x32xbf16> to vector<64x32xbf16>
    %c0_216 = arith.constant 0 : index
    %c0_217 = arith.constant 0 : index
    %c0_218 = arith.constant 0 : index
    %218 = vector.load %arg11[%c0_216, %c0_217, %c0_218] : memref<10x32x128xbf16, #tpu.memory_space<vmem>>, vector<1x32x128xbf16>
    %219 = vector.shape_cast %218 : vector<1x32x128xbf16> to vector<32x128xbf16>
    %cst_219 = arith.constant dense<0.000000e+00> : vector<64x128xf32>
    %220 = tpu.matmul %217, %219, %cst_219 {dimension_numbers = #tpu.dot_dimension_numbers<[1], [0], [0], [1], [0, 0, 1, 1], [], []>} : vector<64x32xbf16>, vector<32x128xbf16>, vector<64x128xf32> -> vector<64x128xf32>
    %c1_220 = arith.constant 1 : index
    %c0_221 = arith.constant 0 : index
    %c0_222 = arith.constant 0 : index
    %221 = vector.load %arg4[%c1_220, %c0_221, %c0_222] : memref<3x64x32xbf16, #tpu.memory_space<vmem>>, vector<1x64x32xbf16>
    %222 = vector.shape_cast %221 : vector<1x64x32xbf16> to vector<64x32xbf16>
    %c1_223 = arith.constant 1 : index
    %c0_224 = arith.constant 0 : index
    %c0_225 = arith.constant 0 : index
    %223 = vector.load %arg11[%c1_223, %c0_224, %c0_225] : memref<10x32x128xbf16, #tpu.memory_space<vmem>>, vector<1x32x128xbf16>
    %224 = vector.shape_cast %223 : vector<1x32x128xbf16> to vector<32x128xbf16>
    %cst_226 = arith.constant dense<0.000000e+00> : vector<64x128xf32>
    %225 = tpu.matmul %222, %224, %cst_226 {dimension_numbers = #tpu.dot_dimension_numbers<[1], [0], [0], [1], [0, 0, 1, 1], [], []>} : vector<64x32xbf16>, vector<32x128xbf16>, vector<64x128xf32> -> vector<64x128xf32>
    %226 = arith.addf %220, %225 : vector<64x128xf32>
    %c2_227 = arith.constant 2 : index
    %c0_228 = arith.constant 0 : index
    %c0_229 = arith.constant 0 : index
    %227 = vector.load %arg4[%c2_227, %c0_228, %c0_229] : memref<3x64x32xbf16, #tpu.memory_space<vmem>>, vector<1x64x32xbf16>
    %228 = vector.shape_cast %227 : vector<1x64x32xbf16> to vector<64x32xbf16>
    %c2_230 = arith.constant 2 : index
    %c0_231 = arith.constant 0 : index
    %c0_232 = arith.constant 0 : index
    %229 = vector.load %arg11[%c2_230, %c0_231, %c0_232] : memref<10x32x128xbf16, #tpu.memory_space<vmem>>, vector<1x32x128xbf16>
    %230 = vector.shape_cast %229 : vector<1x32x128xbf16> to vector<32x128xbf16>
    %cst_233 = arith.constant dense<0.000000e+00> : vector<64x128xf32>
    %231 = tpu.matmul %228, %230, %cst_233 {dimension_numbers = #tpu.dot_dimension_numbers<[1], [0], [0], [1], [0, 0, 1, 1], [], []>} : vector<64x32xbf16>, vector<32x128xbf16>, vector<64x128xf32> -> vector<64x128xf32>
    %232 = arith.addf %226, %231 : vector<64x128xf32>
    %c0_234 = arith.constant 0 : index
    %c0_235 = arith.constant 0 : index
    %233 = vector.load %arg5[%c0_234, %c0_235] : memref<64x1xf32, #tpu.memory_space<vmem>>, vector<64x1xf32>
    %234 = vector.broadcast %233 : vector<64x1xf32> to vector<64x128xf32>
    %235 = arith.addf %232, %234 : vector<64x128xf32>
    %cst_236 = arith.constant 0.000000e+00 : f32
    %236 = vector.broadcast %cst_236 : f32 to vector<64x128xf32>
    %237 = arith.maximumf %235, %236 : vector<64x128xf32>
    %238 = arith.truncf %237 : vector<64x128xf32> to vector<64x128xbf16>
    %c0_237 = arith.constant 0 : index
    %c0_238 = arith.constant 0 : index
    %239 = vector.load %arg12[%c0_237, %c0_238] : memref<512x128xbf16, #tpu.memory_space<vmem>>, vector<64x128xbf16>
    tpu.vector_store %arg12[%c0_237, %c0_238], %238 {strides = array<i32>} : memref<512x128xbf16, #tpu.memory_space<vmem>>, vector<64x128xbf16>,
    %c0_239 = arith.constant 0 : index
    %c0_240 = arith.constant 0 : index
    %c0_241 = arith.constant 0 : index
    %240 = vector.load %arg4[%c0_239, %c0_240, %c0_241] : memref<3x64x32xbf16, #tpu.memory_space<vmem>>, vector<1x64x32xbf16>
    %241 = vector.shape_cast %240 : vector<1x64x32xbf16> to vector<64x32xbf16>
    %c1_242 = arith.constant 1 : index
    %c0_243 = arith.constant 0 : index
    %c0_244 = arith.constant 0 : index
    %242 = vector.load %arg11[%c1_242, %c0_243, %c0_244] : memref<10x32x128xbf16, #tpu.memory_space<vmem>>, vector<1x32x128xbf16>
    %243 = vector.shape_cast %242 : vector<1x32x128xbf16> to vector<32x128xbf16>
    %cst_245 = arith.constant dense<0.000000e+00> : vector<64x128xf32>
    %244 = tpu.matmul %241, %243, %cst_245 {dimension_numbers = #tpu.dot_dimension_numbers<[1], [0], [0], [1], [0, 0, 1, 1], [], []>} : vector<64x32xbf16>, vector<32x128xbf16>, vector<64x128xf32> -> vector<64x128xf32>
    %c1_246 = arith.constant 1 : index
    %c0_247 = arith.constant 0 : index
    %c0_248 = arith.constant 0 : index
    %245 = vector.load %arg4[%c1_246, %c0_247, %c0_248] : memref<3x64x32xbf16, #tpu.memory_space<vmem>>, vector<1x64x32xbf16>
    %246 = vector.shape_cast %245 : vector<1x64x32xbf16> to vector<64x32xbf16>
    %c2_249 = arith.constant 2 : index
    %c0_250 = arith.constant 0 : index
    %c0_251 = arith.constant 0 : index
    %247 = vector.load %arg11[%c2_249, %c0_250, %c0_251] : memref<10x32x128xbf16, #tpu.memory_space<vmem>>, vector<1x32x128xbf16>
    %248 = vector.shape_cast %247 : vector<1x32x128xbf16> to vector<32x128xbf16>
    %cst_252 = arith.constant dense<0.000000e+00> : vector<64x128xf32>
    %249 = tpu.matmul %246, %248, %cst_252 {dimension_numbers = #tpu.dot_dimension_numbers<[1], [0], [0], [1], [0, 0, 1, 1], [], []>} : vector<64x32xbf16>, vector<32x128xbf16>, vector<64x128xf32> -> vector<64x128xf32>
    %250 = arith.addf %244, %249 : vector<64x128xf32>
    %c2_253 = arith.constant 2 : index
    %c0_254 = arith.constant 0 : index
    %c0_255 = arith.constant 0 : index
    %251 = vector.load %arg4[%c2_253, %c0_254, %c0_255] : memref<3x64x32xbf16, #tpu.memory_space<vmem>>, vector<1x64x32xbf16>
    %252 = vector.shape_cast %251 : vector<1x64x32xbf16> to vector<64x32xbf16>
    %c3_256 = arith.constant 3 : index
    %c0_257 = arith.constant 0 : index
    %c0_258 = arith.constant 0 : index
    %253 = vector.load %arg11[%c3_256, %c0_257, %c0_258] : memref<10x32x128xbf16, #tpu.memory_space<vmem>>, vector<1x32x128xbf16>
    %254 = vector.shape_cast %253 : vector<1x32x128xbf16> to vector<32x128xbf16>
    %cst_259 = arith.constant dense<0.000000e+00> : vector<64x128xf32>
    %255 = tpu.matmul %252, %254, %cst_259 {dimension_numbers = #tpu.dot_dimension_numbers<[1], [0], [0], [1], [0, 0, 1, 1], [], []>} : vector<64x32xbf16>, vector<32x128xbf16>, vector<64x128xf32> -> vector<64x128xf32>
    %256 = arith.addf %250, %255 : vector<64x128xf32>
    %c0_260 = arith.constant 0 : index
    %c0_261 = arith.constant 0 : index
    %257 = vector.load %arg5[%c0_260, %c0_261] : memref<64x1xf32, #tpu.memory_space<vmem>>, vector<64x1xf32>
    %258 = vector.broadcast %257 : vector<64x1xf32> to vector<64x128xf32>
    %259 = arith.addf %256, %258 : vector<64x128xf32>
    %cst_262 = arith.constant 0.000000e+00 : f32
    %260 = vector.broadcast %cst_262 : f32 to vector<64x128xf32>
    %261 = arith.maximumf %259, %260 : vector<64x128xf32>
    %262 = arith.truncf %261 : vector<64x128xf32> to vector<64x128xbf16>
    %c64 = arith.constant 64 : index
    %c0_263 = arith.constant 0 : index
    %263 = vector.load %arg12[%c64, %c0_263] : memref<512x128xbf16, #tpu.memory_space<vmem>>, vector<64x128xbf16>
    tpu.vector_store %arg12[%c64, %c0_263], %262 {strides = array<i32>} : memref<512x128xbf16, #tpu.memory_space<vmem>>, vector<64x128xbf16>,
    %c0_264 = arith.constant 0 : index
    %c0_265 = arith.constant 0 : index
    %c0_266 = arith.constant 0 : index
    %264 = vector.load %arg4[%c0_264, %c0_265, %c0_266] : memref<3x64x32xbf16, #tpu.memory_space<vmem>>, vector<1x64x32xbf16>
    %265 = vector.shape_cast %264 : vector<1x64x32xbf16> to vector<64x32xbf16>
    %c2_267 = arith.constant 2 : index
    %c0_268 = arith.constant 0 : index
    %c0_269 = arith.constant 0 : index
    %266 = vector.load %arg11[%c2_267, %c0_268, %c0_269] : memref<10x32x128xbf16, #tpu.memory_space<vmem>>, vector<1x32x128xbf16>
    %267 = vector.shape_cast %266 : vector<1x32x128xbf16> to vector<32x128xbf16>
    %cst_270 = arith.constant dense<0.000000e+00> : vector<64x128xf32>
    %268 = tpu.matmul %265, %267, %cst_270 {dimension_numbers = #tpu.dot_dimension_numbers<[1], [0], [0], [1], [0, 0, 1, 1], [], []>} : vector<64x32xbf16>, vector<32x128xbf16>, vector<64x128xf32> -> vector<64x128xf32>
    %c1_271 = arith.constant 1 : index
    %c0_272 = arith.constant 0 : index
    %c0_273 = arith.constant 0 : index
    %269 = vector.load %arg4[%c1_271, %c0_272, %c0_273] : memref<3x64x32xbf16, #tpu.memory_space<vmem>>, vector<1x64x32xbf16>
    %270 = vector.shape_cast %269 : vector<1x64x32xbf16> to vector<64x32xbf16>
    %c3_274 = arith.constant 3 : index
    %c0_275 = arith.constant 0 : index
    %c0_276 = arith.constant 0 : index
    %271 = vector.load %arg11[%c3_274, %c0_275, %c0_276] : memref<10x32x128xbf16, #tpu.memory_space<vmem>>, vector<1x32x128xbf16>
    %272 = vector.shape_cast %271 : vector<1x32x128xbf16> to vector<32x128xbf16>
    %cst_277 = arith.constant dense<0.000000e+00> : vector<64x128xf32>
    %273 = tpu.matmul %270, %272, %cst_277 {dimension_numbers = #tpu.dot_dimension_numbers<[1], [0], [0], [1], [0, 0, 1, 1], [], []>} : vector<64x32xbf16>, vector<32x128xbf16>, vector<64x128xf32> -> vector<64x128xf32>
    %274 = arith.addf %268, %273 : vector<64x128xf32>
    %c2_278 = arith.constant 2 : index
    %c0_279 = arith.constant 0 : index
    %c0_280 = arith.constant 0 : index
    %275 = vector.load %arg4[%c2_278, %c0_279, %c0_280] : memref<3x64x32xbf16, #tpu.memory_space<vmem>>, vector<1x64x32xbf16>
    %276 = vector.shape_cast %275 : vector<1x64x32xbf16> to vector<64x32xbf16>
    %c4_281 = arith.constant 4 : index
    %c0_282 = arith.constant 0 : index
    %c0_283 = arith.constant 0 : index
    %277 = vector.load %arg11[%c4_281, %c0_282, %c0_283] : memref<10x32x128xbf16, #tpu.memory_space<vmem>>, vector<1x32x128xbf16>
    %278 = vector.shape_cast %277 : vector<1x32x128xbf16> to vector<32x128xbf16>
    %cst_284 = arith.constant dense<0.000000e+00> : vector<64x128xf32>
    %279 = tpu.matmul %276, %278, %cst_284 {dimension_numbers = #tpu.dot_dimension_numbers<[1], [0], [0], [1], [0, 0, 1, 1], [], []>} : vector<64x32xbf16>, vector<32x128xbf16>, vector<64x128xf32> -> vector<64x128xf32>
    %280 = arith.addf %274, %279 : vector<64x128xf32>
    %c0_285 = arith.constant 0 : index
    %c0_286 = arith.constant 0 : index
    %281 = vector.load %arg5[%c0_285, %c0_286] : memref<64x1xf32, #tpu.memory_space<vmem>>, vector<64x1xf32>
    %282 = vector.broadcast %281 : vector<64x1xf32> to vector<64x128xf32>
    %283 = arith.addf %280, %282 : vector<64x128xf32>
    %cst_287 = arith.constant 0.000000e+00 : f32
    %284 = vector.broadcast %cst_287 : f32 to vector<64x128xf32>
    %285 = arith.maximumf %283, %284 : vector<64x128xf32>
    %286 = arith.truncf %285 : vector<64x128xf32> to vector<64x128xbf16>
    %c128 = arith.constant 128 : index
    %c0_288 = arith.constant 0 : index
    %287 = vector.load %arg12[%c128, %c0_288] : memref<512x128xbf16, #tpu.memory_space<vmem>>, vector<64x128xbf16>
    tpu.vector_store %arg12[%c128, %c0_288], %286 {strides = array<i32>} : memref<512x128xbf16, #tpu.memory_space<vmem>>, vector<64x128xbf16>,
    %c0_289 = arith.constant 0 : index
    %c0_290 = arith.constant 0 : index
    %c0_291 = arith.constant 0 : index
    %288 = vector.load %arg4[%c0_289, %c0_290, %c0_291] : memref<3x64x32xbf16, #tpu.memory_space<vmem>>, vector<1x64x32xbf16>
    %289 = vector.shape_cast %288 : vector<1x64x32xbf16> to vector<64x32xbf16>
    %c3_292 = arith.constant 3 : index
    %c0_293 = arith.constant 0 : index
    %c0_294 = arith.constant 0 : index
    %290 = vector.load %arg11[%c3_292, %c0_293, %c0_294] : memref<10x32x128xbf16, #tpu.memory_space<vmem>>, vector<1x32x128xbf16>
    %291 = vector.shape_cast %290 : vector<1x32x128xbf16> to vector<32x128xbf16>
    %cst_295 = arith.constant dense<0.000000e+00> : vector<64x128xf32>
    %292 = tpu.matmul %289, %291, %cst_295 {dimension_numbers = #tpu.dot_dimension_numbers<[1], [0], [0], [1], [0, 0, 1, 1], [], []>} : vector<64x32xbf16>, vector<32x128xbf16>, vector<64x128xf32> -> vector<64x128xf32>
    %c1_296 = arith.constant 1 : index
    %c0_297 = arith.constant 0 : index
    %c0_298 = arith.constant 0 : index
    %293 = vector.load %arg4[%c1_296, %c0_297, %c0_298] : memref<3x64x32xbf16, #tpu.memory_space<vmem>>, vector<1x64x32xbf16>
    %294 = vector.shape_cast %293 : vector<1x64x32xbf16> to vector<64x32xbf16>
    %c4_299 = arith.constant 4 : index
    %c0_300 = arith.constant 0 : index
    %c0_301 = arith.constant 0 : index
    %295 = vector.load %arg11[%c4_299, %c0_300, %c0_301] : memref<10x32x128xbf16, #tpu.memory_space<vmem>>, vector<1x32x128xbf16>
    %296 = vector.shape_cast %295 : vector<1x32x128xbf16> to vector<32x128xbf16>
    %cst_302 = arith.constant dense<0.000000e+00> : vector<64x128xf32>
    %297 = tpu.matmul %294, %296, %cst_302 {dimension_numbers = #tpu.dot_dimension_numbers<[1], [0], [0], [1], [0, 0, 1, 1], [], []>} : vector<64x32xbf16>, vector<32x128xbf16>, vector<64x128xf32> -> vector<64x128xf32>
    %298 = arith.addf %292, %297 : vector<64x128xf32>
    %c2_303 = arith.constant 2 : index
    %c0_304 = arith.constant 0 : index
    %c0_305 = arith.constant 0 : index
    %299 = vector.load %arg4[%c2_303, %c0_304, %c0_305] : memref<3x64x32xbf16, #tpu.memory_space<vmem>>, vector<1x64x32xbf16>
    %300 = vector.shape_cast %299 : vector<1x64x32xbf16> to vector<64x32xbf16>
    %c5_306 = arith.constant 5 : index
    %c0_307 = arith.constant 0 : index
    %c0_308 = arith.constant 0 : index
    %301 = vector.load %arg11[%c5_306, %c0_307, %c0_308] : memref<10x32x128xbf16, #tpu.memory_space<vmem>>, vector<1x32x128xbf16>
    %302 = vector.shape_cast %301 : vector<1x32x128xbf16> to vector<32x128xbf16>
    %cst_309 = arith.constant dense<0.000000e+00> : vector<64x128xf32>
    %303 = tpu.matmul %300, %302, %cst_309 {dimension_numbers = #tpu.dot_dimension_numbers<[1], [0], [0], [1], [0, 0, 1, 1], [], []>} : vector<64x32xbf16>, vector<32x128xbf16>, vector<64x128xf32> -> vector<64x128xf32>
    %304 = arith.addf %298, %303 : vector<64x128xf32>
    %c0_310 = arith.constant 0 : index
    %c0_311 = arith.constant 0 : index
    %305 = vector.load %arg5[%c0_310, %c0_311] : memref<64x1xf32, #tpu.memory_space<vmem>>, vector<64x1xf32>
    %306 = vector.broadcast %305 : vector<64x1xf32> to vector<64x128xf32>
    %307 = arith.addf %304, %306 : vector<64x128xf32>
    %cst_312 = arith.constant 0.000000e+00 : f32
    %308 = vector.broadcast %cst_312 : f32 to vector<64x128xf32>
    %309 = arith.maximumf %307, %308 : vector<64x128xf32>
    %310 = arith.truncf %309 : vector<64x128xf32> to vector<64x128xbf16>
    %c192 = arith.constant 192 : index
    %c0_313 = arith.constant 0 : index
    %311 = vector.load %arg12[%c192, %c0_313] : memref<512x128xbf16, #tpu.memory_space<vmem>>, vector<64x128xbf16>
    tpu.vector_store %arg12[%c192, %c0_313], %310 {strides = array<i32>} : memref<512x128xbf16, #tpu.memory_space<vmem>>, vector<64x128xbf16>,
    %c0_314 = arith.constant 0 : index
    %c0_315 = arith.constant 0 : index
    %c0_316 = arith.constant 0 : index
    %312 = vector.load %arg4[%c0_314, %c0_315, %c0_316] : memref<3x64x32xbf16, #tpu.memory_space<vmem>>, vector<1x64x32xbf16>
    %313 = vector.shape_cast %312 : vector<1x64x32xbf16> to vector<64x32xbf16>
    %c4_317 = arith.constant 4 : index
    %c0_318 = arith.constant 0 : index
    %c0_319 = arith.constant 0 : index
    %314 = vector.load %arg11[%c4_317, %c0_318, %c0_319] : memref<10x32x128xbf16, #tpu.memory_space<vmem>>, vector<1x32x128xbf16>
    %315 = vector.shape_cast %314 : vector<1x32x128xbf16> to vector<32x128xbf16>
    %cst_320 = arith.constant dense<0.000000e+00> : vector<64x128xf32>
    %316 = tpu.matmul %313, %315, %cst_320 {dimension_numbers = #tpu.dot_dimension_numbers<[1], [0], [0], [1], [0, 0, 1, 1], [], []>} : vector<64x32xbf16>, vector<32x128xbf16>, vector<64x128xf32> -> vector<64x128xf32>
    %c1_321 = arith.constant 1 : index
    %c0_322 = arith.constant 0 : index
    %c0_323 = arith.constant 0 : index
    %317 = vector.load %arg4[%c1_321, %c0_322, %c0_323] : memref<3x64x32xbf16, #tpu.memory_space<vmem>>, vector<1x64x32xbf16>
    %318 = vector.shape_cast %317 : vector<1x64x32xbf16> to vector<64x32xbf16>
    %c5_324 = arith.constant 5 : index
    %c0_325 = arith.constant 0 : index
    %c0_326 = arith.constant 0 : index
    %319 = vector.load %arg11[%c5_324, %c0_325, %c0_326] : memref<10x32x128xbf16, #tpu.memory_space<vmem>>, vector<1x32x128xbf16>
    %320 = vector.shape_cast %319 : vector<1x32x128xbf16> to vector<32x128xbf16>
    %cst_327 = arith.constant dense<0.000000e+00> : vector<64x128xf32>
    %321 = tpu.matmul %318, %320, %cst_327 {dimension_numbers = #tpu.dot_dimension_numbers<[1], [0], [0], [1], [0, 0, 1, 1], [], []>} : vector<64x32xbf16>, vector<32x128xbf16>, vector<64x128xf32> -> vector<64x128xf32>
    %322 = arith.addf %316, %321 : vector<64x128xf32>
    %c2_328 = arith.constant 2 : index
    %c0_329 = arith.constant 0 : index
    %c0_330 = arith.constant 0 : index
    %323 = vector.load %arg4[%c2_328, %c0_329, %c0_330] : memref<3x64x32xbf16, #tpu.memory_space<vmem>>, vector<1x64x32xbf16>
    %324 = vector.shape_cast %323 : vector<1x64x32xbf16> to vector<64x32xbf16>
    %c6_331 = arith.constant 6 : index
    %c0_332 = arith.constant 0 : index
    %c0_333 = arith.constant 0 : index
    %325 = vector.load %arg11[%c6_331, %c0_332, %c0_333] : memref<10x32x128xbf16, #tpu.memory_space<vmem>>, vector<1x32x128xbf16>
    %326 = vector.shape_cast %325 : vector<1x32x128xbf16> to vector<32x128xbf16>
    %cst_334 = arith.constant dense<0.000000e+00> : vector<64x128xf32>
    %327 = tpu.matmul %324, %326, %cst_334 {dimension_numbers = #tpu.dot_dimension_numbers<[1], [0], [0], [1], [0, 0, 1, 1], [], []>} : vector<64x32xbf16>, vector<32x128xbf16>, vector<64x128xf32> -> vector<64x128xf32>
    %328 = arith.addf %322, %327 : vector<64x128xf32>
    %c0_335 = arith.constant 0 : index
    %c0_336 = arith.constant 0 : index
    %329 = vector.load %arg5[%c0_335, %c0_336] : memref<64x1xf32, #tpu.memory_space<vmem>>, vector<64x1xf32>
    %330 = vector.broadcast %329 : vector<64x1xf32> to vector<64x128xf32>
    %331 = arith.addf %328, %330 : vector<64x128xf32>
    %cst_337 = arith.constant 0.000000e+00 : f32
    %332 = vector.broadcast %cst_337 : f32 to vector<64x128xf32>
    %333 = arith.maximumf %331, %332 : vector<64x128xf32>
    %334 = arith.truncf %333 : vector<64x128xf32> to vector<64x128xbf16>
    %c256 = arith.constant 256 : index
    %c0_338 = arith.constant 0 : index
    %335 = vector.load %arg12[%c256, %c0_338] : memref<512x128xbf16, #tpu.memory_space<vmem>>, vector<64x128xbf16>
    tpu.vector_store %arg12[%c256, %c0_338], %334 {strides = array<i32>} : memref<512x128xbf16, #tpu.memory_space<vmem>>, vector<64x128xbf16>,
    %c0_339 = arith.constant 0 : index
    %c0_340 = arith.constant 0 : index
    %c0_341 = arith.constant 0 : index
    %336 = vector.load %arg4[%c0_339, %c0_340, %c0_341] : memref<3x64x32xbf16, #tpu.memory_space<vmem>>, vector<1x64x32xbf16>
    %337 = vector.shape_cast %336 : vector<1x64x32xbf16> to vector<64x32xbf16>
    %c5_342 = arith.constant 5 : index
    %c0_343 = arith.constant 0 : index
    %c0_344 = arith.constant 0 : index
    %338 = vector.load %arg11[%c5_342, %c0_343, %c0_344] : memref<10x32x128xbf16, #tpu.memory_space<vmem>>, vector<1x32x128xbf16>
    %339 = vector.shape_cast %338 : vector<1x32x128xbf16> to vector<32x128xbf16>
    %cst_345 = arith.constant dense<0.000000e+00> : vector<64x128xf32>
    %340 = tpu.matmul %337, %339, %cst_345 {dimension_numbers = #tpu.dot_dimension_numbers<[1], [0], [0], [1], [0, 0, 1, 1], [], []>} : vector<64x32xbf16>, vector<32x128xbf16>, vector<64x128xf32> -> vector<64x128xf32>
    %c1_346 = arith.constant 1 : index
    %c0_347 = arith.constant 0 : index
    %c0_348 = arith.constant 0 : index
    %341 = vector.load %arg4[%c1_346, %c0_347, %c0_348] : memref<3x64x32xbf16, #tpu.memory_space<vmem>>, vector<1x64x32xbf16>
    %342 = vector.shape_cast %341 : vector<1x64x32xbf16> to vector<64x32xbf16>
    %c6_349 = arith.constant 6 : index
    %c0_350 = arith.constant 0 : index
    %c0_351 = arith.constant 0 : index
    %343 = vector.load %arg11[%c6_349, %c0_350, %c0_351] : memref<10x32x128xbf16, #tpu.memory_space<vmem>>, vector<1x32x128xbf16>
    %344 = vector.shape_cast %343 : vector<1x32x128xbf16> to vector<32x128xbf16>
    %cst_352 = arith.constant dense<0.000000e+00> : vector<64x128xf32>
    %345 = tpu.matmul %342, %344, %cst_352 {dimension_numbers = #tpu.dot_dimension_numbers<[1], [0], [0], [1], [0, 0, 1, 1], [], []>} : vector<64x32xbf16>, vector<32x128xbf16>, vector<64x128xf32> -> vector<64x128xf32>
    %346 = arith.addf %340, %345 : vector<64x128xf32>
    %c2_353 = arith.constant 2 : index
    %c0_354 = arith.constant 0 : index
    %c0_355 = arith.constant 0 : index
    %347 = vector.load %arg4[%c2_353, %c0_354, %c0_355] : memref<3x64x32xbf16, #tpu.memory_space<vmem>>, vector<1x64x32xbf16>
    %348 = vector.shape_cast %347 : vector<1x64x32xbf16> to vector<64x32xbf16>
    %c7_356 = arith.constant 7 : index
    %c0_357 = arith.constant 0 : index
    %c0_358 = arith.constant 0 : index
    %349 = vector.load %arg11[%c7_356, %c0_357, %c0_358] : memref<10x32x128xbf16, #tpu.memory_space<vmem>>, vector<1x32x128xbf16>
    %350 = vector.shape_cast %349 : vector<1x32x128xbf16> to vector<32x128xbf16>
    %cst_359 = arith.constant dense<0.000000e+00> : vector<64x128xf32>
    %351 = tpu.matmul %348, %350, %cst_359 {dimension_numbers = #tpu.dot_dimension_numbers<[1], [0], [0], [1], [0, 0, 1, 1], [], []>} : vector<64x32xbf16>, vector<32x128xbf16>, vector<64x128xf32> -> vector<64x128xf32>
    %352 = arith.addf %346, %351 : vector<64x128xf32>
    %c0_360 = arith.constant 0 : index
    %c0_361 = arith.constant 0 : index
    %353 = vector.load %arg5[%c0_360, %c0_361] : memref<64x1xf32, #tpu.memory_space<vmem>>, vector<64x1xf32>
    %354 = vector.broadcast %353 : vector<64x1xf32> to vector<64x128xf32>
    %355 = arith.addf %352, %354 : vector<64x128xf32>
    %cst_362 = arith.constant 0.000000e+00 : f32
    %356 = vector.broadcast %cst_362 : f32 to vector<64x128xf32>
    %357 = arith.maximumf %355, %356 : vector<64x128xf32>
    %358 = arith.truncf %357 : vector<64x128xf32> to vector<64x128xbf16>
    %c320 = arith.constant 320 : index
    %c0_363 = arith.constant 0 : index
    %359 = vector.load %arg12[%c320, %c0_363] : memref<512x128xbf16, #tpu.memory_space<vmem>>, vector<64x128xbf16>
    tpu.vector_store %arg12[%c320, %c0_363], %358 {strides = array<i32>} : memref<512x128xbf16, #tpu.memory_space<vmem>>, vector<64x128xbf16>,
    %c0_364 = arith.constant 0 : index
    %c0_365 = arith.constant 0 : index
    %c0_366 = arith.constant 0 : index
    %360 = vector.load %arg4[%c0_364, %c0_365, %c0_366] : memref<3x64x32xbf16, #tpu.memory_space<vmem>>, vector<1x64x32xbf16>
    %361 = vector.shape_cast %360 : vector<1x64x32xbf16> to vector<64x32xbf16>
    %c6_367 = arith.constant 6 : index
    %c0_368 = arith.constant 0 : index
    %c0_369 = arith.constant 0 : index
    %362 = vector.load %arg11[%c6_367, %c0_368, %c0_369] : memref<10x32x128xbf16, #tpu.memory_space<vmem>>, vector<1x32x128xbf16>
    %363 = vector.shape_cast %362 : vector<1x32x128xbf16> to vector<32x128xbf16>
    %cst_370 = arith.constant dense<0.000000e+00> : vector<64x128xf32>
    %364 = tpu.matmul %361, %363, %cst_370 {dimension_numbers = #tpu.dot_dimension_numbers<[1], [0], [0], [1], [0, 0, 1, 1], [], []>} : vector<64x32xbf16>, vector<32x128xbf16>, vector<64x128xf32> -> vector<64x128xf32>
    %c1_371 = arith.constant 1 : index
    %c0_372 = arith.constant 0 : index
    %c0_373 = arith.constant 0 : index
    %365 = vector.load %arg4[%c1_371, %c0_372, %c0_373] : memref<3x64x32xbf16, #tpu.memory_space<vmem>>, vector<1x64x32xbf16>
    %366 = vector.shape_cast %365 : vector<1x64x32xbf16> to vector<64x32xbf16>
    %c7_374 = arith.constant 7 : index
    %c0_375 = arith.constant 0 : index
    %c0_376 = arith.constant 0 : index
    %367 = vector.load %arg11[%c7_374, %c0_375, %c0_376] : memref<10x32x128xbf16, #tpu.memory_space<vmem>>, vector<1x32x128xbf16>
    %368 = vector.shape_cast %367 : vector<1x32x128xbf16> to vector<32x128xbf16>
    %cst_377 = arith.constant dense<0.000000e+00> : vector<64x128xf32>
    %369 = tpu.matmul %366, %368, %cst_377 {dimension_numbers = #tpu.dot_dimension_numbers<[1], [0], [0], [1], [0, 0, 1, 1], [], []>} : vector<64x32xbf16>, vector<32x128xbf16>, vector<64x128xf32> -> vector<64x128xf32>
    %370 = arith.addf %364, %369 : vector<64x128xf32>
    %c2_378 = arith.constant 2 : index
    %c0_379 = arith.constant 0 : index
    %c0_380 = arith.constant 0 : index
    %371 = vector.load %arg4[%c2_378, %c0_379, %c0_380] : memref<3x64x32xbf16, #tpu.memory_space<vmem>>, vector<1x64x32xbf16>
    %372 = vector.shape_cast %371 : vector<1x64x32xbf16> to vector<64x32xbf16>
    %c8_381 = arith.constant 8 : index
    %c0_382 = arith.constant 0 : index
    %c0_383 = arith.constant 0 : index
    %373 = vector.load %arg11[%c8_381, %c0_382, %c0_383] : memref<10x32x128xbf16, #tpu.memory_space<vmem>>, vector<1x32x128xbf16>
    %374 = vector.shape_cast %373 : vector<1x32x128xbf16> to vector<32x128xbf16>
    %cst_384 = arith.constant dense<0.000000e+00> : vector<64x128xf32>
    %375 = tpu.matmul %372, %374, %cst_384 {dimension_numbers = #tpu.dot_dimension_numbers<[1], [0], [0], [1], [0, 0, 1, 1], [], []>} : vector<64x32xbf16>, vector<32x128xbf16>, vector<64x128xf32> -> vector<64x128xf32>
    %376 = arith.addf %370, %375 : vector<64x128xf32>
    %c0_385 = arith.constant 0 : index
    %c0_386 = arith.constant 0 : index
    %377 = vector.load %arg5[%c0_385, %c0_386] : memref<64x1xf32, #tpu.memory_space<vmem>>, vector<64x1xf32>
    %378 = vector.broadcast %377 : vector<64x1xf32> to vector<64x128xf32>
    %379 = arith.addf %376, %378 : vector<64x128xf32>
    %cst_387 = arith.constant 0.000000e+00 : f32
    %380 = vector.broadcast %cst_387 : f32 to vector<64x128xf32>
    %381 = arith.maximumf %379, %380 : vector<64x128xf32>
    %382 = arith.truncf %381 : vector<64x128xf32> to vector<64x128xbf16>
    %c384 = arith.constant 384 : index
    %c0_388 = arith.constant 0 : index
    %383 = vector.load %arg12[%c384, %c0_388] : memref<512x128xbf16, #tpu.memory_space<vmem>>, vector<64x128xbf16>
    tpu.vector_store %arg12[%c384, %c0_388], %382 {strides = array<i32>} : memref<512x128xbf16, #tpu.memory_space<vmem>>, vector<64x128xbf16>,
    %c0_389 = arith.constant 0 : index
    %c0_390 = arith.constant 0 : index
    %c0_391 = arith.constant 0 : index
    %384 = vector.load %arg4[%c0_389, %c0_390, %c0_391] : memref<3x64x32xbf16, #tpu.memory_space<vmem>>, vector<1x64x32xbf16>
    %385 = vector.shape_cast %384 : vector<1x64x32xbf16> to vector<64x32xbf16>
    %c7_392 = arith.constant 7 : index
    %c0_393 = arith.constant 0 : index
    %c0_394 = arith.constant 0 : index
    %386 = vector.load %arg11[%c7_392, %c0_393, %c0_394] : memref<10x32x128xbf16, #tpu.memory_space<vmem>>, vector<1x32x128xbf16>
    %387 = vector.shape_cast %386 : vector<1x32x128xbf16> to vector<32x128xbf16>
    %cst_395 = arith.constant dense<0.000000e+00> : vector<64x128xf32>
    %388 = tpu.matmul %385, %387, %cst_395 {dimension_numbers = #tpu.dot_dimension_numbers<[1], [0], [0], [1], [0, 0, 1, 1], [], []>} : vector<64x32xbf16>, vector<32x128xbf16>, vector<64x128xf32> -> vector<64x128xf32>
    %c1_396 = arith.constant 1 : index
    %c0_397 = arith.constant 0 : index
    %c0_398 = arith.constant 0 : index
    %389 = vector.load %arg4[%c1_396, %c0_397, %c0_398] : memref<3x64x32xbf16, #tpu.memory_space<vmem>>, vector<1x64x32xbf16>
    %390 = vector.shape_cast %389 : vector<1x64x32xbf16> to vector<64x32xbf16>
    %c8_399 = arith.constant 8 : index
    %c0_400 = arith.constant 0 : index
    %c0_401 = arith.constant 0 : index
    %391 = vector.load %arg11[%c8_399, %c0_400, %c0_401] : memref<10x32x128xbf16, #tpu.memory_space<vmem>>, vector<1x32x128xbf16>
    %392 = vector.shape_cast %391 : vector<1x32x128xbf16> to vector<32x128xbf16>
    %cst_402 = arith.constant dense<0.000000e+00> : vector<64x128xf32>
    %393 = tpu.matmul %390, %392, %cst_402 {dimension_numbers = #tpu.dot_dimension_numbers<[1], [0], [0], [1], [0, 0, 1, 1], [], []>} : vector<64x32xbf16>, vector<32x128xbf16>, vector<64x128xf32> -> vector<64x128xf32>
    %394 = arith.addf %388, %393 : vector<64x128xf32>
    %c2_403 = arith.constant 2 : index
    %c0_404 = arith.constant 0 : index
    %c0_405 = arith.constant 0 : index
    %395 = vector.load %arg4[%c2_403, %c0_404, %c0_405] : memref<3x64x32xbf16, #tpu.memory_space<vmem>>, vector<1x64x32xbf16>
    %396 = vector.shape_cast %395 : vector<1x64x32xbf16> to vector<64x32xbf16>
    %c9_406 = arith.constant 9 : index
    %c0_407 = arith.constant 0 : index
    %c0_408 = arith.constant 0 : index
    %397 = vector.load %arg11[%c9_406, %c0_407, %c0_408] : memref<10x32x128xbf16, #tpu.memory_space<vmem>>, vector<1x32x128xbf16>
    %398 = vector.shape_cast %397 : vector<1x32x128xbf16> to vector<32x128xbf16>
    %cst_409 = arith.constant dense<0.000000e+00> : vector<64x128xf32>
    %399 = tpu.matmul %396, %398, %cst_409 {dimension_numbers = #tpu.dot_dimension_numbers<[1], [0], [0], [1], [0, 0, 1, 1], [], []>} : vector<64x32xbf16>, vector<32x128xbf16>, vector<64x128xf32> -> vector<64x128xf32>
    %400 = arith.addf %394, %399 : vector<64x128xf32>
    %c0_410 = arith.constant 0 : index
    %c0_411 = arith.constant 0 : index
    %401 = vector.load %arg5[%c0_410, %c0_411] : memref<64x1xf32, #tpu.memory_space<vmem>>, vector<64x1xf32>
    %402 = vector.broadcast %401 : vector<64x1xf32> to vector<64x128xf32>
    %403 = arith.addf %400, %402 : vector<64x128xf32>
    %cst_412 = arith.constant 0.000000e+00 : f32
    %404 = vector.broadcast %cst_412 : f32 to vector<64x128xf32>
    %405 = arith.maximumf %403, %404 : vector<64x128xf32>
    %406 = arith.truncf %405 : vector<64x128xf32> to vector<64x128xbf16>
    %c448 = arith.constant 448 : index
    %c0_413 = arith.constant 0 : index
    %407 = vector.load %arg12[%c448, %c0_413] : memref<512x128xbf16, #tpu.memory_space<vmem>>, vector<64x128xbf16>
    tpu.vector_store %arg12[%c448, %c0_413], %406 {strides = array<i32>} : memref<512x128xbf16, #tpu.memory_space<vmem>>, vector<64x128xbf16>,
    %c0_414 = arith.constant 0 : index
    %c0_415 = arith.constant 0 : index
    %408 = vector.load %arg6[%c0_414, %c0_415] : memref<128x512xbf16, #tpu.memory_space<vmem>>, vector<128x512xbf16>
    %c0_416 = arith.constant 0 : index
    %c0_417 = arith.constant 0 : index
    %409 = vector.load %arg12[%c0_416, %c0_417] : memref<512x128xbf16, #tpu.memory_space<vmem>>, vector<512x128xbf16>
    %cst_418 = arith.constant dense<0.000000e+00> : vector<128x128xf32>
    %410 = tpu.matmul %408, %409, %cst_418 {dimension_numbers = #tpu.dot_dimension_numbers<[1], [0], [0], [1], [0, 0, 1, 1], [], []>} : vector<128x512xbf16>, vector<512x128xbf16>, vector<128x128xf32> -> vector<128x128xf32>
    %c0_419 = arith.constant 0 : index
    %c0_420 = arith.constant 0 : index
    %411 = vector.load %arg7[%c0_419, %c0_420] : memref<128x1xf32, #tpu.memory_space<vmem>>, vector<128x1xf32>
    %412 = vector.broadcast %411 : vector<128x1xf32> to vector<128x128xf32>
    %413 = arith.addf %410, %412 : vector<128x128xf32>
    %cst_421 = arith.constant 0.000000e+00 : f32
    %414 = vector.broadcast %cst_421 : f32 to vector<128x128xf32>
    %415 = arith.maximumf %413, %414 : vector<128x128xf32>
    %416 = arith.truncf %415 : vector<128x128xf32> to vector<128x128xbf16>
    %c0_422 = arith.constant 0 : index
    %c0_423 = arith.constant 0 : index
    %417 = vector.load %arg8[%c0_422, %c0_423] : memref<8x128xbf16, #tpu.memory_space<vmem>>, vector<8x128xbf16>
    %cst_424 = arith.constant dense<0.000000e+00> : vector<8x128xf32>
    %418 = tpu.matmul %417, %416, %cst_424 {dimension_numbers = #tpu.dot_dimension_numbers<[1], [0], [0], [1], [0, 0, 1, 1], [], []>} : vector<8x128xbf16>, vector<128x128xbf16>, vector<8x128xf32> -> vector<8x128xf32>
    %c0_425 = arith.constant 0 : index
    %c0_426 = arith.constant 0 : index
    %419 = vector.load %arg9[%c0_425, %c0_426] : memref<8x1xf32, #tpu.memory_space<vmem>>, vector<8x1xf32>
    %420 = vector.broadcast %419 : vector<8x1xf32> to vector<8x128xf32>
    %421 = arith.addf %418, %420 : vector<8x128xf32>
    %c0_427 = arith.constant 0 : index
    %c0_428 = arith.constant 0 : index
    %422 = vector.load %arg10[%c0_427, %c0_428] : memref<8x128xf32, #tpu.memory_space<vmem>>, vector<8x128xf32>
    tpu.vector_store %arg10[%c0_427, %c0_428], %421 {strides = array<i32>} : memref<8x128xf32, #tpu.memory_space<vmem>>, vector<8x128xf32>,
    return
  }
  func.func @transform_0(%arg0: i32) -> (i32, i32, i32) {
    %c0_i32 = arith.constant 0 : i32
    %c0_i32_0 = arith.constant 0 : i32
    %c0_i32_1 = arith.constant 0 : i32
    return %c0_i32, %c0_i32_0, %arg0 : i32, i32, i32
  }
  func.func @transform_1(%arg0: i32) -> (i32, i32, i32) {
    %c0_i32 = arith.constant 0 : i32
    %c0_i32_0 = arith.constant 0 : i32
    %c0_i32_1 = arith.constant 0 : i32
    %c0_i32_2 = arith.constant 0 : i32
    return %c0_i32, %c0_i32_0, %c0_i32_1 : i32, i32, i32
  }
  func.func @transform_2(%arg0: i32) -> (i32, i32) {
    %c0_i32 = arith.constant 0 : i32
    %c0_i32_0 = arith.constant 0 : i32
    %c0_i32_1 = arith.constant 0 : i32
    return %c0_i32, %c0_i32_0 : i32, i32
  }
  func.func @transform_3(%arg0: i32) -> (i32, i32, i32) {
    %c0_i32 = arith.constant 0 : i32
    %c0_i32_0 = arith.constant 0 : i32
    %c0_i32_1 = arith.constant 0 : i32
    %c0_i32_2 = arith.constant 0 : i32
    return %c0_i32, %c0_i32_0, %c0_i32_1 : i32, i32, i32
  }
  func.func @transform_4(%arg0: i32) -> (i32, i32) {
    %c0_i32 = arith.constant 0 : i32
    %c0_i32_0 = arith.constant 0 : i32
    %c0_i32_1 = arith.constant 0 : i32
    return %c0_i32, %c0_i32_0 : i32, i32
  }
  func.func @transform_5(%arg0: i32) -> (i32, i32) {
    %c0_i32 = arith.constant 0 : i32
    %c0_i32_0 = arith.constant 0 : i32
    %c0_i32_1 = arith.constant 0 : i32
    return %c0_i32, %c0_i32_0 : i32, i32
  }
  func.func @transform_6(%arg0: i32) -> (i32, i32) {
    %c0_i32 = arith.constant 0 : i32
    %c0_i32_0 = arith.constant 0 : i32
    %c0_i32_1 = arith.constant 0 : i32
    return %c0_i32, %c0_i32_0 : i32, i32
  }
  func.func @transform_7(%arg0: i32) -> (i32, i32) {
    %c0_i32 = arith.constant 0 : i32
    %c0_i32_0 = arith.constant 0 : i32
    %c0_i32_1 = arith.constant 0 : i32
    return %c0_i32, %c0_i32_0 : i32, i32
  }
  func.func @transform_8(%arg0: i32) -> (i32, i32) {
    %c0_i32 = arith.constant 0 : i32
    %c0_i32_0 = arith.constant 0 : i32
    %c0_i32_1 = arith.constant 0 : i32
    return %c0_i32, %c0_i32_0 : i32, i32
  }
  func.func @transform_9(%arg0: i32) -> (i32, i32) {
    %c0_i32 = arith.constant 0 : i32
    %c0_i32_0 = arith.constant 0 : i32
    return %c0_i32, %arg0 : i32, i32
  }
}

</mosaic_0001>

<llo_original>
// kernel: tpu_custom_call.1
$region0: #{tpu_custom_call.1}
  #allocation0 [shape = 'u32[]', space=smem, size = 0x4, offset = 0x4, fixed_abs, tag = 'smem constant byte address 0x4 - core index']
  #allocation1 [shape = 'u32[144,128]{1,0:T(1,128)}', space=vmem, size = 0x12000, scoped, tag = 'internal scratch']
  #allocation2 [shape = 'bf16[10,32,128]{2,1,0:T(8,128)(2,1)}', space=vmem, size = 0x14000, scoped, tag = 'scratch operand']
  #allocation3 [shape = 'bf16[512,128]{1,0:T(8,128)(2,1)}', space=vmem, size = 0x20000, scoped, tag = 'scratch operand']
  %s0 = inlined_call_operand.vmem [shape: bf16[10,8,128], index: 0, kind: input, shape index: {}]
  %s1 = inlined_call_operand.vmem [shape: bf16[3,32,8], index: 1, kind: input, shape index: {}]
  %s2 = inlined_call_operand.vmem [shape: f32[32,1], index: 2, kind: input, shape index: {}]
  %s3 = inlined_call_operand.vmem [shape: bf16[3,64,32], index: 3, kind: input, shape index: {}]
  %s4 = inlined_call_operand.vmem [shape: f32[64,1], index: 4, kind: input, shape index: {}]
  %s5 = inlined_call_operand.vmem [shape: bf16[128,512], index: 5, kind: input, shape index: {}]
  %s6 = inlined_call_operand.vmem [shape: f32[128,1], index: 6, kind: input, shape index: {}]
  %s7 = inlined_call_operand.vmem [shape: bf16[8,128], index: 7, kind: input, shape index: {}]
  %s8 = inlined_call_operand.vmem [shape: f32[8,1], index: 8, kind: input, shape index: {}]
  %s9 = inlined_call_operand.hbm [shape: f32[8,128], index: 9, kind: output, shape index: {}]
  %s10 = sld [smem:[#allocation0]]
  $region46: #{tpu_custom_call.1} parent=0
    _
  %s12 = ssub.s32 1, %s10
  %s13 = scalar_select 0, %s12, %s10
  $region1: #{tpu_custom_call.1} parent=0
    #allocation4 [shape = 'u8[4096]{0}', space=vmem, size = 0x1000, scoped, tag = 'output window, operand 0, single buffered']
    #allocation5 [shape = 's32[1]{0}', space=sflag, size = 0x4, scoped, tag = 'scoped memory for tpu_custom_call.1']
    %14 = vsyncpa [#allocation5], 0
    // Predicated region
    $region2: #{tpu_custom_call.1} parent=1 // pred_check
      _
    $region3: #{tpu_custom_call.1} parent=1 // pred_check_branch
      %16 = sbr.rel (0) target = $region5
    $region4: #{tpu_custom_call.1} parent=1 // pred_region
      _
    $region5: #{tpu_custom_call.1} parent=1 // pred_fallthru
      _
    // Predicated region
    $region6: #{tpu_custom_call.1} parent=1 // pred_check
      _
    $region7: #{tpu_custom_call.1} parent=1 // pred_check_branch
      %18 = sbr.rel (0) target = $region9
    $region8: #{tpu_custom_call.1} parent=1 // pred_region
      _
    $region9: #{tpu_custom_call.1} parent=1 // pred_fallthru
      _
    // Predicated region
    $region10: #{tpu_custom_call.1} parent=1 // pred_check
      _
    $region11: #{tpu_custom_call.1} parent=1 // pred_check_branch
      %20 = sbr.rel (0) target = $region13
    $region12: #{tpu_custom_call.1} parent=1 // pred_region
      _
    $region13: #{tpu_custom_call.1} parent=1 // pred_fallthru
      _
    // Predicated region
    $region14: #{tpu_custom_call.1} parent=1 // pred_check
      _
    $region15: #{tpu_custom_call.1} parent=1 // pred_check_branch
      %22 = sbr.rel (0) target = $region17
    $region16: #{tpu_custom_call.1} parent=1 // pred_region
      _
    $region17: #{tpu_custom_call.1} parent=1 // pred_fallthru
      _
    // Predicated region
    $region18: #{tpu_custom_call.1} parent=1 // pred_check
      _
    $region19: #{tpu_custom_call.1} parent=1 // pred_check_branch
      %24 = sbr.rel (0) target = $region21
    $region20: #{tpu_custom_call.1} parent=1 // pred_region
      _
    $region21: #{tpu_custom_call.1} parent=1 // pred_fallthru
      _
    // Predicated region
    $region22: #{tpu_custom_call.1} parent=1 // pred_check
      _
    $region23: #{tpu_custom_call.1} parent=1 // pred_check_branch
      %26 = sbr.rel (0) target = $region25
    $region24: #{tpu_custom_call.1} parent=1 // pred_region
      _
    $region25: #{tpu_custom_call.1} parent=1 // pred_fallthru
      _
    // Predicated region
    $region26: #{tpu_custom_call.1} parent=1 // pred_check
      _
    $region27: #{tpu_custom_call.1} parent=1 // pred_check_branch
      %28 = sbr.rel (0) target = $region29
    $region28: #{tpu_custom_call.1} parent=1 // pred_region
      _
    $region29: #{tpu_custom_call.1} parent=1 // pred_fallthru
      _
    // Predicated region
    $region30: #{tpu_custom_call.1} parent=1 // pred_check
      _
    $region31: #{tpu_custom_call.1} parent=1 // pred_check_branch
      %30 = sbr.rel (0) target = $region33
    $region32: #{tpu_custom_call.1} parent=1 // pred_region
      _
    $region33: #{tpu_custom_call.1} parent=1 // pred_fallthru
      _
    // Predicated region
    $region34: #{tpu_custom_call.1} parent=1 // pred_check
      _
    $region35: #{tpu_custom_call.1} parent=1 // pred_check_branch
      %32 = sbr.rel (0) target = $region37
    $region36: #{tpu_custom_call.1} parent=1 // pred_region
      _
    $region37: #{tpu_custom_call.1} parent=1 // pred_fallthru
      _
    %34 = vst [vmem:[#allocation2] sm:$0xf] 0
    %35 = vst [vmem:[#allocation2 + $0x4] sm:$0xf] 0
    %36 = vst [vmem:[#allocation2 + $0x8] sm:$0xf] 0
    %37 = vst [vmem:[#allocation2 + $0xc] sm:$0xf] 0
    %s38 = scalar_lea.vmem [#allocation2], 144
    %39 = vst [vmem:[%s38] sm:$0xf] 0
    %40 = vst [vmem:[%s38 + $0x4] sm:$0xf] 0
    %41 = vst [vmem:[%s38 + $0x8] sm:$0xf] 0
    %42 = vst [vmem:[%s38 + $0xc] sm:$0xf] 0
    %v43 = vld [vmem:[%s1] sm:$0xf]
    %v44 = vld [vmem:[%s1 + $0x4] sm:$0xf]
    %v45 = vld [vmem:[%s1 + $0x8] sm:$0xf]
    %v46 = vld [vmem:[%s1 + $0xc] sm:$0xf]
    %v47 = vld [vmem:[%s0] sm:$0xf]
    %s48 = scalar_lea.vmem %s1, 16
    %v49 = vld [vmem:[%s48] sm:$0xf]
    %v50 = vld [vmem:[%s48 + $0x4] sm:$0xf]
    %v51 = vld [vmem:[%s48 + $0x8] sm:$0xf]
    %v52 = vld [vmem:[%s48 + $0xc] sm:$0xf]
    %s53 = scalar_lea.vmem %s0, 4
    %v54 = vld [vmem:[%s53] sm:$0xf]
    %v59 = vunpack.c.l.b16 %v49
    %v60 = vunpack.c.l.b16 %v50
    %v61 = vunpack.c.l.b16 %v51
    %v62 = vunpack.c.l.b16 %v52
    %v63 = vpack.c.b16 %v60, %v59
    %v64 = vpack.c.b16 %v62, %v61
    %vm65 = vcmask 64512
    %v67 = vsel %vm65, %v63, 0
    %v70 = vsel %vm65, %v64, 0
    %vm72 = vcmask 1043456
    %v74 = vsel %vm72, %v54, 0
    %76 = vmatprep.subr.bf16.mxu0 0
    %77 = vmatpush1.bf16.msra.mxu0 0
    %78 = vmatprep.subr.bf16.mxu0 0
    %79 = vmatpush1.bf16.msra.mxu0 0
    %80 = vmatprep.subr.bf16.mxu0 0
    %81 = vmatpush1.bf16.msra.mxu0 0
    %82 = vmatprep.subr.bf16.mxu0 0
    %83 = vmatpush1.bf16.msra.mxu0 0
    %84 = vmatprep.subr.bf16.mxu0 0
    %85 = vmatpush1.bf16.msra.mxu0 0
    %86 = vmatprep.subr.bf16.mxu0 0
    %87 = vmatpush1.bf16.msra.mxu0 0
    %88 = vmatprep.subr.bf16.mxu0 0
    %89 = vmatpush1.bf16.msra.mxu0 0
    %90 = vmatprep.subr.bf16.mxu0 0
    %91 = vmatpush1.bf16.msra.mxu0 %v74
    %92 = vmatprep.subr.bf16.mxu0 0
    %93 = vmatpush2.bf16.msra.mxu0 0
    %94 = vmatprep.subr.bf16.mxu0 0
    %95 = vmatpush2.bf16.msra.mxu0 0
    %96 = vmatprep.subr.bf16.mxu0 0
    %97 = vmatpush2.bf16.msra.mxu0 0
    %98 = vmatprep.subr.bf16.mxu0 0
    %99 = vmatpush2.bf16.msra.mxu0 0
    %100 = vmatprep.subr.bf16.mxu0 0
    %101 = vmatpush2.bf16.msra.mxu0 0
    %102 = vmatprep.subr.bf16.mxu0 0
    %103 = vmatpush2.bf16.msra.mxu0 0
    %104 = vmatprep.subr.bf16.mxu0 0
    %105 = vmatpush2.bf16.msra.mxu0 0
    %106 = vmatprep.subr.bf16.mxu0 0
    %107 = vmatpush2.bf16.msra.mxu0 0
    %108 = vmatprep.mubr.bf16.mxu0 0
    %109 = vmatmul.mubr.bf16.gmra.mxu0 %v67
    %v110 = vpop.f32.mrf.mxu0
    %v111 = vadd.f32 0.0, %v110
    %v112 = vpop.f32.mrf.mxu0
    %v113 = vpop.f32.mrf.mxu0
    %v114 = vadd.f32 0.0, %v113
    %v115 = vpop.f32.mrf.mxu0
    %116 = vmatprep.mubr.bf16.mxu0 0
    %117 = vmatmul.mubr.bf16.gmra.mxu0 %v70
    %v118 = vpop.f32.mrf.mxu0
    %v119 = vadd.f32 0.0, %v118
    %v120 = vpop.f32.mrf.mxu0
    %v121 = vpop.f32.mrf.mxu0
    %v122 = vadd.f32 0.0, %v121
    %v123 = vpop.f32.mrf.mxu0
    %124 = vdwg.mxu0
    %v129 = vunpack.c.l.b16 %v43
    %v130 = vunpack.c.l.b16 %v44
    %v131 = vunpack.c.l.b16 %v45
    %v132 = vunpack.c.l.b16 %v46
    %v133 = vpack.c.b16 %v130, %v129
    %v134 = vpack.c.b16 %v132, %v131
    %v136 = vsel %vm65, %v133, 0
    %v139 = vsel %vm65, %v134, 0
    %v142 = vsel %vm72, %v47, 0
    %144 = vmatprep.subr.bf16.mxu0 0
    %145 = vmatpush1.bf16.msra.mxu0 0
    %146 = vmatprep.subr.bf16.mxu0 0
    %147 = vmatpush1.bf16.msra.mxu0 0
    %148 = vmatprep.subr.bf16.mxu0 0
    %149 = vmatpush1.bf16.msra.mxu0 0
    %150 = vmatprep.subr.bf16.mxu0 0
    %151 = vmatpush1.bf16.msra.mxu0 0
    %152 = vmatprep.subr.bf16.mxu0 0
    %153 = vmatpush1.bf16.msra.mxu0 0
    %154 = vmatprep.subr.bf16.mxu0 0
    %155 = vmatpush1.bf16.msra.mxu0 0
    %156 = vmatprep.subr.bf16.mxu0 0
    %157 = vmatpush1.bf16.msra.mxu0 0
    %158 = vmatprep.subr.bf16.mxu0 0
    %159 = vmatpush1.bf16.msra.mxu0 %v142
    %160 = vmatprep.subr.bf16.mxu0 0
    %161 = vmatpush2.bf16.msra.mxu0 0
    %162 = vmatprep.subr.bf16.mxu0 0
    %163 = vmatpush2.bf16.msra.mxu0 0
    %164 = vmatprep.subr.bf16.mxu0 0
    %165 = vmatpush2.bf16.msra.mxu0 0
    %166 = vmatprep.subr.bf16.mxu0 0
    %167 = vmatpush2.bf16.msra.mxu0 0
    %168 = vmatprep.subr.bf16.mxu0 0
    %169 = vmatpush2.bf16.msra.mxu0 0
    %170 = vmatprep.subr.bf16.mxu0 0
    %171 = vmatpush2.bf16.msra.mxu0 0
    %172 = vmatprep.subr.bf16.mxu0 0
    %173 = vmatpush2.bf16.msra.mxu0 0
    %174 = vmatprep.subr.bf16.mxu0 0
    %175 = vmatpush2.bf16.msra.mxu0 0
    %176 = vmatprep.mubr.bf16.mxu0 0
    %177 = vmatmul.mubr.bf16.gmra.mxu0 %v136
    %v178 = vpop.f32.mrf.mxu0
    %v179 = vadd.f32 %v111, %v178
    %v180 = vpop.f32.mrf.mxu0
    %v181 = vpop.f32.mrf.mxu0
    %v182 = vadd.f32 %v114, %v181
    %v183 = vpop.f32.mrf.mxu0
    %184 = vmatprep.mubr.bf16.mxu0 0
    %185 = vmatmul.mubr.bf16.gmra.mxu0 %v139
    %v186 = vpop.f32.mrf.mxu0
    %v187 = vadd.f32 %v119, %v186
    %v188 = vpop.f32.mrf.mxu0
    %v189 = vpop.f32.mrf.mxu0
    %v190 = vadd.f32 %v122, %v189
    %v191 = vpop.f32.mrf.mxu0
    %192 = vdwg.mxu0
    %s193 = scalar_lea.vmem %s1, 32
    %v194 = vld [vmem:[%s193] sm:$0xf]
    %v195 = vld [vmem:[%s193 + $0x4] sm:$0xf]
    %v196 = vld [vmem:[%s193 + $0x8] sm:$0xf]
    %v197 = vld [vmem:[%s193 + $0xc] sm:$0xf]
    %s198 = scalar_lea.vmem %s0, 8
    %v199 = vld [vmem:[%s198] sm:$0xf]
    %v204 = vunpack.c.l.b16 %v194
    %v205 = vunpack.c.l.b16 %v195
    %v206 = vunpack.c.l.b16 %v196
    %v207 = vunpack.c.l.b16 %v197
    %v208 = vpack.c.b16 %v205, %v204
    %v209 = vpack.c.b16 %v207, %v206
    %v211 = vsel %vm65, %v208, 0
    %v214 = vsel %vm65, %v209, 0
    %v217 = vsel %vm72, %v199, 0
    %219 = vmatprep.subr.bf16.mxu0 0
    %220 = vmatpush1.bf16.msra.mxu0 0
    %221 = vmatprep.subr.bf16.mxu0 0
    %222 = vmatpush1.bf16.msra.mxu0 0
    %223 = vmatprep.subr.bf16.mxu0 0
    %224 = vmatpush1.bf16.msra.mxu0 0
    %225 = vmatprep.subr.bf16.mxu0 0
    %226 = vmatpush1.bf16.msra.mxu0 0
    %227 = vmatprep.subr.bf16.mxu0 0
    %228 = vmatpush1.bf16.msra.mxu0 0
    %229 = vmatprep.subr.bf16.mxu0 0
    %230 = vmatpush1.bf16.msra.mxu0 0
    %231 = vmatprep.subr.bf16.mxu0 0
    %232 = vmatpush1.bf16.msra.mxu0 0
    %233 = vmatprep.subr.bf16.mxu0 0
    %234 = vmatpush1.bf16.msra.mxu0 %v217
    %235 = vmatprep.subr.bf16.mxu0 0
    %236 = vmatpush2.bf16.msra.mxu0 0
    %237 = vmatprep.subr.bf16.mxu0 0
    %238 = vmatpush2.bf16.msra.mxu0 0
    %239 = vmatprep.subr.bf16.mxu0 0
    %240 = vmatpush2.bf16.msra.mxu0 0
    %241 = vmatprep.subr.bf16.mxu0 0
    %242 = vmatpush2.bf16.msra.mxu0 0
    %243 = vmatprep.subr.bf16.mxu0 0
    %244 = vmatpush2.bf16.msra.mxu0 0
    %245 = vmatprep.subr.bf16.mxu0 0
    %246 = vmatpush2.bf16.msra.mxu0 0
    %247 = vmatprep.subr.bf16.mxu0 0
    %248 = vmatpush2.bf16.msra.mxu0 0
    %249 = vmatprep.subr.bf16.mxu0 0
    %250 = vmatpush2.bf16.msra.mxu0 0
    %251 = vmatprep.mubr.bf16.mxu0 0
    %252 = vmatmul.mubr.bf16.gmra.mxu0 %v211
    %v253 = vpop.f32.mrf.mxu0
    %v254 = vadd.f32 0.0, %v253
    %v255 = vpop.f32.mrf.mxu0
    %v256 = vpop.f32.mrf.mxu0
    %v257 = vadd.f32 0.0, %v256
    %v258 = vpop.f32.mrf.mxu0
    %259 = vmatprep.mubr.bf16.mxu0 0
    %260 = vmatmul.mubr.bf16.gmra.mxu0 %v214
    %v261 = vpop.f32.mrf.mxu0
    %v262 = vadd.f32 0.0, %v261
    %v263 = vpop.f32.mrf.mxu0
    %v264 = vpop.f32.mrf.mxu0
    %v265 = vadd.f32 0.0, %v264
    %v266 = vpop.f32.mrf.mxu0
    %267 = vdwg.mxu0
    %v268 = vadd.f32 %v179, %v254
    %v269 = vadd.f32 %v182, %v257
    %v270 = vadd.f32 %v187, %v262
    %v271 = vadd.f32 %v190, %v265
    %v272 = vld [vmem:[%s2] sm:$0xff]
    %v273 = vld [vmem:[%s2 + $0x8] sm:$0xff]
    %v274 = vld [vmem:[%s2 + $0x10] sm:$0xff]
    %v275 = vld [vmem:[%s2 + $0x18] sm:$0xff]
    %277 = vset.pattern.permute.xlu0 0
    %278 = vperm.xlu0 %277, %v272
    %v279 = vpop.permute.xlu0 %278
    %282 = vset.pattern.permute.xlu0 0
    %283 = vperm.xlu0 %282, %v273
    %v284 = vpop.permute.xlu0 %283
    %287 = vset.pattern.permute.xlu0 0
    %288 = vperm.xlu0 %287, %v274
    %v289 = vpop.permute.xlu0 %288
    %292 = vset.pattern.permute.xlu0 0
    %293 = vperm.xlu0 %292, %v275
    %v294 = vpop.permute.xlu0 %293
    %v296 = vadd.f32 %v268, %v279
    %v297 = vadd.f32 %v269, %v284
    %v298 = vadd.f32 %v270, %v289
    %v299 = vadd.f32 %v271, %v294
    %v300 = vmax.f32 %v296, 0.0
    %v301 = vmax.f32 %v297, 0.0
    %v302 = vmax.f32 %v298, 0.0
    %v303 = vmax.f32 %v299, 0.0
    %v304 = vpack.c.bf16 %v301, %v300
    %v305 = vpack.c.bf16 %v303, %v302
    %v308 = vunpack.c.l.b16 %v304
    %v309 = vunpack.c.h.b16 %v304
    %v310 = vunpack.c.l.b16 %v305
    %v311 = vunpack.c.h.b16 %v305
    %v312 = vpack.c.b16 %v308, %v308
    %v313 = vpack.c.b16 %v309, %v309
    %v314 = vpack.c.b16 %v310, %v310
    %v315 = vpack.c.b16 %v311, %v311
    %s320 = scalar_lea.vmem [#allocation2], 16
    %321 = vst [vmem:[%s320] sm:$0xf] %v312
    %322 = vst [vmem:[%s320 + $0x4] sm:$0xf] %v313
    %323 = vst [vmem:[%s320 + $0x8] sm:$0xf] %v314
    %324 = vst [vmem:[%s320 + $0xc] sm:$0xf] %v315
    %v325 = vld [vmem:[%s1] sm:$0xf]
    %v326 = vld [vmem:[%s1 + $0x4] sm:$0xf]
    %v327 = vld [vmem:[%s1 + $0x8] sm:$0xf]
    %v328 = vld [vmem:[%s1 + $0xc] sm:$0xf]
    %v329 = vld [vmem:[%s53] sm:$0xf]
    %v330 = vld [vmem:[%s48] sm:$0xf]
    %v331 = vld [vmem:[%s48 + $0x4] sm:$0xf]
    %v332 = vld [vmem:[%s48 + $0x8] sm:$0xf]
    %v333 = vld [vmem:[%s48 + $0xc] sm:$0xf]
    %v334 = vld [vmem:[%s198] sm:$0xf]
    %v339 = vunpack.c.l.b16 %v330
    %v340 = vunpack.c.l.b16 %v331
    %v341 = vunpack.c.l.b16 %v332
    %v342 = vunpack.c.l.b16 %v333
    %v343 = vpack.c.b16 %v340, %v339
    %v344 = vpack.c.b16 %v342, %v341
    %v346 = vsel %vm65, %v343, 0
    %v349 = vsel %vm65, %v344, 0
    %v352 = vsel %vm72, %v334, 0
    %354 = vmatprep.subr.bf16.mxu0 0
    %355 = vmatpush1.bf16.msra.mxu0 0
    %356 = vmatprep.subr.bf16.mxu0 0
    %357 = vmatpush1.bf16.msra.mxu0 0
    %358 = vmatprep.subr.bf16.mxu0 0
    %359 = vmatpush1.bf16.msra.mxu0 0
    %360 = vmatprep.subr.bf16.mxu0 0
    %361 = vmatpush1.bf16.msra.mxu0 0
    %362 = vmatprep.subr.bf16.mxu0 0
    %363 = vmatpush1.bf16.msra.mxu0 0
    %364 = vmatprep.subr.bf16.mxu0 0
    %365 = vmatpush1.bf16.msra.mxu0 0
    %366 = vmatprep.subr.bf16.mxu0 0
    %367 = vmatpush1.bf16.msra.mxu0 0
    %368 = vmatprep.subr.bf16.mxu0 0
    %369 = vmatpush1.bf16.msra.mxu0 %v352
    %370 = vmatprep.subr.bf16.mxu0 0
    %371 = vmatpush2.bf16.msra.mxu0 0
    %372 = vmatprep.subr.bf16.mxu0 0
    %373 = vmatpush2.bf16.msra.mxu0 0
    %374 = vmatprep.subr.bf16.mxu0 0
    %375 = vmatpush2.bf16.msra.mxu0 0
    %376 = vmatprep.subr.bf16.mxu0 0
    %377 = vmatpush2.bf16.msra.mxu0 0
    %378 = vmatprep.subr.bf16.mxu0 0
    %379 = vmatpush2.bf16.msra.mxu0 0
    %380 = vmatprep.subr.bf16.mxu0 0
    %381 = vmatpush2.bf16.msra.mxu0 0
    %382 = vmatprep.subr.bf16.mxu0 0
    %383 = vmatpush2.bf16.msra.mxu0 0
    %384 = vmatprep.subr.bf16.mxu0 0
    %385 = vmatpush2.bf16.msra.mxu0 0
    %386 = vmatprep.mubr.bf16.mxu0 0
    %387 = vmatmul.mubr.bf16.gmra.mxu0 %v346
    %v388 = vpop.f32.mrf.mxu0
    %v389 = vadd.f32 0.0, %v388
    %v390 = vpop.f32.mrf.mxu0
    %v391 = vpop.f32.mrf.mxu0
    %v392 = vadd.f32 0.0, %v391
    %v393 = vpop.f32.mrf.mxu0
    %394 = vmatprep.mubr.bf16.mxu0 0
    %395 = vmatmul.mubr.bf16.gmra.mxu0 %v349
    %v396 = vpop.f32.mrf.mxu0
    %v397 = vadd.f32 0.0, %v396
    %v398 = vpop.f32.mrf.mxu0
    %v399 = vpop.f32.mrf.mxu0
    %v400 = vadd.f32 0.0, %v399
    %v401 = vpop.f32.mrf.mxu0
    %402 = vdwg.mxu0
    %v407 = vunpack.c.l.b16 %v325
    %v408 = vunpack.c.l.b16 %v326
    %v409 = vunpack.c.l.b16 %v327
    %v410 = vunpack.c.l.b16 %v328
    %v411 = vpack.c.b16 %v408, %v407
    %v412 = vpack.c.b16 %v410, %v409
    %v414 = vsel %vm65, %v411, 0
    %v417 = vsel %vm65, %v412, 0
    %v420 = vsel %vm72, %v329, 0
    %422 = vmatprep.subr.bf16.mxu0 0
    %423 = vmatpush1.bf16.msra.mxu0 0
    %424 = vmatprep.subr.bf16.mxu0 0
    %425 = vmatpush1.bf16.msra.mxu0 0
    %426 = vmatprep.subr.bf16.mxu0 0
    %427 = vmatpush1.bf16.msra.mxu0 0
    %428 = vmatprep.subr.bf16.mxu0 0
    %429 = vmatpush1.bf16.msra.mxu0 0
    %430 = vmatprep.subr.bf16.mxu0 0
    %431 = vmatpush1.bf16.msra.mxu0 0
    %432 = vmatprep.subr.bf16.mxu0 0
    %433 = vmatpush1.bf16.msra.mxu0 0
    %434 = vmatprep.subr.bf16.mxu0 0
    %435 = vmatpush1.bf16.msra.mxu0 0
    %436 = vmatprep.subr.bf16.mxu0 0
    %437 = vmatpush1.bf16.msra.mxu0 %v420
    %438 = vmatprep.subr.bf16.mxu0 0
    %439 = vmatpush2.bf16.msra.mxu0 0
    %440 = vmatprep.subr.bf16.mxu0 0
    %441 = vmatpush2.bf16.msra.mxu0 0
    %442 = vmatprep.subr.bf16.mxu0 0
    %443 = vmatpush2.bf16.msra.mxu0 0
    %444 = vmatprep.subr.bf16.mxu0 0
    %445 = vmatpush2.bf16.msra.mxu0 0
    %446 = vmatprep.subr.bf16.mxu0 0
    %447 = vmatpush2.bf16.msra.mxu0 0
    %448 = vmatprep.subr.bf16.mxu0 0
    %449 = vmatpush2.bf16.msra.mxu0 0
    %450 = vmatprep.subr.bf16.mxu0 0
    %451 = vmatpush2.bf16.msra.mxu0 0
    %452 = vmatprep.subr.bf16.mxu0 0
    %453 = vmatpush2.bf16.msra.mxu0 0
    %454 = vmatprep.mubr.bf16.mxu0 0
    %455 = vmatmul.mubr.bf16.gmra.mxu0 %v414
    %v456 = vpop.f32.mrf.mxu0
    %v457 = vadd.f32 %v389, %v456
    %v458 = vpop.f32.mrf.mxu0
    %v459 = vpop.f32.mrf.mxu0
    %v460 = vadd.f32 %v392, %v459
    %v461 = vpop.f32.mrf.mxu0
    %462 = vmatprep.mubr.bf16.mxu0 0
    %463 = vmatmul.mubr.bf16.gmra.mxu0 %v417
    %v464 = vpop.f32.mrf.mxu0
    %v465 = vadd.f32 %v397, %v464
    %v466 = vpop.f32.mrf.mxu0
    %v467 = vpop.f32.mrf.mxu0
    %v468 = vadd.f32 %v400, %v467
    %v469 = vpop.f32.mrf.mxu0
    %470 = vdwg.mxu0
    %v471 = vld [vmem:[%s193] sm:$0xf]
    %v472 = vld [vmem:[%s193 + $0x4] sm:$0xf]
    %v473 = vld [vmem:[%s193 + $0x8] sm:$0xf]
    %v474 = vld [vmem:[%s193 + $0xc] sm:$0xf]
    %s475 = scalar_lea.vmem %s0, 12
    %v476 = vld [vmem:[%s475] sm:$0xf]
    %v481 = vunpack.c.l.b16 %v471
    %v482 = vunpack.c.l.b16 %v472
    %v483 = vunpack.c.l.b16 %v473
    %v484 = vunpack.c.l.b16 %v474
    %v485 = vpack.c.b16 %v482, %v481
    %v486 = vpack.c.b16 %v484, %v483
    %v488 = vsel %vm65, %v485, 0
    %v491 = vsel %vm65, %v486, 0
    %v494 = vsel %vm72, %v476, 0
    %496 = vmatprep.subr.bf16.mxu0 0
    %497 = vmatpush1.bf16.msra.mxu0 0
    %498 = vmatprep.subr.bf16.mxu0 0
    %499 = vmatpush1.bf16.msra.mxu0 0
    %500 = vmatprep.subr.bf16.mxu0 0
    %501 = vmatpush1.bf16.msra.mxu0 0
    %502 = vmatprep.subr.bf16.mxu0 0
    %503 = vmatpush1.bf16.msra.mxu0 0
    %504 = vmatprep.subr.bf16.mxu0 0
    %505 = vmatpush1.bf16.msra.mxu0 0
    %506 = vmatprep.subr.bf16.mxu0 0
    %507 = vmatpush1.bf16.msra.mxu0 0
    %508 = vmatprep.subr.bf16.mxu0 0
    %509 = vmatpush1.bf16.msra.mxu0 0
    %510 = vmatprep.subr.bf16.mxu0 0
    %511 = vmatpush1.bf16.msra.mxu0 %v494
    %512 = vmatprep.subr.bf16.mxu0 0
    %513 = vmatpush2.bf16.msra.mxu0 0
    %514 = vmatprep.subr.bf16.mxu0 0
    %515 = vmatpush2.bf16.msra.mxu0 0
    %516 = vmatprep.subr.bf16.mxu0 0
    %517 = vmatpush2.bf16.msra.mxu0 0
    %518 = vmatprep.subr.bf16.mxu0 0
    %519 = vmatpush2.bf16.msra.mxu0 0
    %520 = vmatprep.subr.bf16.mxu0 0
    %521 = vmatpush2.bf16.msra.mxu0 0
    %522 = vmatprep.subr.bf16.mxu0 0
    %523 = vmatpush2.bf16.msra.mxu0 0
    %524 = vmatprep.subr.bf16.mxu0 0
    %525 = vmatpush2.bf16.msra.mxu0 0
    %526 = vmatprep.subr.bf16.mxu0 0
    %527 = vmatpush2.bf16.msra.mxu0 0
    %528 = vmatprep.mubr.bf16.mxu0 0
    %529 = vmatmul.mubr.bf16.gmra.mxu0 %v488
    %v530 = vpop.f32.mrf.mxu0
    %v531 = vadd.f32 0.0, %v530
    %v532 = vpop.f32.mrf.mxu0
    %v533 = vpop.f32.mrf.mxu0
    %v534 = vadd.f32 0.0, %v533
    %v535 = vpop.f32.mrf.mxu0
    %536 = vmatprep.mubr.bf16.mxu0 0
    %537 = vmatmul.mubr.bf16.gmra.mxu0 %v491
    %v538 = vpop.f32.mrf.mxu0
    %v539 = vadd.f32 0.0, %v538
    %v540 = vpop.f32.mrf.mxu0
    %v541 = vpop.f32.mrf.mxu0
    %v542 = vadd.f32 0.0, %v541
    %v543 = vpop.f32.mrf.mxu0
    %544 = vdwg.mxu0
    %v545 = vadd.f32 %v457, %v531
    %v546 = vadd.f32 %v460, %v534
    %v547 = vadd.f32 %v465, %v539
    %v548 = vadd.f32 %v468, %v542
    %v549 = vld [vmem:[%s2] sm:$0xff]
    %v550 = vld [vmem:[%s2 + $0x8] sm:$0xff]
    %v551 = vld [vmem:[%s2 + $0x10] sm:$0xff]
    %v552 = vld [vmem:[%s2 + $0x18] sm:$0xff]
    %554 = vset.pattern.permute.xlu0 0
    %555 = vperm.xlu0 %554, %v549
    %v556 = vpop.permute.xlu0 %555
    %559 = vset.pattern.permute.xlu0 0
    %560 = vperm.xlu0 %559, %v550
    %v561 = vpop.permute.xlu0 %560
    %564 = vset.pattern.permute.xlu0 0
    %565 = vperm.xlu0 %564, %v551
    %v566 = vpop.permute.xlu0 %565
    %569 = vset.pattern.permute.xlu0 0
    %570 = vperm.xlu0 %569, %v552
    %v571 = vpop.permute.xlu0 %570
    %v573 = vadd.f32 %v545, %v556
    %v574 = vadd.f32 %v546, %v561
    %v575 = vadd.f32 %v547, %v566
    %v576 = vadd.f32 %v548, %v571
    %v577 = vmax.f32 %v573, 0.0
    %v578 = vmax.f32 %v574, 0.0
    %v579 = vmax.f32 %v575, 0.0
    %v580 = vmax.f32 %v576, 0.0
    %v581 = vpack.c.bf16 %v578, %v577
    %v582 = vpack.c.bf16 %v580, %v579
    %v585 = vunpack.c.l.b16 %v581
    %v586 = vunpack.c.h.b16 %v581
    %v587 = vunpack.c.l.b16 %v582
    %v588 = vunpack.c.h.b16 %v582
    %v589 = vpack.c.b16 %v585, %v585
    %v590 = vpack.c.b16 %v586, %v586
    %v591 = vpack.c.b16 %v587, %v587
    %v592 = vpack.c.b16 %v588, %v588
    %s597 = scalar_lea.vmem [#allocation2], 32
    %598 = vst [vmem:[%s597] sm:$0xf] %v589
    %599 = vst [vmem:[%s597 + $0x4] sm:$0xf] %v590
    %600 = vst [vmem:[%s597 + $0x8] sm:$0xf] %v591
    %601 = vst [vmem:[%s597 + $0xc] sm:$0xf] %v592
    %v602 = vld [vmem:[%s1] sm:$0xf]
    %v603 = vld [vmem:[%s1 + $0x4] sm:$0xf]
    %v604 = vld [vmem:[%s1 + $0x8] sm:$0xf]
    %v605 = vld [vmem:[%s1 + $0xc] sm:$0xf]
    %v606 = vld [vmem:[%s198] sm:$0xf]
    %v607 = vld [vmem:[%s48] sm:$0xf]
    %v608 = vld [vmem:[%s48 + $0x4] sm:$0xf]
    %v609 = vld [vmem:[%s48 + $0x8] sm:$0xf]
    %v610 = vld [vmem:[%s48 + $0xc] sm:$0xf]
    %v611 = vld [vmem:[%s475] sm:$0xf]
    %v616 = vunpack.c.l.b16 %v607
    %v617 = vunpack.c.l.b16 %v608
    %v618 = vunpack.c.l.b16 %v609
    %v619 = vunpack.c.l.b16 %v610
    %v620 = vpack.c.b16 %v617, %v616
    %v621 = vpack.c.b16 %v619, %v618
    %v623 = vsel %vm65, %v620, 0
    %v626 = vsel %vm65, %v621, 0
    %v629 = vsel %vm72, %v611, 0
    %631 = vmatprep.subr.bf16.mxu0 0
    %632 = vmatpush1.bf16.msra.mxu0 0
    %633 = vmatprep.subr.bf16.mxu0 0
    %634 = vmatpush1.bf16.msra.mxu0 0
    %635 = vmatprep.subr.bf16.mxu0 0
    %636 = vmatpush1.bf16.msra.mxu0 0
    %637 = vmatprep.subr.bf16.mxu0 0
    %638 = vmatpush1.bf16.msra.mxu0 0
    %639 = vmatprep.subr.bf16.mxu0 0
    %640 = vmatpush1.bf16.msra.mxu0 0
    %641 = vmatprep.subr.bf16.mxu0 0
    %642 = vmatpush1.bf16.msra.mxu0 0
    %643 = vmatprep.subr.bf16.mxu0 0
    %644 = vmatpush1.bf16.msra.mxu0 0
    %645 = vmatprep.subr.bf16.mxu0 0
    %646 = vmatpush1.bf16.msra.mxu0 %v629
    %647 = vmatprep.subr.bf16.mxu0 0
    %648 = vmatpush2.bf16.msra.mxu0 0
    %649 = vmatprep.subr.bf16.mxu0 0
    %650 = vmatpush2.bf16.msra.mxu0 0
    %651 = vmatprep.subr.bf16.mxu0 0
    %652 = vmatpush2.bf16.msra.mxu0 0
    %653 = vmatprep.subr.bf16.mxu0 0
    %654 = vmatpush2.bf16.msra.mxu0 0
    %655 = vmatprep.subr.bf16.mxu0 0
    %656 = vmatpush2.bf16.msra.mxu0 0
    %657 = vmatprep.subr.bf16.mxu0 0
    %658 = vmatpush2.bf16.msra.mxu0 0
    %659 = vmatprep.subr.bf16.mxu0 0
    %660 = vmatpush2.bf16.msra.mxu0 0
    %661 = vmatprep.subr.bf16.mxu0 0
    %662 = vmatpush2.bf16.msra.mxu0 0
    %663 = vmatprep.mubr.bf16.mxu0 0
    %664 = vmatmul.mubr.bf16.gmra.mxu0 %v623
    %v665 = vpop.f32.mrf.mxu0
    %v666 = vadd.f32 0.0, %v665
    %v667 = vpop.f32.mrf.mxu0
    %v668 = vpop.f32.mrf.mxu0
    %v669 = vadd.f32 0.0, %v668
    %v670 = vpop.f32.mrf.mxu0
    %671 = vmatprep.mubr.bf16.mxu0 0
    %672 = vmatmul.mubr.bf16.gmra.mxu0 %v626
    %v673 = vpop.f32.mrf.mxu0
    %v674 = vadd.f32 0.0, %v673
    %v675 = vpop.f32.mrf.mxu0
    %v676 = vpop.f32.mrf.mxu0
    %v677 = vadd.f32 0.0, %v676
    %v678 = vpop.f32.mrf.mxu0
    %679 = vdwg.mxu0
    %v684 = vunpack.c.l.b16 %v602
    %v685 = vunpack.c.l.b16 %v603
    %v686 = vunpack.c.l.b16 %v604
    %v687 = vunpack.c.l.b16 %v605
    %v688 = vpack.c.b16 %v685, %v684
    %v689 = vpack.c.b16 %v687, %v686
    %v691 = vsel %vm65, %v688, 0
    %v694 = vsel %vm65, %v689, 0
    %v697 = vsel %vm72, %v606, 0
    %699 = vmatprep.subr.bf16.mxu0 0
    %700 = vmatpush1.bf16.msra.mxu0 0
    %701 = vmatprep.subr.bf16.mxu0 0
    %702 = vmatpush1.bf16.msra.mxu0 0
    %703 = vmatprep.subr.bf16.mxu0 0
    %704 = vmatpush1.bf16.msra.mxu0 0
    %705 = vmatprep.subr.bf16.mxu0 0
    %706 = vmatpush1.bf16.msra.mxu0 0
    %707 = vmatprep.subr.bf16.mxu0 0
    %708 = vmatpush1.bf16.msra.mxu0 0
    %709 = vmatprep.subr.bf16.mxu0 0
    %710 = vmatpush1.bf16.msra.mxu0 0
    %711 = vmatprep.subr.bf16.mxu0 0
    %712 = vmatpush1.bf16.msra.mxu0 0
    %713 = vmatprep.subr.bf16.mxu0 0
    %714 = vmatpush1.bf16.msra.mxu0 %v697
    %715 = vmatprep.subr.bf16.mxu0 0
    %716 = vmatpush2.bf16.msra.mxu0 0
    %717 = vmatprep.subr.bf16.mxu0 0
    %718 = vmatpush2.bf16.msra.mxu0 0
    %719 = vmatprep.subr.bf16.mxu0 0
    %720 = vmatpush2.bf16.msra.mxu0 0
    %721 = vmatprep.subr.bf16.mxu0 0
    %722 = vmatpush2.bf16.msra.mxu0 0
    %723 = vmatprep.subr.bf16.mxu0 0
    %724 = vmatpush2.bf16.msra.mxu0 0
    %725 = vmatprep.subr.bf16.mxu0 0
    %726 = vmatpush2.bf16.msra.mxu0 0
    %727 = vmatprep.subr.bf16.mxu0 0
    %728 = vmatpush2.bf16.msra.mxu0 0
    %729 = vmatprep.subr.bf16.mxu0 0
    %730 = vmatpush2.bf16.msra.mxu0 0
    %731 = vmatprep.mubr.bf16.mxu0 0
    %732 = vmatmul.mubr.bf16.gmra.mxu0 %v691
    %v733 = vpop.f32.mrf.mxu0
    %v734 = vadd.f32 %v666, %v733
    %v735 = vpop.f32.mrf.mxu0
    %v736 = vpop.f32.mrf.mxu0
    %v737 = vadd.f32 %v669, %v736
    %v738 = vpop.f32.mrf.mxu0
    %739 = vmatprep.mubr.bf16.mxu0 0
    %740 = vmatmul.mubr.bf16.gmra.mxu0 %v694
    %v741 = vpop.f32.mrf.mxu0
    %v742 = vadd.f32 %v674, %v741
    %v743 = vpop.f32.mrf.mxu0
    %v744 = vpop.f32.mrf.mxu0
    %v745 = vadd.f32 %v677, %v744
    %v746 = vpop.f32.mrf.mxu0
    %747 = vdwg.mxu0
    %v748 = vld [vmem:[%s193] sm:$0xf]
    %v749 = vld [vmem:[%s193 + $0x4] sm:$0xf]
    %v750 = vld [vmem:[%s193 + $0x8] sm:$0xf]
    %v751 = vld [vmem:[%s193 + $0xc] sm:$0xf]
    %s752 = scalar_lea.vmem %s0, 16
    %v753 = vld [vmem:[%s752] sm:$0xf]
    %v758 = vunpack.c.l.b16 %v748
    %v759 = vunpack.c.l.b16 %v749
    %v760 = vunpack.c.l.b16 %v750
    %v761 = vunpack.c.l.b16 %v751
    %v762 = vpack.c.b16 %v759, %v758
    %v763 = vpack.c.b16 %v761, %v760
    %v765 = vsel %vm65, %v762, 0
    %v768 = vsel %vm65, %v763, 0
    %v771 = vsel %vm72, %v753, 0
    %773 = vmatprep.subr.bf16.mxu0 0
    %774 = vmatpush1.bf16.msra.mxu0 0
    %775 = vmatprep.subr.bf16.mxu0 0
    %776 = vmatpush1.bf16.msra.mxu0 0
    %777 = vmatprep.subr.bf16.mxu0 0
    %778 = vmatpush1.bf16.msra.mxu0 0
    %779 = vmatprep.subr.bf16.mxu0 0
    %780 = vmatpush1.bf16.msra.mxu0 0
    %781 = vmatprep.subr.bf16.mxu0 0
    %782 = vmatpush1.bf16.msra.mxu0 0
    %783 = vmatprep.subr.bf16.mxu0 0
    %784 = vmatpush1.bf16.msra.mxu0 0
    %785 = vmatprep.subr.bf16.mxu0 0
    %786 = vmatpush1.bf16.msra.mxu0 0
    %787 = vmatprep.subr.bf16.mxu0 0
    %788 = vmatpush1.bf16.msra.mxu0 %v771
    %789 = vmatprep.subr.bf16.mxu0 0
    %790 = vmatpush2.bf16.msra.mxu0 0
    %791 = vmatprep.subr.bf16.mxu0 0
    %792 = vmatpush2.bf16.msra.mxu0 0
    %793 = vmatprep.subr.bf16.mxu0 0
    %794 = vmatpush2.bf16.msra.mxu0 0
    %795 = vmatprep.subr.bf16.mxu0 0
    %796 = vmatpush2.bf16.msra.mxu0 0
    %797 = vmatprep.subr.bf16.mxu0 0
    %798 = vmatpush2.bf16.msra.mxu0 0
    %799 = vmatprep.subr.bf16.mxu0 0
    %800 = vmatpush2.bf16.msra.mxu0 0
    %801 = vmatprep.subr.bf16.mxu0 0
    %802 = vmatpush2.bf16.msra.mxu0 0
    %803 = vmatprep.subr.bf16.mxu0 0
    %804 = vmatpush2.bf16.msra.mxu0 0
    %805 = vmatprep.mubr.bf16.mxu0 0
    %806 = vmatmul.mubr.bf16.gmra.mxu0 %v765
    %v807 = vpop.f32.mrf.mxu0
    %v808 = vadd.f32 0.0, %v807
    %v809 = vpop.f32.mrf.mxu0
    %v810 = vpop.f32.mrf.mxu0
    %v811 = vadd.f32 0.0, %v810
    %v812 = vpop.f32.mrf.mxu0
    %813 = vmatprep.mubr.bf16.mxu0 0
    %814 = vmatmul.mubr.bf16.gmra.mxu0 %v768
    %v815 = vpop.f32.mrf.mxu0
    %v816 = vadd.f32 0.0, %v815
    %v817 = vpop.f32.mrf.mxu0
    %v818 = vpop.f32.mrf.mxu0
    %v819 = vadd.f32 0.0, %v818
    %v820 = vpop.f32.mrf.mxu0
    %821 = vdwg.mxu0
    %v822 = vadd.f32 %v734, %v808
    %v823 = vadd.f32 %v737, %v811
    %v824 = vadd.f32 %v742, %v816
    %v825 = vadd.f32 %v745, %v819
    %v826 = vld [vmem:[%s2] sm:$0xff]
    %v827 = vld [vmem:[%s2 + $0x8] sm:$0xff]
    %v828 = vld [vmem:[%s2 + $0x10] sm:$0xff]
    %v829 = vld [vmem:[%s2 + $0x18] sm:$0xff]
    %831 = vset.pattern.permute.xlu0 0
    %832 = vperm.xlu0 %831, %v826
    %v833 = vpop.permute.xlu0 %832
    %836 = vset.pattern.permute.xlu0 0
    %837 = vperm.xlu0 %836, %v827
    %v838 = vpop.permute.xlu0 %837
    %841 = vset.pattern.permute.xlu0 0
    %842 = vperm.xlu0 %841, %v828
    %v843 = vpop.permute.xlu0 %842
    %846 = vset.pattern.permute.xlu0 0
    %847 = vperm.xlu0 %846, %v829
    %v848 = vpop.permute.xlu0 %847
    %v850 = vadd.f32 %v822, %v833
    %v851 = vadd.f32 %v823, %v838
    %v852 = vadd.f32 %v824, %v843
    %v853 = vadd.f32 %v825, %v848
    %v854 = vmax.f32 %v850, 0.0
    %v855 = vmax.f32 %v851, 0.0
    %v856 = vmax.f32 %v852, 0.0
    %v857 = vmax.f32 %v853, 0.0
    %v858 = vpack.c.bf16 %v855, %v854
    %v859 = vpack.c.bf16 %v857, %v856
    %v862 = vunpack.c.l.b16 %v858
    %v863 = vunpack.c.h.b16 %v858
    %v864 = vunpack.c.l.b16 %v859
    %v865 = vunpack.c.h.b16 %v859
    %v866 = vpack.c.b16 %v862, %v862
    %v867 = vpack.c.b16 %v863, %v863
    %v868 = vpack.c.b16 %v864, %v864
    %v869 = vpack.c.b16 %v865, %v865
    %s874 = scalar_lea.vmem [#allocation2], 48
    %875 = vst [vmem:[%s874] sm:$0xf] %v866
    %876 = vst [vmem:[%s874 + $0x4] sm:$0xf] %v867
    %877 = vst [vmem:[%s874 + $0x8] sm:$0xf] %v868
    %878 = vst [vmem:[%s874 + $0xc] sm:$0xf] %v869
    %v879 = vld [vmem:[%s1] sm:$0xf]
    %v880 = vld [vmem:[%s1 + $0x4] sm:$0xf]
    %v881 = vld [vmem:[%s1 + $0x8] sm:$0xf]
    %v882 = vld [vmem:[%s1 + $0xc] sm:$0xf]
    %v883 = vld [vmem:[%s475] sm:$0xf]
    %v884 = vld [vmem:[%s48] sm:$0xf]
    %v885 = vld [vmem:[%s48 + $0x4] sm:$0xf]
    %v886 = vld [vmem:[%s48 + $0x8] sm:$0xf]
    %v887 = vld [vmem:[%s48 + $0xc] sm:$0xf]
    %v888 = vld [vmem:[%s752] sm:$0xf]
    %v893 = vunpack.c.l.b16 %v884
    %v894 = vunpack.c.l.b16 %v885
    %v895 = vunpack.c.l.b16 %v886
    %v896 = vunpack.c.l.b16 %v887
    %v897 = vpack.c.b16 %v894, %v893
    %v898 = vpack.c.b16 %v896, %v895
    %v900 = vsel %vm65, %v897, 0
    %v903 = vsel %vm65, %v898, 0
    %v906 = vsel %vm72, %v888, 0
    %908 = vmatprep.subr.bf16.mxu0 0
    %909 = vmatpush1.bf16.msra.mxu0 0
    %910 = vmatprep.subr.bf16.mxu0 0
    %911 = vmatpush1.bf16.msra.mxu0 0
    %912 = vmatprep.subr.bf16.mxu0 0
    %913 = vmatpush1.bf16.msra.mxu0 0
    %914 = vmatprep.subr.bf16.mxu0 0
    %915 = vmatpush1.bf16.msra.mxu0 0
    %916 = vmatprep.subr.bf16.mxu0 0
    %917 = vmatpush1.bf16.msra.mxu0 0
    %918 = vmatprep.subr.bf16.mxu0 0
    %919 = vmatpush1.bf16.msra.mxu0 0
    %920 = vmatprep.subr.bf16.mxu0 0
    %921 = vmatpush1.bf16.msra.mxu0 0
    %922 = vmatprep.subr.bf16.mxu0 0
    %923 = vmatpush1.bf16.msra.mxu0 %v906
    %924 = vmatprep.subr.bf16.mxu0 0
    %925 = vmatpush2.bf16.msra.mxu0 0
    %926 = vmatprep.subr.bf16.mxu0 0
    %927 = vmatpush2.bf16.msra.mxu0 0
    %928 = vmatprep.subr.bf16.mxu0 0
    %929 = vmatpush2.bf16.msra.mxu0 0
    %930 = vmatprep.subr.bf16.mxu0 0
    %931 = vmatpush2.bf16.msra.mxu0 0
    %932 = vmatprep.subr.bf16.mxu0 0
    %933 = vmatpush2.bf16.msra.mxu0 0
    %934 = vmatprep.subr.bf16.mxu0 0
    %935 = vmatpush2.bf16.msra.mxu0 0
    %936 = vmatprep.subr.bf16.mxu0 0
    %937 = vmatpush2.bf16.msra.mxu0 0
    %938 = vmatprep.subr.bf16.mxu0 0
    %939 = vmatpush2.bf16.msra.mxu0 0
    %940 = vmatprep.mubr.bf16.mxu0 0
    %941 = vmatmul.mubr.bf16.gmra.mxu0 %v900
    %v942 = vpop.f32.mrf.mxu0
    %v943 = vadd.f32 0.0, %v942
    %v944 = vpop.f32.mrf.mxu0
    %v945 = vpop.f32.mrf.mxu0
    %v946 = vadd.f32 0.0, %v945
    %v947 = vpop.f32.mrf.mxu0
    %948 = vmatprep.mubr.bf16.mxu0 0
    %949 = vmatmul.mubr.bf16.gmra.mxu0 %v903
    %v950 = vpop.f32.mrf.mxu0
    %v951 = vadd.f32 0.0, %v950
    %v952 = vpop.f32.mrf.mxu0
    %v953 = vpop.f32.mrf.mxu0
    %v954 = vadd.f32 0.0, %v953
    %v955 = vpop.f32.mrf.mxu0
    %956 = vdwg.mxu0
    %v961 = vunpack.c.l.b16 %v879
    %v962 = vunpack.c.l.b16 %v880
    %v963 = vunpack.c.l.b16 %v881
    %v964 = vunpack.c.l.b16 %v882
    %v965 = vpack.c.b16 %v962, %v961
    %v966 = vpack.c.b16 %v964, %v963
    %v968 = vsel %vm65, %v965, 0
    %v971 = vsel %vm65, %v966, 0
    %v974 = vsel %vm72, %v883, 0
    %976 = vmatprep.subr.bf16.mxu0 0
    %977 = vmatpush1.bf16.msra.mxu0 0
    %978 = vmatprep.subr.bf16.mxu0 0
    %979 = vmatpush1.bf16.msra.mxu0 0
    %980 = vmatprep.subr.bf16.mxu0 0
    %981 = vmatpush1.bf16.msra.mxu0 0
    %982 = vmatprep.subr.bf16.mxu0 0
    %983 = vmatpush1.bf16.msra.mxu0 0
    %984 = vmatprep.subr.bf16.mxu0 0
    %985 = vmatpush1.bf16.msra.mxu0 0
    %986 = vmatprep.subr.bf16.mxu0 0
    %987 = vmatpush1.bf16.msra.mxu0 0
    %988 = vmatprep.subr.bf16.mxu0 0
    %989 = vmatpush1.bf16.msra.mxu0 0
    %990 = vmatprep.subr.bf16.mxu0 0
    %991 = vmatpush1.bf16.msra.mxu0 %v974
    %992 = vmatprep.subr.bf16.mxu0 0
    %993 = vmatpush2.bf16.msra.mxu0 0
    %994 = vmatprep.subr.bf16.mxu0 0
    %995 = vmatpush2.bf16.msra.mxu0 0
    %996 = vmatprep.subr.bf16.mxu0 0
    %997 = vmatpush2.bf16.msra.mxu0 0
    %998 = vmatprep.subr.bf16.mxu0 0
    %999 = vmatpush2.bf16.msra.mxu0 0
    %1000 = vmatprep.subr.bf16.mxu0 0
    %1001 = vmatpush2.bf16.msra.mxu0 0
    %1002 = vmatprep.subr.bf16.mxu0 0
    %1003 = vmatpush2.bf16.msra.mxu0 0
    %1004 = vmatprep.subr.bf16.mxu0 0
    %1005 = vmatpush2.bf16.msra.mxu0 0
    %1006 = vmatprep.subr.bf16.mxu0 0
    %1007 = vmatpush2.bf16.msra.mxu0 0
    %1008 = vmatprep.mubr.bf16.mxu0 0
    %1009 = vmatmul.mubr.bf16.gmra.mxu0 %v968
    %v1010 = vpop.f32.mrf.mxu0
    %v1011 = vadd.f32 %v943, %v1010
    %v1012 = vpop.f32.mrf.mxu0
    %v1013 = vpop.f32.mrf.mxu0
    %v1014 = vadd.f32 %v946, %v1013
    %v1015 = vpop.f32.mrf.mxu0
    %1016 = vmatprep.mubr.bf16.mxu0 0
    %1017 = vmatmul.mubr.bf16.gmra.mxu0 %v971
    %v1018 = vpop.f32.mrf.mxu0
    %v1019 = vadd.f32 %v951, %v1018
    %v1020 = vpop.f32.mrf.mxu0
    %v1021 = vpop.f32.mrf.mxu0
    %v1022 = vadd.f32 %v954, %v1021
    %v1023 = vpop.f32.mrf.mxu0
    %1024 = vdwg.mxu0
    %v1025 = vld [vmem:[%s193] sm:$0xf]
    %v1026 = vld [vmem:[%s193 + $0x4] sm:$0xf]
    %v1027 = vld [vmem:[%s193 + $0x8] sm:$0xf]
    %v1028 = vld [vmem:[%s193 + $0xc] sm:$0xf]
    %s1029 = scalar_lea.vmem %s0, 20
    %v1030 = vld [vmem:[%s1029] sm:$0xf]
    %v1035 = vunpack.c.l.b16 %v1025
    %v1036 = vunpack.c.l.b16 %v1026
    %v1037 = vunpack.c.l.b16 %v1027
    %v1038 = vunpack.c.l.b16 %v1028
    %v1039 = vpack.c.b16 %v1036, %v1035
    %v1040 = vpack.c.b16 %v1038, %v1037
    %v1042 = vsel %vm65, %v1039, 0
    %v1045 = vsel %vm65, %v1040, 0
    %v1048 = vsel %vm72, %v1030, 0
    %1050 = vmatprep.subr.bf16.mxu0 0
    %1051 = vmatpush1.bf16.msra.mxu0 0
    %1052 = vmatprep.subr.bf16.mxu0 0
    %1053 = vmatpush1.bf16.msra.mxu0 0
    %1054 = vmatprep.subr.bf16.mxu0 0
    %1055 = vmatpush1.bf16.msra.mxu0 0
    %1056 = vmatprep.subr.bf16.mxu0 0
    %1057 = vmatpush1.bf16.msra.mxu0 0
    %1058 = vmatprep.subr.bf16.mxu0 0
    %1059 = vmatpush1.bf16.msra.mxu0 0
    %1060 = vmatprep.subr.bf16.mxu0 0
    %1061 = vmatpush1.bf16.msra.mxu0 0
    %1062 = vmatprep.subr.bf16.mxu0 0
    %1063 = vmatpush1.bf16.msra.mxu0 0
    %1064 = vmatprep.subr.bf16.mxu0 0
    %1065 = vmatpush1.bf16.msra.mxu0 %v1048
    %1066 = vmatprep.subr.bf16.mxu0 0
    %1067 = vmatpush2.bf16.msra.mxu0 0
    %1068 = vmatprep.subr.bf16.mxu0 0
    %1069 = vmatpush2.bf16.msra.mxu0 0
    %1070 = vmatprep.subr.bf16.mxu0 0
    %1071 = vmatpush2.bf16.msra.mxu0 0
    %1072 = vmatprep.subr.bf16.mxu0 0
    %1073 = vmatpush2.bf16.msra.mxu0 0
    %1074 = vmatprep.subr.bf16.mxu0 0
    %1075 = vmatpush2.bf16.msra.mxu0 0
    %1076 = vmatprep.subr.bf16.mxu0 0
    %1077 = vmatpush2.bf16.msra.mxu0 0
    %1078 = vmatprep.subr.bf16.mxu0 0
    %1079 = vmatpush2.bf16.msra.mxu0 0
    %1080 = vmatprep.subr.bf16.mxu0 0
    %1081 = vmatpush2.bf16.msra.mxu0 0
    %1082 = vmatprep.mubr.bf16.mxu0 0
    %1083 = vmatmul.mubr.bf16.gmra.mxu0 %v1042
    %v1084 = vpop.f32.mrf.mxu0
    %v1085 = vadd.f32 0.0, %v1084
    %v1086 = vpop.f32.mrf.mxu0
    %v1087 = vpop.f32.mrf.mxu0
    %v1088 = vadd.f32 0.0, %v1087
    %v1089 = vpop.f32.mrf.mxu0
    %1090 = vmatprep.mubr.bf16.mxu0 0
    %1091 = vmatmul.mubr.bf16.gmra.mxu0 %v1045
    %v1092 = vpop.f32.mrf.mxu0
    %v1093 = vadd.f32 0.0, %v1092
    %v1094 = vpop.f32.mrf.mxu0
    %v1095 = vpop.f32.mrf.mxu0
    %v1096 = vadd.f32 0.0, %v1095
    %v1097 = vpop.f32.mrf.mxu0
    %1098 = vdwg.mxu0
    %v1099 = vadd.f32 %v1011, %v1085
    %v1100 = vadd.f32 %v1014, %v1088
    %v1101 = vadd.f32 %v1019, %v1093
    %v1102 = vadd.f32 %v1022, %v1096
    %v1103 = vld [vmem:[%s2] sm:$0xff]
    %v1104 = vld [vmem:[%s2 + $0x8] sm:$0xff]
    %v1105 = vld [vmem:[%s2 + $0x10] sm:$0xff]
    %v1106 = vld [vmem:[%s2 + $0x18] sm:$0xff]
    %1108 = vset.pattern.permute.xlu0 0
    %1109 = vperm.xlu0 %1108, %v1103
    %v1110 = vpop.permute.xlu0 %1109
    %1113 = vset.pattern.permute.xlu0 0
    %1114 = vperm.xlu0 %1113, %v1104
    %v1115 = vpop.permute.xlu0 %1114
    %1118 = vset.pattern.permute.xlu0 0
    %1119 = vperm.xlu0 %1118, %v1105
    %v1120 = vpop.permute.xlu0 %1119
    %1123 = vset.pattern.permute.xlu0 0
    %1124 = vperm.xlu0 %1123, %v1106
    %v1125 = vpop.permute.xlu0 %1124
    %v1127 = vadd.f32 %v1099, %v1110
    %v1128 = vadd.f32 %v1100, %v1115
    %v1129 = vadd.f32 %v1101, %v1120
    %v1130 = vadd.f32 %v1102, %v1125
    %v1131 = vmax.f32 %v1127, 0.0
    %v1132 = vmax.f32 %v1128, 0.0
    %v1133 = vmax.f32 %v1129, 0.0
    %v1134 = vmax.f32 %v1130, 0.0
    %v1135 = vpack.c.bf16 %v1132, %v1131
    %v1136 = vpack.c.bf16 %v1134, %v1133
    %v1139 = vunpack.c.l.b16 %v1135
    %v1140 = vunpack.c.h.b16 %v1135
    %v1141 = vunpack.c.l.b16 %v1136
    %v1142 = vunpack.c.h.b16 %v1136
    %v1143 = vpack.c.b16 %v1139, %v1139
    %v1144 = vpack.c.b16 %v1140, %v1140
    %v1145 = vpack.c.b16 %v1141, %v1141
    %v1146 = vpack.c.b16 %v1142, %v1142
    %s1151 = scalar_lea.vmem [#allocation2], 64
    %1152 = vst [vmem:[%s1151] sm:$0xf] %v1143
    %1153 = vst [vmem:[%s1151 + $0x4] sm:$0xf] %v1144
    %1154 = vst [vmem:[%s1151 + $0x8] sm:$0xf] %v1145
    %1155 = vst [vmem:[%s1151 + $0xc] sm:$0xf] %v1146
    %v1156 = vld [vmem:[%s1] sm:$0xf]
    %v1157 = vld [vmem:[%s1 + $0x4] sm:$0xf]
    %v1158 = vld [vmem:[%s1 + $0x8] sm:$0xf]
    %v1159 = vld [vmem:[%s1 + $0xc] sm:$0xf]
    %v1160 = vld [vmem:[%s752] sm:$0xf]
    %v1161 = vld [vmem:[%s48] sm:$0xf]
    %v1162 = vld [vmem:[%s48 + $0x4] sm:$0xf]
    %v1163 = vld [vmem:[%s48 + $0x8] sm:$0xf]
    %v1164 = vld [vmem:[%s48 + $0xc] sm:$0xf]
    %v1165 = vld [vmem:[%s1029] sm:$0xf]
    %v1170 = vunpack.c.l.b16 %v1161
    %v1171 = vunpack.c.l.b16 %v1162
    %v1172 = vunpack.c.l.b16 %v1163
    %v1173 = vunpack.c.l.b16 %v1164
    %v1174 = vpack.c.b16 %v1171, %v1170
    %v1175 = vpack.c.b16 %v1173, %v1172
    %v1177 = vsel %vm65, %v1174, 0
    %v1180 = vsel %vm65, %v1175, 0
    %v1183 = vsel %vm72, %v1165, 0
    %1185 = vmatprep.subr.bf16.mxu0 0
    %1186 = vmatpush1.bf16.msra.mxu0 0
    %1187 = vmatprep.subr.bf16.mxu0 0
    %1188 = vmatpush1.bf16.msra.mxu0 0
    %1189 = vmatprep.subr.bf16.mxu0 0
    %1190 = vmatpush1.bf16.msra.mxu0 0
    %1191 = vmatprep.subr.bf16.mxu0 0
    %1192 = vmatpush1.bf16.msra.mxu0 0
    %1193 = vmatprep.subr.bf16.mxu0 0
    %1194 = vmatpush1.bf16.msra.mxu0 0
    %1195 = vmatprep.subr.bf16.mxu0 0
    %1196 = vmatpush1.bf16.msra.mxu0 0
    %1197 = vmatprep.subr.bf16.mxu0 0
    %1198 = vmatpush1.bf16.msra.mxu0 0
    %1199 = vmatprep.subr.bf16.mxu0 0
    %1200 = vmatpush1.bf16.msra.mxu0 %v1183
    %1201 = vmatprep.subr.bf16.mxu0 0
    %1202 = vmatpush2.bf16.msra.mxu0 0
    %1203 = vmatprep.subr.bf16.mxu0 0
    %1204 = vmatpush2.bf16.msra.mxu0 0
    %1205 = vmatprep.subr.bf16.mxu0 0
    %1206 = vmatpush2.bf16.msra.mxu0 0
    %1207 = vmatprep.subr.bf16.mxu0 0
    %1208 = vmatpush2.bf16.msra.mxu0 0
    %1209 = vmatprep.subr.bf16.mxu0 0
    %1210 = vmatpush2.bf16.msra.mxu0 0
    %1211 = vmatprep.subr.bf16.mxu0 0
    %1212 = vmatpush2.bf16.msra.mxu0 0
    %1213 = vmatprep.subr.bf16.mxu0 0
    %1214 = vmatpush2.bf16.msra.mxu0 0
    %1215 = vmatprep.subr.bf16.mxu0 0
    %1216 = vmatpush2.bf16.msra.mxu0 0
    %1217 = vmatprep.mubr.bf16.mxu0 0
    %1218 = vmatmul.mubr.bf16.gmra.mxu0 %v1177
    %v1219 = vpop.f32.mrf.mxu0
    %v1220 = vadd.f32 0.0, %v1219
    %v1221 = vpop.f32.mrf.mxu0
    %v1222 = vpop.f32.mrf.mxu0
    %v1223 = vadd.f32 0.0, %v1222
    %v1224 = vpop.f32.mrf.mxu0
    %1225 = vmatprep.mubr.bf16.mxu0 0
    %1226 = vmatmul.mubr.bf16.gmra.mxu0 %v1180
    %v1227 = vpop.f32.mrf.mxu0
    %v1228 = vadd.f32 0.0, %v1227
    %v1229 = vpop.f32.mrf.mxu0
    %v1230 = vpop.f32.mrf.mxu0
    %v1231 = vadd.f32 0.0, %v1230
    %v1232 = vpop.f32.mrf.mxu0
    %1233 = vdwg.mxu0
    %v1238 = vunpack.c.l.b16 %v1156
    %v1239 = vunpack.c.l.b16 %v1157
    %v1240 = vunpack.c.l.b16 %v1158
    %v1241 = vunpack.c.l.b16 %v1159
    %v1242 = vpack.c.b16 %v1239, %v1238
    %v1243 = vpack.c.b16 %v1241, %v1240
    %v1245 = vsel %vm65, %v1242, 0
    %v1248 = vsel %vm65, %v1243, 0
    %v1251 = vsel %vm72, %v1160, 0
    %1253 = vmatprep.subr.bf16.mxu0 0
    %1254 = vmatpush1.bf16.msra.mxu0 0
    %1255 = vmatprep.subr.bf16.mxu0 0
    %1256 = vmatpush1.bf16.msra.mxu0 0
    %1257 = vmatprep.subr.bf16.mxu0 0
    %1258 = vmatpush1.bf16.msra.mxu0 0
    %1259 = vmatprep.subr.bf16.mxu0 0
    %1260 = vmatpush1.bf16.msra.mxu0 0
    %1261 = vmatprep.subr.bf16.mxu0 0
    %1262 = vmatpush1.bf16.msra.mxu0 0
    %1263 = vmatprep.subr.bf16.mxu0 0
    %1264 = vmatpush1.bf16.msra.mxu0 0
    %1265 = vmatprep.subr.bf16.mxu0 0
    %1266 = vmatpush1.bf16.msra.mxu0 0
    %1267 = vmatprep.subr.bf16.mxu0 0
    %1268 = vmatpush1.bf16.msra.mxu0 %v1251
    %1269 = vmatprep.subr.bf16.mxu0 0
    %1270 = vmatpush2.bf16.msra.mxu0 0
    %1271 = vmatprep.subr.bf16.mxu0 0
    %1272 = vmatpush2.bf16.msra.mxu0 0
    %1273 = vmatprep.subr.bf16.mxu0 0
    %1274 = vmatpush2.bf16.msra.mxu0 0
    %1275 = vmatprep.subr.bf16.mxu0 0
    %1276 = vmatpush2.bf16.msra.mxu0 0
    %1277 = vmatprep.subr.bf16.mxu0 0
    %1278 = vmatpush2.bf16.msra.mxu0 0
    %1279 = vmatprep.subr.bf16.mxu0 0
    %1280 = vmatpush2.bf16.msra.mxu0 0
    %1281 = vmatprep.subr.bf16.mxu0 0
    %1282 = vmatpush2.bf16.msra.mxu0 0
    %1283 = vmatprep.subr.bf16.mxu0 0
    %1284 = vmatpush2.bf16.msra.mxu0 0
    %1285 = vmatprep.mubr.bf16.mxu0 0
    %1286 = vmatmul.mubr.bf16.gmra.mxu0 %v1245
    %v1287 = vpop.f32.mrf.mxu0
    %v1288 = vadd.f32 %v1220, %v1287
    %v1289 = vpop.f32.mrf.mxu0
    %v1290 = vpop.f32.mrf.mxu0
    %v1291 = vadd.f32 %v1223, %v1290
    %v1292 = vpop.f32.mrf.mxu0
    %1293 = vmatprep.mubr.bf16.mxu0 0
    %1294 = vmatmul.mubr.bf16.gmra.mxu0 %v1248
    %v1295 = vpop.f32.mrf.mxu0
    %v1296 = vadd.f32 %v1228, %v1295
    %v1297 = vpop.f32.mrf.mxu0
    %v1298 = vpop.f32.mrf.mxu0
    %v1299 = vadd.f32 %v1231, %v1298
    %v1300 = vpop.f32.mrf.mxu0
    %1301 = vdwg.mxu0
    %v1302 = vld [vmem:[%s193] sm:$0xf]
    %v1303 = vld [vmem:[%s193 + $0x4] sm:$0xf]
    %v1304 = vld [vmem:[%s193 + $0x8] sm:$0xf]
    %v1305 = vld [vmem:[%s193 + $0xc] sm:$0xf]
    %s1306 = scalar_lea.vmem %s0, 24
    %v1307 = vld [vmem:[%s1306] sm:$0xf]
    %v1312 = vunpack.c.l.b16 %v1302
    %v1313 = vunpack.c.l.b16 %v1303
    %v1314 = vunpack.c.l.b16 %v1304
    %v1315 = vunpack.c.l.b16 %v1305
    %v1316 = vpack.c.b16 %v1313, %v1312
    %v1317 = vpack.c.b16 %v1315, %v1314
    %v1319 = vsel %vm65, %v1316, 0
    %v1322 = vsel %vm65, %v1317, 0
    %v1325 = vsel %vm72, %v1307, 0
    %1327 = vmatprep.subr.bf16.mxu0 0
    %1328 = vmatpush1.bf16.msra.mxu0 0
    %1329 = vmatprep.subr.bf16.mxu0 0
    %1330 = vmatpush1.bf16.msra.mxu0 0
    %1331 = vmatprep.subr.bf16.mxu0 0
    %1332 = vmatpush1.bf16.msra.mxu0 0
    %1333 = vmatprep.subr.bf16.mxu0 0
    %1334 = vmatpush1.bf16.msra.mxu0 0
    %1335 = vmatprep.subr.bf16.mxu0 0
    %1336 = vmatpush1.bf16.msra.mxu0 0
    %1337 = vmatprep.subr.bf16.mxu0 0
    %1338 = vmatpush1.bf16.msra.mxu0 0
    %1339 = vmatprep.subr.bf16.mxu0 0
    %1340 = vmatpush1.bf16.msra.mxu0 0
    %1341 = vmatprep.subr.bf16.mxu0 0
    %1342 = vmatpush1.bf16.msra.mxu0 %v1325
    %1343 = vmatprep.subr.bf16.mxu0 0
    %1344 = vmatpush2.bf16.msra.mxu0 0
    %1345 = vmatprep.subr.bf16.mxu0 0
    %1346 = vmatpush2.bf16.msra.mxu0 0
    %1347 = vmatprep.subr.bf16.mxu0 0
    %1348 = vmatpush2.bf16.msra.mxu0 0
    %1349 = vmatprep.subr.bf16.mxu0 0
    %1350 = vmatpush2.bf16.msra.mxu0 0
    %1351 = vmatprep.subr.bf16.mxu0 0
    %1352 = vmatpush2.bf16.msra.mxu0 0
    %1353 = vmatprep.subr.bf16.mxu0 0
    %1354 = vmatpush2.bf16.msra.mxu0 0
    %1355 = vmatprep.subr.bf16.mxu0 0
    %1356 = vmatpush2.bf16.msra.mxu0 0
    %1357 = vmatprep.subr.bf16.mxu0 0
    %1358 = vmatpush2.bf16.msra.mxu0 0
    %1359 = vmatprep.mubr.bf16.mxu0 0
    %1360 = vmatmul.mubr.bf16.gmra.mxu0 %v1319
    %v1361 = vpop.f32.mrf.mxu0
    %v1362 = vadd.f32 0.0, %v1361
    %v1363 = vpop.f32.mrf.mxu0
    %v1364 = vpop.f32.mrf.mxu0
    %v1365 = vadd.f32 0.0, %v1364
    %v1366 = vpop.f32.mrf.mxu0
    %1367 = vmatprep.mubr.bf16.mxu0 0
    %1368 = vmatmul.mubr.bf16.gmra.mxu0 %v1322
    %v1369 = vpop.f32.mrf.mxu0
    %v1370 = vadd.f32 0.0, %v1369
    %v1371 = vpop.f32.mrf.mxu0
    %v1372 = vpop.f32.mrf.mxu0
    %v1373 = vadd.f32 0.0, %v1372
    %v1374 = vpop.f32.mrf.mxu0
    %1375 = vdwg.mxu0
    %v1376 = vadd.f32 %v1288, %v1362
    %v1377 = vadd.f32 %v1291, %v1365
    %v1378 = vadd.f32 %v1296, %v1370
    %v1379 = vadd.f32 %v1299, %v1373
    %v1380 = vld [vmem:[%s2] sm:$0xff]
    %v1381 = vld [vmem:[%s2 + $0x8] sm:$0xff]
    %v1382 = vld [vmem:[%s2 + $0x10] sm:$0xff]
    %v1383 = vld [vmem:[%s2 + $0x18] sm:$0xff]
    %1385 = vset.pattern.permute.xlu0 0
    %1386 = vperm.xlu0 %1385, %v1380
    %v1387 = vpop.permute.xlu0 %1386
    %1390 = vset.pattern.permute.xlu0 0
    %1391 = vperm.xlu0 %1390, %v1381
    %v1392 = vpop.permute.xlu0 %1391
    %1395 = vset.pattern.permute.xlu0 0
    %1396 = vperm.xlu0 %1395, %v1382
    %v1397 = vpop.permute.xlu0 %1396
    %1400 = vset.pattern.permute.xlu0 0
    %1401 = vperm.xlu0 %1400, %v1383
    %v1402 = vpop.permute.xlu0 %1401
    %v1404 = vadd.f32 %v1376, %v1387
    %v1405 = vadd.f32 %v1377, %v1392
    %v1406 = vadd.f32 %v1378, %v1397
    %v1407 = vadd.f32 %v1379, %v1402
    %v1408 = vmax.f32 %v1404, 0.0
    %v1409 = vmax.f32 %v1405, 0.0
    %v1410 = vmax.f32 %v1406, 0.0
    %v1411 = vmax.f32 %v1407, 0.0
    %v1412 = vpack.c.bf16 %v1409, %v1408
    %v1413 = vpack.c.bf16 %v1411, %v1410
    %v1416 = vunpack.c.l.b16 %v1412
    %v1417 = vunpack.c.h.b16 %v1412
    %v1418 = vunpack.c.l.b16 %v1413
    %v1419 = vunpack.c.h.b16 %v1413
    %v1420 = vpack.c.b16 %v1416, %v1416
    %v1421 = vpack.c.b16 %v1417, %v1417
    %v1422 = vpack.c.b16 %v1418, %v1418
    %v1423 = vpack.c.b16 %v1419, %v1419
    %s1428 = scalar_lea.vmem [#allocation2], 80
    %1429 = vst [vmem:[%s1428] sm:$0xf] %v1420
    %1430 = vst [vmem:[%s1428 + $0x4] sm:$0xf] %v1421
    %1431 = vst [vmem:[%s1428 + $0x8] sm:$0xf] %v1422
    %1432 = vst [vmem:[%s1428 + $0xc] sm:$0xf] %v1423
    %v1433 = vld [vmem:[%s1] sm:$0xf]
    %v1434 = vld [vmem:[%s1 + $0x4] sm:$0xf]
    %v1435 = vld [vmem:[%s1 + $0x8] sm:$0xf]
    %v1436 = vld [vmem:[%s1 + $0xc] sm:$0xf]
    %v1437 = vld [vmem:[%s1029] sm:$0xf]
    %v1438 = vld [vmem:[%s48] sm:$0xf]
    %v1439 = vld [vmem:[%s48 + $0x4] sm:$0xf]
    %v1440 = vld [vmem:[%s48 + $0x8] sm:$0xf]
    %v1441 = vld [vmem:[%s48 + $0xc] sm:$0xf]
    %v1442 = vld [vmem:[%s1306] sm:$0xf]
    %v1447 = vunpack.c.l.b16 %v1438
    %v1448 = vunpack.c.l.b16 %v1439
    %v1449 = vunpack.c.l.b16 %v1440
    %v1450 = vunpack.c.l.b16 %v1441
    %v1451 = vpack.c.b16 %v1448, %v1447
    %v1452 = vpack.c.b16 %v1450, %v1449
    %v1454 = vsel %vm65, %v1451, 0
    %v1457 = vsel %vm65, %v1452, 0
    %v1460 = vsel %vm72, %v1442, 0
    %1462 = vmatprep.subr.bf16.mxu0 0
    %1463 = vmatpush1.bf16.msra.mxu0 0
    %1464 = vmatprep.subr.bf16.mxu0 0
    %1465 = vmatpush1.bf16.msra.mxu0 0
    %1466 = vmatprep.subr.bf16.mxu0 0
    %1467 = vmatpush1.bf16.msra.mxu0 0
    %1468 = vmatprep.subr.bf16.mxu0 0
    %1469 = vmatpush1.bf16.msra.mxu0 0
    %1470 = vmatprep.subr.bf16.mxu0 0
    %1471 = vmatpush1.bf16.msra.mxu0 0
    %1472 = vmatprep.subr.bf16.mxu0 0
    %1473 = vmatpush1.bf16.msra.mxu0 0
    %1474 = vmatprep.subr.bf16.mxu0 0
    %1475 = vmatpush1.bf16.msra.mxu0 0
    %1476 = vmatprep.subr.bf16.mxu0 0
    %1477 = vmatpush1.bf16.msra.mxu0 %v1460
    %1478 = vmatprep.subr.bf16.mxu0 0
    %1479 = vmatpush2.bf16.msra.mxu0 0
    %1480 = vmatprep.subr.bf16.mxu0 0
    %1481 = vmatpush2.bf16.msra.mxu0 0
    %1482 = vmatprep.subr.bf16.mxu0 0
    %1483 = vmatpush2.bf16.msra.mxu0 0
    %1484 = vmatprep.subr.bf16.mxu0 0
    %1485 = vmatpush2.bf16.msra.mxu0 0
    %1486 = vmatprep.subr.bf16.mxu0 0
    %1487 = vmatpush2.bf16.msra.mxu0 0
    %1488 = vmatprep.subr.bf16.mxu0 0
    %1489 = vmatpush2.bf16.msra.mxu0 0
    %1490 = vmatprep.subr.bf16.mxu0 0
    %1491 = vmatpush2.bf16.msra.mxu0 0
    %1492 = vmatprep.subr.bf16.mxu0 0
    %1493 = vmatpush2.bf16.msra.mxu0 0
    %1494 = vmatprep.mubr.bf16.mxu0 0
    %1495 = vmatmul.mubr.bf16.gmra.mxu0 %v1454
    %v1496 = vpop.f32.mrf.mxu0
    %v1497 = vadd.f32 0.0, %v1496
    %v1498 = vpop.f32.mrf.mxu0
    %v1499 = vpop.f32.mrf.mxu0
    %v1500 = vadd.f32 0.0, %v1499
    %v1501 = vpop.f32.mrf.mxu0
    %1502 = vmatprep.mubr.bf16.mxu0 0
    %1503 = vmatmul.mubr.bf16.gmra.mxu0 %v1457
    %v1504 = vpop.f32.mrf.mxu0
    %v1505 = vadd.f32 0.0, %v1504
    %v1506 = vpop.f32.mrf.mxu0
    %v1507 = vpop.f32.mrf.mxu0
    %v1508 = vadd.f32 0.0, %v1507
    %v1509 = vpop.f32.mrf.mxu0
    %1510 = vdwg.mxu0
    %v1515 = vunpack.c.l.b16 %v1433
    %v1516 = vunpack.c.l.b16 %v1434
    %v1517 = vunpack.c.l.b16 %v1435
    %v1518 = vunpack.c.l.b16 %v1436
    %v1519 = vpack.c.b16 %v1516, %v1515
    %v1520 = vpack.c.b16 %v1518, %v1517
    %v1522 = vsel %vm65, %v1519, 0
    %v1525 = vsel %vm65, %v1520, 0
    %v1528 = vsel %vm72, %v1437, 0
    %1530 = vmatprep.subr.bf16.mxu0 0
    %1531 = vmatpush1.bf16.msra.mxu0 0
    %1532 = vmatprep.subr.bf16.mxu0 0
    %1533 = vmatpush1.bf16.msra.mxu0 0
    %1534 = vmatprep.subr.bf16.mxu0 0
    %1535 = vmatpush1.bf16.msra.mxu0 0
    %1536 = vmatprep.subr.bf16.mxu0 0
    %1537 = vmatpush1.bf16.msra.mxu0 0
    %1538 = vmatprep.subr.bf16.mxu0 0
    %1539 = vmatpush1.bf16.msra.mxu0 0
    %1540 = vmatprep.subr.bf16.mxu0 0
    %1541 = vmatpush1.bf16.msra.mxu0 0
    %1542 = vmatprep.subr.bf16.mxu0 0
    %1543 = vmatpush1.bf16.msra.mxu0 0
    %1544 = vmatprep.subr.bf16.mxu0 0
    %1545 = vmatpush1.bf16.msra.mxu0 %v1528
    %1546 = vmatprep.subr.bf16.mxu0 0
    %1547 = vmatpush2.bf16.msra.mxu0 0
    %1548 = vmatprep.subr.bf16.mxu0 0
    %1549 = vmatpush2.bf16.msra.mxu0 0
    %1550 = vmatprep.subr.bf16.mxu0 0
    %1551 = vmatpush2.bf16.msra.mxu0 0
    %1552 = vmatprep.subr.bf16.mxu0 0
    %1553 = vmatpush2.bf16.msra.mxu0 0
    %1554 = vmatprep.subr.bf16.mxu0 0
    %1555 = vmatpush2.bf16.msra.mxu0 0
    %1556 = vmatprep.subr.bf16.mxu0 0
    %1557 = vmatpush2.bf16.msra.mxu0 0
    %1558 = vmatprep.subr.bf16.mxu0 0
    %1559 = vmatpush2.bf16.msra.mxu0 0
    %1560 = vmatprep.subr.bf16.mxu0 0
    %1561 = vmatpush2.bf16.msra.mxu0 0
    %1562 = vmatprep.mubr.bf16.mxu0 0
    %1563 = vmatmul.mubr.bf16.gmra.mxu0 %v1522
    %v1564 = vpop.f32.mrf.mxu0
    %v1565 = vadd.f32 %v1497, %v1564
    %v1566 = vpop.f32.mrf.mxu0
    %v1567 = vpop.f32.mrf.mxu0
    %v1568 = vadd.f32 %v1500, %v1567
    %v1569 = vpop.f32.mrf.mxu0
    %1570 = vmatprep.mubr.bf16.mxu0 0
    %1571 = vmatmul.mubr.bf16.gmra.mxu0 %v1525
    %v1572 = vpop.f32.mrf.mxu0
    %v1573 = vadd.f32 %v1505, %v1572
    %v1574 = vpop.f32.mrf.mxu0
    %v1575 = vpop.f32.mrf.mxu0
    %v1576 = vadd.f32 %v1508, %v1575
    %v1577 = vpop.f32.mrf.mxu0
    %1578 = vdwg.mxu0
    %v1579 = vld [vmem:[%s193] sm:$0xf]
    %v1580 = vld [vmem:[%s193 + $0x4] sm:$0xf]
    %v1581 = vld [vmem:[%s193 + $0x8] sm:$0xf]
    %v1582 = vld [vmem:[%s193 + $0xc] sm:$0xf]
    %s1583 = scalar_lea.vmem %s0, 28
    %v1584 = vld [vmem:[%s1583] sm:$0xf]
    %v1589 = vunpack.c.l.b16 %v1579
    %v1590 = vunpack.c.l.b16 %v1580
    %v1591 = vunpack.c.l.b16 %v1581
    %v1592 = vunpack.c.l.b16 %v1582
    %v1593 = vpack.c.b16 %v1590, %v1589
    %v1594 = vpack.c.b16 %v1592, %v1591
    %v1596 = vsel %vm65, %v1593, 0
    %v1599 = vsel %vm65, %v1594, 0
    %v1602 = vsel %vm72, %v1584, 0
    %1604 = vmatprep.subr.bf16.mxu0 0
    %1605 = vmatpush1.bf16.msra.mxu0 0
    %1606 = vmatprep.subr.bf16.mxu0 0
    %1607 = vmatpush1.bf16.msra.mxu0 0
    %1608 = vmatprep.subr.bf16.mxu0 0
    %1609 = vmatpush1.bf16.msra.mxu0 0
    %1610 = vmatprep.subr.bf16.mxu0 0
    %1611 = vmatpush1.bf16.msra.mxu0 0
    %1612 = vmatprep.subr.bf16.mxu0 0
    %1613 = vmatpush1.bf16.msra.mxu0 0
    %1614 = vmatprep.subr.bf16.mxu0 0
    %1615 = vmatpush1.bf16.msra.mxu0 0
    %1616 = vmatprep.subr.bf16.mxu0 0
    %1617 = vmatpush1.bf16.msra.mxu0 0
    %1618 = vmatprep.subr.bf16.mxu0 0
    %1619 = vmatpush1.bf16.msra.mxu0 %v1602
    %1620 = vmatprep.subr.bf16.mxu0 0
    %1621 = vmatpush2.bf16.msra.mxu0 0
    %1622 = vmatprep.subr.bf16.mxu0 0
    %1623 = vmatpush2.bf16.msra.mxu0 0
    %1624 = vmatprep.subr.bf16.mxu0 0
    %1625 = vmatpush2.bf16.msra.mxu0 0
    %1626 = vmatprep.subr.bf16.mxu0 0
    %1627 = vmatpush2.bf16.msra.mxu0 0
    %1628 = vmatprep.subr.bf16.mxu0 0
    %1629 = vmatpush2.bf16.msra.mxu0 0
    %1630 = vmatprep.subr.bf16.mxu0 0
    %1631 = vmatpush2.bf16.msra.mxu0 0
    %1632 = vmatprep.subr.bf16.mxu0 0
    %1633 = vmatpush2.bf16.msra.mxu0 0
    %1634 = vmatprep.subr.bf16.mxu0 0
    %1635 = vmatpush2.bf16.msra.mxu0 0
    %1636 = vmatprep.mubr.bf16.mxu0 0
    %1637 = vmatmul.mubr.bf16.gmra.mxu0 %v1596
    %v1638 = vpop.f32.mrf.mxu0
    %v1639 = vadd.f32 0.0, %v1638
    %v1640 = vpop.f32.mrf.mxu0
    %v1641 = vpop.f32.mrf.mxu0
    %v1642 = vadd.f32 0.0, %v1641
    %v1643 = vpop.f32.mrf.mxu0
    %1644 = vmatprep.mubr.bf16.mxu0 0
    %1645 = vmatmul.mubr.bf16.gmra.mxu0 %v1599
    %v1646 = vpop.f32.mrf.mxu0
    %v1647 = vadd.f32 0.0, %v1646
    %v1648 = vpop.f32.mrf.mxu0
    %v1649 = vpop.f32.mrf.mxu0
    %v1650 = vadd.f32 0.0, %v1649
    %v1651 = vpop.f32.mrf.mxu0
    %1652 = vdwg.mxu0
    %v1653 = vadd.f32 %v1565, %v1639
    %v1654 = vadd.f32 %v1568, %v1642
    %v1655 = vadd.f32 %v1573, %v1647
    %v1656 = vadd.f32 %v1576, %v1650
    %v1657 = vld [vmem:[%s2] sm:$0xff]
    %v1658 = vld [vmem:[%s2 + $0x8] sm:$0xff]
    %v1659 = vld [vmem:[%s2 + $0x10] sm:$0xff]
    %v1660 = vld [vmem:[%s2 + $0x18] sm:$0xff]
    %1662 = vset.pattern.permute.xlu0 0
    %1663 = vperm.xlu0 %1662, %v1657
    %v1664 = vpop.permute.xlu0 %1663
    %1667 = vset.pattern.permute.xlu0 0
    %1668 = vperm.xlu0 %1667, %v1658
    %v1669 = vpop.permute.xlu0 %1668
    %1672 = vset.pattern.permute.xlu0 0
    %1673 = vperm.xlu0 %1672, %v1659
    %v1674 = vpop.permute.xlu0 %1673
    %1677 = vset.pattern.permute.xlu0 0
    %1678 = vperm.xlu0 %1677, %v1660
    %v1679 = vpop.permute.xlu0 %1678
    %v1681 = vadd.f32 %v1653, %v1664
    %v1682 = vadd.f32 %v1654, %v1669
    %v1683 = vadd.f32 %v1655, %v1674
    %v1684 = vadd.f32 %v1656, %v1679
    %v1685 = vmax.f32 %v1681, 0.0
    %v1686 = vmax.f32 %v1682, 0.0
    %v1687 = vmax.f32 %v1683, 0.0
    %v1688 = vmax.f32 %v1684, 0.0
    %v1689 = vpack.c.bf16 %v1686, %v1685
    %v1690 = vpack.c.bf16 %v1688, %v1687
    %v1693 = vunpack.c.l.b16 %v1689
    %v1694 = vunpack.c.h.b16 %v1689
    %v1695 = vunpack.c.l.b16 %v1690
    %v1696 = vunpack.c.h.b16 %v1690
    %v1697 = vpack.c.b16 %v1693, %v1693
    %v1698 = vpack.c.b16 %v1694, %v1694
    %v1699 = vpack.c.b16 %v1695, %v1695
    %v1700 = vpack.c.b16 %v1696, %v1696
    %s1705 = scalar_lea.vmem [#allocation2], 96
    %1706 = vst [vmem:[%s1705] sm:$0xf] %v1697
    %1707 = vst [vmem:[%s1705 + $0x4] sm:$0xf] %v1698
    %1708 = vst [vmem:[%s1705 + $0x8] sm:$0xf] %v1699
    %1709 = vst [vmem:[%s1705 + $0xc] sm:$0xf] %v1700
    %v1710 = vld [vmem:[%s1] sm:$0xf]
    %v1711 = vld [vmem:[%s1 + $0x4] sm:$0xf]
    %v1712 = vld [vmem:[%s1 + $0x8] sm:$0xf]
    %v1713 = vld [vmem:[%s1 + $0xc] sm:$0xf]
    %v1714 = vld [vmem:[%s1306] sm:$0xf]
    %v1715 = vld [vmem:[%s48] sm:$0xf]
    %v1716 = vld [vmem:[%s48 + $0x4] sm:$0xf]
    %v1717 = vld [vmem:[%s48 + $0x8] sm:$0xf]
    %v1718 = vld [vmem:[%s48 + $0xc] sm:$0xf]
    %v1719 = vld [vmem:[%s1583] sm:$0xf]
    %v1724 = vunpack.c.l.b16 %v1715
    %v1725 = vunpack.c.l.b16 %v1716
    %v1726 = vunpack.c.l.b16 %v1717
    %v1727 = vunpack.c.l.b16 %v1718
    %v1728 = vpack.c.b16 %v1725, %v1724
    %v1729 = vpack.c.b16 %v1727, %v1726
    %v1731 = vsel %vm65, %v1728, 0
    %v1734 = vsel %vm65, %v1729, 0
    %v1737 = vsel %vm72, %v1719, 0
    %1739 = vmatprep.subr.bf16.mxu0 0
    %1740 = vmatpush1.bf16.msra.mxu0 0
    %1741 = vmatprep.subr.bf16.mxu0 0
    %1742 = vmatpush1.bf16.msra.mxu0 0
    %1743 = vmatprep.subr.bf16.mxu0 0
    %1744 = vmatpush1.bf16.msra.mxu0 0
    %1745 = vmatprep.subr.bf16.mxu0 0
    %1746 = vmatpush1.bf16.msra.mxu0 0
    %1747 = vmatprep.subr.bf16.mxu0 0
    %1748 = vmatpush1.bf16.msra.mxu0 0
    %1749 = vmatprep.subr.bf16.mxu0 0
    %1750 = vmatpush1.bf16.msra.mxu0 0
    %1751 = vmatprep.subr.bf16.mxu0 0
    %1752 = vmatpush1.bf16.msra.mxu0 0
    %1753 = vmatprep.subr.bf16.mxu0 0
    %1754 = vmatpush1.bf16.msra.mxu0 %v1737
    %1755 = vmatprep.subr.bf16.mxu0 0
    %1756 = vmatpush2.bf16.msra.mxu0 0
    %1757 = vmatprep.subr.bf16.mxu0 0
    %1758 = vmatpush2.bf16.msra.mxu0 0
    %1759 = vmatprep.subr.bf16.mxu0 0
    %1760 = vmatpush2.bf16.msra.mxu0 0
    %1761 = vmatprep.subr.bf16.mxu0 0
    %1762 = vmatpush2.bf16.msra.mxu0 0
    %1763 = vmatprep.subr.bf16.mxu0 0
    %1764 = vmatpush2.bf16.msra.mxu0 0
    %1765 = vmatprep.subr.bf16.mxu0 0
    %1766 = vmatpush2.bf16.msra.mxu0 0
    %1767 = vmatprep.subr.bf16.mxu0 0
    %1768 = vmatpush2.bf16.msra.mxu0 0
    %1769 = vmatprep.subr.bf16.mxu0 0
    %1770 = vmatpush2.bf16.msra.mxu0 0
    %1771 = vmatprep.mubr.bf16.mxu0 0
    %1772 = vmatmul.mubr.bf16.gmra.mxu0 %v1731
    %v1773 = vpop.f32.mrf.mxu0
    %v1774 = vadd.f32 0.0, %v1773
    %v1775 = vpop.f32.mrf.mxu0
    %v1776 = vpop.f32.mrf.mxu0
    %v1777 = vadd.f32 0.0, %v1776
    %v1778 = vpop.f32.mrf.mxu0
    %1779 = vmatprep.mubr.bf16.mxu0 0
    %1780 = vmatmul.mubr.bf16.gmra.mxu0 %v1734
    %v1781 = vpop.f32.mrf.mxu0
    %v1782 = vadd.f32 0.0, %v1781
    %v1783 = vpop.f32.mrf.mxu0
    %v1784 = vpop.f32.mrf.mxu0
    %v1785 = vadd.f32 0.0, %v1784
    %v1786 = vpop.f32.mrf.mxu0
    %1787 = vdwg.mxu0
    %v1792 = vunpack.c.l.b16 %v1710
    %v1793 = vunpack.c.l.b16 %v1711
    %v1794 = vunpack.c.l.b16 %v1712
    %v1795 = vunpack.c.l.b16 %v1713
    %v1796 = vpack.c.b16 %v1793, %v1792
    %v1797 = vpack.c.b16 %v1795, %v1794
    %v1799 = vsel %vm65, %v1796, 0
    %v1802 = vsel %vm65, %v1797, 0
    %v1805 = vsel %vm72, %v1714, 0
    %1807 = vmatprep.subr.bf16.mxu0 0
    %1808 = vmatpush1.bf16.msra.mxu0 0
    %1809 = vmatprep.subr.bf16.mxu0 0
    %1810 = vmatpush1.bf16.msra.mxu0 0
    %1811 = vmatprep.subr.bf16.mxu0 0
    %1812 = vmatpush1.bf16.msra.mxu0 0
    %1813 = vmatprep.subr.bf16.mxu0 0
    %1814 = vmatpush1.bf16.msra.mxu0 0
    %1815 = vmatprep.subr.bf16.mxu0 0
    %1816 = vmatpush1.bf16.msra.mxu0 0
    %1817 = vmatprep.subr.bf16.mxu0 0
    %1818 = vmatpush1.bf16.msra.mxu0 0
    %1819 = vmatprep.subr.bf16.mxu0 0
    %1820 = vmatpush1.bf16.msra.mxu0 0
    %1821 = vmatprep.subr.bf16.mxu0 0
    %1822 = vmatpush1.bf16.msra.mxu0 %v1805
    %1823 = vmatprep.subr.bf16.mxu0 0
    %1824 = vmatpush2.bf16.msra.mxu0 0
    %1825 = vmatprep.subr.bf16.mxu0 0
    %1826 = vmatpush2.bf16.msra.mxu0 0
    %1827 = vmatprep.subr.bf16.mxu0 0
    %1828 = vmatpush2.bf16.msra.mxu0 0
    %1829 = vmatprep.subr.bf16.mxu0 0
    %1830 = vmatpush2.bf16.msra.mxu0 0
    %1831 = vmatprep.subr.bf16.mxu0 0
    %1832 = vmatpush2.bf16.msra.mxu0 0
    %1833 = vmatprep.subr.bf16.mxu0 0
    %1834 = vmatpush2.bf16.msra.mxu0 0
    %1835 = vmatprep.subr.bf16.mxu0 0
    %1836 = vmatpush2.bf16.msra.mxu0 0
    %1837 = vmatprep.subr.bf16.mxu0 0
    %1838 = vmatpush2.bf16.msra.mxu0 0
    %1839 = vmatprep.mubr.bf16.mxu0 0
    %1840 = vmatmul.mubr.bf16.gmra.mxu0 %v1799
    %v1841 = vpop.f32.mrf.mxu0
    %v1842 = vadd.f32 %v1774, %v1841
    %v1843 = vpop.f32.mrf.mxu0
    %v1844 = vpop.f32.mrf.mxu0
    %v1845 = vadd.f32 %v1777, %v1844
    %v1846 = vpop.f32.mrf.mxu0
    %1847 = vmatprep.mubr.bf16.mxu0 0
    %1848 = vmatmul.mubr.bf16.gmra.mxu0 %v1802
    %v1849 = vpop.f32.mrf.mxu0
    %v1850 = vadd.f32 %v1782, %v1849
    %v1851 = vpop.f32.mrf.mxu0
    %v1852 = vpop.f32.mrf.mxu0
    %v1853 = vadd.f32 %v1785, %v1852
    %v1854 = vpop.f32.mrf.mxu0
    %1855 = vdwg.mxu0
    %v1856 = vld [vmem:[%s193] sm:$0xf]
    %v1857 = vld [vmem:[%s193 + $0x4] sm:$0xf]
    %v1858 = vld [vmem:[%s193 + $0x8] sm:$0xf]
    %v1859 = vld [vmem:[%s193 + $0xc] sm:$0xf]
    %s1860 = scalar_lea.vmem %s0, 32
    %v1861 = vld [vmem:[%s1860] sm:$0xf]
    %v1866 = vunpack.c.l.b16 %v1856
    %v1867 = vunpack.c.l.b16 %v1857
    %v1868 = vunpack.c.l.b16 %v1858
    %v1869 = vunpack.c.l.b16 %v1859
    %v1870 = vpack.c.b16 %v1867, %v1866
    %v1871 = vpack.c.b16 %v1869, %v1868
    %v1873 = vsel %vm65, %v1870, 0
    %v1876 = vsel %vm65, %v1871, 0
    %v1879 = vsel %vm72, %v1861, 0
    %1881 = vmatprep.subr.bf16.mxu0 0
    %1882 = vmatpush1.bf16.msra.mxu0 0
    %1883 = vmatprep.subr.bf16.mxu0 0
    %1884 = vmatpush1.bf16.msra.mxu0 0
    %1885 = vmatprep.subr.bf16.mxu0 0
    %1886 = vmatpush1.bf16.msra.mxu0 0
    %1887 = vmatprep.subr.bf16.mxu0 0
    %1888 = vmatpush1.bf16.msra.mxu0 0
    %1889 = vmatprep.subr.bf16.mxu0 0
    %1890 = vmatpush1.bf16.msra.mxu0 0
    %1891 = vmatprep.subr.bf16.mxu0 0
    %1892 = vmatpush1.bf16.msra.mxu0 0
    %1893 = vmatprep.subr.bf16.mxu0 0
    %1894 = vmatpush1.bf16.msra.mxu0 0
    %1895 = vmatprep.subr.bf16.mxu0 0
    %1896 = vmatpush1.bf16.msra.mxu0 %v1879
    %1897 = vmatprep.subr.bf16.mxu0 0
    %1898 = vmatpush2.bf16.msra.mxu0 0
    %1899 = vmatprep.subr.bf16.mxu0 0
    %1900 = vmatpush2.bf16.msra.mxu0 0
    %1901 = vmatprep.subr.bf16.mxu0 0
    %1902 = vmatpush2.bf16.msra.mxu0 0
    %1903 = vmatprep.subr.bf16.mxu0 0
    %1904 = vmatpush2.bf16.msra.mxu0 0
    %1905 = vmatprep.subr.bf16.mxu0 0
    %1906 = vmatpush2.bf16.msra.mxu0 0
    %1907 = vmatprep.subr.bf16.mxu0 0
    %1908 = vmatpush2.bf16.msra.mxu0 0
    %1909 = vmatprep.subr.bf16.mxu0 0
    %1910 = vmatpush2.bf16.msra.mxu0 0
    %1911 = vmatprep.subr.bf16.mxu0 0
    %1912 = vmatpush2.bf16.msra.mxu0 0
    %1913 = vmatprep.mubr.bf16.mxu0 0
    %1914 = vmatmul.mubr.bf16.gmra.mxu0 %v1873
    %v1915 = vpop.f32.mrf.mxu0
    %v1916 = vadd.f32 0.0, %v1915
    %v1917 = vpop.f32.mrf.mxu0
    %v1918 = vpop.f32.mrf.mxu0
    %v1919 = vadd.f32 0.0, %v1918
    %v1920 = vpop.f32.mrf.mxu0
    %1921 = vmatprep.mubr.bf16.mxu0 0
    %1922 = vmatmul.mubr.bf16.gmra.mxu0 %v1876
    %v1923 = vpop.f32.mrf.mxu0
    %v1924 = vadd.f32 0.0, %v1923
    %v1925 = vpop.f32.mrf.mxu0
    %v1926 = vpop.f32.mrf.mxu0
    %v1927 = vadd.f32 0.0, %v1926
    %v1928 = vpop.f32.mrf.mxu0
    %1929 = vdwg.mxu0
    %v1930 = vadd.f32 %v1842, %v1916
    %v1931 = vadd.f32 %v1845, %v1919
    %v1932 = vadd.f32 %v1850, %v1924
    %v1933 = vadd.f32 %v1853, %v1927
    %v1934 = vld [vmem:[%s2] sm:$0xff]
    %v1935 = vld [vmem:[%s2 + $0x8] sm:$0xff]
    %v1936 = vld [vmem:[%s2 + $0x10] sm:$0xff]
    %v1937 = vld [vmem:[%s2 + $0x18] sm:$0xff]
    %1939 = vset.pattern.permute.xlu0 0
    %1940 = vperm.xlu0 %1939, %v1934
    %v1941 = vpop.permute.xlu0 %1940
    %1944 = vset.pattern.permute.xlu0 0
    %1945 = vperm.xlu0 %1944, %v1935
    %v1946 = vpop.permute.xlu0 %1945
    %1949 = vset.pattern.permute.xlu0 0
    %1950 = vperm.xlu0 %1949, %v1936
    %v1951 = vpop.permute.xlu0 %1950
    %1954 = vset.pattern.permute.xlu0 0
    %1955 = vperm.xlu0 %1954, %v1937
    %v1956 = vpop.permute.xlu0 %1955
    %v1958 = vadd.f32 %v1930, %v1941
    %v1959 = vadd.f32 %v1931, %v1946
    %v1960 = vadd.f32 %v1932, %v1951
    %v1961 = vadd.f32 %v1933, %v1956
    %v1962 = vmax.f32 %v1958, 0.0
    %v1963 = vmax.f32 %v1959, 0.0
    %v1964 = vmax.f32 %v1960, 0.0
    %v1965 = vmax.f32 %v1961, 0.0
    %v1966 = vpack.c.bf16 %v1963, %v1962
    %v1967 = vpack.c.bf16 %v1965, %v1964
    %v1970 = vunpack.c.l.b16 %v1966
    %v1971 = vunpack.c.h.b16 %v1966
    %v1972 = vunpack.c.l.b16 %v1967
    %v1973 = vunpack.c.h.b16 %v1967
    %v1974 = vpack.c.b16 %v1970, %v1970
    %v1975 = vpack.c.b16 %v1971, %v1971
    %v1976 = vpack.c.b16 %v1972, %v1972
    %v1977 = vpack.c.b16 %v1973, %v1973
    %s1982 = scalar_lea.vmem [#allocation2], 112
    %1983 = vst [vmem:[%s1982] sm:$0xf] %v1974
    %1984 = vst [vmem:[%s1982 + $0x4] sm:$0xf] %v1975
    %1985 = vst [vmem:[%s1982 + $0x8] sm:$0xf] %v1976
    %1986 = vst [vmem:[%s1982 + $0xc] sm:$0xf] %v1977
    %v1987 = vld [vmem:[%s1] sm:$0xf]
    %v1988 = vld [vmem:[%s1 + $0x4] sm:$0xf]
    %v1989 = vld [vmem:[%s1 + $0x8] sm:$0xf]
    %v1990 = vld [vmem:[%s1 + $0xc] sm:$0xf]
    %v1991 = vld [vmem:[%s1583] sm:$0xf]
    %v1992 = vld [vmem:[%s48] sm:$0xf]
    %v1993 = vld [vmem:[%s48 + $0x4] sm:$0xf]
    %v1994 = vld [vmem:[%s48 + $0x8] sm:$0xf]
    %v1995 = vld [vmem:[%s48 + $0xc] sm:$0xf]
    %v1996 = vld [vmem:[%s1860] sm:$0xf]
    %v2001 = vunpack.c.l.b16 %v1992
    %v2002 = vunpack.c.l.b16 %v1993
    %v2003 = vunpack.c.l.b16 %v1994
    %v2004 = vunpack.c.l.b16 %v1995
    %v2005 = vpack.c.b16 %v2002, %v2001
    %v2006 = vpack.c.b16 %v2004, %v2003
    %v2008 = vsel %vm65, %v2005, 0
    %v2011 = vsel %vm65, %v2006, 0
    %v2014 = vsel %vm72, %v1996, 0
    %2016 = vmatprep.subr.bf16.mxu0 0
    %2017 = vmatpush1.bf16.msra.mxu0 0
    %2018 = vmatprep.subr.bf16.mxu0 0
    %2019 = vmatpush1.bf16.msra.mxu0 0
    %2020 = vmatprep.subr.bf16.mxu0 0
    %2021 = vmatpush1.bf16.msra.mxu0 0
    %2022 = vmatprep.subr.bf16.mxu0 0
    %2023 = vmatpush1.bf16.msra.mxu0 0
    %2024 = vmatprep.subr.bf16.mxu0 0
    %2025 = vmatpush1.bf16.msra.mxu0 0
    %2026 = vmatprep.subr.bf16.mxu0 0
    %2027 = vmatpush1.bf16.msra.mxu0 0
    %2028 = vmatprep.subr.bf16.mxu0 0
    %2029 = vmatpush1.bf16.msra.mxu0 0
    %2030 = vmatprep.subr.bf16.mxu0 0
    %2031 = vmatpush1.bf16.msra.mxu0 %v2014
    %2032 = vmatprep.subr.bf16.mxu0 0
    %2033 = vmatpush2.bf16.msra.mxu0 0
    %2034 = vmatprep.subr.bf16.mxu0 0
    %2035 = vmatpush2.bf16.msra.mxu0 0
    %2036 = vmatprep.subr.bf16.mxu0 0
    %2037 = vmatpush2.bf16.msra.mxu0 0
    %2038 = vmatprep.subr.bf16.mxu0 0
    %2039 = vmatpush2.bf16.msra.mxu0 0
    %2040 = vmatprep.subr.bf16.mxu0 0
    %2041 = vmatpush2.bf16.msra.mxu0 0
    %2042 = vmatprep.subr.bf16.mxu0 0
    %2043 = vmatpush2.bf16.msra.mxu0 0
    %2044 = vmatprep.subr.bf16.mxu0 0
    %2045 = vmatpush2.bf16.msra.mxu0 0
    %2046 = vmatprep.subr.bf16.mxu0 0
    %2047 = vmatpush2.bf16.msra.mxu0 0
    %2048 = vmatprep.mubr.bf16.mxu0 0
    %2049 = vmatmul.mubr.bf16.gmra.mxu0 %v2008
    %v2050 = vpop.f32.mrf.mxu0
    %v2051 = vadd.f32 0.0, %v2050
    %v2052 = vpop.f32.mrf.mxu0
    %v2053 = vpop.f32.mrf.mxu0
    %v2054 = vadd.f32 0.0, %v2053
    %v2055 = vpop.f32.mrf.mxu0
    %2056 = vmatprep.mubr.bf16.mxu0 0
    %2057 = vmatmul.mubr.bf16.gmra.mxu0 %v2011
    %v2058 = vpop.f32.mrf.mxu0
    %v2059 = vadd.f32 0.0, %v2058
    %v2060 = vpop.f32.mrf.mxu0
    %v2061 = vpop.f32.mrf.mxu0
    %v2062 = vadd.f32 0.0, %v2061
    %v2063 = vpop.f32.mrf.mxu0
    %2064 = vdwg.mxu0
    %v2069 = vunpack.c.l.b16 %v1987
    %v2070 = vunpack.c.l.b16 %v1988
    %v2071 = vunpack.c.l.b16 %v1989
    %v2072 = vunpack.c.l.b16 %v1990
    %v2073 = vpack.c.b16 %v2070, %v2069
    %v2074 = vpack.c.b16 %v2072, %v2071
    %v2076 = vsel %vm65, %v2073, 0
    %v2079 = vsel %vm65, %v2074, 0
    %v2082 = vsel %vm72, %v1991, 0
    %2084 = vmatprep.subr.bf16.mxu0 0
    %2085 = vmatpush1.bf16.msra.mxu0 0
    %2086 = vmatprep.subr.bf16.mxu0 0
    %2087 = vmatpush1.bf16.msra.mxu0 0
    %2088 = vmatprep.subr.bf16.mxu0 0
    %2089 = vmatpush1.bf16.msra.mxu0 0
    %2090 = vmatprep.subr.bf16.mxu0 0
    %2091 = vmatpush1.bf16.msra.mxu0 0
    %2092 = vmatprep.subr.bf16.mxu0 0
    %2093 = vmatpush1.bf16.msra.mxu0 0
    %2094 = vmatprep.subr.bf16.mxu0 0
    %2095 = vmatpush1.bf16.msra.mxu0 0
    %2096 = vmatprep.subr.bf16.mxu0 0
    %2097 = vmatpush1.bf16.msra.mxu0 0
    %2098 = vmatprep.subr.bf16.mxu0 0
    %2099 = vmatpush1.bf16.msra.mxu0 %v2082
    %2100 = vmatprep.subr.bf16.mxu0 0
    %2101 = vmatpush2.bf16.msra.mxu0 0
    %2102 = vmatprep.subr.bf16.mxu0 0
    %2103 = vmatpush2.bf16.msra.mxu0 0
    %2104 = vmatprep.subr.bf16.mxu0 0
    %2105 = vmatpush2.bf16.msra.mxu0 0
    %2106 = vmatprep.subr.bf16.mxu0 0
    %2107 = vmatpush2.bf16.msra.mxu0 0
    %2108 = vmatprep.subr.bf16.mxu0 0
    %2109 = vmatpush2.bf16.msra.mxu0 0
    %2110 = vmatprep.subr.bf16.mxu0 0
    %2111 = vmatpush2.bf16.msra.mxu0 0
    %2112 = vmatprep.subr.bf16.mxu0 0
    %2113 = vmatpush2.bf16.msra.mxu0 0
    %2114 = vmatprep.subr.bf16.mxu0 0
    %2115 = vmatpush2.bf16.msra.mxu0 0
    %2116 = vmatprep.mubr.bf16.mxu0 0
    %2117 = vmatmul.mubr.bf16.gmra.mxu0 %v2076
    %v2118 = vpop.f32.mrf.mxu0
    %v2119 = vadd.f32 %v2051, %v2118
    %v2120 = vpop.f32.mrf.mxu0
    %v2121 = vpop.f32.mrf.mxu0
    %v2122 = vadd.f32 %v2054, %v2121
    %v2123 = vpop.f32.mrf.mxu0
    %2124 = vmatprep.mubr.bf16.mxu0 0
    %2125 = vmatmul.mubr.bf16.gmra.mxu0 %v2079
    %v2126 = vpop.f32.mrf.mxu0
    %v2127 = vadd.f32 %v2059, %v2126
    %v2128 = vpop.f32.mrf.mxu0
    %v2129 = vpop.f32.mrf.mxu0
    %v2130 = vadd.f32 %v2062, %v2129
    %v2131 = vpop.f32.mrf.mxu0
    %2132 = vdwg.mxu0
    %v2133 = vld [vmem:[%s193] sm:$0xf]
    %v2134 = vld [vmem:[%s193 + $0x4] sm:$0xf]
    %v2135 = vld [vmem:[%s193 + $0x8] sm:$0xf]
    %v2136 = vld [vmem:[%s193 + $0xc] sm:$0xf]
    %s2137 = scalar_lea.vmem %s0, 36
    %v2138 = vld [vmem:[%s2137] sm:$0xf]
    %v2143 = vunpack.c.l.b16 %v2133
    %v2144 = vunpack.c.l.b16 %v2134
    %v2145 = vunpack.c.l.b16 %v2135
    %v2146 = vunpack.c.l.b16 %v2136
    %v2147 = vpack.c.b16 %v2144, %v2143
    %v2148 = vpack.c.b16 %v2146, %v2145
    %v2150 = vsel %vm65, %v2147, 0
    %v2153 = vsel %vm65, %v2148, 0
    %v2156 = vsel %vm72, %v2138, 0
    %2158 = vmatprep.subr.bf16.mxu0 0
    %2159 = vmatpush1.bf16.msra.mxu0 0
    %2160 = vmatprep.subr.bf16.mxu0 0
    %2161 = vmatpush1.bf16.msra.mxu0 0
    %2162 = vmatprep.subr.bf16.mxu0 0
    %2163 = vmatpush1.bf16.msra.mxu0 0
    %2164 = vmatprep.subr.bf16.mxu0 0
    %2165 = vmatpush1.bf16.msra.mxu0 0
    %2166 = vmatprep.subr.bf16.mxu0 0
    %2167 = vmatpush1.bf16.msra.mxu0 0
    %2168 = vmatprep.subr.bf16.mxu0 0
    %2169 = vmatpush1.bf16.msra.mxu0 0
    %2170 = vmatprep.subr.bf16.mxu0 0
    %2171 = vmatpush1.bf16.msra.mxu0 0
    %2172 = vmatprep.subr.bf16.mxu0 0
    %2173 = vmatpush1.bf16.msra.mxu0 %v2156
    %2174 = vmatprep.subr.bf16.mxu0 0
    %2175 = vmatpush2.bf16.msra.mxu0 0
    %2176 = vmatprep.subr.bf16.mxu0 0
    %2177 = vmatpush2.bf16.msra.mxu0 0
    %2178 = vmatprep.subr.bf16.mxu0 0
    %2179 = vmatpush2.bf16.msra.mxu0 0
    %2180 = vmatprep.subr.bf16.mxu0 0
    %2181 = vmatpush2.bf16.msra.mxu0 0
    %2182 = vmatprep.subr.bf16.mxu0 0
    %2183 = vmatpush2.bf16.msra.mxu0 0
    %2184 = vmatprep.subr.bf16.mxu0 0
    %2185 = vmatpush2.bf16.msra.mxu0 0
    %2186 = vmatprep.subr.bf16.mxu0 0
    %2187 = vmatpush2.bf16.msra.mxu0 0
    %2188 = vmatprep.subr.bf16.mxu0 0
    %2189 = vmatpush2.bf16.msra.mxu0 0
    %2190 = vmatprep.mubr.bf16.mxu0 0
    %2191 = vmatmul.mubr.bf16.gmra.mxu0 %v2150
    %v2192 = vpop.f32.mrf.mxu0
    %v2193 = vadd.f32 0.0, %v2192
    %v2194 = vpop.f32.mrf.mxu0
    %v2195 = vpop.f32.mrf.mxu0
    %v2196 = vadd.f32 0.0, %v2195
    %v2197 = vpop.f32.mrf.mxu0
    %2198 = vmatprep.mubr.bf16.mxu0 0
    %2199 = vmatmul.mubr.bf16.gmra.mxu0 %v2153
    %v2200 = vpop.f32.mrf.mxu0
    %v2201 = vadd.f32 0.0, %v2200
    %v2202 = vpop.f32.mrf.mxu0
    %v2203 = vpop.f32.mrf.mxu0
    %v2204 = vadd.f32 0.0, %v2203
    %v2205 = vpop.f32.mrf.mxu0
    %2206 = vdwg.mxu0
    %v2207 = vadd.f32 %v2119, %v2193
    %v2208 = vadd.f32 %v2122, %v2196
    %v2209 = vadd.f32 %v2127, %v2201
    %v2210 = vadd.f32 %v2130, %v2204
    %v2211 = vld [vmem:[%s2] sm:$0xff]
    %v2212 = vld [vmem:[%s2 + $0x8] sm:$0xff]
    %v2213 = vld [vmem:[%s2 + $0x10] sm:$0xff]
    %v2214 = vld [vmem:[%s2 + $0x18] sm:$0xff]
    %2216 = vset.pattern.permute.xlu0 0
    %2217 = vperm.xlu0 %2216, %v2211
    %v2218 = vpop.permute.xlu0 %2217
    %2221 = vset.pattern.permute.xlu0 0
    %2222 = vperm.xlu0 %2221, %v2212
    %v2223 = vpop.permute.xlu0 %2222
    %2226 = vset.pattern.permute.xlu0 0
    %2227 = vperm.xlu0 %2226, %v2213
    %v2228 = vpop.permute.xlu0 %2227
    %2231 = vset.pattern.permute.xlu0 0
    %2232 = vperm.xlu0 %2231, %v2214
    %v2233 = vpop.permute.xlu0 %2232
    %v2235 = vadd.f32 %v2207, %v2218
    %v2236 = vadd.f32 %v2208, %v2223
    %v2237 = vadd.f32 %v2209, %v2228
    %v2238 = vadd.f32 %v2210, %v2233
    %v2239 = vmax.f32 %v2235, 0.0
    %v2240 = vmax.f32 %v2236, 0.0
    %v2241 = vmax.f32 %v2237, 0.0
    %v2242 = vmax.f32 %v2238, 0.0
    %v2243 = vpack.c.bf16 %v2240, %v2239
    %v2244 = vpack.c.bf16 %v2242, %v2241
    %v2247 = vunpack.c.l.b16 %v2243
    %v2248 = vunpack.c.h.b16 %v2243
    %v2249 = vunpack.c.l.b16 %v2244
    %v2250 = vunpack.c.h.b16 %v2244
    %v2251 = vpack.c.b16 %v2247, %v2247
    %v2252 = vpack.c.b16 %v2248, %v2248
    %v2253 = vpack.c.b16 %v2249, %v2249
    %v2254 = vpack.c.b16 %v2250, %v2250
    %s2259 = scalar_lea.vmem [#allocation2], 128
    %2260 = vst [vmem:[%s2259] sm:$0xf] %v2251
    %2261 = vst [vmem:[%s2259 + $0x4] sm:$0xf] %v2252
    %2262 = vst [vmem:[%s2259 + $0x8] sm:$0xf] %v2253
    %2263 = vst [vmem:[%s2259 + $0xc] sm:$0xf] %v2254
    %v2264 = vld [vmem:[%s3] sm:$0xf]
    %v2265 = vld [vmem:[%s3 + $0x4] sm:$0xf]
    %v2266 = vld [vmem:[%s3 + $0x8] sm:$0xf]
    %v2267 = vld [vmem:[%s3 + $0xc] sm:$0xf]
    %v2268 = vld [vmem:[%s3 + $0x10] sm:$0xf]
    %v2269 = vld [vmem:[%s3 + $0x14] sm:$0xf]
    %v2270 = vld [vmem:[%s3 + $0x18] sm:$0xf]
    %v2271 = vld [vmem:[%s3 + $0x1c] sm:$0xf]
    %v2272 = vld [vmem:[#allocation2] sm:$0xf]
    %v2273 = vld [vmem:[#allocation2 + $0x4] sm:$0xf]
    %v2274 = vld [vmem:[#allocation2 + $0x8] sm:$0xf]
    %v2275 = vld [vmem:[#allocation2 + $0xc] sm:$0xf]
    %s2276 = scalar_lea.vmem %s3, 32
    %v2277 = vld [vmem:[%s2276] sm:$0xf]
    %v2278 = vld [vmem:[%s2276 + $0x4] sm:$0xf]
    %v2279 = vld [vmem:[%s2276 + $0x8] sm:$0xf]
    %v2280 = vld [vmem:[%s2276 + $0xc] sm:$0xf]
    %v2281 = vld [vmem:[%s2276 + $0x10] sm:$0xf]
    %v2282 = vld [vmem:[%s2276 + $0x14] sm:$0xf]
    %v2283 = vld [vmem:[%s2276 + $0x18] sm:$0xf]
    %v2284 = vld [vmem:[%s2276 + $0x1c] sm:$0xf]
    %v2285 = vld [vmem:[%s320] sm:$0xf]
    %v2286 = vld [vmem:[%s320 + $0x4] sm:$0xf]
    %v2287 = vld [vmem:[%s320 + $0x8] sm:$0xf]
    %v2288 = vld [vmem:[%s320 + $0xc] sm:$0xf]
    %v2297 = vunpack.c.l.b16 %v2277
    %v2298 = vunpack.c.l.b16 %v2278
    %v2299 = vunpack.c.l.b16 %v2279
    %v2300 = vunpack.c.l.b16 %v2280
    %v2301 = vunpack.c.l.b16 %v2281
    %v2302 = vunpack.c.l.b16 %v2282
    %v2303 = vunpack.c.l.b16 %v2283
    %v2304 = vunpack.c.l.b16 %v2284
    %v2305 = vpack.c.b16 %v2298, %v2297
    %v2306 = vpack.c.b16 %v2300, %v2299
    %v2307 = vpack.c.b16 %v2302, %v2301
    %v2308 = vpack.c.b16 %v2304, %v2303
    %v2313 = vunpack.c.l.b16 %v2285
    %v2314 = vunpack.c.l.b16 %v2286
    %v2315 = vunpack.c.l.b16 %v2287
    %v2316 = vunpack.c.l.b16 %v2288
    %v2317 = vpack.c.b16 %v2314, %v2313
    %v2318 = vpack.c.b16 %v2316, %v2315
    %vm2321 = vcmask 261120
    %v2323 = vsel %vm2321, %v2305, 0
    %v2326 = vsel %vm2321, %v2306, 0
    %v2329 = vsel %vm2321, %v2307, 0
    %v2332 = vsel %vm2321, %v2308, 0
    %2334 = vmatprep.subr.bf16.mxu0 0
    %2335 = vmatpush1.bf16.msra.mxu0 0
    %2336 = vmatprep.subr.bf16.mxu0 0
    %2337 = vmatpush1.bf16.msra.mxu0 0
    %2338 = vmatprep.subr.bf16.mxu0 0
    %2339 = vmatpush1.bf16.msra.mxu0 0
    %2340 = vmatprep.subr.bf16.mxu0 0
    %2341 = vmatpush1.bf16.msra.mxu0 0
    %2342 = vmatprep.subr.bf16.mxu0 0
    %2343 = vmatpush1.bf16.msra.mxu0 0
    %2344 = vmatprep.subr.bf16.mxu0 0
    %2345 = vmatpush1.bf16.msra.mxu0 0
    %2346 = vmatprep.subr.bf16.mxu0 0
    %2347 = vmatpush1.bf16.msra.mxu0 %v2318
    %2348 = vmatprep.subr.bf16.mxu0 0
    %2349 = vmatpush1.bf16.msra.mxu0 %v2317
    %2350 = vmatprep.subr.bf16.mxu0 0
    %2351 = vmatpush2.bf16.msra.mxu0 0
    %2352 = vmatprep.subr.bf16.mxu0 0
    %2353 = vmatpush2.bf16.msra.mxu0 0
    %2354 = vmatprep.subr.bf16.mxu0 0
    %2355 = vmatpush2.bf16.msra.mxu0 0
    %2356 = vmatprep.subr.bf16.mxu0 0
    %2357 = vmatpush2.bf16.msra.mxu0 0
    %2358 = vmatprep.subr.bf16.mxu0 0
    %2359 = vmatpush2.bf16.msra.mxu0 0
    %2360 = vmatprep.subr.bf16.mxu0 0
    %2361 = vmatpush2.bf16.msra.mxu0 0
    %2362 = vmatprep.subr.bf16.mxu0 0
    %2363 = vmatpush2.bf16.msra.mxu0 0
    %2364 = vmatprep.subr.bf16.mxu0 0
    %2365 = vmatpush2.bf16.msra.mxu0 0
    %2366 = vmatprep.mubr.bf16.mxu0 0
    %2367 = vmatmul.mubr.bf16.gmra.mxu0 %v2323
    %v2368 = vpop.f32.mrf.mxu0
    %v2369 = vadd.f32 0.0, %v2368
    %v2370 = vpop.f32.mrf.mxu0
    %v2371 = vpop.f32.mrf.mxu0
    %v2372 = vadd.f32 0.0, %v2371
    %v2373 = vpop.f32.mrf.mxu0
    %2374 = vmatprep.mubr.bf16.mxu0 0
    %2375 = vmatmul.mubr.bf16.gmra.mxu0 %v2326
    %v2376 = vpop.f32.mrf.mxu0
    %v2377 = vadd.f32 0.0, %v2376
    %v2378 = vpop.f32.mrf.mxu0
    %v2379 = vpop.f32.mrf.mxu0
    %v2380 = vadd.f32 0.0, %v2379
    %v2381 = vpop.f32.mrf.mxu0
    %2382 = vmatprep.mubr.bf16.mxu0 0
    %2383 = vmatmul.mubr.bf16.gmra.mxu0 %v2329
    %v2384 = vpop.f32.mrf.mxu0
    %v2385 = vadd.f32 0.0, %v2384
    %v2386 = vpop.f32.mrf.mxu0
    %v2387 = vpop.f32.mrf.mxu0
    %v2388 = vadd.f32 0.0, %v2387
    %v2389 = vpop.f32.mrf.mxu0
    %2390 = vmatprep.mubr.bf16.mxu0 0
    %2391 = vmatmul.mubr.bf16.gmra.mxu0 %v2332
    %v2392 = vpop.f32.mrf.mxu0
    %v2393 = vadd.f32 0.0, %v2392
    %v2394 = vpop.f32.mrf.mxu0
    %v2395 = vpop.f32.mrf.mxu0
    %v2396 = vadd.f32 0.0, %v2395
    %v2397 = vpop.f32.mrf.mxu0
    %2398 = vdwg.mxu0
    %v2407 = vunpack.c.l.b16 %v2264
    %v2408 = vunpack.c.l.b16 %v2265
    %v2409 = vunpack.c.l.b16 %v2266
    %v2410 = vunpack.c.l.b16 %v2267
    %v2411 = vunpack.c.l.b16 %v2268
    %v2412 = vunpack.c.l.b16 %v2269
    %v2413 = vunpack.c.l.b16 %v2270
    %v2414 = vunpack.c.l.b16 %v2271
    %v2415 = vpack.c.b16 %v2408, %v2407
    %v2416 = vpack.c.b16 %v2410, %v2409
    %v2417 = vpack.c.b16 %v2412, %v2411
    %v2418 = vpack.c.b16 %v2414, %v2413
    %v2423 = vunpack.c.l.b16 %v2272
    %v2424 = vunpack.c.l.b16 %v2273
    %v2425 = vunpack.c.l.b16 %v2274
    %v2426 = vunpack.c.l.b16 %v2275
    %v2427 = vpack.c.b16 %v2424, %v2423
    %v2428 = vpack.c.b16 %v2426, %v2425
    %v2432 = vsel %vm2321, %v2415, 0
    %v2435 = vsel %vm2321, %v2416, 0
    %v2438 = vsel %vm2321, %v2417, 0
    %v2441 = vsel %vm2321, %v2418, 0
    %2443 = vmatprep.subr.bf16.mxu0 0
    %2444 = vmatpush1.bf16.msra.mxu0 0
    %2445 = vmatprep.subr.bf16.mxu0 0
    %2446 = vmatpush1.bf16.msra.mxu0 0
    %2447 = vmatprep.subr.bf16.mxu0 0
    %2448 = vmatpush1.bf16.msra.mxu0 0
    %2449 = vmatprep.subr.bf16.mxu0 0
    %2450 = vmatpush1.bf16.msra.mxu0 0
    %2451 = vmatprep.subr.bf16.mxu0 0
    %2452 = vmatpush1.bf16.msra.mxu0 0
    %2453 = vmatprep.subr.bf16.mxu0 0
    %2454 = vmatpush1.bf16.msra.mxu0 0
    %2455 = vmatprep.subr.bf16.mxu0 0
    %2456 = vmatpush1.bf16.msra.mxu0 %v2428
    %2457 = vmatprep.subr.bf16.mxu0 0
    %2458 = vmatpush1.bf16.msra.mxu0 %v2427
    %2459 = vmatprep.subr.bf16.mxu0 0
    %2460 = vmatpush2.bf16.msra.mxu0 0
    %2461 = vmatprep.subr.bf16.mxu0 0
    %2462 = vmatpush2.bf16.msra.mxu0 0
    %2463 = vmatprep.subr.bf16.mxu0 0
    %2464 = vmatpush2.bf16.msra.mxu0 0
    %2465 = vmatprep.subr.bf16.mxu0 0
    %2466 = vmatpush2.bf16.msra.mxu0 0
    %2467 = vmatprep.subr.bf16.mxu0 0
    %2468 = vmatpush2.bf16.msra.mxu0 0
    %2469 = vmatprep.subr.bf16.mxu0 0
    %2470 = vmatpush2.bf16.msra.mxu0 0
    %2471 = vmatprep.subr.bf16.mxu0 0
    %2472 = vmatpush2.bf16.msra.mxu0 0
    %2473 = vmatprep.subr.bf16.mxu0 0
    %2474 = vmatpush2.bf16.msra.mxu0 0
    %2475 = vmatprep.mubr.bf16.mxu0 0
    %2476 = vmatmul.mubr.bf16.gmra.mxu0 %v2432
    %v2477 = vpop.f32.mrf.mxu0
    %v2478 = vadd.f32 %v2369, %v2477
    %v2479 = vpop.f32.mrf.mxu0
    %v2480 = vpop.f32.mrf.mxu0
    %v2481 = vadd.f32 %v2372, %v2480
    %v2482 = vpop.f32.mrf.mxu0
    %2483 = vmatprep.mubr.bf16.mxu0 0
    %2484 = vmatmul.mubr.bf16.gmra.mxu0 %v2435
    %v2485 = vpop.f32.mrf.mxu0
    %v2486 = vadd.f32 %v2377, %v2485
    %v2487 = vpop.f32.mrf.mxu0
    %v2488 = vpop.f32.mrf.mxu0
    %v2489 = vadd.f32 %v2380, %v2488
    %v2490 = vpop.f32.mrf.mxu0
    %2491 = vmatprep.mubr.bf16.mxu0 0
    %2492 = vmatmul.mubr.bf16.gmra.mxu0 %v2438
    %v2493 = vpop.f32.mrf.mxu0
    %v2494 = vadd.f32 %v2385, %v2493
    %v2495 = vpop.f32.mrf.mxu0
    %v2496 = vpop.f32.mrf.mxu0
    %v2497 = vadd.f32 %v2388, %v2496
    %v2498 = vpop.f32.mrf.mxu0
    %2499 = vmatprep.mubr.bf16.mxu0 0
    %2500 = vmatmul.mubr.bf16.gmra.mxu0 %v2441
    %v2501 = vpop.f32.mrf.mxu0
    %v2502 = vadd.f32 %v2393, %v2501
    %v2503 = vpop.f32.mrf.mxu0
    %v2504 = vpop.f32.mrf.mxu0
    %v2505 = vadd.f32 %v2396, %v2504
    %v2506 = vpop.f32.mrf.mxu0
    %2507 = vdwg.mxu0
    %s2508 = scalar_lea.vmem %s3, 64
    %v2509 = vld [vmem:[%s2508] sm:$0xf]
    %v2510 = vld [vmem:[%s2508 + $0x4] sm:$0xf]
    %v2511 = vld [vmem:[%s2508 + $0x8] sm:$0xf]
    %v2512 = vld [vmem:[%s2508 + $0xc] sm:$0xf]
    %v2513 = vld [vmem:[%s2508 + $0x10] sm:$0xf]
    %v2514 = vld [vmem:[%s2508 + $0x14] sm:$0xf]
    %v2515 = vld [vmem:[%s2508 + $0x18] sm:$0xf]
    %v2516 = vld [vmem:[%s2508 + $0x1c] sm:$0xf]
    %v2517 = vld [vmem:[%s597] sm:$0xf]
    %v2518 = vld [vmem:[%s597 + $0x4] sm:$0xf]
    %v2519 = vld [vmem:[%s597 + $0x8] sm:$0xf]
    %v2520 = vld [vmem:[%s597 + $0xc] sm:$0xf]
    %v2529 = vunpack.c.l.b16 %v2509
    %v2530 = vunpack.c.l.b16 %v2510
    %v2531 = vunpack.c.l.b16 %v2511
    %v2532 = vunpack.c.l.b16 %v2512
    %v2533 = vunpack.c.l.b16 %v2513
    %v2534 = vunpack.c.l.b16 %v2514
    %v2535 = vunpack.c.l.b16 %v2515
    %v2536 = vunpack.c.l.b16 %v2516
    %v2537 = vpack.c.b16 %v2530, %v2529
    %v2538 = vpack.c.b16 %v2532, %v2531
    %v2539 = vpack.c.b16 %v2534, %v2533
    %v2540 = vpack.c.b16 %v2536, %v2535
    %v2545 = vunpack.c.l.b16 %v2517
    %v2546 = vunpack.c.l.b16 %v2518
    %v2547 = vunpack.c.l.b16 %v2519
    %v2548 = vunpack.c.l.b16 %v2520
    %v2549 = vpack.c.b16 %v2546, %v2545
    %v2550 = vpack.c.b16 %v2548, %v2547
    %v2554 = vsel %vm2321, %v2537, 0
    %v2557 = vsel %vm2321, %v2538, 0
    %v2560 = vsel %vm2321, %v2539, 0
    %v2563 = vsel %vm2321, %v2540, 0
    %2565 = vmatprep.subr.bf16.mxu0 0
    %2566 = vmatpush1.bf16.msra.mxu0 0
    %2567 = vmatprep.subr.bf16.mxu0 0
    %2568 = vmatpush1.bf16.msra.mxu0 0
    %2569 = vmatprep.subr.bf16.mxu0 0
    %2570 = vmatpush1.bf16.msra.mxu0 0
    %2571 = vmatprep.subr.bf16.mxu0 0
    %2572 = vmatpush1.bf16.msra.mxu0 0
    %2573 = vmatprep.subr.bf16.mxu0 0
    %2574 = vmatpush1.bf16.msra.mxu0 0
    %2575 = vmatprep.subr.bf16.mxu0 0
    %2576 = vmatpush1.bf16.msra.mxu0 0
    %2577 = vmatprep.subr.bf16.mxu0 0
    %2578 = vmatpush1.bf16.msra.mxu0 %v2550
    %2579 = vmatprep.subr.bf16.mxu0 0
    %2580 = vmatpush1.bf16.msra.mxu0 %v2549
    %2581 = vmatprep.subr.bf16.mxu0 0
    %2582 = vmatpush2.bf16.msra.mxu0 0
    %2583 = vmatprep.subr.bf16.mxu0 0
    %2584 = vmatpush2.bf16.msra.mxu0 0
    %2585 = vmatprep.subr.bf16.mxu0 0
    %2586 = vmatpush2.bf16.msra.mxu0 0
    %2587 = vmatprep.subr.bf16.mxu0 0
    %2588 = vmatpush2.bf16.msra.mxu0 0
    %2589 = vmatprep.subr.bf16.mxu0 0
    %2590 = vmatpush2.bf16.msra.mxu0 0
    %2591 = vmatprep.subr.bf16.mxu0 0
    %2592 = vmatpush2.bf16.msra.mxu0 0
    %2593 = vmatprep.subr.bf16.mxu0 0
    %2594 = vmatpush2.bf16.msra.mxu0 0
    %2595 = vmatprep.subr.bf16.mxu0 0
    %2596 = vmatpush2.bf16.msra.mxu0 0
    %2597 = vmatprep.mubr.bf16.mxu0 0
    %2598 = vmatmul.mubr.bf16.gmra.mxu0 %v2554
    %v2599 = vpop.f32.mrf.mxu0
    %v2600 = vadd.f32 0.0, %v2599
    %v2601 = vpop.f32.mrf.mxu0
    %v2602 = vpop.f32.mrf.mxu0
    %v2603 = vadd.f32 0.0, %v2602
    %v2604 = vpop.f32.mrf.mxu0
    %2605 = vmatprep.mubr.bf16.mxu0 0
    %2606 = vmatmul.mubr.bf16.gmra.mxu0 %v2557
    %v2607 = vpop.f32.mrf.mxu0
    %v2608 = vadd.f32 0.0, %v2607
    %v2609 = vpop.f32.mrf.mxu0
    %v2610 = vpop.f32.mrf.mxu0
    %v2611 = vadd.f32 0.0, %v2610
    %v2612 = vpop.f32.mrf.mxu0
    %2613 = vmatprep.mubr.bf16.mxu0 0
    %2614 = vmatmul.mubr.bf16.gmra.mxu0 %v2560
    %v2615 = vpop.f32.mrf.mxu0
    %v2616 = vadd.f32 0.0, %v2615
    %v2617 = vpop.f32.mrf.mxu0
    %v2618 = vpop.f32.mrf.mxu0
    %v2619 = vadd.f32 0.0, %v2618
    %v2620 = vpop.f32.mrf.mxu0
    %2621 = vmatprep.mubr.bf16.mxu0 0
    %2622 = vmatmul.mubr.bf16.gmra.mxu0 %v2563
    %v2623 = vpop.f32.mrf.mxu0
    %v2624 = vadd.f32 0.0, %v2623
    %v2625 = vpop.f32.mrf.mxu0
    %v2626 = vpop.f32.mrf.mxu0
    %v2627 = vadd.f32 0.0, %v2626
    %v2628 = vpop.f32.mrf.mxu0
    %2629 = vdwg.mxu0
    %v2630 = vadd.f32 %v2478, %v2600
    %v2631 = vadd.f32 %v2481, %v2603
    %v2632 = vadd.f32 %v2486, %v2608
    %v2633 = vadd.f32 %v2489, %v2611
    %v2634 = vadd.f32 %v2494, %v2616
    %v2635 = vadd.f32 %v2497, %v2619
    %v2636 = vadd.f32 %v2502, %v2624
    %v2637 = vadd.f32 %v2505, %v2627
    %v2638 = vld [vmem:[%s4] sm:$0xff]
    %v2639 = vld [vmem:[%s4 + $0x8] sm:$0xff]
    %v2640 = vld [vmem:[%s4 + $0x10] sm:$0xff]
    %v2641 = vld [vmem:[%s4 + $0x18] sm:$0xff]
    %v2642 = vld [vmem:[%s4 + $0x20] sm:$0xff]
    %v2643 = vld [vmem:[%s4 + $0x28] sm:$0xff]
    %v2644 = vld [vmem:[%s4 + $0x30] sm:$0xff]
    %v2645 = vld [vmem:[%s4 + $0x38] sm:$0xff]
    %2647 = vset.pattern.permute.xlu0 0
    %2648 = vperm.xlu0 %2647, %v2638
    %v2649 = vpop.permute.xlu0 %2648
    %2652 = vset.pattern.permute.xlu0 0
    %2653 = vperm.xlu0 %2652, %v2639
    %v2654 = vpop.permute.xlu0 %2653
    %2657 = vset.pattern.permute.xlu0 0
    %2658 = vperm.xlu0 %2657, %v2640
    %v2659 = vpop.permute.xlu0 %2658
    %2662 = vset.pattern.permute.xlu0 0
    %2663 = vperm.xlu0 %2662, %v2641
    %v2664 = vpop.permute.xlu0 %2663
    %2667 = vset.pattern.permute.xlu0 0
    %2668 = vperm.xlu0 %2667, %v2642
    %v2669 = vpop.permute.xlu0 %2668
    %2672 = vset.pattern.permute.xlu0 0
    %2673 = vperm.xlu0 %2672, %v2643
    %v2674 = vpop.permute.xlu0 %2673
    %2677 = vset.pattern.permute.xlu0 0
    %2678 = vperm.xlu0 %2677, %v2644
    %v2679 = vpop.permute.xlu0 %2678
    %2682 = vset.pattern.permute.xlu0 0
    %2683 = vperm.xlu0 %2682, %v2645
    %v2684 = vpop.permute.xlu0 %2683
    %v2686 = vadd.f32 %v2630, %v2649
    %v2687 = vadd.f32 %v2631, %v2654
    %v2688 = vadd.f32 %v2632, %v2659
    %v2689 = vadd.f32 %v2633, %v2664
    %v2690 = vadd.f32 %v2634, %v2669
    %v2691 = vadd.f32 %v2635, %v2674
    %v2692 = vadd.f32 %v2636, %v2679
    %v2693 = vadd.f32 %v2637, %v2684
    %v2694 = vmax.f32 %v2686, 0.0
    %v2695 = vmax.f32 %v2687, 0.0
    %v2696 = vmax.f32 %v2688, 0.0
    %v2697 = vmax.f32 %v2689, 0.0
    %v2698 = vmax.f32 %v2690, 0.0
    %v2699 = vmax.f32 %v2691, 0.0
    %v2700 = vmax.f32 %v2692, 0.0
    %v2701 = vmax.f32 %v2693, 0.0
    %v2702 = vpack.c.bf16 %v2695, %v2694
    %v2703 = vpack.c.bf16 %v2697, %v2696
    %v2704 = vpack.c.bf16 %v2699, %v2698
    %v2705 = vpack.c.bf16 %v2701, %v2700
    %v2710 = vunpack.c.l.b16 %v2702
    %v2711 = vunpack.c.h.b16 %v2702
    %v2712 = vunpack.c.l.b16 %v2703
    %v2713 = vunpack.c.h.b16 %v2703
    %v2714 = vunpack.c.l.b16 %v2704
    %v2715 = vunpack.c.h.b16 %v2704
    %v2716 = vunpack.c.l.b16 %v2705
    %v2717 = vunpack.c.h.b16 %v2705
    %v2718 = vpack.c.b16 %v2710, %v2710
    %v2719 = vpack.c.b16 %v2711, %v2711
    %v2720 = vpack.c.b16 %v2712, %v2712
    %v2721 = vpack.c.b16 %v2713, %v2713
    %v2722 = vpack.c.b16 %v2714, %v2714
    %v2723 = vpack.c.b16 %v2715, %v2715
    %v2724 = vpack.c.b16 %v2716, %v2716
    %v2725 = vpack.c.b16 %v2717, %v2717
    %2734 = vst [vmem:[#allocation3] sm:$0xf] %v2718
    %2735 = vst [vmem:[#allocation3 + $0x4] sm:$0xf] %v2719
    %2736 = vst [vmem:[#allocation3 + $0x8] sm:$0xf] %v2720
    %2737 = vst [vmem:[#allocation3 + $0xc] sm:$0xf] %v2721
    %2738 = vst [vmem:[#allocation3 + $0x10] sm:$0xf] %v2722
    %2739 = vst [vmem:[#allocation3 + $0x14] sm:$0xf] %v2723
    %2740 = vst [vmem:[#allocation3 + $0x18] sm:$0xf] %v2724
    %2741 = vst [vmem:[#allocation3 + $0x1c] sm:$0xf] %v2725
    %v2742 = vld [vmem:[%s3] sm:$0xf]
    %v2743 = vld [vmem:[%s3 + $0x4] sm:$0xf]
    %v2744 = vld [vmem:[%s3 + $0x8] sm:$0xf]
    %v2745 = vld [vmem:[%s3 + $0xc] sm:$0xf]
    %v2746 = vld [vmem:[%s3 + $0x10] sm:$0xf]
    %v2747 = vld [vmem:[%s3 + $0x14] sm:$0xf]
    %v2748 = vld [vmem:[%s3 + $0x18] sm:$0xf]
    %v2749 = vld [vmem:[%s3 + $0x1c] sm:$0xf]
    %v2750 = vld [vmem:[%s320] sm:$0xf]
    %v2751 = vld [vmem:[%s320 + $0x4] sm:$0xf]
    %v2752 = vld [vmem:[%s320 + $0x8] sm:$0xf]
    %v2753 = vld [vmem:[%s320 + $0xc] sm:$0xf]
    %v2754 = vld [vmem:[%s2276] sm:$0xf]
    %v2755 = vld [vmem:[%s2276 + $0x4] sm:$0xf]
    %v2756 = vld [vmem:[%s2276 + $0x8] sm:$0xf]
    %v2757 = vld [vmem:[%s2276 + $0xc] sm:$0xf]
    %v2758 = vld [vmem:[%s2276 + $0x10] sm:$0xf]
    %v2759 = vld [vmem:[%s2276 + $0x14] sm:$0xf]
    %v2760 = vld [vmem:[%s2276 + $0x18] sm:$0xf]
    %v2761 = vld [vmem:[%s2276 + $0x1c] sm:$0xf]
    %v2762 = vld [vmem:[%s597] sm:$0xf]
    %v2763 = vld [vmem:[%s597 + $0x4] sm:$0xf]
    %v2764 = vld [vmem:[%s597 + $0x8] sm:$0xf]
    %v2765 = vld [vmem:[%s597 + $0xc] sm:$0xf]
    %v2774 = vunpack.c.l.b16 %v2754
    %v2775 = vunpack.c.l.b16 %v2755
    %v2776 = vunpack.c.l.b16 %v2756
    %v2777 = vunpack.c.l.b16 %v2757
    %v2778 = vunpack.c.l.b16 %v2758
    %v2779 = vunpack.c.l.b16 %v2759
    %v2780 = vunpack.c.l.b16 %v2760
    %v2781 = vunpack.c.l.b16 %v2761
    %v2782 = vpack.c.b16 %v2775, %v2774
    %v2783 = vpack.c.b16 %v2777, %v2776
    %v2784 = vpack.c.b16 %v2779, %v2778
    %v2785 = vpack.c.b16 %v2781, %v2780
    %v2790 = vunpack.c.l.b16 %v2762
    %v2791 = vunpack.c.l.b16 %v2763
    %v2792 = vunpack.c.l.b16 %v2764
    %v2793 = vunpack.c.l.b16 %v2765
    %v2794 = vpack.c.b16 %v2791, %v2790
    %v2795 = vpack.c.b16 %v2793, %v2792
    %v2799 = vsel %vm2321, %v2782, 0
    %v2802 = vsel %vm2321, %v2783, 0
    %v2805 = vsel %vm2321, %v2784, 0
    %v2808 = vsel %vm2321, %v2785, 0
    %2810 = vmatprep.subr.bf16.mxu0 0
    %2811 = vmatpush1.bf16.msra.mxu0 0
    %2812 = vmatprep.subr.bf16.mxu0 0
    %2813 = vmatpush1.bf16.msra.mxu0 0
    %2814 = vmatprep.subr.bf16.mxu0 0
    %2815 = vmatpush1.bf16.msra.mxu0 0
    %2816 = vmatprep.subr.bf16.mxu0 0
    %2817 = vmatpush1.bf16.msra.mxu0 0
    %2818 = vmatprep.subr.bf16.mxu0 0
    %2819 = vmatpush1.bf16.msra.mxu0 0
    %2820 = vmatprep.subr.bf16.mxu0 0
    %2821 = vmatpush1.bf16.msra.mxu0 0
    %2822 = vmatprep.subr.bf16.mxu0 0
    %2823 = vmatpush1.bf16.msra.mxu0 %v2795
    %2824 = vmatprep.subr.bf16.mxu0 0
    %2825 = vmatpush1.bf16.msra.mxu0 %v2794
    %2826 = vmatprep.subr.bf16.mxu0 0
    %2827 = vmatpush2.bf16.msra.mxu0 0
    %2828 = vmatprep.subr.bf16.mxu0 0
    %2829 = vmatpush2.bf16.msra.mxu0 0
    %2830 = vmatprep.subr.bf16.mxu0 0
    %2831 = vmatpush2.bf16.msra.mxu0 0
    %2832 = vmatprep.subr.bf16.mxu0 0
    %2833 = vmatpush2.bf16.msra.mxu0 0
    %2834 = vmatprep.subr.bf16.mxu0 0
    %2835 = vmatpush2.bf16.msra.mxu0 0
    %2836 = vmatprep.subr.bf16.mxu0 0
    %2837 = vmatpush2.bf16.msra.mxu0 0
    %2838 = vmatprep.subr.bf16.mxu0 0
    %2839 = vmatpush2.bf16.msra.mxu0 0
    %2840 = vmatprep.subr.bf16.mxu0 0
    %2841 = vmatpush2.bf16.msra.mxu0 0
    %2842 = vmatprep.mubr.bf16.mxu0 0
    %2843 = vmatmul.mubr.bf16.gmra.mxu0 %v2799
    %v2844 = vpop.f32.mrf.mxu0
    %v2845 = vadd.f32 0.0, %v2844
    %v2846 = vpop.f32.mrf.mxu0
    %v2847 = vpop.f32.mrf.mxu0
    %v2848 = vadd.f32 0.0, %v2847
    %v2849 = vpop.f32.mrf.mxu0
    %2850 = vmatprep.mubr.bf16.mxu0 0
    %2851 = vmatmul.mubr.bf16.gmra.mxu0 %v2802
    %v2852 = vpop.f32.mrf.mxu0
    %v2853 = vadd.f32 0.0, %v2852
    %v2854 = vpop.f32.mrf.mxu0
    %v2855 = vpop.f32.mrf.mxu0
    %v2856 = vadd.f32 0.0, %v2855
    %v2857 = vpop.f32.mrf.mxu0
    %2858 = vmatprep.mubr.bf16.mxu0 0
    %2859 = vmatmul.mubr.bf16.gmra.mxu0 %v2805
    %v2860 = vpop.f32.mrf.mxu0
    %v2861 = vadd.f32 0.0, %v2860
    %v2862 = vpop.f32.mrf.mxu0
    %v2863 = vpop.f32.mrf.mxu0
    %v2864 = vadd.f32 0.0, %v2863
    %v2865 = vpop.f32.mrf.mxu0
    %2866 = vmatprep.mubr.bf16.mxu0 0
    %2867 = vmatmul.mubr.bf16.gmra.mxu0 %v2808
    %v2868 = vpop.f32.mrf.mxu0
    %v2869 = vadd.f32 0.0, %v2868
    %v2870 = vpop.f32.mrf.mxu0
    %v2871 = vpop.f32.mrf.mxu0
    %v2872 = vadd.f32 0.0, %v2871
    %v2873 = vpop.f32.mrf.mxu0
    %2874 = vdwg.mxu0
    %v2883 = vunpack.c.l.b16 %v2742
    %v2884 = vunpack.c.l.b16 %v2743
    %v2885 = vunpack.c.l.b16 %v2744
    %v2886 = vunpack.c.l.b16 %v2745
    %v2887 = vunpack.c.l.b16 %v2746
    %v2888 = vunpack.c.l.b16 %v2747
    %v2889 = vunpack.c.l.b16 %v2748
    %v2890 = vunpack.c.l.b16 %v2749
    %v2891 = vpack.c.b16 %v2884, %v2883
    %v2892 = vpack.c.b16 %v2886, %v2885
    %v2893 = vpack.c.b16 %v2888, %v2887
    %v2894 = vpack.c.b16 %v2890, %v2889
    %v2899 = vunpack.c.l.b16 %v2750
    %v2900 = vunpack.c.l.b16 %v2751
    %v2901 = vunpack.c.l.b16 %v2752
    %v2902 = vunpack.c.l.b16 %v2753
    %v2903 = vpack.c.b16 %v2900, %v2899
    %v2904 = vpack.c.b16 %v2902, %v2901
    %v2908 = vsel %vm2321, %v2891, 0
    %v2911 = vsel %vm2321, %v2892, 0
    %v2914 = vsel %vm2321, %v2893, 0
    %v2917 = vsel %vm2321, %v2894, 0
    %2919 = vmatprep.subr.bf16.mxu0 0
    %2920 = vmatpush1.bf16.msra.mxu0 0
    %2921 = vmatprep.subr.bf16.mxu0 0
    %2922 = vmatpush1.bf16.msra.mxu0 0
    %2923 = vmatprep.subr.bf16.mxu0 0
    %2924 = vmatpush1.bf16.msra.mxu0 0
    %2925 = vmatprep.subr.bf16.mxu0 0
    %2926 = vmatpush1.bf16.msra.mxu0 0
    %2927 = vmatprep.subr.bf16.mxu0 0
    %2928 = vmatpush1.bf16.msra.mxu0 0
    %2929 = vmatprep.subr.bf16.mxu0 0
    %2930 = vmatpush1.bf16.msra.mxu0 0
    %2931 = vmatprep.subr.bf16.mxu0 0
    %2932 = vmatpush1.bf16.msra.mxu0 %v2904
    %2933 = vmatprep.subr.bf16.mxu0 0
    %2934 = vmatpush1.bf16.msra.mxu0 %v2903
    %2935 = vmatprep.subr.bf16.mxu0 0
    %2936 = vmatpush2.bf16.msra.mxu0 0
    %2937 = vmatprep.subr.bf16.mxu0 0
    %2938 = vmatpush2.bf16.msra.mxu0 0
    %2939 = vmatprep.subr.bf16.mxu0 0
    %2940 = vmatpush2.bf16.msra.mxu0 0
    %2941 = vmatprep.subr.bf16.mxu0 0
    %2942 = vmatpush2.bf16.msra.mxu0 0
    %2943 = vmatprep.subr.bf16.mxu0 0
    %2944 = vmatpush2.bf16.msra.mxu0 0
    %2945 = vmatprep.subr.bf16.mxu0 0
    %2946 = vmatpush2.bf16.msra.mxu0 0
    %2947 = vmatprep.subr.bf16.mxu0 0
    %2948 = vmatpush2.bf16.msra.mxu0 0
    %2949 = vmatprep.subr.bf16.mxu0 0
    %2950 = vmatpush2.bf16.msra.mxu0 0
    %2951 = vmatprep.mubr.bf16.mxu0 0
    %2952 = vmatmul.mubr.bf16.gmra.mxu0 %v2908
    %v2953 = vpop.f32.mrf.mxu0
    %v2954 = vadd.f32 %v2845, %v2953
    %v2955 = vpop.f32.mrf.mxu0
    %v2956 = vpop.f32.mrf.mxu0
    %v2957 = vadd.f32 %v2848, %v2956
    %v2958 = vpop.f32.mrf.mxu0
    %2959 = vmatprep.mubr.bf16.mxu0 0
    %2960 = vmatmul.mubr.bf16.gmra.mxu0 %v2911
    %v2961 = vpop.f32.mrf.mxu0
    %v2962 = vadd.f32 %v2853, %v2961
    %v2963 = vpop.f32.mrf.mxu0
    %v2964 = vpop.f32.mrf.mxu0
    %v2965 = vadd.f32 %v2856, %v2964
    %v2966 = vpop.f32.mrf.mxu0
    %2967 = vmatprep.mubr.bf16.mxu0 0
    %2968 = vmatmul.mubr.bf16.gmra.mxu0 %v2914
    %v2969 = vpop.f32.mrf.mxu0
    %v2970 = vadd.f32 %v2861, %v2969
    %v2971 = vpop.f32.mrf.mxu0
    %v2972 = vpop.f32.mrf.mxu0
    %v2973 = vadd.f32 %v2864, %v2972
    %v2974 = vpop.f32.mrf.mxu0
    %2975 = vmatprep.mubr.bf16.mxu0 0
    %2976 = vmatmul.mubr.bf16.gmra.mxu0 %v2917
    %v2977 = vpop.f32.mrf.mxu0
    %v2978 = vadd.f32 %v2869, %v2977
    %v2979 = vpop.f32.mrf.mxu0
    %v2980 = vpop.f32.mrf.mxu0
    %v2981 = vadd.f32 %v2872, %v2980
    %v2982 = vpop.f32.mrf.mxu0
    %2983 = vdwg.mxu0
    %v2984 = vld [vmem:[%s2508] sm:$0xf]
    %v2985 = vld [vmem:[%s2508 + $0x4] sm:$0xf]
    %v2986 = vld [vmem:[%s2508 + $0x8] sm:$0xf]
    %v2987 = vld [vmem:[%s2508 + $0xc] sm:$0xf]
    %v2988 = vld [vmem:[%s2508 + $0x10] sm:$0xf]
    %v2989 = vld [vmem:[%s2508 + $0x14] sm:$0xf]
    %v2990 = vld [vmem:[%s2508 + $0x18] sm:$0xf]
    %v2991 = vld [vmem:[%s2508 + $0x1c] sm:$0xf]
    %v2992 = vld [vmem:[%s874] sm:$0xf]
    %v2993 = vld [vmem:[%s874 + $0x4] sm:$0xf]
    %v2994 = vld [vmem:[%s874 + $0x8] sm:$0xf]
    %v2995 = vld [vmem:[%s874 + $0xc] sm:$0xf]
    %v3004 = vunpack.c.l.b16 %v2984
    %v3005 = vunpack.c.l.b16 %v2985
    %v3006 = vunpack.c.l.b16 %v2986
    %v3007 = vunpack.c.l.b16 %v2987
    %v3008 = vunpack.c.l.b16 %v2988
    %v3009 = vunpack.c.l.b16 %v2989
    %v3010 = vunpack.c.l.b16 %v2990
    %v3011 = vunpack.c.l.b16 %v2991
    %v3012 = vpack.c.b16 %v3005, %v3004
    %v3013 = vpack.c.b16 %v3007, %v3006
    %v3014 = vpack.c.b16 %v3009, %v3008
    %v3015 = vpack.c.b16 %v3011, %v3010
    %v3020 = vunpack.c.l.b16 %v2992
    %v3021 = vunpack.c.l.b16 %v2993
    %v3022 = vunpack.c.l.b16 %v2994
    %v3023 = vunpack.c.l.b16 %v2995
    %v3024 = vpack.c.b16 %v3021, %v3020
    %v3025 = vpack.c.b16 %v3023, %v3022
    %v3029 = vsel %vm2321, %v3012, 0
    %v3032 = vsel %vm2321, %v3013, 0
    %v3035 = vsel %vm2321, %v3014, 0
    %v3038 = vsel %vm2321, %v3015, 0
    %3040 = vmatprep.subr.bf16.mxu0 0
    %3041 = vmatpush1.bf16.msra.mxu0 0
    %3042 = vmatprep.subr.bf16.mxu0 0
    %3043 = vmatpush1.bf16.msra.mxu0 0
    %3044 = vmatprep.subr.bf16.mxu0 0
    %3045 = vmatpush1.bf16.msra.mxu0 0
    %3046 = vmatprep.subr.bf16.mxu0 0
    %3047 = vmatpush1.bf16.msra.mxu0 0
    %3048 = vmatprep.subr.bf16.mxu0 0
    %3049 = vmatpush1.bf16.msra.mxu0 0
    %3050 = vmatprep.subr.bf16.mxu0 0
    %3051 = vmatpush1.bf16.msra.mxu0 0
    %3052 = vmatprep.subr.bf16.mxu0 0
    %3053 = vmatpush1.bf16.msra.mxu0 %v3025
    %3054 = vmatprep.subr.bf16.mxu0 0
    %3055 = vmatpush1.bf16.msra.mxu0 %v3024
    %3056 = vmatprep.subr.bf16.mxu0 0
    %3057 = vmatpush2.bf16.msra.mxu0 0
    %3058 = vmatprep.subr.bf16.mxu0 0
    %3059 = vmatpush2.bf16.msra.mxu0 0
    %3060 = vmatprep.subr.bf16.mxu0 0
    %3061 = vmatpush2.bf16.msra.mxu0 0
    %3062 = vmatprep.subr.bf16.mxu0 0
    %3063 = vmatpush2.bf16.msra.mxu0 0
    %3064 = vmatprep.subr.bf16.mxu0 0
    %3065 = vmatpush2.bf16.msra.mxu0 0
    %3066 = vmatprep.subr.bf16.mxu0 0
    %3067 = vmatpush2.bf16.msra.mxu0 0
    %3068 = vmatprep.subr.bf16.mxu0 0
    %3069 = vmatpush2.bf16.msra.mxu0 0
    %3070 = vmatprep.subr.bf16.mxu0 0
    %3071 = vmatpush2.bf16.msra.mxu0 0
    %3072 = vmatprep.mubr.bf16.mxu0 0
    %3073 = vmatmul.mubr.bf16.gmra.mxu0 %v3029
    %v3074 = vpop.f32.mrf.mxu0
    %v3075 = vadd.f32 0.0, %v3074
    %v3076 = vpop.f32.mrf.mxu0
    %v3077 = vpop.f32.mrf.mxu0
    %v3078 = vadd.f32 0.0, %v3077
    %v3079 = vpop.f32.mrf.mxu0
    %3080 = vmatprep.mubr.bf16.mxu0 0
    %3081 = vmatmul.mubr.bf16.gmra.mxu0 %v3032
    %v3082 = vpop.f32.mrf.mxu0
    %v3083 = vadd.f32 0.0, %v3082
    %v3084 = vpop.f32.mrf.mxu0
    %v3085 = vpop.f32.mrf.mxu0
    %v3086 = vadd.f32 0.0, %v3085
    %v3087 = vpop.f32.mrf.mxu0
    %3088 = vmatprep.mubr.bf16.mxu0 0
    %3089 = vmatmul.mubr.bf16.gmra.mxu0 %v3035
    %v3090 = vpop.f32.mrf.mxu0
    %v3091 = vadd.f32 0.0, %v3090
    %v3092 = vpop.f32.mrf.mxu0
    %v3093 = vpop.f32.mrf.mxu0
    %v3094 = vadd.f32 0.0, %v3093
    %v3095 = vpop.f32.mrf.mxu0
    %3096 = vmatprep.mubr.bf16.mxu0 0
    %3097 = vmatmul.mubr.bf16.gmra.mxu0 %v3038
    %v3098 = vpop.f32.mrf.mxu0
    %v3099 = vadd.f32 0.0, %v3098
    %v3100 = vpop.f32.mrf.mxu0
    %v3101 = vpop.f32.mrf.mxu0
    %v3102 = vadd.f32 0.0, %v3101
    %v3103 = vpop.f32.mrf.mxu0
    %3104 = vdwg.mxu0
    %v3105 = vadd.f32 %v2954, %v3075
    %v3106 = vadd.f32 %v2957, %v3078
    %v3107 = vadd.f32 %v2962, %v3083
    %v3108 = vadd.f32 %v2965, %v3086
    %v3109 = vadd.f32 %v2970, %v3091
    %v3110 = vadd.f32 %v2973, %v3094
    %v3111 = vadd.f32 %v2978, %v3099
    %v3112 = vadd.f32 %v2981, %v3102
    %v3113 = vld [vmem:[%s4] sm:$0xff]
    %v3114 = vld [vmem:[%s4 + $0x8] sm:$0xff]
    %v3115 = vld [vmem:[%s4 + $0x10] sm:$0xff]
    %v3116 = vld [vmem:[%s4 + $0x18] sm:$0xff]
    %v3117 = vld [vmem:[%s4 + $0x20] sm:$0xff]
    %v3118 = vld [vmem:[%s4 + $0x28] sm:$0xff]
    %v3119 = vld [vmem:[%s4 + $0x30] sm:$0xff]
    %v3120 = vld [vmem:[%s4 + $0x38] sm:$0xff]
    %3122 = vset.pattern.permute.xlu0 0
    %3123 = vperm.xlu0 %3122, %v3113
    %v3124 = vpop.permute.xlu0 %3123
    %3127 = vset.pattern.permute.xlu0 0
    %3128 = vperm.xlu0 %3127, %v3114
    %v3129 = vpop.permute.xlu0 %3128
    %3132 = vset.pattern.permute.xlu0 0
    %3133 = vperm.xlu0 %3132, %v3115
    %v3134 = vpop.permute.xlu0 %3133
    %3137 = vset.pattern.permute.xlu0 0
    %3138 = vperm.xlu0 %3137, %v3116
    %v3139 = vpop.permute.xlu0 %3138
    %3142 = vset.pattern.permute.xlu0 0
    %3143 = vperm.xlu0 %3142, %v3117
    %v3144 = vpop.permute.xlu0 %3143
    %3147 = vset.pattern.permute.xlu0 0
    %3148 = vperm.xlu0 %3147, %v3118
    %v3149 = vpop.permute.xlu0 %3148
    %3152 = vset.pattern.permute.xlu0 0
    %3153 = vperm.xlu0 %3152, %v3119
    %v3154 = vpop.permute.xlu0 %3153
    %3157 = vset.pattern.permute.xlu0 0
    %3158 = vperm.xlu0 %3157, %v3120
    %v3159 = vpop.permute.xlu0 %3158
    %v3161 = vadd.f32 %v3105, %v3124
    %v3162 = vadd.f32 %v3106, %v3129
    %v3163 = vadd.f32 %v3107, %v3134
    %v3164 = vadd.f32 %v3108, %v3139
    %v3165 = vadd.f32 %v3109, %v3144
    %v3166 = vadd.f32 %v3110, %v3149
    %v3167 = vadd.f32 %v3111, %v3154
    %v3168 = vadd.f32 %v3112, %v3159
    %v3169 = vmax.f32 %v3161, 0.0
    %v3170 = vmax.f32 %v3162, 0.0
    %v3171 = vmax.f32 %v3163, 0.0
    %v3172 = vmax.f32 %v3164, 0.0
    %v3173 = vmax.f32 %v3165, 0.0
    %v3174 = vmax.f32 %v3166, 0.0
    %v3175 = vmax.f32 %v3167, 0.0
    %v3176 = vmax.f32 %v3168, 0.0
    %v3177 = vpack.c.bf16 %v3170, %v3169
    %v3178 = vpack.c.bf16 %v3172, %v3171
    %v3179 = vpack.c.bf16 %v3174, %v3173
    %v3180 = vpack.c.bf16 %v3176, %v3175
    %v3185 = vunpack.c.l.b16 %v3177
    %v3186 = vunpack.c.h.b16 %v3177
    %v3187 = vunpack.c.l.b16 %v3178
    %v3188 = vunpack.c.h.b16 %v3178
    %v3189 = vunpack.c.l.b16 %v3179
    %v3190 = vunpack.c.h.b16 %v3179
    %v3191 = vunpack.c.l.b16 %v3180
    %v3192 = vunpack.c.h.b16 %v3180
    %v3193 = vpack.c.b16 %v3185, %v3185
    %v3194 = vpack.c.b16 %v3186, %v3186
    %v3195 = vpack.c.b16 %v3187, %v3187
    %v3196 = vpack.c.b16 %v3188, %v3188
    %v3197 = vpack.c.b16 %v3189, %v3189
    %v3198 = vpack.c.b16 %v3190, %v3190
    %v3199 = vpack.c.b16 %v3191, %v3191
    %v3200 = vpack.c.b16 %v3192, %v3192
    %3209 = vst [vmem:[#allocation3 + $0x20] sm:$0xf] %v3193
    %3210 = vst [vmem:[#allocation3 + $0x24] sm:$0xf] %v3194
    %3211 = vst [vmem:[#allocation3 + $0x28] sm:$0xf] %v3195
    %3212 = vst [vmem:[#allocation3 + $0x2c] sm:$0xf] %v3196
    %3213 = vst [vmem:[#allocation3 + $0x30] sm:$0xf] %v3197
    %3214 = vst [vmem:[#allocation3 + $0x34] sm:$0xf] %v3198
    %3215 = vst [vmem:[#allocation3 + $0x38] sm:$0xf] %v3199
    %3216 = vst [vmem:[#allocation3 + $0x3c] sm:$0xf] %v3200
    %v3217 = vld [vmem:[%s3] sm:$0xf]
    %v3218 = vld [vmem:[%s3 + $0x4] sm:$0xf]
    %v3219 = vld [vmem:[%s3 + $0x8] sm:$0xf]
    %v3220 = vld [vmem:[%s3 + $0xc] sm:$0xf]
    %v3221 = vld [vmem:[%s3 + $0x10] sm:$0xf]
    %v3222 = vld [vmem:[%s3 + $0x14] sm:$0xf]
    %v3223 = vld [vmem:[%s3 + $0x18] sm:$0xf]
    %v3224 = vld [vmem:[%s3 + $0x1c] sm:$0xf]
    %v3225 = vld [vmem:[%s597] sm:$0xf]
    %v3226 = vld [vmem:[%s597 + $0x4] sm:$0xf]
    %v3227 = vld [vmem:[%s597 + $0x8] sm:$0xf]
    %v3228 = vld [vmem:[%s597 + $0xc] sm:$0xf]
    %v3229 = vld [vmem:[%s2276] sm:$0xf]
    %v3230 = vld [vmem:[%s2276 + $0x4] sm:$0xf]
    %v3231 = vld [vmem:[%s2276 + $0x8] sm:$0xf]
    %v3232 = vld [vmem:[%s2276 + $0xc] sm:$0xf]
    %v3233 = vld [vmem:[%s2276 + $0x10] sm:$0xf]
    %v3234 = vld [vmem:[%s2276 + $0x14] sm:$0xf]
    %v3235 = vld [vmem:[%s2276 + $0x18] sm:$0xf]
    %v3236 = vld [vmem:[%s2276 + $0x1c] sm:$0xf]
    %v3237 = vld [vmem:[%s874] sm:$0xf]
    %v3238 = vld [vmem:[%s874 + $0x4] sm:$0xf]
    %v3239 = vld [vmem:[%s874 + $0x8] sm:$0xf]
    %v3240 = vld [vmem:[%s874 + $0xc] sm:$0xf]
    %v3249 = vunpack.c.l.b16 %v3229
    %v3250 = vunpack.c.l.b16 %v3230
    %v3251 = vunpack.c.l.b16 %v3231
    %v3252 = vunpack.c.l.b16 %v3232
    %v3253 = vunpack.c.l.b16 %v3233
    %v3254 = vunpack.c.l.b16 %v3234
    %v3255 = vunpack.c.l.b16 %v3235
    %v3256 = vunpack.c.l.b16 %v3236
    %v3257 = vpack.c.b16 %v3250, %v3249
    %v3258 = vpack.c.b16 %v3252, %v3251
    %v3259 = vpack.c.b16 %v3254, %v3253
    %v3260 = vpack.c.b16 %v3256, %v3255
    %v3265 = vunpack.c.l.b16 %v3237
    %v3266 = vunpack.c.l.b16 %v3238
    %v3267 = vunpack.c.l.b16 %v3239
    %v3268 = vunpack.c.l.b16 %v3240
    %v3269 = vpack.c.b16 %v3266, %v3265
    %v3270 = vpack.c.b16 %v3268, %v3267
    %v3274 = vsel %vm2321, %v3257, 0
    %v3277 = vsel %vm2321, %v3258, 0
    %v3280 = vsel %vm2321, %v3259, 0
    %v3283 = vsel %vm2321, %v3260, 0
    %3285 = vmatprep.subr.bf16.mxu0 0
    %3286 = vmatpush1.bf16.msra.mxu0 0
    %3287 = vmatprep.subr.bf16.mxu0 0
    %3288 = vmatpush1.bf16.msra.mxu0 0
    %3289 = vmatprep.subr.bf16.mxu0 0
    %3290 = vmatpush1.bf16.msra.mxu0 0
    %3291 = vmatprep.subr.bf16.mxu0 0
    %3292 = vmatpush1.bf16.msra.mxu0 0
    %3293 = vmatprep.subr.bf16.mxu0 0
    %3294 = vmatpush1.bf16.msra.mxu0 0
    %3295 = vmatprep.subr.bf16.mxu0 0
    %3296 = vmatpush1.bf16.msra.mxu0 0
    %3297 = vmatprep.subr.bf16.mxu0 0
    %3298 = vmatpush1.bf16.msra.mxu0 %v3270
    %3299 = vmatprep.subr.bf16.mxu0 0
    %3300 = vmatpush1.bf16.msra.mxu0 %v3269
    %3301 = vmatprep.subr.bf16.mxu0 0
    %3302 = vmatpush2.bf16.msra.mxu0 0
    %3303 = vmatprep.subr.bf16.mxu0 0
    %3304 = vmatpush2.bf16.msra.mxu0 0
    %3305 = vmatprep.subr.bf16.mxu0 0
    %3306 = vmatpush2.bf16.msra.mxu0 0
    %3307 = vmatprep.subr.bf16.mxu0 0
    %3308 = vmatpush2.bf16.msra.mxu0 0
    %3309 = vmatprep.subr.bf16.mxu0 0
    %3310 = vmatpush2.bf16.msra.mxu0 0
    %3311 = vmatprep.subr.bf16.mxu0 0
    %3312 = vmatpush2.bf16.msra.mxu0 0
    %3313 = vmatprep.subr.bf16.mxu0 0
    %3314 = vmatpush2.bf16.msra.mxu0 0
    %3315 = vmatprep.subr.bf16.mxu0 0
    %3316 = vmatpush2.bf16.msra.mxu0 0
    %3317 = vmatprep.mubr.bf16.mxu0 0
    %3318 = vmatmul.mubr.bf16.gmra.mxu0 %v3274
    %v3319 = vpop.f32.mrf.mxu0
    %v3320 = vadd.f32 0.0, %v3319
    %v3321 = vpop.f32.mrf.mxu0
    %v3322 = vpop.f32.mrf.mxu0
    %v3323 = vadd.f32 0.0, %v3322
    %v3324 = vpop.f32.mrf.mxu0
    %3325 = vmatprep.mubr.bf16.mxu0 0
    %3326 = vmatmul.mubr.bf16.gmra.mxu0 %v3277
    %v3327 = vpop.f32.mrf.mxu0
    %v3328 = vadd.f32 0.0, %v3327
    %v3329 = vpop.f32.mrf.mxu0
    %v3330 = vpop.f32.mrf.mxu0
    %v3331 = vadd.f32 0.0, %v3330
    %v3332 = vpop.f32.mrf.mxu0
    %3333 = vmatprep.mubr.bf16.mxu0 0
    %3334 = vmatmul.mubr.bf16.gmra.mxu0 %v3280
    %v3335 = vpop.f32.mrf.mxu0
    %v3336 = vadd.f32 0.0, %v3335
    %v3337 = vpop.f32.mrf.mxu0
    %v3338 = vpop.f32.mrf.mxu0
    %v3339 = vadd.f32 0.0, %v3338
    %v3340 = vpop.f32.mrf.mxu0
    %3341 = vmatprep.mubr.bf16.mxu0 0
    %3342 = vmatmul.mubr.bf16.gmra.mxu0 %v3283
    %v3343 = vpop.f32.mrf.mxu0
    %v3344 = vadd.f32 0.0, %v3343
    %v3345 = vpop.f32.mrf.mxu0
    %v3346 = vpop.f32.mrf.mxu0
    %v3347 = vadd.f32 0.0, %v3346
    %v3348 = vpop.f32.mrf.mxu0
    %3349 = vdwg.mxu0
    %v3358 = vunpack.c.l.b16 %v3217
    %v3359 = vunpack.c.l.b16 %v3218
    %v3360 = vunpack.c.l.b16 %v3219
    %v3361 = vunpack.c.l.b16 %v3220
    %v3362 = vunpack.c.l.b16 %v3221
    %v3363 = vunpack.c.l.b16 %v3222
    %v3364 = vunpack.c.l.b16 %v3223
    %v3365 = vunpack.c.l.b16 %v3224
    %v3366 = vpack.c.b16 %v3359, %v3358
    %v3367 = vpack.c.b16 %v3361, %v3360
    %v3368 = vpack.c.b16 %v3363, %v3362
    %v3369 = vpack.c.b16 %v3365, %v3364
    %v3374 = vunpack.c.l.b16 %v3225
    %v3375 = vunpack.c.l.b16 %v3226
    %v3376 = vunpack.c.l.b16 %v3227
    %v3377 = vunpack.c.l.b16 %v3228
    %v3378 = vpack.c.b16 %v3375, %v3374
    %v3379 = vpack.c.b16 %v3377, %v3376
    %v3383 = vsel %vm2321, %v3366, 0
    %v3386 = vsel %vm2321, %v3367, 0
    %v3389 = vsel %vm2321, %v3368, 0
    %v3392 = vsel %vm2321, %v3369, 0
    %3394 = vmatprep.subr.bf16.mxu0 0
    %3395 = vmatpush1.bf16.msra.mxu0 0
    %3396 = vmatprep.subr.bf16.mxu0 0
    %3397 = vmatpush1.bf16.msra.mxu0 0
    %3398 = vmatprep.subr.bf16.mxu0 0
    %3399 = vmatpush1.bf16.msra.mxu0 0
    %3400 = vmatprep.subr.bf16.mxu0 0
    %3401 = vmatpush1.bf16.msra.mxu0 0
    %3402 = vmatprep.subr.bf16.mxu0 0
    %3403 = vmatpush1.bf16.msra.mxu0 0
    %3404 = vmatprep.subr.bf16.mxu0 0
    %3405 = vmatpush1.bf16.msra.mxu0 0
    %3406 = vmatprep.subr.bf16.mxu0 0
    %3407 = vmatpush1.bf16.msra.mxu0 %v3379
    %3408 = vmatprep.subr.bf16.mxu0 0
    %3409 = vmatpush1.bf16.msra.mxu0 %v3378
    %3410 = vmatprep.subr.bf16.mxu0 0
    %3411 = vmatpush2.bf16.msra.mxu0 0
    %3412 = vmatprep.subr.bf16.mxu0 0
    %3413 = vmatpush2.bf16.msra.mxu0 0
    %3414 = vmatprep.subr.bf16.mxu0 0
    %3415 = vmatpush2.bf16.msra.mxu0 0
    %3416 = vmatprep.subr.bf16.mxu0 0
    %3417 = vmatpush2.bf16.msra.mxu0 0
    %3418 = vmatprep.subr.bf16.mxu0 0
    %3419 = vmatpush2.bf16.msra.mxu0 0
    %3420 = vmatprep.subr.bf16.mxu0 0
    %3421 = vmatpush2.bf16.msra.mxu0 0
    %3422 = vmatprep.subr.bf16.mxu0 0
    %3423 = vmatpush2.bf16.msra.mxu0 0
    %3424 = vmatprep.subr.bf16.mxu0 0
    %3425 = vmatpush2.bf16.msra.mxu0 0
    %3426 = vmatprep.mubr.bf16.mxu0 0
    %3427 = vmatmul.mubr.bf16.gmra.mxu0 %v3383
    %v3428 = vpop.f32.mrf.mxu0
    %v3429 = vadd.f32 %v3320, %v3428
    %v3430 = vpop.f32.mrf.mxu0
    %v3431 = vpop.f32.mrf.mxu0
    %v3432 = vadd.f32 %v3323, %v3431
    %v3433 = vpop.f32.mrf.mxu0
    %3434 = vmatprep.mubr.bf16.mxu0 0
    %3435 = vmatmul.mubr.bf16.gmra.mxu0 %v3386
    %v3436 = vpop.f32.mrf.mxu0
    %v3437 = vadd.f32 %v3328, %v3436
    %v3438 = vpop.f32.mrf.mxu0
    %v3439 = vpop.f32.mrf.mxu0
    %v3440 = vadd.f32 %v3331, %v3439
    %v3441 = vpop.f32.mrf.mxu0
    %3442 = vmatprep.mubr.bf16.mxu0 0
    %3443 = vmatmul.mubr.bf16.gmra.mxu0 %v3389
    %v3444 = vpop.f32.mrf.mxu0
    %v3445 = vadd.f32 %v3336, %v3444
    %v3446 = vpop.f32.mrf.mxu0
    %v3447 = vpop.f32.mrf.mxu0
    %v3448 = vadd.f32 %v3339, %v3447
    %v3449 = vpop.f32.mrf.mxu0
    %3450 = vmatprep.mubr.bf16.mxu0 0
    %3451 = vmatmul.mubr.bf16.gmra.mxu0 %v3392
    %v3452 = vpop.f32.mrf.mxu0
    %v3453 = vadd.f32 %v3344, %v3452
    %v3454 = vpop.f32.mrf.mxu0
    %v3455 = vpop.f32.mrf.mxu0
    %v3456 = vadd.f32 %v3347, %v3455
    %v3457 = vpop.f32.mrf.mxu0
    %3458 = vdwg.mxu0
    %v3459 = vld [vmem:[%s2508] sm:$0xf]
    %v3460 = vld [vmem:[%s2508 + $0x4] sm:$0xf]
    %v3461 = vld [vmem:[%s2508 + $0x8] sm:$0xf]
    %v3462 = vld [vmem:[%s2508 + $0xc] sm:$0xf]
    %v3463 = vld [vmem:[%s2508 + $0x10] sm:$0xf]
    %v3464 = vld [vmem:[%s2508 + $0x14] sm:$0xf]
    %v3465 = vld [vmem:[%s2508 + $0x18] sm:$0xf]
    %v3466 = vld [vmem:[%s2508 + $0x1c] sm:$0xf]
    %v3467 = vld [vmem:[%s1151] sm:$0xf]
    %v3468 = vld [vmem:[%s1151 + $0x4] sm:$0xf]
    %v3469 = vld [vmem:[%s1151 + $0x8] sm:$0xf]
    %v3470 = vld [vmem:[%s1151 + $0xc] sm:$0xf]
    %v3479 = vunpack.c.l.b16 %v3459
    %v3480 = vunpack.c.l.b16 %v3460
    %v3481 = vunpack.c.l.b16 %v3461
    %v3482 = vunpack.c.l.b16 %v3462
    %v3483 = vunpack.c.l.b16 %v3463
    %v3484 = vunpack.c.l.b16 %v3464
    %v3485 = vunpack.c.l.b16 %v3465
    %v3486 = vunpack.c.l.b16 %v3466
    %v3487 = vpack.c.b16 %v3480, %v3479
    %v3488 = vpack.c.b16 %v3482, %v3481
    %v3489 = vpack.c.b16 %v3484, %v3483
    %v3490 = vpack.c.b16 %v3486, %v3485
    %v3495 = vunpack.c.l.b16 %v3467
    %v3496 = vunpack.c.l.b16 %v3468
    %v3497 = vunpack.c.l.b16 %v3469
    %v3498 = vunpack.c.l.b16 %v3470
    %v3499 = vpack.c.b16 %v3496, %v3495
    %v3500 = vpack.c.b16 %v3498, %v3497
    %v3504 = vsel %vm2321, %v3487, 0
    %v3507 = vsel %vm2321, %v3488, 0
    %v3510 = vsel %vm2321, %v3489, 0
    %v3513 = vsel %vm2321, %v3490, 0
    %3515 = vmatprep.subr.bf16.mxu0 0
    %3516 = vmatpush1.bf16.msra.mxu0 0
    %3517 = vmatprep.subr.bf16.mxu0 0
    %3518 = vmatpush1.bf16.msra.mxu0 0
    %3519 = vmatprep.subr.bf16.mxu0 0
    %3520 = vmatpush1.bf16.msra.mxu0 0
    %3521 = vmatprep.subr.bf16.mxu0 0
    %3522 = vmatpush1.bf16.msra.mxu0 0
    %3523 = vmatprep.subr.bf16.mxu0 0
    %3524 = vmatpush1.bf16.msra.mxu0 0
    %3525 = vmatprep.subr.bf16.mxu0 0
    %3526 = vmatpush1.bf16.msra.mxu0 0
    %3527 = vmatprep.subr.bf16.mxu0 0
    %3528 = vmatpush1.bf16.msra.mxu0 %v3500
    %3529 = vmatprep.subr.bf16.mxu0 0
    %3530 = vmatpush1.bf16.msra.mxu0 %v3499
    %3531 = vmatprep.subr.bf16.mxu0 0
    %3532 = vmatpush2.bf16.msra.mxu0 0
    %3533 = vmatprep.subr.bf16.mxu0 0
    %3534 = vmatpush2.bf16.msra.mxu0 0
    %3535 = vmatprep.subr.bf16.mxu0 0
    %3536 = vmatpush2.bf16.msra.mxu0 0
    %3537 = vmatprep.subr.bf16.mxu0 0
    %3538 = vmatpush2.bf16.msra.mxu0 0
    %3539 = vmatprep.subr.bf16.mxu0 0
    %3540 = vmatpush2.bf16.msra.mxu0 0
    %3541 = vmatprep.subr.bf16.mxu0 0
    %3542 = vmatpush2.bf16.msra.mxu0 0
    %3543 = vmatprep.subr.bf16.mxu0 0
    %3544 = vmatpush2.bf16.msra.mxu0 0
    %3545 = vmatprep.subr.bf16.mxu0 0
    %3546 = vmatpush2.bf16.msra.mxu0 0
    %3547 = vmatprep.mubr.bf16.mxu0 0
    %3548 = vmatmul.mubr.bf16.gmra.mxu0 %v3504
    %v3549 = vpop.f32.mrf.mxu0
    %v3550 = vadd.f32 0.0, %v3549
    %v3551 = vpop.f32.mrf.mxu0
    %v3552 = vpop.f32.mrf.mxu0
    %v3553 = vadd.f32 0.0, %v3552
    %v3554 = vpop.f32.mrf.mxu0
    %3555 = vmatprep.mubr.bf16.mxu0 0
    %3556 = vmatmul.mubr.bf16.gmra.mxu0 %v3507
    %v3557 = vpop.f32.mrf.mxu0
    %v3558 = vadd.f32 0.0, %v3557
    %v3559 = vpop.f32.mrf.mxu0
    %v3560 = vpop.f32.mrf.mxu0
    %v3561 = vadd.f32 0.0, %v3560
    %v3562 = vpop.f32.mrf.mxu0
    %3563 = vmatprep.mubr.bf16.mxu0 0
    %3564 = vmatmul.mubr.bf16.gmra.mxu0 %v3510
    %v3565 = vpop.f32.mrf.mxu0
    %v3566 = vadd.f32 0.0, %v3565
    %v3567 = vpop.f32.mrf.mxu0
    %v3568 = vpop.f32.mrf.mxu0
    %v3569 = vadd.f32 0.0, %v3568
    %v3570 = vpop.f32.mrf.mxu0
    %3571 = vmatprep.mubr.bf16.mxu0 0
    %3572 = vmatmul.mubr.bf16.gmra.mxu0 %v3513
    %v3573 = vpop.f32.mrf.mxu0
    %v3574 = vadd.f32 0.0, %v3573
    %v3575 = vpop.f32.mrf.mxu0
    %v3576 = vpop.f32.mrf.mxu0
    %v3577 = vadd.f32 0.0, %v3576
    %v3578 = vpop.f32.mrf.mxu0
    %3579 = vdwg.mxu0
    %v3580 = vadd.f32 %v3429, %v3550
    %v3581 = vadd.f32 %v3432, %v3553
    %v3582 = vadd.f32 %v3437, %v3558
    %v3583 = vadd.f32 %v3440, %v3561
    %v3584 = vadd.f32 %v3445, %v3566
    %v3585 = vadd.f32 %v3448, %v3569
    %v3586 = vadd.f32 %v3453, %v3574
    %v3587 = vadd.f32 %v3456, %v3577
    %v3588 = vld [vmem:[%s4] sm:$0xff]
    %v3589 = vld [vmem:[%s4 + $0x8] sm:$0xff]
    %v3590 = vld [vmem:[%s4 + $0x10] sm:$0xff]
    %v3591 = vld [vmem:[%s4 + $0x18] sm:$0xff]
    %v3592 = vld [vmem:[%s4 + $0x20] sm:$0xff]
    %v3593 = vld [vmem:[%s4 + $0x28] sm:$0xff]
    %v3594 = vld [vmem:[%s4 + $0x30] sm:$0xff]
    %v3595 = vld [vmem:[%s4 + $0x38] sm:$0xff]
    %3597 = vset.pattern.permute.xlu0 0
    %3598 = vperm.xlu0 %3597, %v3588
    %v3599 = vpop.permute.xlu0 %3598
    %3602 = vset.pattern.permute.xlu0 0
    %3603 = vperm.xlu0 %3602, %v3589
    %v3604 = vpop.permute.xlu0 %3603
    %3607 = vset.pattern.permute.xlu0 0
    %3608 = vperm.xlu0 %3607, %v3590
    %v3609 = vpop.permute.xlu0 %3608
    %3612 = vset.pattern.permute.xlu0 0
    %3613 = vperm.xlu0 %3612, %v3591
    %v3614 = vpop.permute.xlu0 %3613
    %3617 = vset.pattern.permute.xlu0 0
    %3618 = vperm.xlu0 %3617, %v3592
    %v3619 = vpop.permute.xlu0 %3618
    %3622 = vset.pattern.permute.xlu0 0
    %3623 = vperm.xlu0 %3622, %v3593
    %v3624 = vpop.permute.xlu0 %3623
    %3627 = vset.pattern.permute.xlu0 0
    %3628 = vperm.xlu0 %3627, %v3594
    %v3629 = vpop.permute.xlu0 %3628
    %3632 = vset.pattern.permute.xlu0 0
    %3633 = vperm.xlu0 %3632, %v3595
    %v3634 = vpop.permute.xlu0 %3633
    %v3636 = vadd.f32 %v3580, %v3599
    %v3637 = vadd.f32 %v3581, %v3604
    %v3638 = vadd.f32 %v3582, %v3609
    %v3639 = vadd.f32 %v3583, %v3614
    %v3640 = vadd.f32 %v3584, %v3619
    %v3641 = vadd.f32 %v3585, %v3624
    %v3642 = vadd.f32 %v3586, %v3629
    %v3643 = vadd.f32 %v3587, %v3634
    %v3644 = vmax.f32 %v3636, 0.0
    %v3645 = vmax.f32 %v3637, 0.0
    %v3646 = vmax.f32 %v3638, 0.0
    %v3647 = vmax.f32 %v3639, 0.0
    %v3648 = vmax.f32 %v3640, 0.0
    %v3649 = vmax.f32 %v3641, 0.0
    %v3650 = vmax.f32 %v3642, 0.0
    %v3651 = vmax.f32 %v3643, 0.0
    %v3652 = vpack.c.bf16 %v3645, %v3644
    %v3653 = vpack.c.bf16 %v3647, %v3646
    %v3654 = vpack.c.bf16 %v3649, %v3648
    %v3655 = vpack.c.bf16 %v3651, %v3650
    %v3660 = vunpack.c.l.b16 %v3652
    %v3661 = vunpack.c.h.b16 %v3652
    %v3662 = vunpack.c.l.b16 %v3653
    %v3663 = vunpack.c.h.b16 %v3653
    %v3664 = vunpack.c.l.b16 %v3654
    %v3665 = vunpack.c.h.b16 %v3654
    %v3666 = vunpack.c.l.b16 %v3655
    %v3667 = vunpack.c.h.b16 %v3655
    %v3668 = vpack.c.b16 %v3660, %v3660
    %v3669 = vpack.c.b16 %v3661, %v3661
    %v3670 = vpack.c.b16 %v3662, %v3662
    %v3671 = vpack.c.b16 %v3663, %v3663
    %v3672 = vpack.c.b16 %v3664, %v3664
    %v3673 = vpack.c.b16 %v3665, %v3665
    %v3674 = vpack.c.b16 %v3666, %v3666
    %v3675 = vpack.c.b16 %v3667, %v3667
    %3684 = vst [vmem:[#allocation3 + $0x40] sm:$0xf] %v3668
    %3685 = vst [vmem:[#allocation3 + $0x44] sm:$0xf] %v3669
    %3686 = vst [vmem:[#allocation3 + $0x48] sm:$0xf] %v3670
    %3687 = vst [vmem:[#allocation3 + $0x4c] sm:$0xf] %v3671
    %3688 = vst [vmem:[#allocation3 + $0x50] sm:$0xf] %v3672
    %3689 = vst [vmem:[#allocation3 + $0x54] sm:$0xf] %v3673
    %3690 = vst [vmem:[#allocation3 + $0x58] sm:$0xf] %v3674
    %3691 = vst [vmem:[#allocation3 + $0x5c] sm:$0xf] %v3675
    %v3692 = vld [vmem:[%s3] sm:$0xf]
    %v3693 = vld [vmem:[%s3 + $0x4] sm:$0xf]
    %v3694 = vld [vmem:[%s3 + $0x8] sm:$0xf]
    %v3695 = vld [vmem:[%s3 + $0xc] sm:$0xf]
    %v3696 = vld [vmem:[%s3 + $0x10] sm:$0xf]
    %v3697 = vld [vmem:[%s3 + $0x14] sm:$0xf]
    %v3698 = vld [vmem:[%s3 + $0x18] sm:$0xf]
    %v3699 = vld [vmem:[%s3 + $0x1c] sm:$0xf]
    %v3700 = vld [vmem:[%s874] sm:$0xf]
    %v3701 = vld [vmem:[%s874 + $0x4] sm:$0xf]
    %v3702 = vld [vmem:[%s874 + $0x8] sm:$0xf]
    %v3703 = vld [vmem:[%s874 + $0xc] sm:$0xf]
    %v3704 = vld [vmem:[%s2276] sm:$0xf]
    %v3705 = vld [vmem:[%s2276 + $0x4] sm:$0xf]
    %v3706 = vld [vmem:[%s2276 + $0x8] sm:$0xf]
    %v3707 = vld [vmem:[%s2276 + $0xc] sm:$0xf]
    %v3708 = vld [vmem:[%s2276 + $0x10] sm:$0xf]
    %v3709 = vld [vmem:[%s2276 + $0x14] sm:$0xf]
    %v3710 = vld [vmem:[%s2276 + $0x18] sm:$0xf]
    %v3711 = vld [vmem:[%s2276 + $0x1c] sm:$0xf]
    %v3712 = vld [vmem:[%s1151] sm:$0xf]
    %v3713 = vld [vmem:[%s1151 + $0x4] sm:$0xf]
    %v3714 = vld [vmem:[%s1151 + $0x8] sm:$0xf]
    %v3715 = vld [vmem:[%s1151 + $0xc] sm:$0xf]
    %v3724 = vunpack.c.l.b16 %v3704
    %v3725 = vunpack.c.l.b16 %v3705
    %v3726 = vunpack.c.l.b16 %v3706
    %v3727 = vunpack.c.l.b16 %v3707
    %v3728 = vunpack.c.l.b16 %v3708
    %v3729 = vunpack.c.l.b16 %v3709
    %v3730 = vunpack.c.l.b16 %v3710
    %v3731 = vunpack.c.l.b16 %v3711
    %v3732 = vpack.c.b16 %v3725, %v3724
    %v3733 = vpack.c.b16 %v3727, %v3726
    %v3734 = vpack.c.b16 %v3729, %v3728
    %v3735 = vpack.c.b16 %v3731, %v3730
    %v3740 = vunpack.c.l.b16 %v3712
    %v3741 = vunpack.c.l.b16 %v3713
    %v3742 = vunpack.c.l.b16 %v3714
    %v3743 = vunpack.c.l.b16 %v3715
    %v3744 = vpack.c.b16 %v3741, %v3740
    %v3745 = vpack.c.b16 %v3743, %v3742
    %v3749 = vsel %vm2321, %v3732, 0
    %v3752 = vsel %vm2321, %v3733, 0
    %v3755 = vsel %vm2321, %v3734, 0
    %v3758 = vsel %vm2321, %v3735, 0
    %3760 = vmatprep.subr.bf16.mxu0 0
    %3761 = vmatpush1.bf16.msra.mxu0 0
    %3762 = vmatprep.subr.bf16.mxu0 0
    %3763 = vmatpush1.bf16.msra.mxu0 0
    %3764 = vmatprep.subr.bf16.mxu0 0
    %3765 = vmatpush1.bf16.msra.mxu0 0
    %3766 = vmatprep.subr.bf16.mxu0 0
    %3767 = vmatpush1.bf16.msra.mxu0 0
    %3768 = vmatprep.subr.bf16.mxu0 0
    %3769 = vmatpush1.bf16.msra.mxu0 0
    %3770 = vmatprep.subr.bf16.mxu0 0
    %3771 = vmatpush1.bf16.msra.mxu0 0
    %3772 = vmatprep.subr.bf16.mxu0 0
    %3773 = vmatpush1.bf16.msra.mxu0 %v3745
    %3774 = vmatprep.subr.bf16.mxu0 0
    %3775 = vmatpush1.bf16.msra.mxu0 %v3744
    %3776 = vmatprep.subr.bf16.mxu0 0
    %3777 = vmatpush2.bf16.msra.mxu0 0
    %3778 = vmatprep.subr.bf16.mxu0 0
    %3779 = vmatpush2.bf16.msra.mxu0 0
    %3780 = vmatprep.subr.bf16.mxu0 0
    %3781 = vmatpush2.bf16.msra.mxu0 0
    %3782 = vmatprep.subr.bf16.mxu0 0
    %3783 = vmatpush2.bf16.msra.mxu0 0
    %3784 = vmatprep.subr.bf16.mxu0 0
    %3785 = vmatpush2.bf16.msra.mxu0 0
    %3786 = vmatprep.subr.bf16.mxu0 0
    %3787 = vmatpush2.bf16.msra.mxu0 0
    %3788 = vmatprep.subr.bf16.mxu0 0
    %3789 = vmatpush2.bf16.msra.mxu0 0
    %3790 = vmatprep.subr.bf16.mxu0 0
    %3791 = vmatpush2.bf16.msra.mxu0 0
    %3792 = vmatprep.mubr.bf16.mxu0 0
    %3793 = vmatmul.mubr.bf16.gmra.mxu0 %v3749
    %v3794 = vpop.f32.mrf.mxu0
    %v3795 = vadd.f32 0.0, %v3794
    %v3796 = vpop.f32.mrf.mxu0
    %v3797 = vpop.f32.mrf.mxu0
    %v3798 = vadd.f32 0.0, %v3797
    %v3799 = vpop.f32.mrf.mxu0
    %3800 = vmatprep.mubr.bf16.mxu0 0
    %3801 = vmatmul.mubr.bf16.gmra.mxu0 %v3752
    %v3802 = vpop.f32.mrf.mxu0
    %v3803 = vadd.f32 0.0, %v3802
    %v3804 = vpop.f32.mrf.mxu0
    %v3805 = vpop.f32.mrf.mxu0
    %v3806 = vadd.f32 0.0, %v3805
    %v3807 = vpop.f32.mrf.mxu0
    %3808 = vmatprep.mubr.bf16.mxu0 0
    %3809 = vmatmul.mubr.bf16.gmra.mxu0 %v3755
    %v3810 = vpop.f32.mrf.mxu0
    %v3811 = vadd.f32 0.0, %v3810
    %v3812 = vpop.f32.mrf.mxu0
    %v3813 = vpop.f32.mrf.mxu0
    %v3814 = vadd.f32 0.0, %v3813
    %v3815 = vpop.f32.mrf.mxu0
    %3816 = vmatprep.mubr.bf16.mxu0 0
    %3817 = vmatmul.mubr.bf16.gmra.mxu0 %v3758
    %v3818 = vpop.f32.mrf.mxu0
    %v3819 = vadd.f32 0.0, %v3818
    %v3820 = vpop.f32.mrf.mxu0
    %v3821 = vpop.f32.mrf.mxu0
    %v3822 = vadd.f32 0.0, %v3821
    %v3823 = vpop.f32.mrf.mxu0
    %3824 = vdwg.mxu0
    %v3833 = vunpack.c.l.b16 %v3692
    %v3834 = vunpack.c.l.b16 %v3693
    %v3835 = vunpack.c.l.b16 %v3694
    %v3836 = vunpack.c.l.b16 %v3695
    %v3837 = vunpack.c.l.b16 %v3696
    %v3838 = vunpack.c.l.b16 %v3697
    %v3839 = vunpack.c.l.b16 %v3698
    %v3840 = vunpack.c.l.b16 %v3699
    %v3841 = vpack.c.b16 %v3834, %v3833
    %v3842 = vpack.c.b16 %v3836, %v3835
    %v3843 = vpack.c.b16 %v3838, %v3837
    %v3844 = vpack.c.b16 %v3840, %v3839
    %v3849 = vunpack.c.l.b16 %v3700
    %v3850 = vunpack.c.l.b16 %v3701
    %v3851 = vunpack.c.l.b16 %v3702
    %v3852 = vunpack.c.l.b16 %v3703
    %v3853 = vpack.c.b16 %v3850, %v3849
    %v3854 = vpack.c.b16 %v3852, %v3851
    %v3858 = vsel %vm2321, %v3841, 0
    %v3861 = vsel %vm2321, %v3842, 0
    %v3864 = vsel %vm2321, %v3843, 0
    %v3867 = vsel %vm2321, %v3844, 0
    %3869 = vmatprep.subr.bf16.mxu0 0
    %3870 = vmatpush1.bf16.msra.mxu0 0
    %3871 = vmatprep.subr.bf16.mxu0 0
    %3872 = vmatpush1.bf16.msra.mxu0 0
    %3873 = vmatprep.subr.bf16.mxu0 0
    %3874 = vmatpush1.bf16.msra.mxu0 0
    %3875 = vmatprep.subr.bf16.mxu0 0
    %3876 = vmatpush1.bf16.msra.mxu0 0
    %3877 = vmatprep.subr.bf16.mxu0 0
    %3878 = vmatpush1.bf16.msra.mxu0 0
    %3879 = vmatprep.subr.bf16.mxu0 0
    %3880 = vmatpush1.bf16.msra.mxu0 0
    %3881 = vmatprep.subr.bf16.mxu0 0
    %3882 = vmatpush1.bf16.msra.mxu0 %v3854
    %3883 = vmatprep.subr.bf16.mxu0 0
    %3884 = vmatpush1.bf16.msra.mxu0 %v3853
    %3885 = vmatprep.subr.bf16.mxu0 0
    %3886 = vmatpush2.bf16.msra.mxu0 0
    %3887 = vmatprep.subr.bf16.mxu0 0
    %3888 = vmatpush2.bf16.msra.mxu0 0
    %3889 = vmatprep.subr.bf16.mxu0 0
    %3890 = vmatpush2.bf16.msra.mxu0 0
    %3891 = vmatprep.subr.bf16.mxu0 0
    %3892 = vmatpush2.bf16.msra.mxu0 0
    %3893 = vmatprep.subr.bf16.mxu0 0
    %3894 = vmatpush2.bf16.msra.mxu0 0
    %3895 = vmatprep.subr.bf16.mxu0 0
    %3896 = vmatpush2.bf16.msra.mxu0 0
    %3897 = vmatprep.subr.bf16.mxu0 0
    %3898 = vmatpush2.bf16.msra.mxu0 0
    %3899 = vmatprep.subr.bf16.mxu0 0
    %3900 = vmatpush2.bf16.msra.mxu0 0
    %3901 = vmatprep.mubr.bf16.mxu0 0
    %3902 = vmatmul.mubr.bf16.gmra.mxu0 %v3858
    %v3903 = vpop.f32.mrf.mxu0
    %v3904 = vadd.f32 %v3795, %v3903
    %v3905 = vpop.f32.mrf.mxu0
    %v3906 = vpop.f32.mrf.mxu0
    %v3907 = vadd.f32 %v3798, %v3906
    %v3908 = vpop.f32.mrf.mxu0
    %3909 = vmatprep.mubr.bf16.mxu0 0
    %3910 = vmatmul.mubr.bf16.gmra.mxu0 %v3861
    %v3911 = vpop.f32.mrf.mxu0
    %v3912 = vadd.f32 %v3803, %v3911
    %v3913 = vpop.f32.mrf.mxu0
    %v3914 = vpop.f32.mrf.mxu0
    %v3915 = vadd.f32 %v3806, %v3914
    %v3916 = vpop.f32.mrf.mxu0
    %3917 = vmatprep.mubr.bf16.mxu0 0
    %3918 = vmatmul.mubr.bf16.gmra.mxu0 %v3864
    %v3919 = vpop.f32.mrf.mxu0
    %v3920 = vadd.f32 %v3811, %v3919
    %v3921 = vpop.f32.mrf.mxu0
    %v3922 = vpop.f32.mrf.mxu0
    %v3923 = vadd.f32 %v3814, %v3922
    %v3924 = vpop.f32.mrf.mxu0
    %3925 = vmatprep.mubr.bf16.mxu0 0
    %3926 = vmatmul.mubr.bf16.gmra.mxu0 %v3867
    %v3927 = vpop.f32.mrf.mxu0
    %v3928 = vadd.f32 %v3819, %v3927
    %v3929 = vpop.f32.mrf.mxu0
    %v3930 = vpop.f32.mrf.mxu0
    %v3931 = vadd.f32 %v3822, %v3930
    %v3932 = vpop.f32.mrf.mxu0
    %3933 = vdwg.mxu0
    %v3934 = vld [vmem:[%s2508] sm:$0xf]
    %v3935 = vld [vmem:[%s2508 + $0x4] sm:$0xf]
    %v3936 = vld [vmem:[%s2508 + $0x8] sm:$0xf]
    %v3937 = vld [vmem:[%s2508 + $0xc] sm:$0xf]
    %v3938 = vld [vmem:[%s2508 + $0x10] sm:$0xf]
    %v3939 = vld [vmem:[%s2508 + $0x14] sm:$0xf]
    %v3940 = vld [vmem:[%s2508 + $0x18] sm:$0xf]
    %v3941 = vld [vmem:[%s2508 + $0x1c] sm:$0xf]
    %v3942 = vld [vmem:[%s1428] sm:$0xf]
    %v3943 = vld [vmem:[%s1428 + $0x4] sm:$0xf]
    %v3944 = vld [vmem:[%s1428 + $0x8] sm:$0xf]
    %v3945 = vld [vmem:[%s1428 + $0xc] sm:$0xf]
    %v3954 = vunpack.c.l.b16 %v3934
    %v3955 = vunpack.c.l.b16 %v3935
    %v3956 = vunpack.c.l.b16 %v3936
    %v3957 = vunpack.c.l.b16 %v3937
    %v3958 = vunpack.c.l.b16 %v3938
    %v3959 = vunpack.c.l.b16 %v3939
    %v3960 = vunpack.c.l.b16 %v3940
    %v3961 = vunpack.c.l.b16 %v3941
    %v3962 = vpack.c.b16 %v3955, %v3954
    %v3963 = vpack.c.b16 %v3957, %v3956
    %v3964 = vpack.c.b16 %v3959, %v3958
    %v3965 = vpack.c.b16 %v3961, %v3960
    %v3970 = vunpack.c.l.b16 %v3942
    %v3971 = vunpack.c.l.b16 %v3943
    %v3972 = vunpack.c.l.b16 %v3944
    %v3973 = vunpack.c.l.b16 %v3945
    %v3974 = vpack.c.b16 %v3971, %v3970
    %v3975 = vpack.c.b16 %v3973, %v3972
    %v3979 = vsel %vm2321, %v3962, 0
    %v3982 = vsel %vm2321, %v3963, 0
    %v3985 = vsel %vm2321, %v3964, 0
    %v3988 = vsel %vm2321, %v3965, 0
    %3990 = vmatprep.subr.bf16.mxu0 0
    %3991 = vmatpush1.bf16.msra.mxu0 0
    %3992 = vmatprep.subr.bf16.mxu0 0
    %3993 = vmatpush1.bf16.msra.mxu0 0
    %3994 = vmatprep.subr.bf16.mxu0 0
    %3995 = vmatpush1.bf16.msra.mxu0 0
    %3996 = vmatprep.subr.bf16.mxu0 0
    %3997 = vmatpush1.bf16.msra.mxu0 0
    %3998 = vmatprep.subr.bf16.mxu0 0
    %3999 = vmatpush1.bf16.msra.mxu0 0
    %4000 = vmatprep.subr.bf16.mxu0 0
    %4001 = vmatpush1.bf16.msra.mxu0 0
    %4002 = vmatprep.subr.bf16.mxu0 0
    %4003 = vmatpush1.bf16.msra.mxu0 %v3975
    %4004 = vmatprep.subr.bf16.mxu0 0
    %4005 = vmatpush1.bf16.msra.mxu0 %v3974
    %4006 = vmatprep.subr.bf16.mxu0 0
    %4007 = vmatpush2.bf16.msra.mxu0 0
    %4008 = vmatprep.subr.bf16.mxu0 0
    %4009 = vmatpush2.bf16.msra.mxu0 0
    %4010 = vmatprep.subr.bf16.mxu0 0
    %4011 = vmatpush2.bf16.msra.mxu0 0
    %4012 = vmatprep.subr.bf16.mxu0 0
    %4013 = vmatpush2.bf16.msra.mxu0 0
    %4014 = vmatprep.subr.bf16.mxu0 0
    %4015 = vmatpush2.bf16.msra.mxu0 0
    %4016 = vmatprep.subr.bf16.mxu0 0
    %4017 = vmatpush2.bf16.msra.mxu0 0
    %4018 = vmatprep.subr.bf16.mxu0 0
    %4019 = vmatpush2.bf16.msra.mxu0 0
    %4020 = vmatprep.subr.bf16.mxu0 0
    %4021 = vmatpush2.bf16.msra.mxu0 0
    %4022 = vmatprep.mubr.bf16.mxu0 0
    %4023 = vmatmul.mubr.bf16.gmra.mxu0 %v3979
    %v4024 = vpop.f32.mrf.mxu0
    %v4025 = vadd.f32 0.0, %v4024
    %v4026 = vpop.f32.mrf.mxu0
    %v4027 = vpop.f32.mrf.mxu0
    %v4028 = vadd.f32 0.0, %v4027
    %v4029 = vpop.f32.mrf.mxu0
    %4030 = vmatprep.mubr.bf16.mxu0 0
    %4031 = vmatmul.mubr.bf16.gmra.mxu0 %v3982
    %v4032 = vpop.f32.mrf.mxu0
    %v4033 = vadd.f32 0.0, %v4032
    %v4034 = vpop.f32.mrf.mxu0
    %v4035 = vpop.f32.mrf.mxu0
    %v4036 = vadd.f32 0.0, %v4035
    %v4037 = vpop.f32.mrf.mxu0
    %4038 = vmatprep.mubr.bf16.mxu0 0
    %4039 = vmatmul.mubr.bf16.gmra.mxu0 %v3985
    %v4040 = vpop.f32.mrf.mxu0
    %v4041 = vadd.f32 0.0, %v4040
    %v4042 = vpop.f32.mrf.mxu0
    %v4043 = vpop.f32.mrf.mxu0
    %v4044 = vadd.f32 0.0, %v4043
    %v4045 = vpop.f32.mrf.mxu0
    %4046 = vmatprep.mubr.bf16.mxu0 0
    %4047 = vmatmul.mubr.bf16.gmra.mxu0 %v3988
    %v4048 = vpop.f32.mrf.mxu0
    %v4049 = vadd.f32 0.0, %v4048
    %v4050 = vpop.f32.mrf.mxu0
    %v4051 = vpop.f32.mrf.mxu0
    %v4052 = vadd.f32 0.0, %v4051
    %v4053 = vpop.f32.mrf.mxu0
    %4054 = vdwg.mxu0
    %v4055 = vadd.f32 %v3904, %v4025
    %v4056 = vadd.f32 %v3907, %v4028
    %v4057 = vadd.f32 %v3912, %v4033
    %v4058 = vadd.f32 %v3915, %v4036
    %v4059 = vadd.f32 %v3920, %v4041
    %v4060 = vadd.f32 %v3923, %v4044
    %v4061 = vadd.f32 %v3928, %v4049
    %v4062 = vadd.f32 %v3931, %v4052
    %v4063 = vld [vmem:[%s4] sm:$0xff]
    %v4064 = vld [vmem:[%s4 + $0x8] sm:$0xff]
    %v4065 = vld [vmem:[%s4 + $0x10] sm:$0xff]
    %v4066 = vld [vmem:[%s4 + $0x18] sm:$0xff]
    %v4067 = vld [vmem:[%s4 + $0x20] sm:$0xff]
    %v4068 = vld [vmem:[%s4 + $0x28] sm:$0xff]
    %v4069 = vld [vmem:[%s4 + $0x30] sm:$0xff]
    %v4070 = vld [vmem:[%s4 + $0x38] sm:$0xff]
    %4072 = vset.pattern.permute.xlu0 0
    %4073 = vperm.xlu0 %4072, %v4063
    %v4074 = vpop.permute.xlu0 %4073
    %4077 = vset.pattern.permute.xlu0 0
    %4078 = vperm.xlu0 %4077, %v4064
    %v4079 = vpop.permute.xlu0 %4078
    %4082 = vset.pattern.permute.xlu0 0
    %4083 = vperm.xlu0 %4082, %v4065
    %v4084 = vpop.permute.xlu0 %4083
    %4087 = vset.pattern.permute.xlu0 0
    %4088 = vperm.xlu0 %4087, %v4066
    %v4089 = vpop.permute.xlu0 %4088
    %4092 = vset.pattern.permute.xlu0 0
    %4093 = vperm.xlu0 %4092, %v4067
    %v4094 = vpop.permute.xlu0 %4093
    %4097 = vset.pattern.permute.xlu0 0
    %4098 = vperm.xlu0 %4097, %v4068
    %v4099 = vpop.permute.xlu0 %4098
    %4102 = vset.pattern.permute.xlu0 0
    %4103 = vperm.xlu0 %4102, %v4069
    %v4104 = vpop.permute.xlu0 %4103
    %4107 = vset.pattern.permute.xlu0 0
    %4108 = vperm.xlu0 %4107, %v4070
    %v4109 = vpop.permute.xlu0 %4108
    %v4111 = vadd.f32 %v4055, %v4074
    %v4112 = vadd.f32 %v4056, %v4079
    %v4113 = vadd.f32 %v4057, %v4084
    %v4114 = vadd.f32 %v4058, %v4089
    %v4115 = vadd.f32 %v4059, %v4094
    %v4116 = vadd.f32 %v4060, %v4099
    %v4117 = vadd.f32 %v4061, %v4104
    %v4118 = vadd.f32 %v4062, %v4109
    %v4119 = vmax.f32 %v4111, 0.0
    %v4120 = vmax.f32 %v4112, 0.0
    %v4121 = vmax.f32 %v4113, 0.0
    %v4122 = vmax.f32 %v4114, 0.0
    %v4123 = vmax.f32 %v4115, 0.0
    %v4124 = vmax.f32 %v4116, 0.0
    %v4125 = vmax.f32 %v4117, 0.0
    %v4126 = vmax.f32 %v4118, 0.0
    %v4127 = vpack.c.bf16 %v4120, %v4119
    %v4128 = vpack.c.bf16 %v4122, %v4121
    %v4129 = vpack.c.bf16 %v4124, %v4123
    %v4130 = vpack.c.bf16 %v4126, %v4125
    %v4135 = vunpack.c.l.b16 %v4127
    %v4136 = vunpack.c.h.b16 %v4127
    %v4137 = vunpack.c.l.b16 %v4128
    %v4138 = vunpack.c.h.b16 %v4128
    %v4139 = vunpack.c.l.b16 %v4129
    %v4140 = vunpack.c.h.b16 %v4129
    %v4141 = vunpack.c.l.b16 %v4130
    %v4142 = vunpack.c.h.b16 %v4130
    %v4143 = vpack.c.b16 %v4135, %v4135
    %v4144 = vpack.c.b16 %v4136, %v4136
    %v4145 = vpack.c.b16 %v4137, %v4137
    %v4146 = vpack.c.b16 %v4138, %v4138
    %v4147 = vpack.c.b16 %v4139, %v4139
    %v4148 = vpack.c.b16 %v4140, %v4140
    %v4149 = vpack.c.b16 %v4141, %v4141
    %v4150 = vpack.c.b16 %v4142, %v4142
    %4159 = vst [vmem:[#allocation3 + $0x60] sm:$0xf] %v4143
    %4160 = vst [vmem:[#allocation3 + $0x64] sm:$0xf] %v4144
    %4161 = vst [vmem:[#allocation3 + $0x68] sm:$0xf] %v4145
    %4162 = vst [vmem:[#allocation3 + $0x6c] sm:$0xf] %v4146
    %4163 = vst [vmem:[#allocation3 + $0x70] sm:$0xf] %v4147
    %4164 = vst [vmem:[#allocation3 + $0x74] sm:$0xf] %v4148
    %4165 = vst [vmem:[#allocation3 + $0x78] sm:$0xf] %v4149
    %4166 = vst [vmem:[#allocation3 + $0x7c] sm:$0xf] %v4150
    %v4167 = vld [vmem:[%s3] sm:$0xf]
    %v4168 = vld [vmem:[%s3 + $0x4] sm:$0xf]
    %v4169 = vld [vmem:[%s3 + $0x8] sm:$0xf]
    %v4170 = vld [vmem:[%s3 + $0xc] sm:$0xf]
    %v4171 = vld [vmem:[%s3 + $0x10] sm:$0xf]
    %v4172 = vld [vmem:[%s3 + $0x14] sm:$0xf]
    %v4173 = vld [vmem:[%s3 + $0x18] sm:$0xf]
    %v4174 = vld [vmem:[%s3 + $0x1c] sm:$0xf]
    %v4175 = vld [vmem:[%s1151] sm:$0xf]
    %v4176 = vld [vmem:[%s1151 + $0x4] sm:$0xf]
    %v4177 = vld [vmem:[%s1151 + $0x8] sm:$0xf]
    %v4178 = vld [vmem:[%s1151 + $0xc] sm:$0xf]
    %v4179 = vld [vmem:[%s2276] sm:$0xf]
    %v4180 = vld [vmem:[%s2276 + $0x4] sm:$0xf]
    %v4181 = vld [vmem:[%s2276 + $0x8] sm:$0xf]
    %v4182 = vld [vmem:[%s2276 + $0xc] sm:$0xf]
    %v4183 = vld [vmem:[%s2276 + $0x10] sm:$0xf]
    %v4184 = vld [vmem:[%s2276 + $0x14] sm:$0xf]
    %v4185 = vld [vmem:[%s2276 + $0x18] sm:$0xf]
    %v4186 = vld [vmem:[%s2276 + $0x1c] sm:$0xf]
    %v4187 = vld [vmem:[%s1428] sm:$0xf]
    %v4188 = vld [vmem:[%s1428 + $0x4] sm:$0xf]
    %v4189 = vld [vmem:[%s1428 + $0x8] sm:$0xf]
    %v4190 = vld [vmem:[%s1428 + $0xc] sm:$0xf]
    %v4199 = vunpack.c.l.b16 %v4179
    %v4200 = vunpack.c.l.b16 %v4180
    %v4201 = vunpack.c.l.b16 %v4181
    %v4202 = vunpack.c.l.b16 %v4182
    %v4203 = vunpack.c.l.b16 %v4183
    %v4204 = vunpack.c.l.b16 %v4184
    %v4205 = vunpack.c.l.b16 %v4185
    %v4206 = vunpack.c.l.b16 %v4186
    %v4207 = vpack.c.b16 %v4200, %v4199
    %v4208 = vpack.c.b16 %v4202, %v4201
    %v4209 = vpack.c.b16 %v4204, %v4203
    %v4210 = vpack.c.b16 %v4206, %v4205
    %v4215 = vunpack.c.l.b16 %v4187
    %v4216 = vunpack.c.l.b16 %v4188
    %v4217 = vunpack.c.l.b16 %v4189
    %v4218 = vunpack.c.l.b16 %v4190
    %v4219 = vpack.c.b16 %v4216, %v4215
    %v4220 = vpack.c.b16 %v4218, %v4217
    %v4224 = vsel %vm2321, %v4207, 0
    %v4227 = vsel %vm2321, %v4208, 0
    %v4230 = vsel %vm2321, %v4209, 0
    %v4233 = vsel %vm2321, %v4210, 0
    %4235 = vmatprep.subr.bf16.mxu0 0
    %4236 = vmatpush1.bf16.msra.mxu0 0
    %4237 = vmatprep.subr.bf16.mxu0 0
    %4238 = vmatpush1.bf16.msra.mxu0 0
    %4239 = vmatprep.subr.bf16.mxu0 0
    %4240 = vmatpush1.bf16.msra.mxu0 0
    %4241 = vmatprep.subr.bf16.mxu0 0
    %4242 = vmatpush1.bf16.msra.mxu0 0
    %4243 = vmatprep.subr.bf16.mxu0 0
    %4244 = vmatpush1.bf16.msra.mxu0 0
    %4245 = vmatprep.subr.bf16.mxu0 0
    %4246 = vmatpush1.bf16.msra.mxu0 0
    %4247 = vmatprep.subr.bf16.mxu0 0
    %4248 = vmatpush1.bf16.msra.mxu0 %v4220
    %4249 = vmatprep.subr.bf16.mxu0 0
    %4250 = vmatpush1.bf16.msra.mxu0 %v4219
    %4251 = vmatprep.subr.bf16.mxu0 0
    %4252 = vmatpush2.bf16.msra.mxu0 0
    %4253 = vmatprep.subr.bf16.mxu0 0
    %4254 = vmatpush2.bf16.msra.mxu0 0
    %4255 = vmatprep.subr.bf16.mxu0 0
    %4256 = vmatpush2.bf16.msra.mxu0 0
    %4257 = vmatprep.subr.bf16.mxu0 0
    %4258 = vmatpush2.bf16.msra.mxu0 0
    %4259 = vmatprep.subr.bf16.mxu0 0
    %4260 = vmatpush2.bf16.msra.mxu0 0
    %4261 = vmatprep.subr.bf16.mxu0 0
    %4262 = vmatpush2.bf16.msra.mxu0 0
    %4263 = vmatprep.subr.bf16.mxu0 0
    %4264 = vmatpush2.bf16.msra.mxu0 0
    %4265 = vmatprep.subr.bf16.mxu0 0
    %4266 = vmatpush2.bf16.msra.mxu0 0
    %4267 = vmatprep.mubr.bf16.mxu0 0
    %4268 = vmatmul.mubr.bf16.gmra.mxu0 %v4224
    %v4269 = vpop.f32.mrf.mxu0
    %v4270 = vadd.f32 0.0, %v4269
    %v4271 = vpop.f32.mrf.mxu0
    %v4272 = vpop.f32.mrf.mxu0
    %v4273 = vadd.f32 0.0, %v4272
    %v4274 = vpop.f32.mrf.mxu0
    %4275 = vmatprep.mubr.bf16.mxu0 0
    %4276 = vmatmul.mubr.bf16.gmra.mxu0 %v4227
    %v4277 = vpop.f32.mrf.mxu0
    %v4278 = vadd.f32 0.0, %v4277
    %v4279 = vpop.f32.mrf.mxu0
    %v4280 = vpop.f32.mrf.mxu0
    %v4281 = vadd.f32 0.0, %v4280
    %v4282 = vpop.f32.mrf.mxu0
    %4283 = vmatprep.mubr.bf16.mxu0 0
    %4284 = vmatmul.mubr.bf16.gmra.mxu0 %v4230
    %v4285 = vpop.f32.mrf.mxu0
    %v4286 = vadd.f32 0.0, %v4285
    %v4287 = vpop.f32.mrf.mxu0
    %v4288 = vpop.f32.mrf.mxu0
    %v4289 = vadd.f32 0.0, %v4288
    %v4290 = vpop.f32.mrf.mxu0
    %4291 = vmatprep.mubr.bf16.mxu0 0
    %4292 = vmatmul.mubr.bf16.gmra.mxu0 %v4233
    %v4293 = vpop.f32.mrf.mxu0
    %v4294 = vadd.f32 0.0, %v4293
    %v4295 = vpop.f32.mrf.mxu0
    %v4296 = vpop.f32.mrf.mxu0
    %v4297 = vadd.f32 0.0, %v4296
    %v4298 = vpop.f32.mrf.mxu0
    %4299 = vdwg.mxu0
    %v4308 = vunpack.c.l.b16 %v4167
    %v4309 = vunpack.c.l.b16 %v4168
    %v4310 = vunpack.c.l.b16 %v4169
    %v4311 = vunpack.c.l.b16 %v4170
    %v4312 = vunpack.c.l.b16 %v4171
    %v4313 = vunpack.c.l.b16 %v4172
    %v4314 = vunpack.c.l.b16 %v4173
    %v4315 = vunpack.c.l.b16 %v4174
    %v4316 = vpack.c.b16 %v4309, %v4308
    %v4317 = vpack.c.b16 %v4311, %v4310
    %v4318 = vpack.c.b16 %v4313, %v4312
    %v4319 = vpack.c.b16 %v4315, %v4314
    %v4324 = vunpack.c.l.b16 %v4175
    %v4325 = vunpack.c.l.b16 %v4176
    %v4326 = vunpack.c.l.b16 %v4177
    %v4327 = vunpack.c.l.b16 %v4178
    %v4328 = vpack.c.b16 %v4325, %v4324
    %v4329 = vpack.c.b16 %v4327, %v4326
    %v4333 = vsel %vm2321, %v4316, 0
    %v4336 = vsel %vm2321, %v4317, 0
    %v4339 = vsel %vm2321, %v4318, 0
    %v4342 = vsel %vm2321, %v4319, 0
    %4344 = vmatprep.subr.bf16.mxu0 0
    %4345 = vmatpush1.bf16.msra.mxu0 0
    %4346 = vmatprep.subr.bf16.mxu0 0
    %4347 = vmatpush1.bf16.msra.mxu0 0
    %4348 = vmatprep.subr.bf16.mxu0 0
    %4349 = vmatpush1.bf16.msra.mxu0 0
    %4350 = vmatprep.subr.bf16.mxu0 0
    %4351 = vmatpush1.bf16.msra.mxu0 0
    %4352 = vmatprep.subr.bf16.mxu0 0
    %4353 = vmatpush1.bf16.msra.mxu0 0
    %4354 = vmatprep.subr.bf16.mxu0 0
    %4355 = vmatpush1.bf16.msra.mxu0 0
    %4356 = vmatprep.subr.bf16.mxu0 0
    %4357 = vmatpush1.bf16.msra.mxu0 %v4329
    %4358 = vmatprep.subr.bf16.mxu0 0
    %4359 = vmatpush1.bf16.msra.mxu0 %v4328
    %4360 = vmatprep.subr.bf16.mxu0 0
    %4361 = vmatpush2.bf16.msra.mxu0 0
    %4362 = vmatprep.subr.bf16.mxu0 0
    %4363 = vmatpush2.bf16.msra.mxu0 0
    %4364 = vmatprep.subr.bf16.mxu0 0
    %4365 = vmatpush2.bf16.msra.mxu0 0
    %4366 = vmatprep.subr.bf16.mxu0 0
    %4367 = vmatpush2.bf16.msra.mxu0 0
    %4368 = vmatprep.subr.bf16.mxu0 0
    %4369 = vmatpush2.bf16.msra.mxu0 0
    %4370 = vmatprep.subr.bf16.mxu0 0
    %4371 = vmatpush2.bf16.msra.mxu0 0
    %4372 = vmatprep.subr.bf16.mxu0 0
    %4373 = vmatpush2.bf16.msra.mxu0 0
    %4374 = vmatprep.subr.bf16.mxu0 0
    %4375 = vmatpush2.bf16.msra.mxu0 0
    %4376 = vmatprep.mubr.bf16.mxu0 0
    %4377 = vmatmul.mubr.bf16.gmra.mxu0 %v4333
    %v4378 = vpop.f32.mrf.mxu0
    %v4379 = vadd.f32 %v4270, %v4378
    %v4380 = vpop.f32.mrf.mxu0
    %v4381 = vpop.f32.mrf.mxu0
    %v4382 = vadd.f32 %v4273, %v4381
    %v4383 = vpop.f32.mrf.mxu0
    %4384 = vmatprep.mubr.bf16.mxu0 0
    %4385 = vmatmul.mubr.bf16.gmra.mxu0 %v4336
    %v4386 = vpop.f32.mrf.mxu0
    %v4387 = vadd.f32 %v4278, %v4386
    %v4388 = vpop.f32.mrf.mxu0
    %v4389 = vpop.f32.mrf.mxu0
    %v4390 = vadd.f32 %v4281, %v4389
    %v4391 = vpop.f32.mrf.mxu0
    %4392 = vmatprep.mubr.bf16.mxu0 0
    %4393 = vmatmul.mubr.bf16.gmra.mxu0 %v4339
    %v4394 = vpop.f32.mrf.mxu0
    %v4395 = vadd.f32 %v4286, %v4394
    %v4396 = vpop.f32.mrf.mxu0
    %v4397 = vpop.f32.mrf.mxu0
    %v4398 = vadd.f32 %v4289, %v4397
    %v4399 = vpop.f32.mrf.mxu0
    %4400 = vmatprep.mubr.bf16.mxu0 0
    %4401 = vmatmul.mubr.bf16.gmra.mxu0 %v4342
    %v4402 = vpop.f32.mrf.mxu0
    %v4403 = vadd.f32 %v4294, %v4402
    %v4404 = vpop.f32.mrf.mxu0
    %v4405 = vpop.f32.mrf.mxu0
    %v4406 = vadd.f32 %v4297, %v4405
    %v4407 = vpop.f32.mrf.mxu0
    %4408 = vdwg.mxu0
    %v4409 = vld [vmem:[%s2508] sm:$0xf]
    %v4410 = vld [vmem:[%s2508 + $0x4] sm:$0xf]
    %v4411 = vld [vmem:[%s2508 + $0x8] sm:$0xf]
    %v4412 = vld [vmem:[%s2508 + $0xc] sm:$0xf]
    %v4413 = vld [vmem:[%s2508 + $0x10] sm:$0xf]
    %v4414 = vld [vmem:[%s2508 + $0x14] sm:$0xf]
    %v4415 = vld [vmem:[%s2508 + $0x18] sm:$0xf]
    %v4416 = vld [vmem:[%s2508 + $0x1c] sm:$0xf]
    %v4417 = vld [vmem:[%s1705] sm:$0xf]
    %v4418 = vld [vmem:[%s1705 + $0x4] sm:$0xf]
    %v4419 = vld [vmem:[%s1705 + $0x8] sm:$0xf]
    %v4420 = vld [vmem:[%s1705 + $0xc] sm:$0xf]
    %v4429 = vunpack.c.l.b16 %v4409
    %v4430 = vunpack.c.l.b16 %v4410
    %v4431 = vunpack.c.l.b16 %v4411
    %v4432 = vunpack.c.l.b16 %v4412
    %v4433 = vunpack.c.l.b16 %v4413
    %v4434 = vunpack.c.l.b16 %v4414
    %v4435 = vunpack.c.l.b16 %v4415
    %v4436 = vunpack.c.l.b16 %v4416
    %v4437 = vpack.c.b16 %v4430, %v4429
    %v4438 = vpack.c.b16 %v4432, %v4431
    %v4439 = vpack.c.b16 %v4434, %v4433
    %v4440 = vpack.c.b16 %v4436, %v4435
    %v4445 = vunpack.c.l.b16 %v4417
    %v4446 = vunpack.c.l.b16 %v4418
    %v4447 = vunpack.c.l.b16 %v4419
    %v4448 = vunpack.c.l.b16 %v4420
    %v4449 = vpack.c.b16 %v4446, %v4445
    %v4450 = vpack.c.b16 %v4448, %v4447
    %v4454 = vsel %vm2321, %v4437, 0
    %v4457 = vsel %vm2321, %v4438, 0
    %v4460 = vsel %vm2321, %v4439, 0
    %v4463 = vsel %vm2321, %v4440, 0
    %4465 = vmatprep.subr.bf16.mxu0 0
    %4466 = vmatpush1.bf16.msra.mxu0 0
    %4467 = vmatprep.subr.bf16.mxu0 0
    %4468 = vmatpush1.bf16.msra.mxu0 0
    %4469 = vmatprep.subr.bf16.mxu0 0
    %4470 = vmatpush1.bf16.msra.mxu0 0
    %4471 = vmatprep.subr.bf16.mxu0 0
    %4472 = vmatpush1.bf16.msra.mxu0 0
    %4473 = vmatprep.subr.bf16.mxu0 0
    %4474 = vmatpush1.bf16.msra.mxu0 0
    %4475 = vmatprep.subr.bf16.mxu0 0
    %4476 = vmatpush1.bf16.msra.mxu0 0
    %4477 = vmatprep.subr.bf16.mxu0 0
    %4478 = vmatpush1.bf16.msra.mxu0 %v4450
    %4479 = vmatprep.subr.bf16.mxu0 0
    %4480 = vmatpush1.bf16.msra.mxu0 %v4449
    %4481 = vmatprep.subr.bf16.mxu0 0
    %4482 = vmatpush2.bf16.msra.mxu0 0
    %4483 = vmatprep.subr.bf16.mxu0 0
    %4484 = vmatpush2.bf16.msra.mxu0 0
    %4485 = vmatprep.subr.bf16.mxu0 0
    %4486 = vmatpush2.bf16.msra.mxu0 0
    %4487 = vmatprep.subr.bf16.mxu0 0
    %4488 = vmatpush2.bf16.msra.mxu0 0
    %4489 = vmatprep.subr.bf16.mxu0 0
    %4490 = vmatpush2.bf16.msra.mxu0 0
    %4491 = vmatprep.subr.bf16.mxu0 0
    %4492 = vmatpush2.bf16.msra.mxu0 0
    %4493 = vmatprep.subr.bf16.mxu0 0
    %4494 = vmatpush2.bf16.msra.mxu0 0
    %4495 = vmatprep.subr.bf16.mxu0 0
    %4496 = vmatpush2.bf16.msra.mxu0 0
    %4497 = vmatprep.mubr.bf16.mxu0 0
    %4498 = vmatmul.mubr.bf16.gmra.mxu0 %v4454
    %v4499 = vpop.f32.mrf.mxu0
    %v4500 = vadd.f32 0.0, %v4499
    %v4501 = vpop.f32.mrf.mxu0
    %v4502 = vpop.f32.mrf.mxu0
    %v4503 = vadd.f32 0.0, %v4502
    %v4504 = vpop.f32.mrf.mxu0
    %4505 = vmatprep.mubr.bf16.mxu0 0
    %4506 = vmatmul.mubr.bf16.gmra.mxu0 %v4457
    %v4507 = vpop.f32.mrf.mxu0
    %v4508 = vadd.f32 0.0, %v4507
    %v4509 = vpop.f32.mrf.mxu0
    %v4510 = vpop.f32.mrf.mxu0
    %v4511 = vadd.f32 0.0, %v4510
    %v4512 = vpop.f32.mrf.mxu0
    %4513 = vmatprep.mubr.bf16.mxu0 0
    %4514 = vmatmul.mubr.bf16.gmra.mxu0 %v4460
    %v4515 = vpop.f32.mrf.mxu0
    %v4516 = vadd.f32 0.0, %v4515
    %v4517 = vpop.f32.mrf.mxu0
    %v4518 = vpop.f32.mrf.mxu0
    %v4519 = vadd.f32 0.0, %v4518
    %v4520 = vpop.f32.mrf.mxu0
    %4521 = vmatprep.mubr.bf16.mxu0 0
    %4522 = vmatmul.mubr.bf16.gmra.mxu0 %v4463
    %v4523 = vpop.f32.mrf.mxu0
    %v4524 = vadd.f32 0.0, %v4523
    %v4525 = vpop.f32.mrf.mxu0
    %v4526 = vpop.f32.mrf.mxu0
    %v4527 = vadd.f32 0.0, %v4526
    %v4528 = vpop.f32.mrf.mxu0
    %4529 = vdwg.mxu0
    %v4530 = vadd.f32 %v4379, %v4500
    %v4531 = vadd.f32 %v4382, %v4503
    %v4532 = vadd.f32 %v4387, %v4508
    %v4533 = vadd.f32 %v4390, %v4511
    %v4534 = vadd.f32 %v4395, %v4516
    %v4535 = vadd.f32 %v4398, %v4519
    %v4536 = vadd.f32 %v4403, %v4524
    %v4537 = vadd.f32 %v4406, %v4527
    %v4538 = vld [vmem:[%s4] sm:$0xff]
    %v4539 = vld [vmem:[%s4 + $0x8] sm:$0xff]
    %v4540 = vld [vmem:[%s4 + $0x10] sm:$0xff]
    %v4541 = vld [vmem:[%s4 + $0x18] sm:$0xff]
    %v4542 = vld [vmem:[%s4 + $0x20] sm:$0xff]
    %v4543 = vld [vmem:[%s4 + $0x28] sm:$0xff]
    %v4544 = vld [vmem:[%s4 + $0x30] sm:$0xff]
    %v4545 = vld [vmem:[%s4 + $0x38] sm:$0xff]
    %4547 = vset.pattern.permute.xlu0 0
    %4548 = vperm.xlu0 %4547, %v4538
    %v4549 = vpop.permute.xlu0 %4548
    %4552 = vset.pattern.permute.xlu0 0
    %4553 = vperm.xlu0 %4552, %v4539
    %v4554 = vpop.permute.xlu0 %4553
    %4557 = vset.pattern.permute.xlu0 0
    %4558 = vperm.xlu0 %4557, %v4540
    %v4559 = vpop.permute.xlu0 %4558
    %4562 = vset.pattern.permute.xlu0 0
    %4563 = vperm.xlu0 %4562, %v4541
    %v4564 = vpop.permute.xlu0 %4563
    %4567 = vset.pattern.permute.xlu0 0
    %4568 = vperm.xlu0 %4567, %v4542
    %v4569 = vpop.permute.xlu0 %4568
    %4572 = vset.pattern.permute.xlu0 0
    %4573 = vperm.xlu0 %4572, %v4543
    %v4574 = vpop.permute.xlu0 %4573
    %4577 = vset.pattern.permute.xlu0 0
    %4578 = vperm.xlu0 %4577, %v4544
    %v4579 = vpop.permute.xlu0 %4578
    %4582 = vset.pattern.permute.xlu0 0
    %4583 = vperm.xlu0 %4582, %v4545
    %v4584 = vpop.permute.xlu0 %4583
    %v4586 = vadd.f32 %v4530, %v4549
    %v4587 = vadd.f32 %v4531, %v4554
    %v4588 = vadd.f32 %v4532, %v4559
    %v4589 = vadd.f32 %v4533, %v4564
    %v4590 = vadd.f32 %v4534, %v4569
    %v4591 = vadd.f32 %v4535, %v4574
    %v4592 = vadd.f32 %v4536, %v4579
    %v4593 = vadd.f32 %v4537, %v4584
    %v4594 = vmax.f32 %v4586, 0.0
    %v4595 = vmax.f32 %v4587, 0.0
    %v4596 = vmax.f32 %v4588, 0.0
    %v4597 = vmax.f32 %v4589, 0.0
    %v4598 = vmax.f32 %v4590, 0.0
    %v4599 = vmax.f32 %v4591, 0.0
    %v4600 = vmax.f32 %v4592, 0.0
    %v4601 = vmax.f32 %v4593, 0.0
    %v4602 = vpack.c.bf16 %v4595, %v4594
    %v4603 = vpack.c.bf16 %v4597, %v4596
    %v4604 = vpack.c.bf16 %v4599, %v4598
    %v4605 = vpack.c.bf16 %v4601, %v4600
    %v4610 = vunpack.c.l.b16 %v4602
    %v4611 = vunpack.c.h.b16 %v4602
    %v4612 = vunpack.c.l.b16 %v4603
    %v4613 = vunpack.c.h.b16 %v4603
    %v4614 = vunpack.c.l.b16 %v4604
    %v4615 = vunpack.c.h.b16 %v4604
    %v4616 = vunpack.c.l.b16 %v4605
    %v4617 = vunpack.c.h.b16 %v4605
    %v4618 = vpack.c.b16 %v4610, %v4610
    %v4619 = vpack.c.b16 %v4611, %v4611
    %v4620 = vpack.c.b16 %v4612, %v4612
    %v4621 = vpack.c.b16 %v4613, %v4613
    %v4622 = vpack.c.b16 %v4614, %v4614
    %v4623 = vpack.c.b16 %v4615, %v4615
    %v4624 = vpack.c.b16 %v4616, %v4616
    %v4625 = vpack.c.b16 %v4617, %v4617
    %4634 = vst [vmem:[#allocation3 + $0x80] sm:$0xf] %v4618
    %4635 = vst [vmem:[#allocation3 + $0x84] sm:$0xf] %v4619
    %4636 = vst [vmem:[#allocation3 + $0x88] sm:$0xf] %v4620
    %4637 = vst [vmem:[#allocation3 + $0x8c] sm:$0xf] %v4621
    %4638 = vst [vmem:[#allocation3 + $0x90] sm:$0xf] %v4622
    %4639 = vst [vmem:[#allocation3 + $0x94] sm:$0xf] %v4623
    %4640 = vst [vmem:[#allocation3 + $0x98] sm:$0xf] %v4624
    %4641 = vst [vmem:[#allocation3 + $0x9c] sm:$0xf] %v4625
    %v4642 = vld [vmem:[%s3] sm:$0xf]
    %v4643 = vld [vmem:[%s3 + $0x4] sm:$0xf]
    %v4644 = vld [vmem:[%s3 + $0x8] sm:$0xf]
    %v4645 = vld [vmem:[%s3 + $0xc] sm:$0xf]
    %v4646 = vld [vmem:[%s3 + $0x10] sm:$0xf]
    %v4647 = vld [vmem:[%s3 + $0x14] sm:$0xf]
    %v4648 = vld [vmem:[%s3 + $0x18] sm:$0xf]
    %v4649 = vld [vmem:[%s3 + $0x1c] sm:$0xf]
    %v4650 = vld [vmem:[%s1428] sm:$0xf]
    %v4651 = vld [vmem:[%s1428 + $0x4] sm:$0xf]
    %v4652 = vld [vmem:[%s1428 + $0x8] sm:$0xf]
    %v4653 = vld [vmem:[%s1428 + $0xc] sm:$0xf]
    %v4654 = vld [vmem:[%s2276] sm:$0xf]
    %v4655 = vld [vmem:[%s2276 + $0x4] sm:$0xf]
    %v4656 = vld [vmem:[%s2276 + $0x8] sm:$0xf]
    %v4657 = vld [vmem:[%s2276 + $0xc] sm:$0xf]
    %v4658 = vld [vmem:[%s2276 + $0x10] sm:$0xf]
    %v4659 = vld [vmem:[%s2276 + $0x14] sm:$0xf]
    %v4660 = vld [vmem:[%s2276 + $0x18] sm:$0xf]
    %v4661 = vld [vmem:[%s2276 + $0x1c] sm:$0xf]
    %v4662 = vld [vmem:[%s1705] sm:$0xf]
    %v4663 = vld [vmem:[%s1705 + $0x4] sm:$0xf]
    %v4664 = vld [vmem:[%s1705 + $0x8] sm:$0xf]
    %v4665 = vld [vmem:[%s1705 + $0xc] sm:$0xf]
    %v4674 = vunpack.c.l.b16 %v4654
    %v4675 = vunpack.c.l.b16 %v4655
    %v4676 = vunpack.c.l.b16 %v4656
    %v4677 = vunpack.c.l.b16 %v4657
    %v4678 = vunpack.c.l.b16 %v4658
    %v4679 = vunpack.c.l.b16 %v4659
    %v4680 = vunpack.c.l.b16 %v4660
    %v4681 = vunpack.c.l.b16 %v4661
    %v4682 = vpack.c.b16 %v4675, %v4674
    %v4683 = vpack.c.b16 %v4677, %v4676
    %v4684 = vpack.c.b16 %v4679, %v4678
    %v4685 = vpack.c.b16 %v4681, %v4680
    %v4690 = vunpack.c.l.b16 %v4662
    %v4691 = vunpack.c.l.b16 %v4663
    %v4692 = vunpack.c.l.b16 %v4664
    %v4693 = vunpack.c.l.b16 %v4665
    %v4694 = vpack.c.b16 %v4691, %v4690
    %v4695 = vpack.c.b16 %v4693, %v4692
    %v4699 = vsel %vm2321, %v4682, 0
    %v4702 = vsel %vm2321, %v4683, 0
    %v4705 = vsel %vm2321, %v4684, 0
    %v4708 = vsel %vm2321, %v4685, 0
    %4710 = vmatprep.subr.bf16.mxu0 0
    %4711 = vmatpush1.bf16.msra.mxu0 0
    %4712 = vmatprep.subr.bf16.mxu0 0
    %4713 = vmatpush1.bf16.msra.mxu0 0
    %4714 = vmatprep.subr.bf16.mxu0 0
    %4715 = vmatpush1.bf16.msra.mxu0 0
    %4716 = vmatprep.subr.bf16.mxu0 0
    %4717 = vmatpush1.bf16.msra.mxu0 0
    %4718 = vmatprep.subr.bf16.mxu0 0
    %4719 = vmatpush1.bf16.msra.mxu0 0
    %4720 = vmatprep.subr.bf16.mxu0 0
    %4721 = vmatpush1.bf16.msra.mxu0 0
    %4722 = vmatprep.subr.bf16.mxu0 0
    %4723 = vmatpush1.bf16.msra.mxu0 %v4695
    %4724 = vmatprep.subr.bf16.mxu0 0
    %4725 = vmatpush1.bf16.msra.mxu0 %v4694
    %4726 = vmatprep.subr.bf16.mxu0 0
    %4727 = vmatpush2.bf16.msra.mxu0 0
    %4728 = vmatprep.subr.bf16.mxu0 0
    %4729 = vmatpush2.bf16.msra.mxu0 0
    %4730 = vmatprep.subr.bf16.mxu0 0
    %4731 = vmatpush2.bf16.msra.mxu0 0
    %4732 = vmatprep.subr.bf16.mxu0 0
    %4733 = vmatpush2.bf16.msra.mxu0 0
    %4734 = vmatprep.subr.bf16.mxu0 0
    %4735 = vmatpush2.bf16.msra.mxu0 0
    %4736 = vmatprep.subr.bf16.mxu0 0
    %4737 = vmatpush2.bf16.msra.mxu0 0
    %4738 = vmatprep.subr.bf16.mxu0 0
    %4739 = vmatpush2.bf16.msra.mxu0 0
    %4740 = vmatprep.subr.bf16.mxu0 0
    %4741 = vmatpush2.bf16.msra.mxu0 0
    %4742 = vmatprep.mubr.bf16.mxu0 0
    %4743 = vmatmul.mubr.bf16.gmra.mxu0 %v4699
    %v4744 = vpop.f32.mrf.mxu0
    %v4745 = vadd.f32 0.0, %v4744
    %v4746 = vpop.f32.mrf.mxu0
    %v4747 = vpop.f32.mrf.mxu0
    %v4748 = vadd.f32 0.0, %v4747
    %v4749 = vpop.f32.mrf.mxu0
    %4750 = vmatprep.mubr.bf16.mxu0 0
    %4751 = vmatmul.mubr.bf16.gmra.mxu0 %v4702
    %v4752 = vpop.f32.mrf.mxu0
    %v4753 = vadd.f32 0.0, %v4752
    %v4754 = vpop.f32.mrf.mxu0
    %v4755 = vpop.f32.mrf.mxu0
    %v4756 = vadd.f32 0.0, %v4755
    %v4757 = vpop.f32.mrf.mxu0
    %4758 = vmatprep.mubr.bf16.mxu0 0
    %4759 = vmatmul.mubr.bf16.gmra.mxu0 %v4705
    %v4760 = vpop.f32.mrf.mxu0
    %v4761 = vadd.f32 0.0, %v4760
    %v4762 = vpop.f32.mrf.mxu0
    %v4763 = vpop.f32.mrf.mxu0
    %v4764 = vadd.f32 0.0, %v4763
    %v4765 = vpop.f32.mrf.mxu0
    %4766 = vmatprep.mubr.bf16.mxu0 0
    %4767 = vmatmul.mubr.bf16.gmra.mxu0 %v4708
    %v4768 = vpop.f32.mrf.mxu0
    %v4769 = vadd.f32 0.0, %v4768
    %v4770 = vpop.f32.mrf.mxu0
    %v4771 = vpop.f32.mrf.mxu0
    %v4772 = vadd.f32 0.0, %v4771
    %v4773 = vpop.f32.mrf.mxu0
    %4774 = vdwg.mxu0
    %v4783 = vunpack.c.l.b16 %v4642
    %v4784 = vunpack.c.l.b16 %v4643
    %v4785 = vunpack.c.l.b16 %v4644
    %v4786 = vunpack.c.l.b16 %v4645
    %v4787 = vunpack.c.l.b16 %v4646
    %v4788 = vunpack.c.l.b16 %v4647
    %v4789 = vunpack.c.l.b16 %v4648
    %v4790 = vunpack.c.l.b16 %v4649
    %v4791 = vpack.c.b16 %v4784, %v4783
    %v4792 = vpack.c.b16 %v4786, %v4785
    %v4793 = vpack.c.b16 %v4788, %v4787
    %v4794 = vpack.c.b16 %v4790, %v4789
    %v4799 = vunpack.c.l.b16 %v4650
    %v4800 = vunpack.c.l.b16 %v4651
    %v4801 = vunpack.c.l.b16 %v4652
    %v4802 = vunpack.c.l.b16 %v4653
    %v4803 = vpack.c.b16 %v4800, %v4799
    %v4804 = vpack.c.b16 %v4802, %v4801
    %v4808 = vsel %vm2321, %v4791, 0
    %v4811 = vsel %vm2321, %v4792, 0
    %v4814 = vsel %vm2321, %v4793, 0
    %v4817 = vsel %vm2321, %v4794, 0
    %4819 = vmatprep.subr.bf16.mxu0 0
    %4820 = vmatpush1.bf16.msra.mxu0 0
    %4821 = vmatprep.subr.bf16.mxu0 0
    %4822 = vmatpush1.bf16.msra.mxu0 0
    %4823 = vmatprep.subr.bf16.mxu0 0
    %4824 = vmatpush1.bf16.msra.mxu0 0
    %4825 = vmatprep.subr.bf16.mxu0 0
    %4826 = vmatpush1.bf16.msra.mxu0 0
    %4827 = vmatprep.subr.bf16.mxu0 0
    %4828 = vmatpush1.bf16.msra.mxu0 0
    %4829 = vmatprep.subr.bf16.mxu0 0
    %4830 = vmatpush1.bf16.msra.mxu0 0
    %4831 = vmatprep.subr.bf16.mxu0 0
    %4832 = vmatpush1.bf16.msra.mxu0 %v4804
    %4833 = vmatprep.subr.bf16.mxu0 0
    %4834 = vmatpush1.bf16.msra.mxu0 %v4803
    %4835 = vmatprep.subr.bf16.mxu0 0
    %4836 = vmatpush2.bf16.msra.mxu0 0
    %4837 = vmatprep.subr.bf16.mxu0 0
    %4838 = vmatpush2.bf16.msra.mxu0 0
    %4839 = vmatprep.subr.bf16.mxu0 0
    %4840 = vmatpush2.bf16.msra.mxu0 0
    %4841 = vmatprep.subr.bf16.mxu0 0
    %4842 = vmatpush2.bf16.msra.mxu0 0
    %4843 = vmatprep.subr.bf16.mxu0 0
    %4844 = vmatpush2.bf16.msra.mxu0 0
    %4845 = vmatprep.subr.bf16.mxu0 0
    %4846 = vmatpush2.bf16.msra.mxu0 0
    %4847 = vmatprep.subr.bf16.mxu0 0
    %4848 = vmatpush2.bf16.msra.mxu0 0
    %4849 = vmatprep.subr.bf16.mxu0 0
    %4850 = vmatpush2.bf16.msra.mxu0 0
    %4851 = vmatprep.mubr.bf16.mxu0 0
    %4852 = vmatmul.mubr.bf16.gmra.mxu0 %v4808
    %v4853 = vpop.f32.mrf.mxu0
    %v4854 = vadd.f32 %v4745, %v4853
    %v4855 = vpop.f32.mrf.mxu0
    %v4856 = vpop.f32.mrf.mxu0
    %v4857 = vadd.f32 %v4748, %v4856
    %v4858 = vpop.f32.mrf.mxu0
    %4859 = vmatprep.mubr.bf16.mxu0 0
    %4860 = vmatmul.mubr.bf16.gmra.mxu0 %v4811
    %v4861 = vpop.f32.mrf.mxu0
    %v4862 = vadd.f32 %v4753, %v4861
    %v4863 = vpop.f32.mrf.mxu0
    %v4864 = vpop.f32.mrf.mxu0
    %v4865 = vadd.f32 %v4756, %v4864
    %v4866 = vpop.f32.mrf.mxu0
    %4867 = vmatprep.mubr.bf16.mxu0 0
    %4868 = vmatmul.mubr.bf16.gmra.mxu0 %v4814
    %v4869 = vpop.f32.mrf.mxu0
    %v4870 = vadd.f32 %v4761, %v4869
    %v4871 = vpop.f32.mrf.mxu0
    %v4872 = vpop.f32.mrf.mxu0
    %v4873 = vadd.f32 %v4764, %v4872
    %v4874 = vpop.f32.mrf.mxu0
    %4875 = vmatprep.mubr.bf16.mxu0 0
    %4876 = vmatmul.mubr.bf16.gmra.mxu0 %v4817
    %v4877 = vpop.f32.mrf.mxu0
    %v4878 = vadd.f32 %v4769, %v4877
    %v4879 = vpop.f32.mrf.mxu0
    %v4880 = vpop.f32.mrf.mxu0
    %v4881 = vadd.f32 %v4772, %v4880
    %v4882 = vpop.f32.mrf.mxu0
    %4883 = vdwg.mxu0
    %v4884 = vld [vmem:[%s2508] sm:$0xf]
    %v4885 = vld [vmem:[%s2508 + $0x4] sm:$0xf]
    %v4886 = vld [vmem:[%s2508 + $0x8] sm:$0xf]
    %v4887 = vld [vmem:[%s2508 + $0xc] sm:$0xf]
    %v4888 = vld [vmem:[%s2508 + $0x10] sm:$0xf]
    %v4889 = vld [vmem:[%s2508 + $0x14] sm:$0xf]
    %v4890 = vld [vmem:[%s2508 + $0x18] sm:$0xf]
    %v4891 = vld [vmem:[%s2508 + $0x1c] sm:$0xf]
    %v4892 = vld [vmem:[%s1982] sm:$0xf]
    %v4893 = vld [vmem:[%s1982 + $0x4] sm:$0xf]
    %v4894 = vld [vmem:[%s1982 + $0x8] sm:$0xf]
    %v4895 = vld [vmem:[%s1982 + $0xc] sm:$0xf]
    %v4904 = vunpack.c.l.b16 %v4884
    %v4905 = vunpack.c.l.b16 %v4885
    %v4906 = vunpack.c.l.b16 %v4886
    %v4907 = vunpack.c.l.b16 %v4887
    %v4908 = vunpack.c.l.b16 %v4888
    %v4909 = vunpack.c.l.b16 %v4889
    %v4910 = vunpack.c.l.b16 %v4890
    %v4911 = vunpack.c.l.b16 %v4891
    %v4912 = vpack.c.b16 %v4905, %v4904
    %v4913 = vpack.c.b16 %v4907, %v4906
    %v4914 = vpack.c.b16 %v4909, %v4908
    %v4915 = vpack.c.b16 %v4911, %v4910
    %v4920 = vunpack.c.l.b16 %v4892
    %v4921 = vunpack.c.l.b16 %v4893
    %v4922 = vunpack.c.l.b16 %v4894
    %v4923 = vunpack.c.l.b16 %v4895
    %v4924 = vpack.c.b16 %v4921, %v4920
    %v4925 = vpack.c.b16 %v4923, %v4922
    %v4929 = vsel %vm2321, %v4912, 0
    %v4932 = vsel %vm2321, %v4913, 0
    %v4935 = vsel %vm2321, %v4914, 0
    %v4938 = vsel %vm2321, %v4915, 0
    %4940 = vmatprep.subr.bf16.mxu0 0
    %4941 = vmatpush1.bf16.msra.mxu0 0
    %4942 = vmatprep.subr.bf16.mxu0 0
    %4943 = vmatpush1.bf16.msra.mxu0 0
    %4944 = vmatprep.subr.bf16.mxu0 0
    %4945 = vmatpush1.bf16.msra.mxu0 0
    %4946 = vmatprep.subr.bf16.mxu0 0
    %4947 = vmatpush1.bf16.msra.mxu0 0
    %4948 = vmatprep.subr.bf16.mxu0 0
    %4949 = vmatpush1.bf16.msra.mxu0 0
    %4950 = vmatprep.subr.bf16.mxu0 0
    %4951 = vmatpush1.bf16.msra.mxu0 0
    %4952 = vmatprep.subr.bf16.mxu0 0
    %4953 = vmatpush1.bf16.msra.mxu0 %v4925
    %4954 = vmatprep.subr.bf16.mxu0 0
    %4955 = vmatpush1.bf16.msra.mxu0 %v4924
    %4956 = vmatprep.subr.bf16.mxu0 0
    %4957 = vmatpush2.bf16.msra.mxu0 0
    %4958 = vmatprep.subr.bf16.mxu0 0
    %4959 = vmatpush2.bf16.msra.mxu0 0
    %4960 = vmatprep.subr.bf16.mxu0 0
    %4961 = vmatpush2.bf16.msra.mxu0 0
    %4962 = vmatprep.subr.bf16.mxu0 0
    %4963 = vmatpush2.bf16.msra.mxu0 0
    %4964 = vmatprep.subr.bf16.mxu0 0
    %4965 = vmatpush2.bf16.msra.mxu0 0
    %4966 = vmatprep.subr.bf16.mxu0 0
    %4967 = vmatpush2.bf16.msra.mxu0 0
    %4968 = vmatprep.subr.bf16.mxu0 0
    %4969 = vmatpush2.bf16.msra.mxu0 0
    %4970 = vmatprep.subr.bf16.mxu0 0
    %4971 = vmatpush2.bf16.msra.mxu0 0
    %4972 = vmatprep.mubr.bf16.mxu0 0
    %4973 = vmatmul.mubr.bf16.gmra.mxu0 %v4929
    %v4974 = vpop.f32.mrf.mxu0
    %v4975 = vadd.f32 0.0, %v4974
    %v4976 = vpop.f32.mrf.mxu0
    %v4977 = vpop.f32.mrf.mxu0
    %v4978 = vadd.f32 0.0, %v4977
    %v4979 = vpop.f32.mrf.mxu0
    %4980 = vmatprep.mubr.bf16.mxu0 0
    %4981 = vmatmul.mubr.bf16.gmra.mxu0 %v4932
    %v4982 = vpop.f32.mrf.mxu0
    %v4983 = vadd.f32 0.0, %v4982
    %v4984 = vpop.f32.mrf.mxu0
    %v4985 = vpop.f32.mrf.mxu0
    %v4986 = vadd.f32 0.0, %v4985
    %v4987 = vpop.f32.mrf.mxu0
    %4988 = vmatprep.mubr.bf16.mxu0 0
    %4989 = vmatmul.mubr.bf16.gmra.mxu0 %v4935
    %v4990 = vpop.f32.mrf.mxu0
    %v4991 = vadd.f32 0.0, %v4990
    %v4992 = vpop.f32.mrf.mxu0
    %v4993 = vpop.f32.mrf.mxu0
    %v4994 = vadd.f32 0.0, %v4993
    %v4995 = vpop.f32.mrf.mxu0
    %4996 = vmatprep.mubr.bf16.mxu0 0
    %4997 = vmatmul.mubr.bf16.gmra.mxu0 %v4938
    %v4998 = vpop.f32.mrf.mxu0
    %v4999 = vadd.f32 0.0, %v4998
    %v5000 = vpop.f32.mrf.mxu0
    %v5001 = vpop.f32.mrf.mxu0
    %v5002 = vadd.f32 0.0, %v5001
    %v5003 = vpop.f32.mrf.mxu0
    %5004 = vdwg.mxu0
    %v5005 = vadd.f32 %v4854, %v4975
    %v5006 = vadd.f32 %v4857, %v4978
    %v5007 = vadd.f32 %v4862, %v4983
    %v5008 = vadd.f32 %v4865, %v4986
    %v5009 = vadd.f32 %v4870, %v4991
    %v5010 = vadd.f32 %v4873, %v4994
    %v5011 = vadd.f32 %v4878, %v4999
    %v5012 = vadd.f32 %v4881, %v5002
    %v5013 = vld [vmem:[%s4] sm:$0xff]
    %v5014 = vld [vmem:[%s4 + $0x8] sm:$0xff]
    %v5015 = vld [vmem:[%s4 + $0x10] sm:$0xff]
    %v5016 = vld [vmem:[%s4 + $0x18] sm:$0xff]
    %v5017 = vld [vmem:[%s4 + $0x20] sm:$0xff]
    %v5018 = vld [vmem:[%s4 + $0x28] sm:$0xff]
    %v5019 = vld [vmem:[%s4 + $0x30] sm:$0xff]
    %v5020 = vld [vmem:[%s4 + $0x38] sm:$0xff]
    %5022 = vset.pattern.permute.xlu0 0
    %5023 = vperm.xlu0 %5022, %v5013
    %v5024 = vpop.permute.xlu0 %5023
    %5027 = vset.pattern.permute.xlu0 0
    %5028 = vperm.xlu0 %5027, %v5014
    %v5029 = vpop.permute.xlu0 %5028
    %5032 = vset.pattern.permute.xlu0 0
    %5033 = vperm.xlu0 %5032, %v5015
    %v5034 = vpop.permute.xlu0 %5033
    %5037 = vset.pattern.permute.xlu0 0
    %5038 = vperm.xlu0 %5037, %v5016
    %v5039 = vpop.permute.xlu0 %5038
    %5042 = vset.pattern.permute.xlu0 0
    %5043 = vperm.xlu0 %5042, %v5017
    %v5044 = vpop.permute.xlu0 %5043
    %5047 = vset.pattern.permute.xlu0 0
    %5048 = vperm.xlu0 %5047, %v5018
    %v5049 = vpop.permute.xlu0 %5048
    %5052 = vset.pattern.permute.xlu0 0
    %5053 = vperm.xlu0 %5052, %v5019
    %v5054 = vpop.permute.xlu0 %5053
    %5057 = vset.pattern.permute.xlu0 0
    %5058 = vperm.xlu0 %5057, %v5020
    %v5059 = vpop.permute.xlu0 %5058
    %v5061 = vadd.f32 %v5005, %v5024
    %v5062 = vadd.f32 %v5006, %v5029
    %v5063 = vadd.f32 %v5007, %v5034
    %v5064 = vadd.f32 %v5008, %v5039
    %v5065 = vadd.f32 %v5009, %v5044
    %v5066 = vadd.f32 %v5010, %v5049
    %v5067 = vadd.f32 %v5011, %v5054
    %v5068 = vadd.f32 %v5012, %v5059
    %v5069 = vmax.f32 %v5061, 0.0
    %v5070 = vmax.f32 %v5062, 0.0
    %v5071 = vmax.f32 %v5063, 0.0
    %v5072 = vmax.f32 %v5064, 0.0
    %v5073 = vmax.f32 %v5065, 0.0
    %v5074 = vmax.f32 %v5066, 0.0
    %v5075 = vmax.f32 %v5067, 0.0
    %v5076 = vmax.f32 %v5068, 0.0
    %v5077 = vpack.c.bf16 %v5070, %v5069
    %v5078 = vpack.c.bf16 %v5072, %v5071
    %v5079 = vpack.c.bf16 %v5074, %v5073
    %v5080 = vpack.c.bf16 %v5076, %v5075
    %v5085 = vunpack.c.l.b16 %v5077
    %v5086 = vunpack.c.h.b16 %v5077
    %v5087 = vunpack.c.l.b16 %v5078
    %v5088 = vunpack.c.h.b16 %v5078
    %v5089 = vunpack.c.l.b16 %v5079
    %v5090 = vunpack.c.h.b16 %v5079
    %v5091 = vunpack.c.l.b16 %v5080
    %v5092 = vunpack.c.h.b16 %v5080
    %v5093 = vpack.c.b16 %v5085, %v5085
    %v5094 = vpack.c.b16 %v5086, %v5086
    %v5095 = vpack.c.b16 %v5087, %v5087
    %v5096 = vpack.c.b16 %v5088, %v5088
    %v5097 = vpack.c.b16 %v5089, %v5089
    %v5098 = vpack.c.b16 %v5090, %v5090
    %v5099 = vpack.c.b16 %v5091, %v5091
    %v5100 = vpack.c.b16 %v5092, %v5092
    %5109 = vst [vmem:[#allocation3 + $0xa0] sm:$0xf] %v5093
    %5110 = vst [vmem:[#allocation3 + $0xa4] sm:$0xf] %v5094
    %5111 = vst [vmem:[#allocation3 + $0xa8] sm:$0xf] %v5095
    %5112 = vst [vmem:[#allocation3 + $0xac] sm:$0xf] %v5096
    %5113 = vst [vmem:[#allocation3 + $0xb0] sm:$0xf] %v5097
    %5114 = vst [vmem:[#allocation3 + $0xb4] sm:$0xf] %v5098
    %5115 = vst [vmem:[#allocation3 + $0xb8] sm:$0xf] %v5099
    %5116 = vst [vmem:[#allocation3 + $0xbc] sm:$0xf] %v5100
    %v5117 = vld [vmem:[%s3] sm:$0xf]
    %v5118 = vld [vmem:[%s3 + $0x4] sm:$0xf]
    %v5119 = vld [vmem:[%s3 + $0x8] sm:$0xf]
    %v5120 = vld [vmem:[%s3 + $0xc] sm:$0xf]
    %v5121 = vld [vmem:[%s3 + $0x10] sm:$0xf]
    %v5122 = vld [vmem:[%s3 + $0x14] sm:$0xf]
    %v5123 = vld [vmem:[%s3 + $0x18] sm:$0xf]
    %v5124 = vld [vmem:[%s3 + $0x1c] sm:$0xf]
    %v5125 = vld [vmem:[%s1705] sm:$0xf]
    %v5126 = vld [vmem:[%s1705 + $0x4] sm:$0xf]
    %v5127 = vld [vmem:[%s1705 + $0x8] sm:$0xf]
    %v5128 = vld [vmem:[%s1705 + $0xc] sm:$0xf]
    %v5129 = vld [vmem:[%s2276] sm:$0xf]
    %v5130 = vld [vmem:[%s2276 + $0x4] sm:$0xf]
    %v5131 = vld [vmem:[%s2276 + $0x8] sm:$0xf]
    %v5132 = vld [vmem:[%s2276 + $0xc] sm:$0xf]
    %v5133 = vld [vmem:[%s2276 + $0x10] sm:$0xf]
    %v5134 = vld [vmem:[%s2276 + $0x14] sm:$0xf]
    %v5135 = vld [vmem:[%s2276 + $0x18] sm:$0xf]
    %v5136 = vld [vmem:[%s2276 + $0x1c] sm:$0xf]
    %v5137 = vld [vmem:[%s1982] sm:$0xf]
    %v5138 = vld [vmem:[%s1982 + $0x4] sm:$0xf]
    %v5139 = vld [vmem:[%s1982 + $0x8] sm:$0xf]
    %v5140 = vld [vmem:[%s1982 + $0xc] sm:$0xf]
    %v5149 = vunpack.c.l.b16 %v5129
    %v5150 = vunpack.c.l.b16 %v5130
    %v5151 = vunpack.c.l.b16 %v5131
    %v5152 = vunpack.c.l.b16 %v5132
    %v5153 = vunpack.c.l.b16 %v5133
    %v5154 = vunpack.c.l.b16 %v5134
    %v5155 = vunpack.c.l.b16 %v5135
    %v5156 = vunpack.c.l.b16 %v5136
    %v5157 = vpack.c.b16 %v5150, %v5149
    %v5158 = vpack.c.b16 %v5152, %v5151
    %v5159 = vpack.c.b16 %v5154, %v5153
    %v5160 = vpack.c.b16 %v5156, %v5155
    %v5165 = vunpack.c.l.b16 %v5137
    %v5166 = vunpack.c.l.b16 %v5138
    %v5167 = vunpack.c.l.b16 %v5139
    %v5168 = vunpack.c.l.b16 %v5140
    %v5169 = vpack.c.b16 %v5166, %v5165
    %v5170 = vpack.c.b16 %v5168, %v5167
    %v5174 = vsel %vm2321, %v5157, 0
    %v5177 = vsel %vm2321, %v5158, 0
    %v5180 = vsel %vm2321, %v5159, 0
    %v5183 = vsel %vm2321, %v5160, 0
    %5185 = vmatprep.subr.bf16.mxu0 0
    %5186 = vmatpush1.bf16.msra.mxu0 0
    %5187 = vmatprep.subr.bf16.mxu0 0
    %5188 = vmatpush1.bf16.msra.mxu0 0
    %5189 = vmatprep.subr.bf16.mxu0 0
    %5190 = vmatpush1.bf16.msra.mxu0 0
    %5191 = vmatprep.subr.bf16.mxu0 0
    %5192 = vmatpush1.bf16.msra.mxu0 0
    %5193 = vmatprep.subr.bf16.mxu0 0
    %5194 = vmatpush1.bf16.msra.mxu0 0
    %5195 = vmatprep.subr.bf16.mxu0 0
    %5196 = vmatpush1.bf16.msra.mxu0 0
    %5197 = vmatprep.subr.bf16.mxu0 0
    %5198 = vmatpush1.bf16.msra.mxu0 %v5170
    %5199 = vmatprep.subr.bf16.mxu0 0
    %5200 = vmatpush1.bf16.msra.mxu0 %v5169
    %5201 = vmatprep.subr.bf16.mxu0 0
    %5202 = vmatpush2.bf16.msra.mxu0 0
    %5203 = vmatprep.subr.bf16.mxu0 0
    %5204 = vmatpush2.bf16.msra.mxu0 0
    %5205 = vmatprep.subr.bf16.mxu0 0
    %5206 = vmatpush2.bf16.msra.mxu0 0
    %5207 = vmatprep.subr.bf16.mxu0 0
    %5208 = vmatpush2.bf16.msra.mxu0 0
    %5209 = vmatprep.subr.bf16.mxu0 0
    %5210 = vmatpush2.bf16.msra.mxu0 0
    %5211 = vmatprep.subr.bf16.mxu0 0
    %5212 = vmatpush2.bf16.msra.mxu0 0
    %5213 = vmatprep.subr.bf16.mxu0 0
    %5214 = vmatpush2.bf16.msra.mxu0 0
    %5215 = vmatprep.subr.bf16.mxu0 0
    %5216 = vmatpush2.bf16.msra.mxu0 0
    %5217 = vmatprep.mubr.bf16.mxu0 0
    %5218 = vmatmul.mubr.bf16.gmra.mxu0 %v5174
    %v5219 = vpop.f32.mrf.mxu0
    %v5220 = vadd.f32 0.0, %v5219
    %v5221 = vpop.f32.mrf.mxu0
    %v5222 = vpop.f32.mrf.mxu0
    %v5223 = vadd.f32 0.0, %v5222
    %v5224 = vpop.f32.mrf.mxu0
    %5225 = vmatprep.mubr.bf16.mxu0 0
    %5226 = vmatmul.mubr.bf16.gmra.mxu0 %v5177
    %v5227 = vpop.f32.mrf.mxu0
    %v5228 = vadd.f32 0.0, %v5227
    %v5229 = vpop.f32.mrf.mxu0
    %v5230 = vpop.f32.mrf.mxu0
    %v5231 = vadd.f32 0.0, %v5230
    %v5232 = vpop.f32.mrf.mxu0
    %5233 = vmatprep.mubr.bf16.mxu0 0
    %5234 = vmatmul.mubr.bf16.gmra.mxu0 %v5180
    %v5235 = vpop.f32.mrf.mxu0
    %v5236 = vadd.f32 0.0, %v5235
    %v5237 = vpop.f32.mrf.mxu0
    %v5238 = vpop.f32.mrf.mxu0
    %v5239 = vadd.f32 0.0, %v5238
    %v5240 = vpop.f32.mrf.mxu0
    %5241 = vmatprep.mubr.bf16.mxu0 0
    %5242 = vmatmul.mubr.bf16.gmra.mxu0 %v5183
    %v5243 = vpop.f32.mrf.mxu0
    %v5244 = vadd.f32 0.0, %v5243
    %v5245 = vpop.f32.mrf.mxu0
    %v5246 = vpop.f32.mrf.mxu0
    %v5247 = vadd.f32 0.0, %v5246
    %v5248 = vpop.f32.mrf.mxu0
    %5249 = vdwg.mxu0
    %v5258 = vunpack.c.l.b16 %v5117
    %v5259 = vunpack.c.l.b16 %v5118
    %v5260 = vunpack.c.l.b16 %v5119
    %v5261 = vunpack.c.l.b16 %v5120
    %v5262 = vunpack.c.l.b16 %v5121
    %v5263 = vunpack.c.l.b16 %v5122
    %v5264 = vunpack.c.l.b16 %v5123
    %v5265 = vunpack.c.l.b16 %v5124
    %v5266 = vpack.c.b16 %v5259, %v5258
    %v5267 = vpack.c.b16 %v5261, %v5260
    %v5268 = vpack.c.b16 %v5263, %v5262
    %v5269 = vpack.c.b16 %v5265, %v5264
    %v5274 = vunpack.c.l.b16 %v5125
    %v5275 = vunpack.c.l.b16 %v5126
    %v5276 = vunpack.c.l.b16 %v5127
    %v5277 = vunpack.c.l.b16 %v5128
    %v5278 = vpack.c.b16 %v5275, %v5274
    %v5279 = vpack.c.b16 %v5277, %v5276
    %v5283 = vsel %vm2321, %v5266, 0
    %v5286 = vsel %vm2321, %v5267, 0
    %v5289 = vsel %vm2321, %v5268, 0
    %v5292 = vsel %vm2321, %v5269, 0
    %5294 = vmatprep.subr.bf16.mxu0 0
    %5295 = vmatpush1.bf16.msra.mxu0 0
    %5296 = vmatprep.subr.bf16.mxu0 0
    %5297 = vmatpush1.bf16.msra.mxu0 0
    %5298 = vmatprep.subr.bf16.mxu0 0
    %5299 = vmatpush1.bf16.msra.mxu0 0
    %5300 = vmatprep.subr.bf16.mxu0 0
    %5301 = vmatpush1.bf16.msra.mxu0 0
    %5302 = vmatprep.subr.bf16.mxu0 0
    %5303 = vmatpush1.bf16.msra.mxu0 0
    %5304 = vmatprep.subr.bf16.mxu0 0
    %5305 = vmatpush1.bf16.msra.mxu0 0
    %5306 = vmatprep.subr.bf16.mxu0 0
    %5307 = vmatpush1.bf16.msra.mxu0 %v5279
    %5308 = vmatprep.subr.bf16.mxu0 0
    %5309 = vmatpush1.bf16.msra.mxu0 %v5278
    %5310 = vmatprep.subr.bf16.mxu0 0
    %5311 = vmatpush2.bf16.msra.mxu0 0
    %5312 = vmatprep.subr.bf16.mxu0 0
    %5313 = vmatpush2.bf16.msra.mxu0 0
    %5314 = vmatprep.subr.bf16.mxu0 0
    %5315 = vmatpush2.bf16.msra.mxu0 0
    %5316 = vmatprep.subr.bf16.mxu0 0
    %5317 = vmatpush2.bf16.msra.mxu0 0
    %5318 = vmatprep.subr.bf16.mxu0 0
    %5319 = vmatpush2.bf16.msra.mxu0 0
    %5320 = vmatprep.subr.bf16.mxu0 0
    %5321 = vmatpush2.bf16.msra.mxu0 0
    %5322 = vmatprep.subr.bf16.mxu0 0
    %5323 = vmatpush2.bf16.msra.mxu0 0
    %5324 = vmatprep.subr.bf16.mxu0 0
    %5325 = vmatpush2.bf16.msra.mxu0 0
    %5326 = vmatprep.mubr.bf16.mxu0 0
    %5327 = vmatmul.mubr.bf16.gmra.mxu0 %v5283
    %v5328 = vpop.f32.mrf.mxu0
    %v5329 = vadd.f32 %v5220, %v5328
    %v5330 = vpop.f32.mrf.mxu0
    %v5331 = vpop.f32.mrf.mxu0
    %v5332 = vadd.f32 %v5223, %v5331
    %v5333 = vpop.f32.mrf.mxu0
    %5334 = vmatprep.mubr.bf16.mxu0 0
    %5335 = vmatmul.mubr.bf16.gmra.mxu0 %v5286
    %v5336 = vpop.f32.mrf.mxu0
    %v5337 = vadd.f32 %v5228, %v5336
    %v5338 = vpop.f32.mrf.mxu0
    %v5339 = vpop.f32.mrf.mxu0
    %v5340 = vadd.f32 %v5231, %v5339
    %v5341 = vpop.f32.mrf.mxu0
    %5342 = vmatprep.mubr.bf16.mxu0 0
    %5343 = vmatmul.mubr.bf16.gmra.mxu0 %v5289
    %v5344 = vpop.f32.mrf.mxu0
    %v5345 = vadd.f32 %v5236, %v5344
    %v5346 = vpop.f32.mrf.mxu0
    %v5347 = vpop.f32.mrf.mxu0
    %v5348 = vadd.f32 %v5239, %v5347
    %v5349 = vpop.f32.mrf.mxu0
    %5350 = vmatprep.mubr.bf16.mxu0 0
    %5351 = vmatmul.mubr.bf16.gmra.mxu0 %v5292
    %v5352 = vpop.f32.mrf.mxu0
    %v5353 = vadd.f32 %v5244, %v5352
    %v5354 = vpop.f32.mrf.mxu0
    %v5355 = vpop.f32.mrf.mxu0
    %v5356 = vadd.f32 %v5247, %v5355
    %v5357 = vpop.f32.mrf.mxu0
    %5358 = vdwg.mxu0
    %v5359 = vld [vmem:[%s2508] sm:$0xf]
    %v5360 = vld [vmem:[%s2508 + $0x4] sm:$0xf]
    %v5361 = vld [vmem:[%s2508 + $0x8] sm:$0xf]
    %v5362 = vld [vmem:[%s2508 + $0xc] sm:$0xf]
    %v5363 = vld [vmem:[%s2508 + $0x10] sm:$0xf]
    %v5364 = vld [vmem:[%s2508 + $0x14] sm:$0xf]
    %v5365 = vld [vmem:[%s2508 + $0x18] sm:$0xf]
    %v5366 = vld [vmem:[%s2508 + $0x1c] sm:$0xf]
    %v5367 = vld [vmem:[%s2259] sm:$0xf]
    %v5368 = vld [vmem:[%s2259 + $0x4] sm:$0xf]
    %v5369 = vld [vmem:[%s2259 + $0x8] sm:$0xf]
    %v5370 = vld [vmem:[%s2259 + $0xc] sm:$0xf]
    %v5379 = vunpack.c.l.b16 %v5359
    %v5380 = vunpack.c.l.b16 %v5360
    %v5381 = vunpack.c.l.b16 %v5361
    %v5382 = vunpack.c.l.b16 %v5362
    %v5383 = vunpack.c.l.b16 %v5363
    %v5384 = vunpack.c.l.b16 %v5364
    %v5385 = vunpack.c.l.b16 %v5365
    %v5386 = vunpack.c.l.b16 %v5366
    %v5387 = vpack.c.b16 %v5380, %v5379
    %v5388 = vpack.c.b16 %v5382, %v5381
    %v5389 = vpack.c.b16 %v5384, %v5383
    %v5390 = vpack.c.b16 %v5386, %v5385
    %v5395 = vunpack.c.l.b16 %v5367
    %v5396 = vunpack.c.l.b16 %v5368
    %v5397 = vunpack.c.l.b16 %v5369
    %v5398 = vunpack.c.l.b16 %v5370
    %v5399 = vpack.c.b16 %v5396, %v5395
    %v5400 = vpack.c.b16 %v5398, %v5397
    %v5404 = vsel %vm2321, %v5387, 0
    %v5407 = vsel %vm2321, %v5388, 0
    %v5410 = vsel %vm2321, %v5389, 0
    %v5413 = vsel %vm2321, %v5390, 0
    %5415 = vmatprep.subr.bf16.mxu0 0
    %5416 = vmatpush1.bf16.msra.mxu0 0
    %5417 = vmatprep.subr.bf16.mxu0 0
    %5418 = vmatpush1.bf16.msra.mxu0 0
    %5419 = vmatprep.subr.bf16.mxu0 0
    %5420 = vmatpush1.bf16.msra.mxu0 0
    %5421 = vmatprep.subr.bf16.mxu0 0
    %5422 = vmatpush1.bf16.msra.mxu0 0
    %5423 = vmatprep.subr.bf16.mxu0 0
    %5424 = vmatpush1.bf16.msra.mxu0 0
    %5425 = vmatprep.subr.bf16.mxu0 0
    %5426 = vmatpush1.bf16.msra.mxu0 0
    %5427 = vmatprep.subr.bf16.mxu0 0
    %5428 = vmatpush1.bf16.msra.mxu0 %v5400
    %5429 = vmatprep.subr.bf16.mxu0 0
    %5430 = vmatpush1.bf16.msra.mxu0 %v5399
    %5431 = vmatprep.subr.bf16.mxu0 0
    %5432 = vmatpush2.bf16.msra.mxu0 0
    %5433 = vmatprep.subr.bf16.mxu0 0
    %5434 = vmatpush2.bf16.msra.mxu0 0
    %5435 = vmatprep.subr.bf16.mxu0 0
    %5436 = vmatpush2.bf16.msra.mxu0 0
    %5437 = vmatprep.subr.bf16.mxu0 0
    %5438 = vmatpush2.bf16.msra.mxu0 0
    %5439 = vmatprep.subr.bf16.mxu0 0
    %5440 = vmatpush2.bf16.msra.mxu0 0
    %5441 = vmatprep.subr.bf16.mxu0 0
    %5442 = vmatpush2.bf16.msra.mxu0 0
    %5443 = vmatprep.subr.bf16.mxu0 0
    %5444 = vmatpush2.bf16.msra.mxu0 0
    %5445 = vmatprep.subr.bf16.mxu0 0
    %5446 = vmatpush2.bf16.msra.mxu0 0
    %5447 = vmatprep.mubr.bf16.mxu0 0
    %5448 = vmatmul.mubr.bf16.gmra.mxu0 %v5404
    %v5449 = vpop.f32.mrf.mxu0
    %v5450 = vadd.f32 0.0, %v5449
    %v5451 = vpop.f32.mrf.mxu0
    %v5452 = vpop.f32.mrf.mxu0
    %v5453 = vadd.f32 0.0, %v5452
    %v5454 = vpop.f32.mrf.mxu0
    %5455 = vmatprep.mubr.bf16.mxu0 0
    %5456 = vmatmul.mubr.bf16.gmra.mxu0 %v5407
    %v5457 = vpop.f32.mrf.mxu0
    %v5458 = vadd.f32 0.0, %v5457
    %v5459 = vpop.f32.mrf.mxu0
    %v5460 = vpop.f32.mrf.mxu0
    %v5461 = vadd.f32 0.0, %v5460
    %v5462 = vpop.f32.mrf.mxu0
    %5463 = vmatprep.mubr.bf16.mxu0 0
    %5464 = vmatmul.mubr.bf16.gmra.mxu0 %v5410
    %v5465 = vpop.f32.mrf.mxu0
    %v5466 = vadd.f32 0.0, %v5465
    %v5467 = vpop.f32.mrf.mxu0
    %v5468 = vpop.f32.mrf.mxu0
    %v5469 = vadd.f32 0.0, %v5468
    %v5470 = vpop.f32.mrf.mxu0
    %5471 = vmatprep.mubr.bf16.mxu0 0
    %5472 = vmatmul.mubr.bf16.gmra.mxu0 %v5413
    %v5473 = vpop.f32.mrf.mxu0
    %v5474 = vadd.f32 0.0, %v5473
    %v5475 = vpop.f32.mrf.mxu0
    %v5476 = vpop.f32.mrf.mxu0
    %v5477 = vadd.f32 0.0, %v5476
    %v5478 = vpop.f32.mrf.mxu0
    %5479 = vdwg.mxu0
    %v5480 = vadd.f32 %v5329, %v5450
    %v5481 = vadd.f32 %v5332, %v5453
    %v5482 = vadd.f32 %v5337, %v5458
    %v5483 = vadd.f32 %v5340, %v5461
    %v5484 = vadd.f32 %v5345, %v5466
    %v5485 = vadd.f32 %v5348, %v5469
    %v5486 = vadd.f32 %v5353, %v5474
    %v5487 = vadd.f32 %v5356, %v5477
    %v5488 = vld [vmem:[%s4] sm:$0xff]
    %v5489 = vld [vmem:[%s4 + $0x8] sm:$0xff]
    %v5490 = vld [vmem:[%s4 + $0x10] sm:$0xff]
    %v5491 = vld [vmem:[%s4 + $0x18] sm:$0xff]
    %v5492 = vld [vmem:[%s4 + $0x20] sm:$0xff]
    %v5493 = vld [vmem:[%s4 + $0x28] sm:$0xff]
    %v5494 = vld [vmem:[%s4 + $0x30] sm:$0xff]
    %v5495 = vld [vmem:[%s4 + $0x38] sm:$0xff]
    %5497 = vset.pattern.permute.xlu0 0
    %5498 = vperm.xlu0 %5497, %v5488
    %v5499 = vpop.permute.xlu0 %5498
    %5502 = vset.pattern.permute.xlu0 0
    %5503 = vperm.xlu0 %5502, %v5489
    %v5504 = vpop.permute.xlu0 %5503
    %5507 = vset.pattern.permute.xlu0 0
    %5508 = vperm.xlu0 %5507, %v5490
    %v5509 = vpop.permute.xlu0 %5508
    %5512 = vset.pattern.permute.xlu0 0
    %5513 = vperm.xlu0 %5512, %v5491
    %v5514 = vpop.permute.xlu0 %5513
    %5517 = vset.pattern.permute.xlu0 0
    %5518 = vperm.xlu0 %5517, %v5492
    %v5519 = vpop.permute.xlu0 %5518
    %5522 = vset.pattern.permute.xlu0 0
    %5523 = vperm.xlu0 %5522, %v5493
    %v5524 = vpop.permute.xlu0 %5523
    %5527 = vset.pattern.permute.xlu0 0
    %5528 = vperm.xlu0 %5527, %v5494
    %v5529 = vpop.permute.xlu0 %5528
    %5532 = vset.pattern.permute.xlu0 0
    %5533 = vperm.xlu0 %5532, %v5495
    %v5534 = vpop.permute.xlu0 %5533
    %v5536 = vadd.f32 %v5480, %v5499
    %v5537 = vadd.f32 %v5481, %v5504
    %v5538 = vadd.f32 %v5482, %v5509
    %v5539 = vadd.f32 %v5483, %v5514
    %v5540 = vadd.f32 %v5484, %v5519
    %v5541 = vadd.f32 %v5485, %v5524
    %v5542 = vadd.f32 %v5486, %v5529
    %v5543 = vadd.f32 %v5487, %v5534
    %v5544 = vmax.f32 %v5536, 0.0
    %v5545 = vmax.f32 %v5537, 0.0
    %v5546 = vmax.f32 %v5538, 0.0
    %v5547 = vmax.f32 %v5539, 0.0
    %v5548 = vmax.f32 %v5540, 0.0
    %v5549 = vmax.f32 %v5541, 0.0
    %v5550 = vmax.f32 %v5542, 0.0
    %v5551 = vmax.f32 %v5543, 0.0
    %v5552 = vpack.c.bf16 %v5545, %v5544
    %v5553 = vpack.c.bf16 %v5547, %v5546
    %v5554 = vpack.c.bf16 %v5549, %v5548
    %v5555 = vpack.c.bf16 %v5551, %v5550
    %v5560 = vunpack.c.l.b16 %v5552
    %v5561 = vunpack.c.h.b16 %v5552
    %v5562 = vunpack.c.l.b16 %v5553
    %v5563 = vunpack.c.h.b16 %v5553
    %v5564 = vunpack.c.l.b16 %v5554
    %v5565 = vunpack.c.h.b16 %v5554
    %v5566 = vunpack.c.l.b16 %v5555
    %v5567 = vunpack.c.h.b16 %v5555
    %v5568 = vpack.c.b16 %v5560, %v5560
    %v5569 = vpack.c.b16 %v5561, %v5561
    %v5570 = vpack.c.b16 %v5562, %v5562
    %v5571 = vpack.c.b16 %v5563, %v5563
    %v5572 = vpack.c.b16 %v5564, %v5564
    %v5573 = vpack.c.b16 %v5565, %v5565
    %v5574 = vpack.c.b16 %v5566, %v5566
    %v5575 = vpack.c.b16 %v5567, %v5567
    %5584 = vst [vmem:[#allocation3 + $0xc0] sm:$0xf] %v5568
    %5585 = vst [vmem:[#allocation3 + $0xc4] sm:$0xf] %v5569
    %5586 = vst [vmem:[#allocation3 + $0xc8] sm:$0xf] %v5570
    %5587 = vst [vmem:[#allocation3 + $0xcc] sm:$0xf] %v5571
    %5588 = vst [vmem:[#allocation3 + $0xd0] sm:$0xf] %v5572
    %5589 = vst [vmem:[#allocation3 + $0xd4] sm:$0xf] %v5573
    %5590 = vst [vmem:[#allocation3 + $0xd8] sm:$0xf] %v5574
    %5591 = vst [vmem:[#allocation3 + $0xdc] sm:$0xf] %v5575
    %v5592 = vld [vmem:[%s3] sm:$0xf]
    %v5593 = vld [vmem:[%s3 + $0x4] sm:$0xf]
    %v5594 = vld [vmem:[%s3 + $0x8] sm:$0xf]
    %v5595 = vld [vmem:[%s3 + $0xc] sm:$0xf]
    %v5596 = vld [vmem:[%s3 + $0x10] sm:$0xf]
    %v5597 = vld [vmem:[%s3 + $0x14] sm:$0xf]
    %v5598 = vld [vmem:[%s3 + $0x18] sm:$0xf]
    %v5599 = vld [vmem:[%s3 + $0x1c] sm:$0xf]
    %v5600 = vld [vmem:[%s1982] sm:$0xf]
    %v5601 = vld [vmem:[%s1982 + $0x4] sm:$0xf]
    %v5602 = vld [vmem:[%s1982 + $0x8] sm:$0xf]
    %v5603 = vld [vmem:[%s1982 + $0xc] sm:$0xf]
    %v5604 = vld [vmem:[%s2276] sm:$0xf]
    %v5605 = vld [vmem:[%s2276 + $0x4] sm:$0xf]
    %v5606 = vld [vmem:[%s2276 + $0x8] sm:$0xf]
    %v5607 = vld [vmem:[%s2276 + $0xc] sm:$0xf]
    %v5608 = vld [vmem:[%s2276 + $0x10] sm:$0xf]
    %v5609 = vld [vmem:[%s2276 + $0x14] sm:$0xf]
    %v5610 = vld [vmem:[%s2276 + $0x18] sm:$0xf]
    %v5611 = vld [vmem:[%s2276 + $0x1c] sm:$0xf]
    %v5612 = vld [vmem:[%s2259] sm:$0xf]
    %v5613 = vld [vmem:[%s2259 + $0x4] sm:$0xf]
    %v5614 = vld [vmem:[%s2259 + $0x8] sm:$0xf]
    %v5615 = vld [vmem:[%s2259 + $0xc] sm:$0xf]
    %v5624 = vunpack.c.l.b16 %v5604
    %v5625 = vunpack.c.l.b16 %v5605
    %v5626 = vunpack.c.l.b16 %v5606
    %v5627 = vunpack.c.l.b16 %v5607
    %v5628 = vunpack.c.l.b16 %v5608
    %v5629 = vunpack.c.l.b16 %v5609
    %v5630 = vunpack.c.l.b16 %v5610
    %v5631 = vunpack.c.l.b16 %v5611
    %v5632 = vpack.c.b16 %v5625, %v5624
    %v5633 = vpack.c.b16 %v5627, %v5626
    %v5634 = vpack.c.b16 %v5629, %v5628
    %v5635 = vpack.c.b16 %v5631, %v5630
    %v5640 = vunpack.c.l.b16 %v5612
    %v5641 = vunpack.c.l.b16 %v5613
    %v5642 = vunpack.c.l.b16 %v5614
    %v5643 = vunpack.c.l.b16 %v5615
    %v5644 = vpack.c.b16 %v5641, %v5640
    %v5645 = vpack.c.b16 %v5643, %v5642
    %v5649 = vsel %vm2321, %v5632, 0
    %v5652 = vsel %vm2321, %v5633, 0
    %v5655 = vsel %vm2321, %v5634, 0
    %v5658 = vsel %vm2321, %v5635, 0
    %5660 = vmatprep.subr.bf16.mxu0 0
    %5661 = vmatpush1.bf16.msra.mxu0 0
    %5662 = vmatprep.subr.bf16.mxu0 0
    %5663 = vmatpush1.bf16.msra.mxu0 0
    %5664 = vmatprep.subr.bf16.mxu0 0
    %5665 = vmatpush1.bf16.msra.mxu0 0
    %5666 = vmatprep.subr.bf16.mxu0 0
    %5667 = vmatpush1.bf16.msra.mxu0 0
    %5668 = vmatprep.subr.bf16.mxu0 0
    %5669 = vmatpush1.bf16.msra.mxu0 0
    %5670 = vmatprep.subr.bf16.mxu0 0
    %5671 = vmatpush1.bf16.msra.mxu0 0
    %5672 = vmatprep.subr.bf16.mxu0 0
    %5673 = vmatpush1.bf16.msra.mxu0 %v5645
    %5674 = vmatprep.subr.bf16.mxu0 0
    %5675 = vmatpush1.bf16.msra.mxu0 %v5644
    %5676 = vmatprep.subr.bf16.mxu0 0
    %5677 = vmatpush2.bf16.msra.mxu0 0
    %5678 = vmatprep.subr.bf16.mxu0 0
    %5679 = vmatpush2.bf16.msra.mxu0 0
    %5680 = vmatprep.subr.bf16.mxu0 0
    %5681 = vmatpush2.bf16.msra.mxu0 0
    %5682 = vmatprep.subr.bf16.mxu0 0
    %5683 = vmatpush2.bf16.msra.mxu0 0
    %5684 = vmatprep.subr.bf16.mxu0 0
    %5685 = vmatpush2.bf16.msra.mxu0 0
    %5686 = vmatprep.subr.bf16.mxu0 0
    %5687 = vmatpush2.bf16.msra.mxu0 0
    %5688 = vmatprep.subr.bf16.mxu0 0
    %5689 = vmatpush2.bf16.msra.mxu0 0
    %5690 = vmatprep.subr.bf16.mxu0 0
    %5691 = vmatpush2.bf16.msra.mxu0 0
    %5692 = vmatprep.mubr.bf16.mxu0 0
    %5693 = vmatmul.mubr.bf16.gmra.mxu0 %v5649
    %v5694 = vpop.f32.mrf.mxu0
    %v5695 = vadd.f32 0.0, %v5694
    %v5696 = vpop.f32.mrf.mxu0
    %v5697 = vpop.f32.mrf.mxu0
    %v5698 = vadd.f32 0.0, %v5697
    %v5699 = vpop.f32.mrf.mxu0
    %5700 = vmatprep.mubr.bf16.mxu0 0
    %5701 = vmatmul.mubr.bf16.gmra.mxu0 %v5652
    %v5702 = vpop.f32.mrf.mxu0
    %v5703 = vadd.f32 0.0, %v5702
    %v5704 = vpop.f32.mrf.mxu0
    %v5705 = vpop.f32.mrf.mxu0
    %v5706 = vadd.f32 0.0, %v5705
    %v5707 = vpop.f32.mrf.mxu0
    %5708 = vmatprep.mubr.bf16.mxu0 0
    %5709 = vmatmul.mubr.bf16.gmra.mxu0 %v5655
    %v5710 = vpop.f32.mrf.mxu0
    %v5711 = vadd.f32 0.0, %v5710
    %v5712 = vpop.f32.mrf.mxu0
    %v5713 = vpop.f32.mrf.mxu0
    %v5714 = vadd.f32 0.0, %v5713
    %v5715 = vpop.f32.mrf.mxu0
    %5716 = vmatprep.mubr.bf16.mxu0 0
    %5717 = vmatmul.mubr.bf16.gmra.mxu0 %v5658
    %v5718 = vpop.f32.mrf.mxu0
    %v5719 = vadd.f32 0.0, %v5718
    %v5720 = vpop.f32.mrf.mxu0
    %v5721 = vpop.f32.mrf.mxu0
    %v5722 = vadd.f32 0.0, %v5721
    %v5723 = vpop.f32.mrf.mxu0
    %5724 = vdwg.mxu0
    %v5733 = vunpack.c.l.b16 %v5592
    %v5734 = vunpack.c.l.b16 %v5593
    %v5735 = vunpack.c.l.b16 %v5594
    %v5736 = vunpack.c.l.b16 %v5595
    %v5737 = vunpack.c.l.b16 %v5596
    %v5738 = vunpack.c.l.b16 %v5597
    %v5739 = vunpack.c.l.b16 %v5598
    %v5740 = vunpack.c.l.b16 %v5599
    %v5741 = vpack.c.b16 %v5734, %v5733
    %v5742 = vpack.c.b16 %v5736, %v5735
    %v5743 = vpack.c.b16 %v5738, %v5737
    %v5744 = vpack.c.b16 %v5740, %v5739
    %v5749 = vunpack.c.l.b16 %v5600
    %v5750 = vunpack.c.l.b16 %v5601
    %v5751 = vunpack.c.l.b16 %v5602
    %v5752 = vunpack.c.l.b16 %v5603
    %v5753 = vpack.c.b16 %v5750, %v5749
    %v5754 = vpack.c.b16 %v5752, %v5751
    %v5758 = vsel %vm2321, %v5741, 0
    %v5761 = vsel %vm2321, %v5742, 0
    %v5764 = vsel %vm2321, %v5743, 0
    %v5767 = vsel %vm2321, %v5744, 0
    %5769 = vmatprep.subr.bf16.mxu0 0
    %5770 = vmatpush1.bf16.msra.mxu0 0
    %5771 = vmatprep.subr.bf16.mxu0 0
    %5772 = vmatpush1.bf16.msra.mxu0 0
    %5773 = vmatprep.subr.bf16.mxu0 0
    %5774 = vmatpush1.bf16.msra.mxu0 0
    %5775 = vmatprep.subr.bf16.mxu0 0
    %5776 = vmatpush1.bf16.msra.mxu0 0
    %5777 = vmatprep.subr.bf16.mxu0 0
    %5778 = vmatpush1.bf16.msra.mxu0 0
    %5779 = vmatprep.subr.bf16.mxu0 0
    %5780 = vmatpush1.bf16.msra.mxu0 0
    %5781 = vmatprep.subr.bf16.mxu0 0
    %5782 = vmatpush1.bf16.msra.mxu0 %v5754
    %5783 = vmatprep.subr.bf16.mxu0 0
    %5784 = vmatpush1.bf16.msra.mxu0 %v5753
    %5785 = vmatprep.subr.bf16.mxu0 0
    %5786 = vmatpush2.bf16.msra.mxu0 0
    %5787 = vmatprep.subr.bf16.mxu0 0
    %5788 = vmatpush2.bf16.msra.mxu0 0
    %5789 = vmatprep.subr.bf16.mxu0 0
    %5790 = vmatpush2.bf16.msra.mxu0 0
    %5791 = vmatprep.subr.bf16.mxu0 0
    %5792 = vmatpush2.bf16.msra.mxu0 0
    %5793 = vmatprep.subr.bf16.mxu0 0
    %5794 = vmatpush2.bf16.msra.mxu0 0
    %5795 = vmatprep.subr.bf16.mxu0 0
    %5796 = vmatpush2.bf16.msra.mxu0 0
    %5797 = vmatprep.subr.bf16.mxu0 0
    %5798 = vmatpush2.bf16.msra.mxu0 0
    %5799 = vmatprep.subr.bf16.mxu0 0
    %5800 = vmatpush2.bf16.msra.mxu0 0
    %5801 = vmatprep.mubr.bf16.mxu0 0
    %5802 = vmatmul.mubr.bf16.gmra.mxu0 %v5758
    %v5803 = vpop.f32.mrf.mxu0
    %v5804 = vadd.f32 %v5695, %v5803
    %v5805 = vpop.f32.mrf.mxu0
    %v5806 = vpop.f32.mrf.mxu0
    %v5807 = vadd.f32 %v5698, %v5806
    %v5808 = vpop.f32.mrf.mxu0
    %5809 = vmatprep.mubr.bf16.mxu0 0
    %5810 = vmatmul.mubr.bf16.gmra.mxu0 %v5761
    %v5811 = vpop.f32.mrf.mxu0
    %v5812 = vadd.f32 %v5703, %v5811
    %v5813 = vpop.f32.mrf.mxu0
    %v5814 = vpop.f32.mrf.mxu0
    %v5815 = vadd.f32 %v5706, %v5814
    %v5816 = vpop.f32.mrf.mxu0
    %5817 = vmatprep.mubr.bf16.mxu0 0
    %5818 = vmatmul.mubr.bf16.gmra.mxu0 %v5764
    %v5819 = vpop.f32.mrf.mxu0
    %v5820 = vadd.f32 %v5711, %v5819
    %v5821 = vpop.f32.mrf.mxu0
    %v5822 = vpop.f32.mrf.mxu0
    %v5823 = vadd.f32 %v5714, %v5822
    %v5824 = vpop.f32.mrf.mxu0
    %5825 = vmatprep.mubr.bf16.mxu0 0
    %5826 = vmatmul.mubr.bf16.gmra.mxu0 %v5767
    %v5827 = vpop.f32.mrf.mxu0
    %v5828 = vadd.f32 %v5719, %v5827
    %v5829 = vpop.f32.mrf.mxu0
    %v5830 = vpop.f32.mrf.mxu0
    %v5831 = vadd.f32 %v5722, %v5830
    %v5832 = vpop.f32.mrf.mxu0
    %5833 = vdwg.mxu0
    %v5834 = vld [vmem:[%s2508] sm:$0xf]
    %v5835 = vld [vmem:[%s2508 + $0x4] sm:$0xf]
    %v5836 = vld [vmem:[%s2508 + $0x8] sm:$0xf]
    %v5837 = vld [vmem:[%s2508 + $0xc] sm:$0xf]
    %v5838 = vld [vmem:[%s2508 + $0x10] sm:$0xf]
    %v5839 = vld [vmem:[%s2508 + $0x14] sm:$0xf]
    %v5840 = vld [vmem:[%s2508 + $0x18] sm:$0xf]
    %v5841 = vld [vmem:[%s2508 + $0x1c] sm:$0xf]
    %v5842 = vld [vmem:[%s38] sm:$0xf]
    %v5843 = vld [vmem:[%s38 + $0x4] sm:$0xf]
    %v5844 = vld [vmem:[%s38 + $0x8] sm:$0xf]
    %v5845 = vld [vmem:[%s38 + $0xc] sm:$0xf]
    %v5854 = vunpack.c.l.b16 %v5834
    %v5855 = vunpack.c.l.b16 %v5835
    %v5856 = vunpack.c.l.b16 %v5836
    %v5857 = vunpack.c.l.b16 %v5837
    %v5858 = vunpack.c.l.b16 %v5838
    %v5859 = vunpack.c.l.b16 %v5839
    %v5860 = vunpack.c.l.b16 %v5840
    %v5861 = vunpack.c.l.b16 %v5841
    %v5862 = vpack.c.b16 %v5855, %v5854
    %v5863 = vpack.c.b16 %v5857, %v5856
    %v5864 = vpack.c.b16 %v5859, %v5858
    %v5865 = vpack.c.b16 %v5861, %v5860
    %v5870 = vunpack.c.l.b16 %v5842
    %v5871 = vunpack.c.l.b16 %v5843
    %v5872 = vunpack.c.l.b16 %v5844
    %v5873 = vunpack.c.l.b16 %v5845
    %v5874 = vpack.c.b16 %v5871, %v5870
    %v5875 = vpack.c.b16 %v5873, %v5872
    %v5879 = vsel %vm2321, %v5862, 0
    %v5882 = vsel %vm2321, %v5863, 0
    %v5885 = vsel %vm2321, %v5864, 0
    %v5888 = vsel %vm2321, %v5865, 0
    %5890 = vmatprep.subr.bf16.mxu0 0
    %5891 = vmatpush1.bf16.msra.mxu0 0
    %5892 = vmatprep.subr.bf16.mxu0 0
    %5893 = vmatpush1.bf16.msra.mxu0 0
    %5894 = vmatprep.subr.bf16.mxu0 0
    %5895 = vmatpush1.bf16.msra.mxu0 0
    %5896 = vmatprep.subr.bf16.mxu0 0
    %5897 = vmatpush1.bf16.msra.mxu0 0
    %5898 = vmatprep.subr.bf16.mxu0 0
    %5899 = vmatpush1.bf16.msra.mxu0 0
    %5900 = vmatprep.subr.bf16.mxu0 0
    %5901 = vmatpush1.bf16.msra.mxu0 0
    %5902 = vmatprep.subr.bf16.mxu0 0
    %5903 = vmatpush1.bf16.msra.mxu0 %v5875
    %5904 = vmatprep.subr.bf16.mxu0 0
    %5905 = vmatpush1.bf16.msra.mxu0 %v5874
    %5906 = vmatprep.subr.bf16.mxu0 0
    %5907 = vmatpush2.bf16.msra.mxu0 0
    %5908 = vmatprep.subr.bf16.mxu0 0
    %5909 = vmatpush2.bf16.msra.mxu0 0
    %5910 = vmatprep.subr.bf16.mxu0 0
    %5911 = vmatpush2.bf16.msra.mxu0 0
    %5912 = vmatprep.subr.bf16.mxu0 0
    %5913 = vmatpush2.bf16.msra.mxu0 0
    %5914 = vmatprep.subr.bf16.mxu0 0
    %5915 = vmatpush2.bf16.msra.mxu0 0
    %5916 = vmatprep.subr.bf16.mxu0 0
    %5917 = vmatpush2.bf16.msra.mxu0 0
    %5918 = vmatprep.subr.bf16.mxu0 0
    %5919 = vmatpush2.bf16.msra.mxu0 0
    %5920 = vmatprep.subr.bf16.mxu0 0
    %5921 = vmatpush2.bf16.msra.mxu0 0
    %5922 = vmatprep.mubr.bf16.mxu0 0
    %5923 = vmatmul.mubr.bf16.gmra.mxu0 %v5879
    %v5924 = vpop.f32.mrf.mxu0
    %v5925 = vadd.f32 0.0, %v5924
    %v5926 = vpop.f32.mrf.mxu0
    %v5927 = vpop.f32.mrf.mxu0
    %v5928 = vadd.f32 0.0, %v5927
    %v5929 = vpop.f32.mrf.mxu0
    %5930 = vmatprep.mubr.bf16.mxu0 0
    %5931 = vmatmul.mubr.bf16.gmra.mxu0 %v5882
    %v5932 = vpop.f32.mrf.mxu0
    %v5933 = vadd.f32 0.0, %v5932
    %v5934 = vpop.f32.mrf.mxu0
    %v5935 = vpop.f32.mrf.mxu0
    %v5936 = vadd.f32 0.0, %v5935
    %v5937 = vpop.f32.mrf.mxu0
    %5938 = vmatprep.mubr.bf16.mxu0 0
    %5939 = vmatmul.mubr.bf16.gmra.mxu0 %v5885
    %v5940 = vpop.f32.mrf.mxu0
    %v5941 = vadd.f32 0.0, %v5940
    %v5942 = vpop.f32.mrf.mxu0
    %v5943 = vpop.f32.mrf.mxu0
    %v5944 = vadd.f32 0.0, %v5943
    %v5945 = vpop.f32.mrf.mxu0
    %5946 = vmatprep.mubr.bf16.mxu0 0
    %5947 = vmatmul.mubr.bf16.gmra.mxu0 %v5888
    %v5948 = vpop.f32.mrf.mxu0
    %v5949 = vadd.f32 0.0, %v5948
    %v5950 = vpop.f32.mrf.mxu0
    %v5951 = vpop.f32.mrf.mxu0
    %v5952 = vadd.f32 0.0, %v5951
    %v5953 = vpop.f32.mrf.mxu0
    %5954 = vdwg.mxu0
    %v5955 = vadd.f32 %v5804, %v5925
    %v5956 = vadd.f32 %v5807, %v5928
    %v5957 = vadd.f32 %v5812, %v5933
    %v5958 = vadd.f32 %v5815, %v5936
    %v5959 = vadd.f32 %v5820, %v5941
    %v5960 = vadd.f32 %v5823, %v5944
    %v5961 = vadd.f32 %v5828, %v5949
    %v5962 = vadd.f32 %v5831, %v5952
    %v5963 = vld [vmem:[%s4] sm:$0xff]
    %v5964 = vld [vmem:[%s4 + $0x8] sm:$0xff]
    %v5965 = vld [vmem:[%s4 + $0x10] sm:$0xff]
    %v5966 = vld [vmem:[%s4 + $0x18] sm:$0xff]
    %v5967 = vld [vmem:[%s4 + $0x20] sm:$0xff]
    %v5968 = vld [vmem:[%s4 + $0x28] sm:$0xff]
    %v5969 = vld [vmem:[%s4 + $0x30] sm:$0xff]
    %v5970 = vld [vmem:[%s4 + $0x38] sm:$0xff]
    %5972 = vset.pattern.permute.xlu0 0
    %5973 = vperm.xlu0 %5972, %v5963
    %v5974 = vpop.permute.xlu0 %5973
    %5977 = vset.pattern.permute.xlu0 0
    %5978 = vperm.xlu0 %5977, %v5964
    %v5979 = vpop.permute.xlu0 %5978
    %5982 = vset.pattern.permute.xlu0 0
    %5983 = vperm.xlu0 %5982, %v5965
    %v5984 = vpop.permute.xlu0 %5983
    %5987 = vset.pattern.permute.xlu0 0
    %5988 = vperm.xlu0 %5987, %v5966
    %v5989 = vpop.permute.xlu0 %5988
    %5992 = vset.pattern.permute.xlu0 0
    %5993 = vperm.xlu0 %5992, %v5967
    %v5994 = vpop.permute.xlu0 %5993
    %5997 = vset.pattern.permute.xlu0 0
    %5998 = vperm.xlu0 %5997, %v5968
    %v5999 = vpop.permute.xlu0 %5998
    %6002 = vset.pattern.permute.xlu0 0
    %6003 = vperm.xlu0 %6002, %v5969
    %v6004 = vpop.permute.xlu0 %6003
    %6007 = vset.pattern.permute.xlu0 0
    %6008 = vperm.xlu0 %6007, %v5970
    %v6009 = vpop.permute.xlu0 %6008
    %v6011 = vadd.f32 %v5955, %v5974
    %v6012 = vadd.f32 %v5956, %v5979
    %v6013 = vadd.f32 %v5957, %v5984
    %v6014 = vadd.f32 %v5958, %v5989
    %v6015 = vadd.f32 %v5959, %v5994
    %v6016 = vadd.f32 %v5960, %v5999
    %v6017 = vadd.f32 %v5961, %v6004
    %v6018 = vadd.f32 %v5962, %v6009
    %v6019 = vmax.f32 %v6011, 0.0
    %v6020 = vmax.f32 %v6012, 0.0
    %v6021 = vmax.f32 %v6013, 0.0
    %v6022 = vmax.f32 %v6014, 0.0
    %v6023 = vmax.f32 %v6015, 0.0
    %v6024 = vmax.f32 %v6016, 0.0
    %v6025 = vmax.f32 %v6017, 0.0
    %v6026 = vmax.f32 %v6018, 0.0
    %v6027 = vpack.c.bf16 %v6020, %v6019
    %v6028 = vpack.c.bf16 %v6022, %v6021
    %v6029 = vpack.c.bf16 %v6024, %v6023
    %v6030 = vpack.c.bf16 %v6026, %v6025
    %v6035 = vunpack.c.l.b16 %v6027
    %v6036 = vunpack.c.h.b16 %v6027
    %v6037 = vunpack.c.l.b16 %v6028
    %v6038 = vunpack.c.h.b16 %v6028
    %v6039 = vunpack.c.l.b16 %v6029
    %v6040 = vunpack.c.h.b16 %v6029
    %v6041 = vunpack.c.l.b16 %v6030
    %v6042 = vunpack.c.h.b16 %v6030
    %v6043 = vpack.c.b16 %v6035, %v6035
    %v6044 = vpack.c.b16 %v6036, %v6036
    %v6045 = vpack.c.b16 %v6037, %v6037
    %v6046 = vpack.c.b16 %v6038, %v6038
    %v6047 = vpack.c.b16 %v6039, %v6039
    %v6048 = vpack.c.b16 %v6040, %v6040
    %v6049 = vpack.c.b16 %v6041, %v6041
    %v6050 = vpack.c.b16 %v6042, %v6042
    %6059 = vst [vmem:[#allocation3 + $0xe0] sm:$0xf] %v6043
    %6060 = vst [vmem:[#allocation3 + $0xe4] sm:$0xf] %v6044
    %6061 = vst [vmem:[#allocation3 + $0xe8] sm:$0xf] %v6045
    %6062 = vst [vmem:[#allocation3 + $0xec] sm:$0xf] %v6046
    %6063 = vst [vmem:[#allocation3 + $0xf0] sm:$0xf] %v6047
    %6064 = vst [vmem:[#allocation3 + $0xf4] sm:$0xf] %v6048
    %6065 = vst [vmem:[#allocation3 + $0xf8] sm:$0xf] %v6049
    %6066 = vst [vmem:[#allocation3 + $0xfc] sm:$0xf] %v6050
    %v6067 = vld [vmem:[%s5] sm:$0xff]
    %v6068 = vld [vmem:[%s5 + $0x8] sm:$0xff]
    %v6069 = vld [vmem:[%s5 + $0x10] sm:$0xff]
    %v6070 = vld [vmem:[%s5 + $0x18] sm:$0xff]
    %v6071 = vld [vmem:[%s5 + $0x20] sm:$0xff]
    %v6072 = vld [vmem:[%s5 + $0x28] sm:$0xff]
    %v6073 = vld [vmem:[%s5 + $0x30] sm:$0xff]
    %v6074 = vld [vmem:[%s5 + $0x38] sm:$0xff]
    %v6075 = vld [vmem:[%s5 + $0x40] sm:$0xff]
    %v6076 = vld [vmem:[%s5 + $0x48] sm:$0xff]
    %v6077 = vld [vmem:[%s5 + $0x50] sm:$0xff]
    %v6078 = vld [vmem:[%s5 + $0x58] sm:$0xff]
    %v6079 = vld [vmem:[%s5 + $0x60] sm:$0xff]
    %v6080 = vld [vmem:[%s5 + $0x68] sm:$0xff]
    %v6081 = vld [vmem:[%s5 + $0x70] sm:$0xff]
    %v6082 = vld [vmem:[%s5 + $0x78] sm:$0xff]
    %v6083 = vld [vmem:[%s5 + $0x80] sm:$0xff]
    %v6084 = vld [vmem:[%s5 + $0x88] sm:$0xff]
    %v6085 = vld [vmem:[%s5 + $0x90] sm:$0xff]
    %v6086 = vld [vmem:[%s5 + $0x98] sm:$0xff]
    %v6087 = vld [vmem:[%s5 + $0xa0] sm:$0xff]
    %v6088 = vld [vmem:[%s5 + $0xa8] sm:$0xff]
    %v6089 = vld [vmem:[%s5 + $0xb0] sm:$0xff]
    %v6090 = vld [vmem:[%s5 + $0xb8] sm:$0xff]
    %v6091 = vld [vmem:[%s5 + $0xc0] sm:$0xff]
    %v6092 = vld [vmem:[%s5 + $0xc8] sm:$0xff]
    %v6093 = vld [vmem:[%s5 + $0xd0] sm:$0xff]
    %v6094 = vld [vmem:[%s5 + $0xd8] sm:$0xff]
    %v6095 = vld [vmem:[%s5 + $0xe0] sm:$0xff]
    %v6096 = vld [vmem:[%s5 + $0xe8] sm:$0xff]
    %v6097 = vld [vmem:[%s5 + $0xf0] sm:$0xff]
    %v6098 = vld [vmem:[%s5 + $0xf8] sm:$0xff]
    %v6099 = vld [vmem:[#allocation3] sm:$0xf]
    %v6100 = vld [vmem:[#allocation3 + $0x4] sm:$0xf]
    %v6101 = vld [vmem:[#allocation3 + $0x8] sm:$0xf]
    %v6102 = vld [vmem:[#allocation3 + $0xc] sm:$0xf]
    %v6103 = vld [vmem:[#allocation3 + $0x10] sm:$0xf]
    %v6104 = vld [vmem:[#allocation3 + $0x14] sm:$0xf]
    %v6105 = vld [vmem:[#allocation3 + $0x18] sm:$0xf]
    %v6106 = vld [vmem:[#allocation3 + $0x1c] sm:$0xf]
    %v6107 = vld [vmem:[#allocation3 + $0x20] sm:$0xf]
    %v6108 = vld [vmem:[#allocation3 + $0x24] sm:$0xf]
    %v6109 = vld [vmem:[#allocation3 + $0x28] sm:$0xf]
    %v6110 = vld [vmem:[#allocation3 + $0x2c] sm:$0xf]
    %v6111 = vld [vmem:[#allocation3 + $0x30] sm:$0xf]
    %v6112 = vld [vmem:[#allocation3 + $0x34] sm:$0xf]
    %v6113 = vld [vmem:[#allocation3 + $0x38] sm:$0xf]
    %v6114 = vld [vmem:[#allocation3 + $0x3c] sm:$0xf]
    %v6115 = vld [vmem:[#allocation3 + $0x40] sm:$0xf]
    %v6116 = vld [vmem:[#allocation3 + $0x44] sm:$0xf]
    %v6117 = vld [vmem:[#allocation3 + $0x48] sm:$0xf]
    %v6118 = vld [vmem:[#allocation3 + $0x4c] sm:$0xf]
    %v6119 = vld [vmem:[#allocation3 + $0x50] sm:$0xf]
    %v6120 = vld [vmem:[#allocation3 + $0x54] sm:$0xf]
    %v6121 = vld [vmem:[#allocation3 + $0x58] sm:$0xf]
    %v6122 = vld [vmem:[#allocation3 + $0x5c] sm:$0xf]
    %v6123 = vld [vmem:[#allocation3 + $0x60] sm:$0xf]
    %v6124 = vld [vmem:[#allocation3 + $0x64] sm:$0xf]
    %v6125 = vld [vmem:[#allocation3 + $0x68] sm:$0xf]
    %v6126 = vld [vmem:[#allocation3 + $0x6c] sm:$0xf]
    %v6127 = vld [vmem:[#allocation3 + $0x70] sm:$0xf]
    %v6128 = vld [vmem:[#allocation3 + $0x74] sm:$0xf]
    %v6129 = vld [vmem:[#allocation3 + $0x78] sm:$0xf]
    %v6130 = vld [vmem:[#allocation3 + $0x7c] sm:$0xf]
    %v6131 = vld [vmem:[#allocation3 + $0x80] sm:$0xf]
    %v6132 = vld [vmem:[#allocation3 + $0x84] sm:$0xf]
    %v6133 = vld [vmem:[#allocation3 + $0x88] sm:$0xf]
    %v6134 = vld [vmem:[#allocation3 + $0x8c] sm:$0xf]
    %v6135 = vld [vmem:[#allocation3 + $0x90] sm:$0xf]
    %v6136 = vld [vmem:[#allocation3 + $0x94] sm:$0xf]
    %v6137 = vld [vmem:[#allocation3 + $0x98] sm:$0xf]
    %v6138 = vld [vmem:[#allocation3 + $0x9c] sm:$0xf]
    %v6139 = vld [vmem:[#allocation3 + $0xa0] sm:$0xf]
    %v6140 = vld [vmem:[#allocation3 + $0xa4] sm:$0xf]
    %v6141 = vld [vmem:[#allocation3 + $0xa8] sm:$0xf]
    %v6142 = vld [vmem:[#allocation3 + $0xac] sm:$0xf]
    %v6143 = vld [vmem:[#allocation3 + $0xb0] sm:$0xf]
    %v6144 = vld [vmem:[#allocation3 + $0xb4] sm:$0xf]
    %v6145 = vld [vmem:[#allocation3 + $0xb8] sm:$0xf]
    %v6146 = vld [vmem:[#allocation3 + $0xbc] sm:$0xf]
    %v6147 = vld [vmem:[#allocation3 + $0xc0] sm:$0xf]
    %v6148 = vld [vmem:[#allocation3 + $0xc4] sm:$0xf]
    %v6149 = vld [vmem:[#allocation3 + $0xc8] sm:$0xf]
    %v6150 = vld [vmem:[#allocation3 + $0xcc] sm:$0xf]
    %v6151 = vld [vmem:[#allocation3 + $0xd0] sm:$0xf]
    %v6152 = vld [vmem:[#allocation3 + $0xd4] sm:$0xf]
    %v6153 = vld [vmem:[#allocation3 + $0xd8] sm:$0xf]
    %v6154 = vld [vmem:[#allocation3 + $0xdc] sm:$0xf]
    %v6155 = vld [vmem:[#allocation3 + $0xe0] sm:$0xf]
    %v6156 = vld [vmem:[#allocation3 + $0xe4] sm:$0xf]
    %v6157 = vld [vmem:[#allocation3 + $0xe8] sm:$0xf]
    %v6158 = vld [vmem:[#allocation3 + $0xec] sm:$0xf]
    %v6159 = vld [vmem:[#allocation3 + $0xf0] sm:$0xf]
    %v6160 = vld [vmem:[#allocation3 + $0xf4] sm:$0xf]
    %v6161 = vld [vmem:[#allocation3 + $0xf8] sm:$0xf]
    %v6162 = vld [vmem:[#allocation3 + $0xfc] sm:$0xf]
    %v6163 = vld [vmem:[%s6] sm:$0xff]
    %v6164 = vld [vmem:[%s6 + $0x8] sm:$0xff]
    %v6165 = vld [vmem:[%s6 + $0x10] sm:$0xff]
    %v6166 = vld [vmem:[%s6 + $0x18] sm:$0xff]
    %v6167 = vld [vmem:[%s6 + $0x20] sm:$0xff]
    %v6168 = vld [vmem:[%s6 + $0x28] sm:$0xff]
    %v6169 = vld [vmem:[%s6 + $0x30] sm:$0xff]
    %v6170 = vld [vmem:[%s6 + $0x38] sm:$0xff]
    %v6171 = vld [vmem:[%s6 + $0x40] sm:$0xff]
    %v6172 = vld [vmem:[%s6 + $0x48] sm:$0xff]
    %v6173 = vld [vmem:[%s6 + $0x50] sm:$0xff]
    %v6174 = vld [vmem:[%s6 + $0x58] sm:$0xff]
    %v6175 = vld [vmem:[%s6 + $0x60] sm:$0xff]
    %v6176 = vld [vmem:[%s6 + $0x68] sm:$0xff]
    %v6177 = vld [vmem:[%s6 + $0x70] sm:$0xff]
    %v6178 = vld [vmem:[%s6 + $0x78] sm:$0xff]
    %6180 = vset.pattern.permute.xlu0 0
    %6181 = vperm.xlu0 %6180, %v6163
    %v6182 = vpop.permute.xlu0 %6181
    %6185 = vset.pattern.permute.xlu0 0
    %6186 = vperm.xlu0 %6185, %v6164
    %v6187 = vpop.permute.xlu0 %6186
    %6190 = vset.pattern.permute.xlu0 0
    %6191 = vperm.xlu0 %6190, %v6165
    %v6192 = vpop.permute.xlu0 %6191
    %6195 = vset.pattern.permute.xlu0 0
    %6196 = vperm.xlu0 %6195, %v6166
    %v6197 = vpop.permute.xlu0 %6196
    %6200 = vset.pattern.permute.xlu0 0
    %6201 = vperm.xlu0 %6200, %v6167
    %v6202 = vpop.permute.xlu0 %6201
    %6205 = vset.pattern.permute.xlu0 0
    %6206 = vperm.xlu0 %6205, %v6168
    %v6207 = vpop.permute.xlu0 %6206
    %6210 = vset.pattern.permute.xlu0 0
    %6211 = vperm.xlu0 %6210, %v6169
    %v6212 = vpop.permute.xlu0 %6211
    %6215 = vset.pattern.permute.xlu0 0
    %6216 = vperm.xlu0 %6215, %v6170
    %v6217 = vpop.permute.xlu0 %6216
    %6220 = vset.pattern.permute.xlu0 0
    %6221 = vperm.xlu0 %6220, %v6171
    %v6222 = vpop.permute.xlu0 %6221
    %6225 = vset.pattern.permute.xlu0 0
    %6226 = vperm.xlu0 %6225, %v6172
    %v6227 = vpop.permute.xlu0 %6226
    %6230 = vset.pattern.permute.xlu0 0
    %6231 = vperm.xlu0 %6230, %v6173
    %v6232 = vpop.permute.xlu0 %6231
    %6235 = vset.pattern.permute.xlu0 0
    %6236 = vperm.xlu0 %6235, %v6174
    %v6237 = vpop.permute.xlu0 %6236
    %6240 = vset.pattern.permute.xlu0 0
    %6241 = vperm.xlu0 %6240, %v6175
    %v6242 = vpop.permute.xlu0 %6241
    %6245 = vset.pattern.permute.xlu0 0
    %6246 = vperm.xlu0 %6245, %v6176
    %v6247 = vpop.permute.xlu0 %6246
    %6250 = vset.pattern.permute.xlu0 0
    %6251 = vperm.xlu0 %6250, %v6177
    %v6252 = vpop.permute.xlu0 %6251
    %6255 = vset.pattern.permute.xlu0 0
    %6256 = vperm.xlu0 %6255, %v6178
    %v6257 = vpop.permute.xlu0 %6256
    %v6291 = vunpack.c.l.b16 %v6067
    %v6292 = vunpack.c.h.b16 %v6067
    %v6293 = vunpack.c.l.b16 %v6068
    %v6294 = vunpack.c.h.b16 %v6068
    %v6295 = vunpack.c.l.b16 %v6069
    %v6296 = vunpack.c.h.b16 %v6069
    %v6297 = vunpack.c.l.b16 %v6070
    %v6298 = vunpack.c.h.b16 %v6070
    %v6299 = vunpack.c.l.b16 %v6071
    %v6300 = vunpack.c.h.b16 %v6071
    %v6301 = vunpack.c.l.b16 %v6072
    %v6302 = vunpack.c.h.b16 %v6072
    %v6303 = vunpack.c.l.b16 %v6073
    %v6304 = vunpack.c.h.b16 %v6073
    %v6305 = vunpack.c.l.b16 %v6074
    %v6306 = vunpack.c.h.b16 %v6074
    %v6307 = vunpack.c.l.b16 %v6075
    %v6308 = vunpack.c.h.b16 %v6075
    %v6309 = vunpack.c.l.b16 %v6076
    %v6310 = vunpack.c.h.b16 %v6076
    %v6311 = vunpack.c.l.b16 %v6077
    %v6312 = vunpack.c.h.b16 %v6077
    %v6313 = vunpack.c.l.b16 %v6078
    %v6314 = vunpack.c.h.b16 %v6078
    %v6315 = vunpack.c.l.b16 %v6079
    %v6316 = vunpack.c.h.b16 %v6079
    %v6317 = vunpack.c.l.b16 %v6080
    %v6318 = vunpack.c.h.b16 %v6080
    %v6319 = vunpack.c.l.b16 %v6081
    %v6320 = vunpack.c.h.b16 %v6081
    %v6321 = vunpack.c.l.b16 %v6082
    %v6322 = vunpack.c.h.b16 %v6082
    %v6323 = vunpack.c.l.b16 %v6083
    %v6324 = vunpack.c.h.b16 %v6083
    %v6325 = vunpack.c.l.b16 %v6084
    %v6326 = vunpack.c.h.b16 %v6084
    %v6327 = vunpack.c.l.b16 %v6085
    %v6328 = vunpack.c.h.b16 %v6085
    %v6329 = vunpack.c.l.b16 %v6086
    %v6330 = vunpack.c.h.b16 %v6086
    %v6331 = vunpack.c.l.b16 %v6087
    %v6332 = vunpack.c.h.b16 %v6087
    %v6333 = vunpack.c.l.b16 %v6088
    %v6334 = vunpack.c.h.b16 %v6088
    %v6335 = vunpack.c.l.b16 %v6089
    %v6336 = vunpack.c.h.b16 %v6089
    %v6337 = vunpack.c.l.b16 %v6090
    %v6338 = vunpack.c.h.b16 %v6090
    %v6339 = vunpack.c.l.b16 %v6091
    %v6340 = vunpack.c.h.b16 %v6091
    %v6341 = vunpack.c.l.b16 %v6092
    %v6342 = vunpack.c.h.b16 %v6092
    %v6343 = vunpack.c.l.b16 %v6093
    %v6344 = vunpack.c.h.b16 %v6093
    %v6345 = vunpack.c.l.b16 %v6094
    %v6346 = vunpack.c.h.b16 %v6094
    %v6347 = vunpack.c.l.b16 %v6095
    %v6348 = vunpack.c.h.b16 %v6095
    %v6349 = vunpack.c.l.b16 %v6096
    %v6350 = vunpack.c.h.b16 %v6096
    %v6351 = vunpack.c.l.b16 %v6097
    %v6352 = vunpack.c.h.b16 %v6097
    %v6353 = vunpack.c.l.b16 %v6098
    %v6354 = vunpack.c.h.b16 %v6098
    %v6355 = vpack.c.b16 %v6295, %v6291
    %v6356 = vpack.c.b16 %v6296, %v6292
    %v6357 = vpack.c.b16 %v6297, %v6293
    %v6358 = vpack.c.b16 %v6298, %v6294
    %v6359 = vpack.c.b16 %v6303, %v6299
    %v6360 = vpack.c.b16 %v6304, %v6300
    %v6361 = vpack.c.b16 %v6305, %v6301
    %v6362 = vpack.c.b16 %v6306, %v6302
    %v6363 = vpack.c.b16 %v6311, %v6307
    %v6364 = vpack.c.b16 %v6312, %v6308
    %v6365 = vpack.c.b16 %v6313, %v6309
    %v6366 = vpack.c.b16 %v6314, %v6310
    %v6367 = vpack.c.b16 %v6319, %v6315
    %v6368 = vpack.c.b16 %v6320, %v6316
    %v6369 = vpack.c.b16 %v6321, %v6317
    %v6370 = vpack.c.b16 %v6322, %v6318
    %v6371 = vpack.c.b16 %v6327, %v6323
    %v6372 = vpack.c.b16 %v6328, %v6324
    %v6373 = vpack.c.b16 %v6329, %v6325
    %v6374 = vpack.c.b16 %v6330, %v6326
    %v6375 = vpack.c.b16 %v6335, %v6331
    %v6376 = vpack.c.b16 %v6336, %v6332
    %v6377 = vpack.c.b16 %v6337, %v6333
    %v6378 = vpack.c.b16 %v6338, %v6334
    %v6379 = vpack.c.b16 %v6343, %v6339
    %v6380 = vpack.c.b16 %v6344, %v6340
    %v6381 = vpack.c.b16 %v6345, %v6341
    %v6382 = vpack.c.b16 %v6346, %v6342
    %v6383 = vpack.c.b16 %v6351, %v6347
    %v6384 = vpack.c.b16 %v6352, %v6348
    %v6385 = vpack.c.b16 %v6353, %v6349
    %v6386 = vpack.c.b16 %v6354, %v6350
    %v6483 = vunpack.c.l.b16 %v6099
    %v6484 = vunpack.c.l.b16 %v6100
    %v6485 = vunpack.c.l.b16 %v6101
    %v6486 = vunpack.c.l.b16 %v6102
    %v6487 = vunpack.c.l.b16 %v6103
    %v6488 = vunpack.c.l.b16 %v6104
    %v6489 = vunpack.c.l.b16 %v6105
    %v6490 = vunpack.c.l.b16 %v6106
    %v6491 = vunpack.c.l.b16 %v6107
    %v6492 = vunpack.c.l.b16 %v6108
    %v6493 = vunpack.c.l.b16 %v6109
    %v6494 = vunpack.c.l.b16 %v6110
    %v6495 = vunpack.c.l.b16 %v6111
    %v6496 = vunpack.c.l.b16 %v6112
    %v6497 = vunpack.c.l.b16 %v6113
    %v6498 = vunpack.c.l.b16 %v6114
    %v6499 = vunpack.c.l.b16 %v6115
    %v6500 = vunpack.c.l.b16 %v6116
    %v6501 = vunpack.c.l.b16 %v6117
    %v6502 = vunpack.c.l.b16 %v6118
    %v6503 = vunpack.c.l.b16 %v6119
    %v6504 = vunpack.c.l.b16 %v6120
    %v6505 = vunpack.c.l.b16 %v6121
    %v6506 = vunpack.c.l.b16 %v6122
    %v6507 = vunpack.c.l.b16 %v6123
    %v6508 = vunpack.c.l.b16 %v6124
    %v6509 = vunpack.c.l.b16 %v6125
    %v6510 = vunpack.c.l.b16 %v6126
    %v6511 = vunpack.c.l.b16 %v6127
    %v6512 = vunpack.c.l.b16 %v6128
    %v6513 = vunpack.c.l.b16 %v6129
    %v6514 = vunpack.c.l.b16 %v6130
    %v6515 = vunpack.c.l.b16 %v6131
    %v6516 = vunpack.c.l.b16 %v6132
    %v6517 = vunpack.c.l.b16 %v6133
    %v6518 = vunpack.c.l.b16 %v6134
    %v6519 = vunpack.c.l.b16 %v6135
    %v6520 = vunpack.c.l.b16 %v6136
    %v6521 = vunpack.c.l.b16 %v6137
    %v6522 = vunpack.c.l.b16 %v6138
    %v6523 = vunpack.c.l.b16 %v6139
    %v6524 = vunpack.c.l.b16 %v6140
    %v6525 = vunpack.c.l.b16 %v6141
    %v6526 = vunpack.c.l.b16 %v6142
    %v6527 = vunpack.c.l.b16 %v6143
    %v6528 = vunpack.c.l.b16 %v6144
    %v6529 = vunpack.c.l.b16 %v6145
    %v6530 = vunpack.c.l.b16 %v6146
    %v6531 = vunpack.c.l.b16 %v6147
    %v6532 = vunpack.c.l.b16 %v6148
    %v6533 = vunpack.c.l.b16 %v6149
    %v6534 = vunpack.c.l.b16 %v6150
    %v6535 = vunpack.c.l.b16 %v6151
    %v6536 = vunpack.c.l.b16 %v6152
    %v6537 = vunpack.c.l.b16 %v6153
    %v6538 = vunpack.c.l.b16 %v6154
    %v6539 = vunpack.c.l.b16 %v6155
    %v6540 = vunpack.c.l.b16 %v6156
    %v6541 = vunpack.c.l.b16 %v6157
    %v6542 = vunpack.c.l.b16 %v6158
    %v6543 = vunpack.c.l.b16 %v6159
    %v6544 = vunpack.c.l.b16 %v6160
    %v6545 = vunpack.c.l.b16 %v6161
    %v6546 = vunpack.c.l.b16 %v6162
    %v6547 = vpack.c.b16 %v6484, %v6483
    %v6548 = vpack.c.b16 %v6486, %v6485
    %v6549 = vpack.c.b16 %v6488, %v6487
    %v6550 = vpack.c.b16 %v6490, %v6489
    %v6551 = vpack.c.b16 %v6492, %v6491
    %v6552 = vpack.c.b16 %v6494, %v6493
    %v6553 = vpack.c.b16 %v6496, %v6495
    %v6554 = vpack.c.b16 %v6498, %v6497
    %v6555 = vpack.c.b16 %v6500, %v6499
    %v6556 = vpack.c.b16 %v6502, %v6501
    %v6557 = vpack.c.b16 %v6504, %v6503
    %v6558 = vpack.c.b16 %v6506, %v6505
    %v6559 = vpack.c.b16 %v6508, %v6507
    %v6560 = vpack.c.b16 %v6510, %v6509
    %v6561 = vpack.c.b16 %v6512, %v6511
    %v6562 = vpack.c.b16 %v6514, %v6513
    %v6563 = vpack.c.b16 %v6516, %v6515
    %v6564 = vpack.c.b16 %v6518, %v6517
    %v6565 = vpack.c.b16 %v6520, %v6519
    %v6566 = vpack.c.b16 %v6522, %v6521
    %v6567 = vpack.c.b16 %v6524, %v6523
    %v6568 = vpack.c.b16 %v6526, %v6525
    %v6569 = vpack.c.b16 %v6528, %v6527
    %v6570 = vpack.c.b16 %v6530, %v6529
    %v6571 = vpack.c.b16 %v6532, %v6531
    %v6572 = vpack.c.b16 %v6534, %v6533
    %v6573 = vpack.c.b16 %v6536, %v6535
    %v6574 = vpack.c.b16 %v6538, %v6537
    %v6575 = vpack.c.b16 %v6540, %v6539
    %v6576 = vpack.c.b16 %v6542, %v6541
    %v6577 = vpack.c.b16 %v6544, %v6543
    %v6578 = vpack.c.b16 %v6546, %v6545
    %6611 = vmatprep.subr.bf16.mxu0 0
    %6612 = vmatpush1.bf16.msra.mxu0 %v6554
    %6613 = vmatprep.subr.bf16.mxu0 0
    %6614 = vmatpush1.bf16.msra.mxu0 %v6553
    %6615 = vmatprep.subr.bf16.mxu0 0
    %6616 = vmatpush1.bf16.msra.mxu0 %v6552
    %6617 = vmatprep.subr.bf16.mxu0 0
    %6618 = vmatpush1.bf16.msra.mxu0 %v6551
    %6619 = vmatprep.subr.bf16.mxu0 0
    %6620 = vmatpush1.bf16.msra.mxu0 %v6550
    %6621 = vmatprep.subr.bf16.mxu0 0
    %6622 = vmatpush1.bf16.msra.mxu0 %v6549
    %6623 = vmatprep.subr.bf16.mxu0 0
    %6624 = vmatpush1.bf16.msra.mxu0 %v6548
    %6625 = vmatprep.subr.bf16.mxu0 0
    %6626 = vmatpush1.bf16.msra.mxu0 %v6547
    %6627 = vmatprep.subr.bf16.mxu0 0
    %6628 = vmatpush2.bf16.msra.mxu0 %v6562
    %6629 = vmatprep.subr.bf16.mxu0 0
    %6630 = vmatpush2.bf16.msra.mxu0 %v6561
    %6631 = vmatprep.subr.bf16.mxu0 0
    %6632 = vmatpush2.bf16.msra.mxu0 %v6560
    %6633 = vmatprep.subr.bf16.mxu0 0
    %6634 = vmatpush2.bf16.msra.mxu0 %v6559
    %6635 = vmatprep.subr.bf16.mxu0 0
    %6636 = vmatpush2.bf16.msra.mxu0 %v6558
    %6637 = vmatprep.subr.bf16.mxu0 0
    %6638 = vmatpush2.bf16.msra.mxu0 %v6557
    %6639 = vmatprep.subr.bf16.mxu0 0
    %6640 = vmatpush2.bf16.msra.mxu0 %v6556
    %6641 = vmatprep.subr.bf16.mxu0 0
    %6642 = vmatpush2.bf16.msra.mxu0 %v6555
    %6643 = vmatprep.mubr.bf16.mxu0 %v6356
    %6644 = vmatmul.mubr.bf16.gmra.mxu0 %v6355
    %v6645 = vpop.f32.mrf.mxu0
    %v6646 = vadd.f32 %v6182, %v6645
    %v6647 = vpop.f32.mrf.mxu0
    %v6648 = vpop.f32.mrf.mxu0
    %v6649 = vadd.f32 %v6187, %v6648
    %v6650 = vpop.f32.mrf.mxu0
    %6651 = vmatprep.mubr.bf16.mxu0 %v6360
    %6652 = vmatmul.mubr.bf16.gmra.mxu0 %v6359
    %v6653 = vpop.f32.mrf.mxu0
    %v6654 = vadd.f32 %v6192, %v6653
    %v6655 = vpop.f32.mrf.mxu0
    %v6656 = vpop.f32.mrf.mxu0
    %v6657 = vadd.f32 %v6197, %v6656
    %v6658 = vpop.f32.mrf.mxu0
    %6659 = vmatprep.mubr.bf16.mxu0 %v6364
    %6660 = vmatmul.mubr.bf16.gmra.mxu0 %v6363
    %v6661 = vpop.f32.mrf.mxu0
    %v6662 = vadd.f32 %v6202, %v6661
    %v6663 = vpop.f32.mrf.mxu0
    %v6664 = vpop.f32.mrf.mxu0
    %v6665 = vadd.f32 %v6207, %v6664
    %v6666 = vpop.f32.mrf.mxu0
    %6667 = vmatprep.mubr.bf16.mxu0 %v6368
    %6668 = vmatmul.mubr.bf16.gmra.mxu0 %v6367
    %v6669 = vpop.f32.mrf.mxu0
    %v6670 = vadd.f32 %v6212, %v6669
    %v6671 = vpop.f32.mrf.mxu0
    %v6672 = vpop.f32.mrf.mxu0
    %v6673 = vadd.f32 %v6217, %v6672
    %v6674 = vpop.f32.mrf.mxu0
    %6675 = vmatprep.mubr.bf16.mxu0 %v6372
    %6676 = vmatmul.mubr.bf16.gmra.mxu0 %v6371
    %v6677 = vpop.f32.mrf.mxu0
    %v6678 = vadd.f32 %v6222, %v6677
    %v6679 = vpop.f32.mrf.mxu0
    %v6680 = vpop.f32.mrf.mxu0
    %v6681 = vadd.f32 %v6227, %v6680
    %v6682 = vpop.f32.mrf.mxu0
    %6683 = vmatprep.mubr.bf16.mxu0 %v6376
    %6684 = vmatmul.mubr.bf16.gmra.mxu0 %v6375
    %v6685 = vpop.f32.mrf.mxu0
    %v6686 = vadd.f32 %v6232, %v6685
    %v6687 = vpop.f32.mrf.mxu0
    %v6688 = vpop.f32.mrf.mxu0
    %v6689 = vadd.f32 %v6237, %v6688
    %v6690 = vpop.f32.mrf.mxu0
    %6691 = vmatprep.mubr.bf16.mxu0 %v6380
    %6692 = vmatmul.mubr.bf16.gmra.mxu0 %v6379
    %v6693 = vpop.f32.mrf.mxu0
    %v6694 = vadd.f32 %v6242, %v6693
    %v6695 = vpop.f32.mrf.mxu0
    %v6696 = vpop.f32.mrf.mxu0
    %v6697 = vadd.f32 %v6247, %v6696
    %v6698 = vpop.f32.mrf.mxu0
    %6699 = vmatprep.mubr.bf16.mxu0 %v6384
    %6700 = vmatmul.mubr.bf16.gmra.mxu0 %v6383
    %v6701 = vpop.f32.mrf.mxu0
    %v6702 = vadd.f32 %v6252, %v6701
    %v6703 = vpop.f32.mrf.mxu0
    %v6704 = vpop.f32.mrf.mxu0
    %v6705 = vadd.f32 %v6257, %v6704
    %v6706 = vpop.f32.mrf.mxu0
    %6707 = vdwg.mxu0
    %6708 = vmatprep.subr.bf16.mxu0 0
    %6709 = vmatpush1.bf16.msra.mxu0 %v6570
    %6710 = vmatprep.subr.bf16.mxu0 0
    %6711 = vmatpush1.bf16.msra.mxu0 %v6569
    %6712 = vmatprep.subr.bf16.mxu0 0
    %6713 = vmatpush1.bf16.msra.mxu0 %v6568
    %6714 = vmatprep.subr.bf16.mxu0 0
    %6715 = vmatpush1.bf16.msra.mxu0 %v6567
    %6716 = vmatprep.subr.bf16.mxu0 0
    %6717 = vmatpush1.bf16.msra.mxu0 %v6566
    %6718 = vmatprep.subr.bf16.mxu0 0
    %6719 = vmatpush1.bf16.msra.mxu0 %v6565
    %6720 = vmatprep.subr.bf16.mxu0 0
    %6721 = vmatpush1.bf16.msra.mxu0 %v6564
    %6722 = vmatprep.subr.bf16.mxu0 0
    %6723 = vmatpush1.bf16.msra.mxu0 %v6563
    %6724 = vmatprep.subr.bf16.mxu0 0
    %6725 = vmatpush2.bf16.msra.mxu0 %v6578
    %6726 = vmatprep.subr.bf16.mxu0 0
    %6727 = vmatpush2.bf16.msra.mxu0 %v6577
    %6728 = vmatprep.subr.bf16.mxu0 0
    %6729 = vmatpush2.bf16.msra.mxu0 %v6576
    %6730 = vmatprep.subr.bf16.mxu0 0
    %6731 = vmatpush2.bf16.msra.mxu0 %v6575
    %6732 = vmatprep.subr.bf16.mxu0 0
    %6733 = vmatpush2.bf16.msra.mxu0 %v6574
    %6734 = vmatprep.subr.bf16.mxu0 0
    %6735 = vmatpush2.bf16.msra.mxu0 %v6573
    %6736 = vmatprep.subr.bf16.mxu0 0
    %6737 = vmatpush2.bf16.msra.mxu0 %v6572
    %6738 = vmatprep.subr.bf16.mxu0 0
    %6739 = vmatpush2.bf16.msra.mxu0 %v6571
    %6740 = vmatprep.mubr.bf16.mxu0 %v6358
    %6741 = vmatmul.mubr.bf16.gmra.mxu0 %v6357
    %v6742 = vpop.f32.mrf.mxu0
    %v6743 = vadd.f32 %v6646, %v6742
    %v6744 = vpop.f32.mrf.mxu0
    %v6745 = vpop.f32.mrf.mxu0
    %v6746 = vadd.f32 %v6649, %v6745
    %v6747 = vpop.f32.mrf.mxu0
    %6748 = vmatprep.mubr.bf16.mxu0 %v6362
    %6749 = vmatmul.mubr.bf16.gmra.mxu0 %v6361
    %v6750 = vpop.f32.mrf.mxu0
    %v6751 = vadd.f32 %v6654, %v6750
    %v6752 = vpop.f32.mrf.mxu0
    %v6753 = vpop.f32.mrf.mxu0
    %v6754 = vadd.f32 %v6657, %v6753
    %v6755 = vpop.f32.mrf.mxu0
    %6756 = vmatprep.mubr.bf16.mxu0 %v6366
    %6757 = vmatmul.mubr.bf16.gmra.mxu0 %v6365
    %v6758 = vpop.f32.mrf.mxu0
    %v6759 = vadd.f32 %v6662, %v6758
    %v6760 = vpop.f32.mrf.mxu0
    %v6761 = vpop.f32.mrf.mxu0
    %v6762 = vadd.f32 %v6665, %v6761
    %v6763 = vpop.f32.mrf.mxu0
    %6764 = vmatprep.mubr.bf16.mxu0 %v6370
    %6765 = vmatmul.mubr.bf16.gmra.mxu0 %v6369
    %v6766 = vpop.f32.mrf.mxu0
    %v6767 = vadd.f32 %v6670, %v6766
    %v6768 = vpop.f32.mrf.mxu0
    %v6769 = vpop.f32.mrf.mxu0
    %v6770 = vadd.f32 %v6673, %v6769
    %v6771 = vpop.f32.mrf.mxu0
    %6772 = vmatprep.mubr.bf16.mxu0 %v6374
    %6773 = vmatmul.mubr.bf16.gmra.mxu0 %v6373
    %v6774 = vpop.f32.mrf.mxu0
    %v6775 = vadd.f32 %v6678, %v6774
    %v6776 = vpop.f32.mrf.mxu0
    %v6777 = vpop.f32.mrf.mxu0
    %v6778 = vadd.f32 %v6681, %v6777
    %v6779 = vpop.f32.mrf.mxu0
    %6780 = vmatprep.mubr.bf16.mxu0 %v6378
    %6781 = vmatmul.mubr.bf16.gmra.mxu0 %v6377
    %v6782 = vpop.f32.mrf.mxu0
    %v6783 = vadd.f32 %v6686, %v6782
    %v6784 = vpop.f32.mrf.mxu0
    %v6785 = vpop.f32.mrf.mxu0
    %v6786 = vadd.f32 %v6689, %v6785
    %v6787 = vpop.f32.mrf.mxu0
    %6788 = vmatprep.mubr.bf16.mxu0 %v6382
    %6789 = vmatmul.mubr.bf16.gmra.mxu0 %v6381
    %v6790 = vpop.f32.mrf.mxu0
    %v6791 = vadd.f32 %v6694, %v6790
    %v6792 = vpop.f32.mrf.mxu0
    %v6793 = vpop.f32.mrf.mxu0
    %v6794 = vadd.f32 %v6697, %v6793
    %v6795 = vpop.f32.mrf.mxu0
    %6796 = vmatprep.mubr.bf16.mxu0 %v6386
    %6797 = vmatmul.mubr.bf16.gmra.mxu0 %v6385
    %v6798 = vpop.f32.mrf.mxu0
    %v6799 = vadd.f32 %v6702, %v6798
    %v6800 = vpop.f32.mrf.mxu0
    %v6801 = vpop.f32.mrf.mxu0
    %v6802 = vadd.f32 %v6705, %v6801
    %v6803 = vpop.f32.mrf.mxu0
    %6804 = vdwg.mxu0
    %v6805 = vmax.f32 %v6743, 0.0
    %v6806 = vmax.f32 %v6746, 0.0
    %v6807 = vmax.f32 %v6751, 0.0
    %v6808 = vmax.f32 %v6754, 0.0
    %v6809 = vmax.f32 %v6759, 0.0
    %v6810 = vmax.f32 %v6762, 0.0
    %v6811 = vmax.f32 %v6767, 0.0
    %v6812 = vmax.f32 %v6770, 0.0
    %v6813 = vmax.f32 %v6775, 0.0
    %v6814 = vmax.f32 %v6778, 0.0
    %v6815 = vmax.f32 %v6783, 0.0
    %v6816 = vmax.f32 %v6786, 0.0
    %v6817 = vmax.f32 %v6791, 0.0
    %v6818 = vmax.f32 %v6794, 0.0
    %v6819 = vmax.f32 %v6799, 0.0
    %v6820 = vmax.f32 %v6802, 0.0
    %v6821 = vpack.c.bf16 %v6806, %v6805
    %v6822 = vpack.c.bf16 %v6808, %v6807
    %v6823 = vpack.c.bf16 %v6810, %v6809
    %v6824 = vpack.c.bf16 %v6812, %v6811
    %v6825 = vpack.c.bf16 %v6814, %v6813
    %v6826 = vpack.c.bf16 %v6816, %v6815
    %v6827 = vpack.c.bf16 %v6818, %v6817
    %v6828 = vpack.c.bf16 %v6820, %v6819
    %v6829 = vld [vmem:[%s7] sm:$0xf]
    %v6830 = vld [vmem:[%s8] sm:$0xff]
    %6832 = vset.pattern.permute.xlu0 0
    %6833 = vperm.xlu0 %6832, %v6830
    %v6834 = vpop.permute.xlu0 %6833
    %6836 = vmatprep.subr.bf16.mxu0 0
    %6837 = vmatpush1.bf16.msra.mxu0 %v6828
    %6838 = vmatprep.subr.bf16.mxu0 0
    %6839 = vmatpush1.bf16.msra.mxu0 %v6827
    %6840 = vmatprep.subr.bf16.mxu0 0
    %6841 = vmatpush1.bf16.msra.mxu0 %v6826
    %6842 = vmatprep.subr.bf16.mxu0 0
    %6843 = vmatpush1.bf16.msra.mxu0 %v6825
    %6844 = vmatprep.subr.bf16.mxu0 0
    %6845 = vmatpush1.bf16.msra.mxu0 %v6824
    %6846 = vmatprep.subr.bf16.mxu0 0
    %6847 = vmatpush1.bf16.msra.mxu0 %v6823
    %6848 = vmatprep.subr.bf16.mxu0 0
    %6849 = vmatpush1.bf16.msra.mxu0 %v6822
    %6850 = vmatprep.subr.bf16.mxu0 0
    %6851 = vmatpush1.bf16.msra.mxu0 %v6821
    %6852 = vmatprep.subr.bf16.mxu0 0
    %6853 = vmatpush2.bf16.msra.mxu0 0
    %6854 = vmatprep.subr.bf16.mxu0 0
    %6855 = vmatpush2.bf16.msra.mxu0 0
    %6856 = vmatprep.subr.bf16.mxu0 0
    %6857 = vmatpush2.bf16.msra.mxu0 0
    %6858 = vmatprep.subr.bf16.mxu0 0
    %6859 = vmatpush2.bf16.msra.mxu0 0
    %6860 = vmatprep.subr.bf16.mxu0 0
    %6861 = vmatpush2.bf16.msra.mxu0 0
    %6862 = vmatprep.subr.bf16.mxu0 0
    %6863 = vmatpush2.bf16.msra.mxu0 0
    %6864 = vmatprep.subr.bf16.mxu0 0
    %6865 = vmatpush2.bf16.msra.mxu0 0
    %6866 = vmatprep.subr.bf16.mxu0 0
    %6867 = vmatpush2.bf16.msra.mxu0 0
    %6868 = vmatprep.mubr.bf16.mxu0 0
    %6869 = vmatmul.mubr.bf16.gmra.mxu0 %v6829
    %v6870 = vpop.f32.mrf.mxu0
    %v6871 = vadd.f32 %v6834, %v6870
    %v6872 = vpop.f32.mrf.mxu0
    %v6873 = vpop.f32.mrf.mxu0
    %v6874 = vpop.f32.mrf.mxu0
    %6875 = vdwg.mxu0
    %6876 = vst [vmem:[#allocation4] sm:$0xff] %v6871
    // Predicated region
    $region38: #{tpu_custom_call.1} parent=1 // pred_check
      _
    $region39: #{tpu_custom_call.1} parent=1 // pred_check_branch
      %6878 = sbr.rel (0) target = $region41
    $region40: #{tpu_custom_call.1} parent=1 // pred_region
      %s6880 = ssub.s32 128, 128
      %6881 = vsyncadd [#allocation5], %s6880
      %s6883 = sshll.u32 [#allocation4], 4
      %s6884 = int_to_ptr.vmem [resolvable:$true] %s6883
      %6886 = dma.vmem_to_hbm [thread:$0]  %s6884, 128, %s9, [#allocation5]
    $region41: #{tpu_custom_call.1} parent=1 // pred_fallthru
      _
    // Predicated region
    $region42: #{tpu_custom_call.1} parent=1 // pred_check
      _
    $region43: #{tpu_custom_call.1} parent=1 // pred_check_branch
      %6888 = sbr.rel (0) target = $region45
    $region44: #{tpu_custom_call.1} parent=1 // pred_region
      %6889 = dma.done [#allocation5], 128
    $region45: #{tpu_custom_call.1} parent=1 // pred_fallthru
      _
    %6890 = vsyncpa [#allocation5], 1

</llo_original>
